<compile_context>
chip_gen: v7x
topology: tpu7x:2x2x1
jax: 0.10.0
libtpu: 0.0.40
codegen_flags: <defaults>
</compile_context>

<pallas_src>
import functools
import math

import jax
import jax.numpy as jnp
from jax.experimental import pallas as pl
from jax.experimental.pallas import tpu as pltpu


# ----------------------------------------------------------------------------
# Layout helpers: module boundary is NCHW; kernels run channel-last (N, L, C).
# ----------------------------------------------------------------------------
def nchw_to_nlc(x):
    B, C, H, W = x.shape
    return x.reshape(B, C, H * W).transpose(0, 2, 1)


def nlc_to_nchw(x, H, W):
    B, L, C = x.shape
    return x.transpose(0, 2, 1).reshape(B, C, H, W)


def _pick_tile(n, prefs):
    for t in prefs:
        if t <= n and n % t == 0:
            return t
    return n


# ----------------------------------------------------------------------------
# Kernel 1: fused CrossAttentionBlock (flash-style)
#   per (batch, q-tile): project Q full-width once; loop KV tiles with online
#   softmax (per-head running max / sum / acc); finalize = concat heads ->
#   full-width out-proj -> residual LayerNorm -> zero-init 1x1 conv proj.
# ----------------------------------------------------------------------------
def _fused_ca_kernel(q_ref, ctx_ref,
                     wq_ref, bq_ref, wk_ref, bk_ref, wv_ref, bv_ref,
                     wo_ref, bo_ref, g_ref, beta_ref, wp_ref, bp_ref,
                     o_ref,
                     qh_scr, m_scr, l_scr, acc_scr,
                     *, nh, scale):
    ki = pl.program_id(2)
    TQ = q_ref.shape[1]
    TK = ctx_ref.shape[1]
    C = q_ref.shape[2]
    d = C // nh

    # ---- init (first KV tile of this (batch, q-tile)): project Q once ----
    @pl.when(ki == 0)
    def _():
        qf = q_ref[0].astype(jnp.bfloat16)                                   # (TQ, C)
        qp = jnp.dot(qf, wq_ref[...], preferred_element_type=jnp.float32)
        qp = (qp + bq_ref[...].astype(jnp.float32)) * scale                  # (TQ, C)
        # head split: (TQ,C) -> (C,TQ) -> (nh,d,TQ) -> (nh,TQ,d)
        qh_scr[...] = jnp.swapaxes(qp.T.reshape(nh, d, TQ), 1, 2).astype(qh_scr.dtype)
        m_scr[...] = jnp.full_like(m_scr, -jnp.inf)
        l_scr[...] = jnp.zeros_like(l_scr)
        acc_scr[...] = jnp.zeros_like(acc_scr)

    # ---- per KV tile: full-width K/V projections, online softmax over heads ----
    cf = ctx_ref[0].astype(jnp.bfloat16)                                     # (TK, C)
    kp = jnp.dot(cf, wk_ref[...], preferred_element_type=jnp.float32) \
        + bk_ref[...].astype(jnp.float32)
    vp = jnp.dot(cf, wv_ref[...], preferred_element_type=jnp.float32) \
        + bv_ref[...].astype(jnp.float32)
    khT = kp.T.reshape(nh, d, TK).astype(jnp.bfloat16)                       # (nh, d, TK)
    vhT = vp.T.reshape(nh, d, TK).astype(jnp.bfloat16)                       # (nh, d, TK)

    qh = qh_scr[...]                                                         # (nh, TQ, d)
    s = jax.lax.dot_general(qh, khT, (((2,), (1,)), ((0,), (0,))),
                            preferred_element_type=jnp.float32)              # (nh, TQ, TK)

    m_prev = m_scr[...]                                                      # (nh, TQ, 1)
    m_new = jnp.maximum(m_prev, jnp.max(s, axis=-1, keepdims=True))
    alpha = jnp.exp(m_prev - m_new)
    pmat = jnp.exp(s - m_new)                                                # (nh, TQ, TK)
    l_scr[...] = alpha * l_scr[...] + jnp.sum(pmat, axis=-1, keepdims=True)
    pv = jax.lax.dot_general(pmat.astype(jnp.bfloat16), vhT,
                             (((2,), (2,)), ((0,), (0,))),
                             preferred_element_type=jnp.float32)             # (nh, TQ, d)
    acc_scr[...] = alpha * acc_scr[...] + pv
    m_scr[...] = m_new

    # ---- finalize: one full-width out-proj + residual LN + zero-init 1x1 proj ----
    @pl.when(ki == pl.num_programs(2) - 1)
    def _():
        inv_l = pl.reciprocal(l_scr[...], approx=True)                       # (nh, TQ, 1)
        oh = acc_scr[...] * inv_l                                            # (nh, TQ, d)
        # concat heads back to (TQ, C) with head-major columns (matches PyTorch MHA)
        o2 = jnp.swapaxes(oh, 1, 2).reshape(C, TQ).T                         # (TQ, C)
        attn = jnp.dot(o2.astype(jnp.bfloat16), wo_ref[...],
                       preferred_element_type=jnp.float32) \
            + bo_ref[...].astype(jnp.float32)
        y = attn + q_ref[0].astype(jnp.float32)                              # residual
        inv_c = 1.0 / C
        mu = jnp.sum(y, axis=-1, keepdims=True) * inv_c
        var = jnp.sum(y * y, axis=-1, keepdims=True) * inv_c - mu * mu
        yn = (y - mu) * jax.lax.rsqrt(var + 1e-5)
        yn = yn * g_ref[...].astype(jnp.float32) + beta_ref[...].astype(jnp.float32)
        out = jnp.dot(yn.astype(jnp.bfloat16), wp_ref[...],
                      preferred_element_type=jnp.float32) \
            + bp_ref[...].astype(jnp.float32)
        o_ref[0] = out.astype(o_ref.dtype)


def cross_attention_fused(q_nlc, ctx_nlc, p, *, tq=None, tk=None):
    """q_nlc, ctx_nlc: (N, L, C) channel-last. Returns (N, L, C)."""
    N, L, C = q_nlc.shape
    nh = int(p["nh"])
    d = C // nh
    prefs = (512, 256, 128, 64, 32, 16, 8)
    TQ = tq if tq is not None else _pick_tile(L, prefs)
    TK = tk if tk is not None else _pick_tile(L, prefs)
    grid = (N, L // TQ, L // TK)

    wspec = lambda shape: pl.BlockSpec(shape, lambda n, qi, ki: (0, 0))

    return pl.pallas_call(
        functools.partial(_fused_ca_kernel, nh=nh, scale=1.0 / math.sqrt(d)),
        out_shape=jax.ShapeDtypeStruct((N, L, C), q_nlc.dtype),
        grid_spec=pltpu.PrefetchScalarGridSpec(
            num_scalar_prefetch=0, grid=grid,
            in_specs=[
                pl.BlockSpec((1, TQ, C), lambda n, qi, ki: (n, qi, 0)),
                pl.BlockSpec((1, TK, C), lambda n, qi, ki: (n, ki, 0)),
                wspec((C, C)), wspec((1, C)),
                wspec((C, C)), wspec((1, C)),
                wspec((C, C)), wspec((1, C)),
                wspec((C, C)), wspec((1, C)),
                wspec((1, C)), wspec((1, C)),
                wspec((C, C)), wspec((1, C)),
            ],
            out_specs=pl.BlockSpec((1, TQ, C), lambda n, qi, ki: (n, qi, 0)),
            scratch_shapes=[pltpu.VMEM((nh, TQ, d), jnp.bfloat16),   # projected Q heads
                            pltpu.VMEM((nh, TQ, 1), jnp.float32),    # running max
                            pltpu.VMEM((nh, TQ, 1), jnp.float32),    # running sum
                            pltpu.VMEM((nh, TQ, d), jnp.float32)]),  # output acc
        compiler_params=pltpu.CompilerParams(
            dimension_semantics=("parallel", "parallel", "arbitrary")),
    )(q_nlc, ctx_nlc, p["wq"], p["bq"], p["wk"], p["bk"], p["wv"], p["bv"],
      p["wo"], p["bo"], p["ln_g"], p["ln_b"], p["wp"], p["bp"])


# ----------------------------------------------------------------------------
# Kernel 2: 1x1 conv (ZeroConv2d) fused with the `org + ctrl` residual add.
#   out = residual + x @ W^T + b   (per-pixel matmul, channel-last)
# ----------------------------------------------------------------------------
def _conv1x1_add_kernel(x_ref, r_ref, w_ref, b_ref, o_ref):
    x = x_ref[0].astype(jnp.bfloat16)                                        # (TL, Cin)
    y = jnp.dot(x, w_ref[...], preferred_element_type=jnp.float32) \
        + b_ref[...].astype(jnp.float32)
    o_ref[0] = (r_ref[0].astype(jnp.float32) + y).astype(o_ref.dtype)


def conv1x1_add(x_nlc, res_nlc, w_t, b, *, tl=None):
    N, L, Cin = x_nlc.shape
    Cout = w_t.shape[1]
    TL = tl if tl is not None else _pick_tile(L, (1024, 512, 256, 128, 64, 32, 16, 8))
    return pl.pallas_call(
        _conv1x1_add_kernel,
        out_shape=jax.ShapeDtypeStruct((N, L, Cout), res_nlc.dtype),
        grid_spec=pltpu.PrefetchScalarGridSpec(
            num_scalar_prefetch=0, grid=(N, L // TL),
            in_specs=[pl.BlockSpec((1, TL, Cin), lambda n, l: (n, l, 0)),
                      pl.BlockSpec((1, TL, Cout), lambda n, l: (n, l, 0)),
                      pl.BlockSpec((Cin, Cout), lambda n, l: (0, 0)),
                      pl.BlockSpec((1, Cout), lambda n, l: (0, 0))],
            out_specs=pl.BlockSpec((1, TL, Cout), lambda n, l: (n, l, 0))),
        compiler_params=pltpu.CompilerParams(
            dimension_semantics=("parallel", "parallel")),
    )(x_nlc, res_nlc, w_t, b)


# ----------------------------------------------------------------------------
# Kernel 3: attn1 + attn2 followed by F.layer_norm(x, x.shape[1:])
#   (whole-sample norm, no affine, eps=1e-5).  Channel-last, one-pass mean/var.
# ----------------------------------------------------------------------------
def _add_samplenorm_kernel(a_ref, b_ref, o_ref):
    y = a_ref[0].astype(jnp.float32) + b_ref[0].astype(jnp.float32)          # (L, C)
    n = y.shape[0] * y.shape[1]
    mu = jnp.sum(y) * (1.0 / n)
    var = jnp.sum(y * y) * (1.0 / n) - mu * mu
    o_ref[0] = ((y - mu) * jax.lax.rsqrt(var + 1e-5)).astype(o_ref.dtype)


def add_samplenorm(a_nlc, b_nlc):
    N, L, C = a_nlc.shape
    return pl.pallas_call(
        _add_samplenorm_kernel,
        out_shape=jax.ShapeDtypeStruct((N, L, C), a_nlc.dtype),
        grid_spec=pltpu.PrefetchScalarGridSpec(
            num_scalar_prefetch=0, grid=(N,),
            in_specs=[pl.BlockSpec((1, L, C), lambda n: (n, 0, 0))] * 2,
            out_specs=pl.BlockSpec((1, L, C), lambda n: (n, 0, 0))),
        compiler_params=pltpu.CompilerParams(dimension_semantics=("parallel",)),
    )(a_nlc, b_nlc)


# ----------------------------------------------------------------------------
# Kernel 4: converge = Linear(3D->2D) -> SiLU -> Linear(2D->D) -> LayerNorm(D)
#   Batch folded into the matmul M dimension.
# ----------------------------------------------------------------------------
def _converge_kernel(x_ref, w1_ref, b1_ref, w2_ref, b2_ref, g_ref, beta_ref, o_ref):
    x = x_ref[...].astype(jnp.bfloat16)                                      # (TM, 3D)
    h = jnp.dot(x, w1_ref[...], preferred_element_type=jnp.float32) \
        + b1_ref[...].astype(jnp.float32)
    h = h * jax.nn.sigmoid(h)                                                # SiLU
    y = jnp.dot(h.astype(jnp.bfloat16), w2_ref[...],
                preferred_element_type=jnp.float32) + b2_ref[...].astype(jnp.float32)
    D = y.shape[-1]
    mu = jnp.sum(y, axis=-1, keepdims=True) * (1.0 / D)
    var = jnp.sum(y * y, axis=-1, keepdims=True) * (1.0 / D) - mu * mu
    yn = (y - mu) * jax.lax.rsqrt(var + 1e-5)
    o_ref[...] = (yn * g_ref[...].astype(jnp.float32)
                  + beta_ref[...].astype(jnp.float32)).astype(o_ref.dtype)


def converge_apply(cond, p, *, tm=None):
    B, S, Din = cond.shape
    H2 = p["w1"].shape[1]
    D = p["w2"].shape[1]
    M = B * S
    x2 = cond.reshape(M, Din)
    TM = tm if tm is not None else _pick_tile(M, (512, 256, 128, 64, 32, 16, 8))
    out = pl.pallas_call(
        _converge_kernel,
        out_shape=jax.ShapeDtypeStruct((M, D), cond.dtype),
        grid_spec=pltpu.PrefetchScalarGridSpec(
            num_scalar_prefetch=0, grid=(M // TM,),
            in_specs=[pl.BlockSpec((TM, Din), lambda m: (m, 0)),
                      pl.BlockSpec((Din, H2), lambda m: (0, 0)),
                      pl.BlockSpec((1, H2), lambda m: (0, 0)),
                      pl.BlockSpec((H2, D), lambda m: (0, 0)),
                      pl.BlockSpec((1, D), lambda m: (0, 0)),
                      pl.BlockSpec((1, D), lambda m: (0, 0)),
                      pl.BlockSpec((1, D), lambda m: (0, 0))],
            out_specs=pl.BlockSpec((TM, D), lambda m: (m, 0))),
        compiler_params=pltpu.CompilerParams(dimension_semantics=("parallel",)),
    )(x2, p["w1"], p["b1"], p["w2"], p["b2"], p["ln_g"], p["ln_b"])
    return out.reshape(B, S, D)


# ----------------------------------------------------------------------------
# Parameter init (deterministic; shapes per ReImagen.__init__, scaled down).
# Weights stored in bf16 (MXU operands), accumulation in f32 inside kernels.
# ----------------------------------------------------------------------------
def init_cross_attn_params(key, C, nh):
    ks = jax.random.split(key, 4)
    in_w = 0.02 * jax.random.normal(ks[0], (3 * C, C), jnp.float32)
    in_b = 0.02 * jax.random.normal(ks[1], (3 * C,), jnp.float32)
    out_w = 0.02 * jax.random.normal(ks[2], (C, C), jnp.float32)
    out_b = 0.02 * jax.random.normal(ks[3], (C,), jnp.float32)
    bf = lambda a: a.astype(jnp.bfloat16)
    return dict(
        nh=nh,
        wq=bf(in_w[:C].T), bq=bf(in_b[:C].reshape(1, C)),
        wk=bf(in_w[C:2 * C].T), bk=bf(in_b[C:2 * C].reshape(1, C)),
        wv=bf(in_w[2 * C:].T), bv=bf(in_b[2 * C:].reshape(1, C)),
        wo=bf(out_w.T), bo=bf(out_b.reshape(1, C)),
        ln_g=bf(jnp.ones((1, C))), ln_b=bf(jnp.zeros((1, C))),
        wp=bf(jnp.zeros((C, C))),          # nn.init.zeros_(self.proj.weight)
        bp=bf(jnp.zeros((1, C))),          # nn.init.zeros_(self.proj.bias)
    )


def init_converge_params(key, D):
    ks = jax.random.split(key, 4)
    w1 = 0.02 * jax.random.normal(ks[0], (2 * D, 3 * D), jnp.float32)
    b1 = 0.02 * jax.random.normal(ks[1], (2 * D,), jnp.float32)
    w2 = 0.02 * jax.random.normal(ks[2], (D, 2 * D), jnp.float32)
    b2 = 0.02 * jax.random.normal(ks[3], (D,), jnp.float32)
    bf = lambda a: a.astype(jnp.bfloat16)
    return dict(w1=bf(w1.T), b1=bf(b1.reshape(1, -1)),
                w2=bf(w2.T), b2=bf(b2.reshape(1, -1)),
                ln_g=bf(jnp.ones((1, D))), ln_b=bf(jnp.zeros((1, D))))


def init_zero_conv_params(Cin, Cout):
    return dict(w=jnp.zeros((Cin, Cout), jnp.bfloat16),   # nn.init.zeros_
                b=jnp.zeros((1, Cout), jnp.bfloat16))


# ----------------------------------------------------------------------------
# ReImagen forward (ControlNet-specific trainable compute, Pallas-backed)
# ----------------------------------------------------------------------------
def reimagen_controlnet_forward(params, feats, *, tq=None, tk=None):
    ca = params["cross_attn"]                  # [2][n_levels]
    idx = 0                                    # demo: one cross-attention down level
    B, C, H, W = feats["ctrl_feat"].shape

    # Convert the external NCHW activations to channel-last ONCE at the boundary and
    # batch the three (query, context) pairs that share each weight set.
    q_stack = jnp.concatenate([nchw_to_nlc(feats["ctrl_feat"]),
                               nchw_to_nlc(feats["res"][0]),
                               nchw_to_nlc(feats["res"][1])], axis=0)        # (3B, L, C)
    ctx1 = jnp.concatenate([nchw_to_nlc(feats["sim1_feat"]),
                            nchw_to_nlc(feats["sim_res_one"][0]),
                            nchw_to_nlc(feats["sim_res_one"][1])], axis=0)
    ctx2 = jnp.concatenate([nchw_to_nlc(feats["sim2_feat"]),
                            nchw_to_nlc(feats["sim_res_two"][0]),
                            nchw_to_nlc(feats["sim_res_two"][1])], axis=0)

    attn_a = cross_attention_fused(q_stack, ctx1, ca[0][idx], tq=tq, tk=tk)  # (3B, L, C)
    attn_b = cross_attention_fused(q_stack, ctx2, ca[1][idx], tq=tq, tk=tk)

    # attn1 + attn2 then F.layer_norm over the whole sample (no affine).
    fused = add_samplenorm(attn_a, attn_b)                                   # (3B, L, C)
    ctrl_unet_out = nlc_to_nchw(fused[:B], H, W)
    res_norm = jnp.concatenate([fused[B:2 * B], fused[2 * B:3 * B]], axis=0)  # (2B, L, C)

    # zero-conv resnet heads fused with the org_res residual add (combined = org + conv(ctrl)).
    org_stack = jnp.concatenate([nchw_to_nlc(r) for r in feats["org_res"]], axis=0)
    comb = conv1x1_add(res_norm, org_stack,
                       params["zero_resnet"][idx]["w"], params["zero_resnet"][idx]["b"])
    combined = [nlc_to_nchw(comb[:B], H, W), nlc_to_nchw(comb[B:], H, W)]

    # mid zero conv fused with org_mid + ctrl_mid.
    Hm, Wm = feats["ctrl_mid_feat"].shape[2:]
    org_unet_out = nlc_to_nchw(
        conv1x1_add(nchw_to_nlc(feats["ctrl_mid_feat"]), nchw_to_nlc(feats["org_mid"]),
                    params["zero_mid"]["w"], params["zero_mid"]["b"]), Hm, Wm)

    # conditioning = converge(cat(text, clip0, clip1, dim=2))
    conditioning = jnp.concatenate(
        [feats["text_condn"], feats["clip0"], feats["clip1"]], axis=2)
    conditioning = converge_apply(conditioning, params["converge"])

    # TODO(synk): SD up_blocks / conv_norm_out / conv_act / conv_out (external frozen UNet).
    return org_unet_out, combined, conditioning, ctrl_unet_out


# ----------------------------------------------------------------------------
# Pure-JAX references for self-checking (bf16 weights upcast to f32).
# ----------------------------------------------------------------------------
def ca_reference(query, context, p):
    B, C, H, W = query.shape
    L = H * W
    nh = int(p["nh"])
    d = C // nh
    f = lambda a: a.astype(jnp.float32)
    qf = nchw_to_nlc(query)
    cf = nchw_to_nlc(context)
    q = qf @ f(p["wq"]) + f(p["bq"])
    k = cf @ f(p["wk"]) + f(p["bk"])
    v = cf @ f(p["wv"]) + f(p["bv"])
    qh = q.reshape(B, L, nh, d).transpose(0, 2, 1, 3)
    kh = k.reshape(B, L, nh, d).transpose(0, 2, 1, 3)
    vh = v.reshape(B, L, nh, d).transpose(0, 2, 1, 3)
    s = jnp.einsum("bhqd,bhkd->bhqk", qh, kh) / jnp.sqrt(jnp.float32(d))
    pa = jax.nn.softmax(s, axis=-1)
    o = jnp.einsum("bhqk,bhkd->bhqd", pa, vh).transpose(0, 2, 1, 3).reshape(B, L, C)
    y = o @ f(p["wo"]) + f(p["bo"]) + qf
    mu = y.mean(-1, keepdims=True)
    var = ((y - mu) ** 2).mean(-1, keepdims=True)
    yn = (y - mu) / jnp.sqrt(var + 1e-5) * f(p["ln_g"]) + f(p["ln_b"])
    out = yn @ f(p["wp"]) + f(p["bp"])
    return nlc_to_nchw(out, H, W)


def converge_reference(cond, p):
    f = lambda a: a.astype(jnp.float32)
    h = cond @ f(p["w1"]) + f(p["b1"])
    h = h * jax.nn.sigmoid(h)
    y = h @ f(p["w2"]) + f(p["b2"])
    mu = y.mean(-1, keepdims=True)
    var = ((y - mu) ** 2).mean(-1, keepdims=True)
    return (y - mu) / jnp.sqrt(var + 1e-5) * f(p["ln_g"]) + f(p["ln_b"])


# ----------------------------------------------------------------------------
if __name__ == "__main__":
    # Small stand-ins: embed_dim 128 (vs 320/640/1280), H=W=8 (vs 64..8),
    # seq 8 / hidden 64 (vs 77 / 768). num_heads=16 as in ReImagen.__init__.
    B, C, H, W = 2, 128, 8, 8
    NH = 16
    S, D = 8, 64
    Hm = Wm = 4
    n_levels = 1

    key = jax.random.PRNGKey(0)
    keys = iter(jax.random.split(key, 64))
    nrm = lambda shape: jax.random.normal(next(keys), shape, jnp.float32)

    params = {
        "cross_attn": [[init_cross_attn_params(next(keys), C, NH)
                        for _ in range(n_levels)] for _ in range(2)],
        "zero_resnet": [init_zero_conv_params(C, C) for _ in range(n_levels)],
        "zero_mid": init_zero_conv_params(C, C),
        "converge": init_converge_params(next(keys), D),
        # null entries (used only by the training-time conditioning drop; unused here)
        "img_null_entry": nrm((1, 4, 2 * H, 2 * W)),
        "txt_null_entry": nrm((1, S, D)),
        "clip_null_entry": nrm((1, S, D)),
    }

    # Stand-ins for the frozen SD UNet intermediate activations (external model).
    feats = {
        "text_condn": nrm((B, S, D)),
        "clip0": nrm((B, S, D)),
        "clip1": nrm((B, S, D)),
        "ctrl_feat": nrm((B, C, H, W)),
        "sim1_feat": nrm((B, C, H, W)),
        "sim2_feat": nrm((B, C, H, W)),
        "res": [nrm((B, C, H, W)) for _ in range(2)],
        "sim_res_one": [nrm((B, C, H, W)) for _ in range(2)],
        "sim_res_two": [nrm((B, C, H, W)) for _ in range(2)],
        "org_res": [nrm((B, C, H, W)) for _ in range(2)],
        "org_mid": nrm((B, C, Hm, Wm)),
        "ctrl_mid_feat": nrm((B, C, Hm, Wm)),
    }

    # tq=tk=32 exercises the multi-tile (flash) path at L=64.
    outs = reimagen_controlnet_forward(params, feats, tq=32, tk=32)
    outs = jax.block_until_ready(outs)
    org_out, combined, conditioning, ctrl_out = outs

    # --- numerical self-checks against pure-JAX references ---------------------
    # Cross-attention kernel (non-zero proj so the check is non-trivial; the module
    # keeps proj zero-initialized).
    test_ca = dict(params["cross_attn"][0][0])
    test_ca["wp"] = (0.05 * jax.random.normal(next(keys), (C, C), jnp.float32)).astype(jnp.bfloat16)
    test_ca["bp"] = (0.05 * jax.random.normal(next(keys), (1, C), jnp.float32)).astype(jnp.bfloat16)
    got = cross_attention_fused(nchw_to_nlc(feats["ctrl_feat"]),
                                nchw_to_nlc(feats["sim1_feat"]), test_ca, tq=32, tk=32)
    want = nchw_to_nlc(ca_reference(feats["ctrl_feat"], feats["sim1_feat"], test_ca))
    assert jnp.allclose(got, want, atol=3e-2, rtol=3e-2), "cross-attention kernel mismatch"

    cond_in = jnp.concatenate([feats["text_condn"], feats["clip0"], feats["clip1"]], axis=2)
    assert jnp.allclose(conditioning, converge_reference(cond_in, params["converge"]),
                        atol=3e-2, rtol=3e-2), "converge kernel mismatch"

    # Zero-init ControlNet heads -> zero contribution at init (ControlNet property).
    assert jnp.allclose(org_out, feats["org_mid"], atol=1e-5)
    for o, cmb in zip(feats["org_res"], combined):
        assert jnp.allclose(o, cmb, atol=1e-5)
    assert jnp.allclose(ctrl_out, 0.0, atol=1e-6)

    print("KERNEL_OK")
</pallas_src>

<mosaic_0001>
module attributes {stable_mosaic.version = 11 : i64} {
  func.func @_fused_ca_kernel(%arg0: i32, %arg1: i32, %arg2: i32, %arg3: memref<1x32x128xf32, #tpu.memory_space<vmem>>, %arg4: memref<1x32x128xf32, #tpu.memory_space<vmem>>, %arg5: memref<128x128xbf16, #tpu.memory_space<vmem>>, %arg6: memref<1x128xbf16, #tpu.memory_space<vmem>>, %arg7: memref<128x128xbf16, #tpu.memory_space<vmem>>, %arg8: memref<1x128xbf16, #tpu.memory_space<vmem>>, %arg9: memref<128x128xbf16, #tpu.memory_space<vmem>>, %arg10: memref<1x128xbf16, #tpu.memory_space<vmem>>, %arg11: memref<128x128xbf16, #tpu.memory_space<vmem>>, %arg12: memref<1x128xbf16, #tpu.memory_space<vmem>>, %arg13: memref<1x128xbf16, #tpu.memory_space<vmem>>, %arg14: memref<1x128xbf16, #tpu.memory_space<vmem>>, %arg15: memref<128x128xbf16, #tpu.memory_space<vmem>>, %arg16: memref<1x128xbf16, #tpu.memory_space<vmem>>, %arg17: memref<1x32x128xf32, #tpu.memory_space<vmem>>, %arg18: memref<16x32x8xbf16, #tpu.memory_space<vmem>>, %arg19: memref<16x32x1xf32, #tpu.memory_space<vmem>>, %arg20: memref<16x32x1xf32, #tpu.memory_space<vmem>>, %arg21: memref<16x32x8xf32, #tpu.memory_space<vmem>>) attributes {dimension_semantics = [#tpu.dimension_semantics<parallel>, #tpu.dimension_semantics<parallel>, #tpu.dimension_semantics<arbitrary>], iteration_bounds = array<i64: 6, 2, 2>, scalar_prefetch = 0 : i64, scratch_operands = 4 : i64, tpu.core_type = #tpu.core_type<tc>, window_params = [{transform_indices = @transform_0, window_bounds = array<i64: 1, 32, 128>}, {transform_indices = @transform_1, window_bounds = array<i64: 1, 32, 128>}, {pipeline_mode = #tpu.pipeline_mode<synchronous>, transform_indices = @transform_2, window_bounds = array<i64: 128, 128>}, {pipeline_mode = #tpu.pipeline_mode<synchronous>, transform_indices = @transform_3, window_bounds = array<i64: 1, 128>}, {pipeline_mode = #tpu.pipeline_mode<synchronous>, transform_indices = @transform_4, window_bounds = array<i64: 128, 128>}, {pipeline_mode = #tpu.pipeline_mode<synchronous>, transform_indices = @transform_5, window_bounds = array<i64: 1, 128>}, {pipeline_mode = #tpu.pipeline_mode<synchronous>, transform_indices = @transform_6, window_bounds = array<i64: 128, 128>}, {pipeline_mode = #tpu.pipeline_mode<synchronous>, transform_indices = @transform_7, window_bounds = array<i64: 1, 128>}, {pipeline_mode = #tpu.pipeline_mode<synchronous>, transform_indices = @transform_8, window_bounds = array<i64: 128, 128>}, {pipeline_mode = #tpu.pipeline_mode<synchronous>, transform_indices = @transform_9, window_bounds = array<i64: 1, 128>}, {pipeline_mode = #tpu.pipeline_mode<synchronous>, transform_indices = @transform_10, window_bounds = array<i64: 1, 128>}, {pipeline_mode = #tpu.pipeline_mode<synchronous>, transform_indices = @transform_11, window_bounds = array<i64: 1, 128>}, {pipeline_mode = #tpu.pipeline_mode<synchronous>, transform_indices = @transform_12, window_bounds = array<i64: 128, 128>}, {pipeline_mode = #tpu.pipeline_mode<synchronous>, transform_indices = @transform_13, window_bounds = array<i64: 1, 128>}, {transform_indices = @transform_14, window_bounds = array<i64: 1, 32, 128>}]} {
    %c0_i32 = arith.constant 0 : i32
    %0 = arith.cmpi eq, %arg2, %c0_i32 : i32
    %1 = arith.extui %0 : i1 to i32
    %c0_i32_0 = arith.constant 0 : i32
    %2 = arith.cmpi ne, %1, %c0_i32_0 : i32
    scf.if %2 {
      %c0_38 = arith.constant 0 : index
      %c0_39 = arith.constant 0 : index
      %c0_40 = arith.constant 0 : index
      %52 = vector.load %arg3[%c0_38, %c0_39, %c0_40] : memref<1x32x128xf32, #tpu.memory_space<vmem>>, vector<1x32x128xf32>
      %53 = vector.shape_cast %52 : vector<1x32x128xf32> to vector<32x128xf32>
      %54 = arith.truncf %53 : vector<32x128xf32> to vector<32x128xbf16>
      %c0_41 = arith.constant 0 : index
      %c0_42 = arith.constant 0 : index
      %55 = vector.load %arg5[%c0_41, %c0_42] : memref<128x128xbf16, #tpu.memory_space<vmem>>, vector<128x128xbf16>
      %cst_43 = arith.constant dense<0.000000e+00> : vector<32x128xf32>
      %56 = tpu.matmul %54, %55, %cst_43 {dimension_numbers = #tpu.dot_dimension_numbers<[1], [0], [0], [1], [0, 0, 1, 1], [], []>} : vector<32x128xbf16>, vector<128x128xbf16>, vector<32x128xf32> -> vector<32x128xf32>
      %c0_44 = arith.constant 0 : index
      %c0_45 = arith.constant 0 : index
      %57 = vector.load %arg6[%c0_44, %c0_45] : memref<1x128xbf16, #tpu.memory_space<vmem>>, vector<1x128xbf16>
      %58 = arith.extf %57 : vector<1x128xbf16> to vector<1x128xf32>
      %59 = vector.broadcast %58 : vector<1x128xf32> to vector<32x128xf32>
      %60 = arith.addf %56, %59 : vector<32x128xf32>
      %cst_46 = arith.constant 0.353553385 : f32
      %61 = vector.broadcast %cst_46 : f32 to vector<32x128xf32>
      %62 = arith.mulf %60, %61 : vector<32x128xf32>
      %63 = tpu.transpose %62, [1, 0] : vector<32x128xf32> -> vector<128x32xf32>
      %64 = vector.shape_cast %63 : vector<128x32xf32> to vector<16x8x32xf32>
      %65 = tpu.transpose %64, [0, 2, 1] : vector<16x8x32xf32> -> vector<16x32x8xf32>
      %66 = arith.truncf %65 : vector<16x32x8xf32> to vector<16x32x8xbf16>
      %c0_47 = arith.constant 0 : index
      %c0_48 = arith.constant 0 : index
      %c0_49 = arith.constant 0 : index
      %67 = vector.load %arg18[%c0_47, %c0_48, %c0_49] : memref<16x32x8xbf16, #tpu.memory_space<vmem>>, vector<16x32x8xbf16>
      tpu.vector_store %arg18[%c0_47, %c0_48, %c0_49], %66 {strides = array<i32>} : memref<16x32x8xbf16, #tpu.memory_space<vmem>>, vector<16x32x8xbf16>,
      %cst_50 = arith.constant 0xFF800000 : f32
      %68 = vector.broadcast %cst_50 : f32 to vector<16x32x1xf32>
      %c0_51 = arith.constant 0 : index
      %c0_52 = arith.constant 0 : index
      %c0_53 = arith.constant 0 : index
      %69 = vector.load %arg19[%c0_51, %c0_52, %c0_53] : memref<16x32x1xf32, #tpu.memory_space<vmem>>, vector<16x32x1xf32>
      tpu.vector_store %arg19[%c0_51, %c0_52, %c0_53], %68 {strides = array<i32>} : memref<16x32x1xf32, #tpu.memory_space<vmem>>, vector<16x32x1xf32>,
      %cst_54 = arith.constant 0.000000e+00 : f32
      %70 = vector.broadcast %cst_54 : f32 to vector<16x32x1xf32>
      %c0_55 = arith.constant 0 : index
      %c0_56 = arith.constant 0 : index
      %c0_57 = arith.constant 0 : index
      %71 = vector.load %arg20[%c0_55, %c0_56, %c0_57] : memref<16x32x1xf32, #tpu.memory_space<vmem>>, vector<16x32x1xf32>
      tpu.vector_store %arg20[%c0_55, %c0_56, %c0_57], %70 {strides = array<i32>} : memref<16x32x1xf32, #tpu.memory_space<vmem>>, vector<16x32x1xf32>,
      %cst_58 = arith.constant 0.000000e+00 : f32
      %72 = vector.broadcast %cst_58 : f32 to vector<16x32x8xf32>
      %c0_59 = arith.constant 0 : index
      %c0_60 = arith.constant 0 : index
      %c0_61 = arith.constant 0 : index
      %73 = vector.load %arg21[%c0_59, %c0_60, %c0_61] : memref<16x32x8xf32, #tpu.memory_space<vmem>>, vector<16x32x8xf32>
      tpu.vector_store %arg21[%c0_59, %c0_60, %c0_61], %72 {strides = array<i32>} : memref<16x32x8xf32, #tpu.memory_space<vmem>>, vector<16x32x8xf32>,
    } else {
    }
    %c0 = arith.constant 0 : index
    %c0_1 = arith.constant 0 : index
    %c0_2 = arith.constant 0 : index
    %3 = vector.load %arg4[%c0, %c0_1, %c0_2] : memref<1x32x128xf32, #tpu.memory_space<vmem>>, vector<1x32x128xf32>
    %4 = vector.shape_cast %3 : vector<1x32x128xf32> to vector<32x128xf32>
    %5 = arith.truncf %4 : vector<32x128xf32> to vector<32x128xbf16>
    %c0_3 = arith.constant 0 : index
    %c0_4 = arith.constant 0 : index
    %6 = vector.load %arg7[%c0_3, %c0_4] : memref<128x128xbf16, #tpu.memory_space<vmem>>, vector<128x128xbf16>
    %cst = arith.constant dense<0.000000e+00> : vector<32x128xf32>
    %7 = tpu.matmul %5, %6, %cst {dimension_numbers = #tpu.dot_dimension_numbers<[1], [0], [0], [1], [0, 0, 1, 1], [], []>} : vector<32x128xbf16>, vector<128x128xbf16>, vector<32x128xf32> -> vector<32x128xf32>
    %c0_5 = arith.constant 0 : index
    %c0_6 = arith.constant 0 : index
    %8 = vector.load %arg8[%c0_5, %c0_6] : memref<1x128xbf16, #tpu.memory_space<vmem>>, vector<1x128xbf16>
    %9 = arith.extf %8 : vector<1x128xbf16> to vector<1x128xf32>
    %10 = vector.broadcast %9 : vector<1x128xf32> to vector<32x128xf32>
    %11 = arith.addf %7, %10 : vector<32x128xf32>
    %c0_7 = arith.constant 0 : index
    %c0_8 = arith.constant 0 : index
    %12 = vector.load %arg9[%c0_7, %c0_8] : memref<128x128xbf16, #tpu.memory_space<vmem>>, vector<128x128xbf16>
    %cst_9 = arith.constant dense<0.000000e+00> : vector<32x128xf32>
    %13 = tpu.matmul %5, %12, %cst_9 {dimension_numbers = #tpu.dot_dimension_numbers<[1], [0], [0], [1], [0, 0, 1, 1], [], []>} : vector<32x128xbf16>, vector<128x128xbf16>, vector<32x128xf32> -> vector<32x128xf32>
    %c0_10 = arith.constant 0 : index
    %c0_11 = arith.constant 0 : index
    %14 = vector.load %arg10[%c0_10, %c0_11] : memref<1x128xbf16, #tpu.memory_space<vmem>>, vector<1x128xbf16>
    %15 = arith.extf %14 : vector<1x128xbf16> to vector<1x128xf32>
    %16 = vector.broadcast %15 : vector<1x128xf32> to vector<32x128xf32>
    %17 = arith.addf %13, %16 : vector<32x128xf32>
    %18 = tpu.transpose %11, [1, 0] : vector<32x128xf32> -> vector<128x32xf32>
    %19 = vector.shape_cast %18 : vector<128x32xf32> to vector<16x8x32xf32>
    %20 = arith.truncf %19 : vector<16x8x32xf32> to vector<16x8x32xbf16>
    %21 = tpu.transpose %17, [1, 0] : vector<32x128xf32> -> vector<128x32xf32>
    %22 = vector.shape_cast %21 : vector<128x32xf32> to vector<16x8x32xf32>
    %23 = arith.truncf %22 : vector<16x8x32xf32> to vector<16x8x32xbf16>
    %c0_12 = arith.constant 0 : index
    %c0_13 = arith.constant 0 : index
    %c0_14 = arith.constant 0 : index
    %24 = vector.load %arg18[%c0_12, %c0_13, %c0_14] : memref<16x32x8xbf16, #tpu.memory_space<vmem>>, vector<16x32x8xbf16>
    %cst_15 = arith.constant dense<0.000000e+00> : vector<16x32x32xf32>
    %25 = tpu.matmul %24, %20, %cst_15 {dimension_numbers = #tpu.dot_dimension_numbers<[2], [1], [1], [2], [0, 0, 0, 1, 1, 2], [0], [0]>} : vector<16x32x8xbf16>, vector<16x8x32xbf16>, vector<16x32x32xf32> -> vector<16x32x32xf32>
    %c0_16 = arith.constant 0 : index
    %c0_17 = arith.constant 0 : index
    %c0_18 = arith.constant 0 : index
    %26 = vector.load %arg19[%c0_16, %c0_17, %c0_18] : memref<16x32x1xf32, #tpu.memory_space<vmem>>, vector<16x32x1xf32>
    %cst_19 = arith.constant dense<0xFF800000> : vector<16x32xf32>
    %27 = vector.multi_reduction <maximumf>, %25, %cst_19 [2] : vector<16x32x32xf32> to vector<16x32xf32>
    %28 = vector.shape_cast %27 : vector<16x32xf32> to vector<16x32x1xf32>
    %29 = arith.maximumf %26, %28 : vector<16x32x1xf32>
    %30 = arith.subf %26, %29 : vector<16x32x1xf32>
    %31 = math.exp %30 : vector<16x32x1xf32>
    %32 = vector.broadcast %29 : vector<16x32x1xf32> to vector<16x32x32xf32>
    %33 = arith.subf %25, %32 : vector<16x32x32xf32>
    %34 = math.exp %33 : vector<16x32x32xf32>
    %c0_20 = arith.constant 0 : index
    %c0_21 = arith.constant 0 : index
    %c0_22 = arith.constant 0 : index
    %35 = vector.load %arg20[%c0_20, %c0_21, %c0_22] : memref<16x32x1xf32, #tpu.memory_space<vmem>>, vector<16x32x1xf32>
    %36 = arith.mulf %31, %35 : vector<16x32x1xf32>
    %cst_23 = arith.constant dense<0.000000e+00> : vector<16x32xf32>
    %37 = vector.multi_reduction <add>, %34, %cst_23 [2] : vector<16x32x32xf32> to vector<16x32xf32>
    %38 = vector.shape_cast %37 : vector<16x32xf32> to vector<16x32x1xf32>
    %39 = arith.addf %36, %38 : vector<16x32x1xf32>
    %c0_24 = arith.constant 0 : index
    %c0_25 = arith.constant 0 : index
    %c0_26 = arith.constant 0 : index
    %40 = vector.load %arg20[%c0_24, %c0_25, %c0_26] : memref<16x32x1xf32, #tpu.memory_space<vmem>>, vector<16x32x1xf32>
    tpu.vector_store %arg20[%c0_24, %c0_25, %c0_26], %39 {strides = array<i32>} : memref<16x32x1xf32, #tpu.memory_space<vmem>>, vector<16x32x1xf32>,
    %41 = arith.truncf %34 : vector<16x32x32xf32> to vector<16x32x32xbf16>
    %cst_27 = arith.constant dense<0.000000e+00> : vector<16x32x8xf32>
    %42 = tpu.matmul %41, %23, %cst_27 {dimension_numbers = #tpu.dot_dimension_numbers<[2], [2], [1], [1], [0, 0, 0, 1, 1, 1], [0], [0]>} : vector<16x32x32xbf16>, vector<16x8x32xbf16>, vector<16x32x8xf32> -> vector<16x32x8xf32>
    %c0_28 = arith.constant 0 : index
    %c0_29 = arith.constant 0 : index
    %c0_30 = arith.constant 0 : index
    %43 = vector.load %arg21[%c0_28, %c0_29, %c0_30] : memref<16x32x8xf32, #tpu.memory_space<vmem>>, vector<16x32x8xf32>
    %44 = vector.broadcast %31 : vector<16x32x1xf32> to vector<16x32x8xf32>
    %45 = arith.mulf %44, %43 : vector<16x32x8xf32>
    %46 = arith.addf %45, %42 : vector<16x32x8xf32>
    %c0_31 = arith.constant 0 : index
    %c0_32 = arith.constant 0 : index
    %c0_33 = arith.constant 0 : index
    %47 = vector.load %arg21[%c0_31, %c0_32, %c0_33] : memref<16x32x8xf32, #tpu.memory_space<vmem>>, vector<16x32x8xf32>
    tpu.vector_store %arg21[%c0_31, %c0_32, %c0_33], %46 {strides = array<i32>} : memref<16x32x8xf32, #tpu.memory_space<vmem>>, vector<16x32x8xf32>,
    %c0_34 = arith.constant 0 : index
    %c0_35 = arith.constant 0 : index
    %c0_36 = arith.constant 0 : index
    %48 = vector.load %arg19[%c0_34, %c0_35, %c0_36] : memref<16x32x1xf32, #tpu.memory_space<vmem>>, vector<16x32x1xf32>
    tpu.vector_store %arg19[%c0_34, %c0_35, %c0_36], %29 {strides = array<i32>} : memref<16x32x1xf32, #tpu.memory_space<vmem>>, vector<16x32x1xf32>,
    %c1_i32 = arith.constant 1 : i32
    %49 = arith.cmpi eq, %arg2, %c1_i32 : i32
    %50 = arith.extui %49 : i1 to i32
    %c0_i32_37 = arith.constant 0 : i32
    %51 = arith.cmpi ne, %50, %c0_i32_37 : i32
    scf.if %51 {
      %c0_38 = arith.constant 0 : index
      %c0_39 = arith.constant 0 : index
      %c0_40 = arith.constant 0 : index
      %52 = vector.load %arg20[%c0_38, %c0_39, %c0_40] : memref<16x32x1xf32, #tpu.memory_space<vmem>>, vector<16x32x1xf32>
      %53 = tpu.reciprocal %52 {approx = true} : vector<16x32x1xf32> -> vector<16x32x1xf32>
      %c0_41 = arith.constant 0 : index
      %c0_42 = arith.constant 0 : index
      %c0_43 = arith.constant 0 : index
      %54 = vector.load %arg21[%c0_41, %c0_42, %c0_43] : memref<16x32x8xf32, #tpu.memory_space<vmem>>, vector<16x32x8xf32>
      %55 = vector.broadcast %53 : vector<16x32x1xf32> to vector<16x32x8xf32>
      %56 = arith.mulf %54, %55 : vector<16x32x8xf32>
      %57 = tpu.transpose %56, [0, 2, 1] : vector<16x32x8xf32> -> vector<16x8x32xf32>
      %58 = vector.shape_cast %57 : vector<16x8x32xf32> to vector<128x32xf32>
      %59 = tpu.transpose %58, [1, 0] : vector<128x32xf32> -> vector<32x128xf32>
      %60 = arith.truncf %59 : vector<32x128xf32> to vector<32x128xbf16>
      %c0_44 = arith.constant 0 : index
      %c0_45 = arith.constant 0 : index
      %61 = vector.load %arg11[%c0_44, %c0_45] : memref<128x128xbf16, #tpu.memory_space<vmem>>, vector<128x128xbf16>
      %cst_46 = arith.constant dense<0.000000e+00> : vector<32x128xf32>
      %62 = tpu.matmul %60, %61, %cst_46 {dimension_numbers = #tpu.dot_dimension_numbers<[1], [0], [0], [1], [0, 0, 1, 1], [], []>} : vector<32x128xbf16>, vector<128x128xbf16>, vector<32x128xf32> -> vector<32x128xf32>
      %c0_47 = arith.constant 0 : index
      %c0_48 = arith.constant 0 : index
      %63 = vector.load %arg12[%c0_47, %c0_48] : memref<1x128xbf16, #tpu.memory_space<vmem>>, vector<1x128xbf16>
      %64 = arith.extf %63 : vector<1x128xbf16> to vector<1x128xf32>
      %65 = vector.broadcast %64 : vector<1x128xf32> to vector<32x128xf32>
      %66 = arith.addf %62, %65 : vector<32x128xf32>
      %c0_49 = arith.constant 0 : index
      %c0_50 = arith.constant 0 : index
      %c0_51 = arith.constant 0 : index
      %67 = vector.load %arg3[%c0_49, %c0_50, %c0_51] : memref<1x32x128xf32, #tpu.memory_space<vmem>>, vector<1x32x128xf32>
      %68 = vector.shape_cast %67 : vector<1x32x128xf32> to vector<32x128xf32>
      %69 = arith.addf %66, %68 : vector<32x128xf32>
      %cst_52 = arith.constant dense<0.000000e+00> : vector<32xf32>
      %70 = vector.multi_reduction <add>, %69, %cst_52 [1] : vector<32x128xf32> to vector<32xf32>
      %71 = vector.shape_cast %70 : vector<32xf32> to vector<32x1xf32>
      %cst_53 = arith.constant 7.812500e-03 : f32
      %72 = vector.broadcast %cst_53 : f32 to vector<32x1xf32>
      %73 = arith.mulf %71, %72 : vector<32x1xf32>
      %74 = arith.mulf %69, %69 : vector<32x128xf32>
      %cst_54 = arith.constant dense<0.000000e+00> : vector<32xf32>
      %75 = vector.multi_reduction <add>, %74, %cst_54 [1] : vector<32x128xf32> to vector<32xf32>
      %76 = vector.shape_cast %75 : vector<32xf32> to vector<32x1xf32>
      %cst_55 = arith.constant 7.812500e-03 : f32
      %77 = vector.broadcast %cst_55 : f32 to vector<32x1xf32>
      %78 = arith.mulf %76, %77 : vector<32x1xf32>
      %79 = arith.mulf %73, %73 : vector<32x1xf32>
      %80 = arith.subf %78, %79 : vector<32x1xf32>
      %81 = vector.broadcast %73 : vector<32x1xf32> to vector<32x128xf32>
      %82 = arith.subf %69, %81 : vector<32x128xf32>
      %cst_56 = arith.constant 9.99999974E-6 : f32
      %83 = vector.broadcast %cst_56 : f32 to vector<32x1xf32>
      %84 = arith.addf %80, %83 : vector<32x1xf32>
      %85 = math.rsqrt %84 : vector<32x1xf32>
      %86 = vector.broadcast %85 : vector<32x1xf32> to vector<32x128xf32>
      %87 = arith.mulf %82, %86 : vector<32x128xf32>
      %c0_57 = arith.constant 0 : index
      %c0_58 = arith.constant 0 : index
      %88 = vector.load %arg13[%c0_57, %c0_58] : memref<1x128xbf16, #tpu.memory_space<vmem>>, vector<1x128xbf16>
      %89 = arith.extf %88 : vector<1x128xbf16> to vector<1x128xf32>
      %90 = vector.broadcast %89 : vector<1x128xf32> to vector<32x128xf32>
      %91 = arith.mulf %87, %90 : vector<32x128xf32>
      %c0_59 = arith.constant 0 : index
      %c0_60 = arith.constant 0 : index
      %92 = vector.load %arg14[%c0_59, %c0_60] : memref<1x128xbf16, #tpu.memory_space<vmem>>, vector<1x128xbf16>
      %93 = arith.extf %92 : vector<1x128xbf16> to vector<1x128xf32>
      %94 = vector.broadcast %93 : vector<1x128xf32> to vector<32x128xf32>
      %95 = arith.addf %91, %94 : vector<32x128xf32>
      %96 = arith.truncf %95 : vector<32x128xf32> to vector<32x128xbf16>
      %c0_61 = arith.constant 0 : index
      %c0_62 = arith.constant 0 : index
      %97 = vector.load %arg15[%c0_61, %c0_62] : memref<128x128xbf16, #tpu.memory_space<vmem>>, vector<128x128xbf16>
      %cst_63 = arith.constant dense<0.000000e+00> : vector<32x128xf32>
      %98 = tpu.matmul %96, %97, %cst_63 {dimension_numbers = #tpu.dot_dimension_numbers<[1], [0], [0], [1], [0, 0, 1, 1], [], []>} : vector<32x128xbf16>, vector<128x128xbf16>, vector<32x128xf32> -> vector<32x128xf32>
      %c0_64 = arith.constant 0 : index
      %c0_65 = arith.constant 0 : index
      %99 = vector.load %arg16[%c0_64, %c0_65] : memref<1x128xbf16, #tpu.memory_space<vmem>>, vector<1x128xbf16>
      %100 = arith.extf %99 : vector<1x128xbf16> to vector<1x128xf32>
      %101 = vector.broadcast %100 : vector<1x128xf32> to vector<32x128xf32>
      %102 = arith.addf %98, %101 : vector<32x128xf32>
      %c0_66 = arith.constant 0 : index
      %c0_67 = arith.constant 0 : index
      %c0_68 = arith.constant 0 : index
      %103 = vector.load %arg17[%c0_66, %c0_67, %c0_68] : memref<1x32x128xf32, #tpu.memory_space<vmem>>, vector<1x32x128xf32>
      %104 = vector.shape_cast %103 : vector<1x32x128xf32> to vector<32x128xf32>
      %105 = vector.shape_cast %102 : vector<32x128xf32> to vector<1x32x128xf32>
      tpu.vector_store %arg17[%c0_66, %c0_67, %c0_68], %105 {strides = array<i32>} : memref<1x32x128xf32, #tpu.memory_space<vmem>>, vector<1x32x128xf32>,
    } else {
    }
    return
  }
  func.func @transform_0(%arg0: i32, %arg1: i32, %arg2: i32) -> (i32, i32, i32) {
    %c0_i32 = arith.constant 0 : i32
    %c0_i32_0 = arith.constant 0 : i32
    return %arg0, %arg1, %c0_i32 : i32, i32, i32
  }
  func.func @transform_1(%arg0: i32, %arg1: i32, %arg2: i32) -> (i32, i32, i32) {
    %c0_i32 = arith.constant 0 : i32
    %c0_i32_0 = arith.constant 0 : i32
    return %arg0, %arg2, %c0_i32 : i32, i32, i32
  }
  func.func @transform_2(%arg0: i32, %arg1: i32, %arg2: i32) -> (i32, i32) {
    %c0_i32 = arith.constant 0 : i32
    %c0_i32_0 = arith.constant 0 : i32
    %c0_i32_1 = arith.constant 0 : i32
    return %c0_i32, %c0_i32_0 : i32, i32
  }
  func.func @transform_3(%arg0: i32, %arg1: i32, %arg2: i32) -> (i32, i32) {
    %c0_i32 = arith.constant 0 : i32
    %c0_i32_0 = arith.constant 0 : i32
    %c0_i32_1 = arith.constant 0 : i32
    return %c0_i32, %c0_i32_0 : i32, i32
  }
  func.func @transform_4(%arg0: i32, %arg1: i32, %arg2: i32) -> (i32, i32) {
    %c0_i32 = arith.constant 0 : i32
    %c0_i32_0 = arith.constant 0 : i32
    %c0_i32_1 = arith.constant 0 : i32
    return %c0_i32, %c0_i32_0 : i32, i32
  }
  func.func @transform_5(%arg0: i32, %arg1: i32, %arg2: i32) -> (i32, i32) {
    %c0_i32 = arith.constant 0 : i32
    %c0_i32_0 = arith.constant 0 : i32
    %c0_i32_1 = arith.constant 0 : i32
    return %c0_i32, %c0_i32_0 : i32, i32
  }
  func.func @transform_6(%arg0: i32, %arg1: i32, %arg2: i32) -> (i32, i32) {
    %c0_i32 = arith.constant 0 : i32
    %c0_i32_0 = arith.constant 0 : i32
    %c0_i32_1 = arith.constant 0 : i32
    return %c0_i32, %c0_i32_0 : i32, i32
  }
  func.func @transform_7(%arg0: i32, %arg1: i32, %arg2: i32) -> (i32, i32) {
    %c0_i32 = arith.constant 0 : i32
    %c0_i32_0 = arith.constant 0 : i32
    %c0_i32_1 = arith.constant 0 : i32
    return %c0_i32, %c0_i32_0 : i32, i32
  }
  func.func @transform_8(%arg0: i32, %arg1: i32, %arg2: i32) -> (i32, i32) {
    %c0_i32 = arith.constant 0 : i32
    %c0_i32_0 = arith.constant 0 : i32
    %c0_i32_1 = arith.constant 0 : i32
    return %c0_i32, %c0_i32_0 : i32, i32
  }
  func.func @transform_9(%arg0: i32, %arg1: i32, %arg2: i32) -> (i32, i32) {
    %c0_i32 = arith.constant 0 : i32
    %c0_i32_0 = arith.constant 0 : i32
    %c0_i32_1 = arith.constant 0 : i32
    return %c0_i32, %c0_i32_0 : i32, i32
  }
  func.func @transform_10(%arg0: i32, %arg1: i32, %arg2: i32) -> (i32, i32) {
    %c0_i32 = arith.constant 0 : i32
    %c0_i32_0 = arith.constant 0 : i32
    %c0_i32_1 = arith.constant 0 : i32
    return %c0_i32, %c0_i32_0 : i32, i32
  }
  func.func @transform_11(%arg0: i32, %arg1: i32, %arg2: i32) -> (i32, i32) {
    %c0_i32 = arith.constant 0 : i32
    %c0_i32_0 = arith.constant 0 : i32
    %c0_i32_1 = arith.constant 0 : i32
    return %c0_i32, %c0_i32_0 : i32, i32
  }
  func.func @transform_12(%arg0: i32, %arg1: i32, %arg2: i32) -> (i32, i32) {
    %c0_i32 = arith.constant 0 : i32
    %c0_i32_0 = arith.constant 0 : i32
    %c0_i32_1 = arith.constant 0 : i32
    return %c0_i32, %c0_i32_0 : i32, i32
  }
  func.func @transform_13(%arg0: i32, %arg1: i32, %arg2: i32) -> (i32, i32) {
    %c0_i32 = arith.constant 0 : i32
    %c0_i32_0 = arith.constant 0 : i32
    %c0_i32_1 = arith.constant 0 : i32
    return %c0_i32, %c0_i32_0 : i32, i32
  }
  func.func @transform_14(%arg0: i32, %arg1: i32, %arg2: i32) -> (i32, i32, i32) {
    %c0_i32 = arith.constant 0 : i32
    %c0_i32_0 = arith.constant 0 : i32
    return %arg0, %arg1, %c0_i32 : i32, i32, i32
  }
}

</mosaic_0001>

<llo_original>
// kernel: tpu_custom_call.1
$region0: #{tpu_custom_call.1}
  #allocation0 [shape = 'u32[]', space=smem, size = 0x4, offset = 0x4, fixed_abs, tag = 'smem constant byte address 0x4 - core index']
  #allocation1 [shape = 'u32[144,128]{1,0:T(1,128)}', space=vmem, size = 0x12000, scoped, tag = 'internal scratch']
  #allocation2 [shape = 'bf16[16,32,8]{2,1,0:T(16,128)(2,1)}', space=vmem, size = 0x20000, scoped, tag = 'scratch operand']
  #allocation3 [shape = 'f32[16,32,1]{2,1,0:T(8,128)}', space=vmem, size = 0x40000, scoped, tag = 'scratch operand']
  #allocation4 [shape = 'f32[16,32,1]{2,1,0:T(8,128)}', space=vmem, size = 0x40000, scoped, tag = 'scratch operand']
  #allocation5 [shape = 'f32[16,32,8]{2,1,0:T(8,128)}', space=vmem, size = 0x40000, scoped, tag = 'scratch operand']
  %s0 = inlined_call_operand.hbm [shape: f32[6,64,128], index: 0, kind: input, shape index: {}]
  %s1 = inlined_call_operand.hbm [shape: f32[6,64,128], index: 1, kind: input, shape index: {}]
  %s2 = inlined_call_operand.hbm [shape: bf16[128,128], index: 2, kind: input, shape index: {}]
  %s3 = inlined_call_operand.vmem [shape: bf16[1,128], index: 3, kind: input, shape index: {}]
  %s4 = inlined_call_operand.hbm [shape: bf16[128,128], index: 4, kind: input, shape index: {}]
  %s5 = inlined_call_operand.vmem [shape: bf16[1,128], index: 5, kind: input, shape index: {}]
  %s6 = inlined_call_operand.hbm [shape: bf16[128,128], index: 6, kind: input, shape index: {}]
  %s7 = inlined_call_operand.vmem [shape: bf16[1,128], index: 7, kind: input, shape index: {}]
  %s8 = inlined_call_operand.hbm [shape: bf16[128,128], index: 8, kind: input, shape index: {}]
  %s9 = inlined_call_operand.vmem [shape: bf16[1,128], index: 9, kind: input, shape index: {}]
  %s10 = inlined_call_operand.vmem [shape: bf16[1,128], index: 10, kind: input, shape index: {}]
  %s11 = inlined_call_operand.vmem [shape: bf16[1,128], index: 11, kind: input, shape index: {}]
  %s12 = inlined_call_operand.hbm [shape: bf16[128,128], index: 12, kind: input, shape index: {}]
  %s13 = inlined_call_operand.vmem [shape: bf16[1,128], index: 13, kind: input, shape index: {}]
  %s14 = inlined_call_operand.hbm [shape: f32[6,64,128], index: 14, kind: output, shape index: {}]
  %s15 = sld [smem:[#allocation0]]
  $region125: #{tpu_custom_call.1} parent=0
    _
  %s17 = ssub.s32 1, %s15
  %s18 = scalar_select 0, %s17, %s15
  $region1: #{tpu_custom_call.1} parent=0
    #allocation6 [shape = 'u8[32768]{0}', space=vmem, size = 0x8000, scoped, tag = 'input window, operand 0']
    #allocation7 [shape = 's32[2]{0}', space=sflag, size = 0x8, scoped, tag = 'scoped memory for tpu_custom_call.1']
    #allocation8 [shape = 's32[2]{0}', space=sflag, size = 0x8, scoped, tag = 'scoped memory for tpu_custom_call.1']
    #allocation9 [shape = 'u8[32768]{0}', space=vmem, size = 0x8000, scoped, tag = 'input window, operand 1']
    #allocation10 [shape = 's32[2]{0}', space=sflag, size = 0x8, scoped, tag = 'scoped memory for tpu_custom_call.1']
    #allocation11 [shape = 'u8[32768]{0}', space=vmem, size = 0x8000, scoped, tag = 'input window, operand 2, single buffered']
    #allocation12 [shape = 'u8[32768]{0}', space=vmem, size = 0x8000, scoped, tag = 'input window, operand 4, single buffered']
    #allocation13 [shape = 's32[1]{0}', space=sflag, size = 0x4, scoped, tag = 'scoped memory for tpu_custom_call.1']
    #allocation14 [shape = 'u8[32768]{0}', space=vmem, size = 0x8000, scoped, tag = 'input window, operand 6, single buffered']
    #allocation15 [shape = 'u8[32768]{0}', space=vmem, size = 0x8000, scoped, tag = 'input window, operand 8, single buffered']
    #allocation16 [shape = 's32[1]{0}', space=sflag, size = 0x4, scoped, tag = 'scoped memory for tpu_custom_call.1']
    #allocation17 [shape = 'u8[32768]{0}', space=vmem, size = 0x8000, scoped, tag = 'input window, operand 12, single buffered']
    #allocation18 [shape = 'u8[32768]{0}', space=vmem, size = 0x8000, scoped, tag = 'output window, operand 0']
    %19 = vsyncpa [#allocation7], 0
    %s20 = scalar_lea.sflag [#allocation7], 1
    %21 = vsyncpa %s20, 0
    %22 = vsyncpa [#allocation10], 0
    %s23 = scalar_lea.sflag [#allocation10], 1
    %24 = vsyncpa %s23, 0
    %25 = vsyncpa [#allocation13], 0
    %26 = vsyncpa [#allocation16], 0
    %27 = vsyncpa [#allocation8], 0
    %s28 = scalar_lea.sflag [#allocation8], 1
    %29 = vsyncpa %s28, 0
    loop: start=0, step=1, limit=26
    $region2: #{tpu_custom_call.1} parent=1 // loop_pre_header
      _
    $region3: #{tpu_custom_call.1} parent=1 // loop_header
      %s31 = sphi 0, %s35
      %p32 = scmp.ge.s32.totalorder %s31, 26
      %s38 = sphi 0, %s57
      %s39 = sphi 0, %s53
      %s40 = sphi 0, %s49
      %s41 = sphi 0, %s38
      %s42 = sphi 0, %s39
      %s43 = sphi 0, %s40
      %s44 = sphi 0, %s41
      %s45 = sphi 0, %s42
      %s46 = sphi 0, %s43
      %s62 = sphi 0, %s64
      %s65 = sphi 0, %s62
      %s66 = sphi 0, %s65
      %s82 = sphi 0, %s66
      %s90 = sphi 0, %s92
      %s93 = sphi 0, %s90
      %s94 = sphi 0, %s93
      %s110 = sphi 0, %s94
      %s114 = sphi 0, %s114
      %s116 = sphi 0, %s114
      %s117 = sphi 0, %s116
      %s131 = sphi 0, %s117
      %s135 = sphi 0, %s135
      %s137 = sphi 0, %s135
      %s138 = sphi 0, %s137
      %s152 = sphi 0, %s138
      %s156 = sphi 0, %s156
      %s158 = sphi 0, %s156
      %s159 = sphi 0, %s158
      %s173 = sphi 0, %s159
      %s177 = sphi 0, %s177
      %s179 = sphi 0, %s177
      %s180 = sphi 0, %s179
      %s194 = sphi 0, %s180
      %s198 = sphi 0, %s198
      %s200 = sphi 0, %s198
      %s201 = sphi 0, %s200
      %s215 = sphi 0, %s201
      %s219 = sphi 0, %s219
      %s221 = sphi 0, %s219
      %s222 = sphi 0, %s221
      %s236 = sphi 0, %s222
      %s240 = sphi 0, %s240
      %s242 = sphi 0, %s240
      %s243 = sphi 0, %s242
      %s257 = sphi 0, %s243
      %s261 = sphi 0, %s261
      %s263 = sphi 0, %s261
      %s264 = sphi 0, %s263
      %s278 = sphi 0, %s264
      %s282 = sphi 0, %s282
      %s284 = sphi 0, %s282
      %s285 = sphi 0, %s284
      %s299 = sphi 0, %s285
      %s303 = sphi 0, %s303
      %s305 = sphi 0, %s303
      %s306 = sphi 0, %s305
      %s320 = sphi 0, %s306
      %s324 = sphi 0, %s324
      %s326 = sphi 0, %s324
      %s327 = sphi 0, %s326
      %s341 = sphi 0, %s327
      %s345 = sphi 0, %s345
      %s347 = sphi 0, %s345
      %s348 = sphi 0, %s347
      %s362 = sphi 0, %s348
      %s370 = sphi 0, %s372
      %s373 = sphi 0, %s370
      %s374 = sphi 0, %s373
      %s390 = sphi 0, %s374
    $region4: #{tpu_custom_call.1} parent=1 // loop_header_branch
      %34 = sbr.rel (%p32) target = $region8
    $region5: #{tpu_custom_call.1} parent=1 // loop_body
      %s36 = ssub.s32 %s31, 1
      %s37 = ssub.s32 %s31, 2
      %s47 = sadd.s32 1, %s40
      %p48 = scmp.ge.s32.totalorder %s47, 2
      %s49 = scalar_select %p48, 0, %s47
      %s50 = sadd.s32 1, %s39
      %s51 = scalar_select %p48, %s50, %s39
      %p52 = scmp.ge.s32.totalorder %s51, 2
      %s53 = scalar_select %p52, 0, %s51
      %s54 = sadd.s32 1, %s38
      %s55 = scalar_select %p52, %s54, %s38
      %p56 = scmp.ge.s32.totalorder %s55, 6
      %s57 = scalar_select %p56, 0, %s55
      %s58 = ssub.s32 %s38, %s57
      %s59 = ssub.s32 %s39, %s53
      %s60 = sor.u32 %s58, %s59
      %p61 = scmp.eq.s32.totalorder %s60, 0
      %s63 = sadd.s32 %s62, 1
      %s64 = scalar_select %p61, %s62, %s63
      %p67 = pneg %p61
      %p68 = scmp.eq.s32.totalorder %s31, 23
      %p69 = por %p67, %p68
      %p70 = scmp.ne.s32.totalorder %s62, %s65
      %p71 = scmp.eq.s32.totalorder %s31, 0
      %p72 = por %p70, %p71
      %p73 = scmp.ne.s32.totalorder %s62, %s65
      %p74 = scmp.eq.s32.totalorder %s36, 23
      %p75 = por %p73, %p74
      %p76 = scmp.ne.s32.totalorder %s65, %s66
      %p77 = scmp.eq.s32.totalorder %s36, 0
      %p78 = por %p76, %p77
      %p79 = scmp.ne.s32.totalorder %s65, %s66
      %p80 = scmp.eq.s32.totalorder %s37, 23
      %p81 = por %p79, %p80
      %p83 = scmp.ne.s32.totalorder %s66, %s82
      %p84 = scmp.eq.s32.totalorder %s37, 0
      %p85 = por %p83, %p84
      %s86 = ssub.s32 %s38, %s57
      %s87 = ssub.s32 %s40, %s49
      %s88 = sor.u32 %s86, %s87
      %p89 = scmp.eq.s32.totalorder %s88, 0
      %s91 = sadd.s32 %s90, 1
      %s92 = scalar_select %p89, %s90, %s91
      %p95 = pneg %p89
      %p96 = scmp.eq.s32.totalorder %s31, 23
      %p97 = por %p95, %p96
      %p98 = scmp.ne.s32.totalorder %s90, %s93
      %p99 = scmp.eq.s32.totalorder %s31, 0
      %p100 = por %p98, %p99
      %p101 = scmp.ne.s32.totalorder %s90, %s93
      %p102 = scmp.eq.s32.totalorder %s36, 23
      %p103 = por %p101, %p102
      %p104 = scmp.ne.s32.totalorder %s93, %s94
      %p105 = scmp.eq.s32.totalorder %s36, 0
      %p106 = por %p104, %p105
      %p107 = scmp.ne.s32.totalorder %s93, %s94
      %p108 = scmp.eq.s32.totalorder %s37, 23
      %p109 = por %p107, %p108
      %p111 = scmp.ne.s32.totalorder %s94, %s110
      %p112 = scmp.eq.s32.totalorder %s37, 0
      %p113 = por %p111, %p112
      %s115 = sadd.s32 %s114, 1
      %p118 = scmp.eq.s32.totalorder %s31, 23
      %p119 = scmp.ne.s32.totalorder %s114, %s116
      %p120 = scmp.eq.s32.totalorder %s31, 0
      %p121 = por %p119, %p120
      %p122 = scmp.ne.s32.totalorder %s114, %s116
      %p123 = scmp.eq.s32.totalorder %s36, 23
      %p124 = por %p122, %p123
      %p125 = scmp.ne.s32.totalorder %s116, %s117
      %p126 = scmp.eq.s32.totalorder %s36, 0
      %p127 = por %p125, %p126
      %p128 = scmp.ne.s32.totalorder %s116, %s117
      %p129 = scmp.eq.s32.totalorder %s37, 23
      %p130 = por %p128, %p129
      %p132 = scmp.ne.s32.totalorder %s117, %s131
      %p133 = scmp.eq.s32.totalorder %s37, 0
      %p134 = por %p132, %p133
      %s136 = sadd.s32 %s135, 1
      %p139 = scmp.eq.s32.totalorder %s31, 23
      %p140 = scmp.ne.s32.totalorder %s135, %s137
      %p141 = scmp.eq.s32.totalorder %s31, 0
      %p142 = por %p140, %p141
      %p143 = scmp.ne.s32.totalorder %s135, %s137
      %p144 = scmp.eq.s32.totalorder %s36, 23
      %p145 = por %p143, %p144
      %p146 = scmp.ne.s32.totalorder %s137, %s138
      %p147 = scmp.eq.s32.totalorder %s36, 0
      %p148 = por %p146, %p147
      %p149 = scmp.ne.s32.totalorder %s137, %s138
      %p150 = scmp.eq.s32.totalorder %s37, 23
      %p151 = por %p149, %p150
      %p153 = scmp.ne.s32.totalorder %s138, %s152
      %p154 = scmp.eq.s32.totalorder %s37, 0
      %p155 = por %p153, %p154
      %s157 = sadd.s32 %s156, 1
      %p160 = scmp.eq.s32.totalorder %s31, 23
      %p161 = scmp.ne.s32.totalorder %s156, %s158
      %p162 = scmp.eq.s32.totalorder %s31, 0
      %p163 = por %p161, %p162
      %p164 = scmp.ne.s32.totalorder %s156, %s158
      %p165 = scmp.eq.s32.totalorder %s36, 23
      %p166 = por %p164, %p165
      %p167 = scmp.ne.s32.totalorder %s158, %s159
      %p168 = scmp.eq.s32.totalorder %s36, 0
      %p169 = por %p167, %p168
      %p170 = scmp.ne.s32.totalorder %s158, %s159
      %p171 = scmp.eq.s32.totalorder %s37, 23
      %p172 = por %p170, %p171
      %p174 = scmp.ne.s32.totalorder %s159, %s173
      %p175 = scmp.eq.s32.totalorder %s37, 0
      %p176 = por %p174, %p175
      %s178 = sadd.s32 %s177, 1
      %p181 = scmp.eq.s32.totalorder %s31, 23
      %p182 = scmp.ne.s32.totalorder %s177, %s179
      %p183 = scmp.eq.s32.totalorder %s31, 0
      %p184 = por %p182, %p183
      %p185 = scmp.ne.s32.totalorder %s177, %s179
      %p186 = scmp.eq.s32.totalorder %s36, 23
      %p187 = por %p185, %p186
      %p188 = scmp.ne.s32.totalorder %s179, %s180
      %p189 = scmp.eq.s32.totalorder %s36, 0
      %p190 = por %p188, %p189
      %p191 = scmp.ne.s32.totalorder %s179, %s180
      %p192 = scmp.eq.s32.totalorder %s37, 23
      %p193 = por %p191, %p192
      %p195 = scmp.ne.s32.totalorder %s180, %s194
      %p196 = scmp.eq.s32.totalorder %s37, 0
      %p197 = por %p195, %p196
      %s199 = sadd.s32 %s198, 1
      %p202 = scmp.eq.s32.totalorder %s31, 23
      %p203 = scmp.ne.s32.totalorder %s198, %s200
      %p204 = scmp.eq.s32.totalorder %s31, 0
      %p205 = por %p203, %p204
      %p206 = scmp.ne.s32.totalorder %s198, %s200
      %p207 = scmp.eq.s32.totalorder %s36, 23
      %p208 = por %p206, %p207
      %p209 = scmp.ne.s32.totalorder %s200, %s201
      %p210 = scmp.eq.s32.totalorder %s36, 0
      %p211 = por %p209, %p210
      %p212 = scmp.ne.s32.totalorder %s200, %s201
      %p213 = scmp.eq.s32.totalorder %s37, 23
      %p214 = por %p212, %p213
      %p216 = scmp.ne.s32.totalorder %s201, %s215
      %p217 = scmp.eq.s32.totalorder %s37, 0
      %p218 = por %p216, %p217
      %s220 = sadd.s32 %s219, 1
      %p223 = scmp.eq.s32.totalorder %s31, 23
      %p224 = scmp.ne.s32.totalorder %s219, %s221
      %p225 = scmp.eq.s32.totalorder %s31, 0
      %p226 = por %p224, %p225
      %p227 = scmp.ne.s32.totalorder %s219, %s221
      %p228 = scmp.eq.s32.totalorder %s36, 23
      %p229 = por %p227, %p228
      %p230 = scmp.ne.s32.totalorder %s221, %s222
      %p231 = scmp.eq.s32.totalorder %s36, 0
      %p232 = por %p230, %p231
      %p233 = scmp.ne.s32.totalorder %s221, %s222
      %p234 = scmp.eq.s32.totalorder %s37, 23
      %p235 = por %p233, %p234
      %p237 = scmp.ne.s32.totalorder %s222, %s236
      %p238 = scmp.eq.s32.totalorder %s37, 0
      %p239 = por %p237, %p238
      %s241 = sadd.s32 %s240, 1
      %p244 = scmp.eq.s32.totalorder %s31, 23
      %p245 = scmp.ne.s32.totalorder %s240, %s242
      %p246 = scmp.eq.s32.totalorder %s31, 0
      %p247 = por %p245, %p246
      %p248 = scmp.ne.s32.totalorder %s240, %s242
      %p249 = scmp.eq.s32.totalorder %s36, 23
      %p250 = por %p248, %p249
      %p251 = scmp.ne.s32.totalorder %s242, %s243
      %p252 = scmp.eq.s32.totalorder %s36, 0
      %p253 = por %p251, %p252
      %p254 = scmp.ne.s32.totalorder %s242, %s243
      %p255 = scmp.eq.s32.totalorder %s37, 23
      %p256 = por %p254, %p255
      %p258 = scmp.ne.s32.totalorder %s243, %s257
      %p259 = scmp.eq.s32.totalorder %s37, 0
      %p260 = por %p258, %p259
      %s262 = sadd.s32 %s261, 1
      %p265 = scmp.eq.s32.totalorder %s31, 23
      %p266 = scmp.ne.s32.totalorder %s261, %s263
      %p267 = scmp.eq.s32.totalorder %s31, 0
      %p268 = por %p266, %p267
      %p269 = scmp.ne.s32.totalorder %s261, %s263
      %p270 = scmp.eq.s32.totalorder %s36, 23
      %p271 = por %p269, %p270
      %p272 = scmp.ne.s32.totalorder %s263, %s264
      %p273 = scmp.eq.s32.totalorder %s36, 0
      %p274 = por %p272, %p273
      %p275 = scmp.ne.s32.totalorder %s263, %s264
      %p276 = scmp.eq.s32.totalorder %s37, 23
      %p277 = por %p275, %p276
      %p279 = scmp.ne.s32.totalorder %s264, %s278
      %p280 = scmp.eq.s32.totalorder %s37, 0
      %p281 = por %p279, %p280
      %s283 = sadd.s32 %s282, 1
      %p286 = scmp.eq.s32.totalorder %s31, 23
      %p287 = scmp.ne.s32.totalorder %s282, %s284
      %p288 = scmp.eq.s32.totalorder %s31, 0
      %p289 = por %p287, %p288
      %p290 = scmp.ne.s32.totalorder %s282, %s284
      %p291 = scmp.eq.s32.totalorder %s36, 23
      %p292 = por %p290, %p291
      %p293 = scmp.ne.s32.totalorder %s284, %s285
      %p294 = scmp.eq.s32.totalorder %s36, 0
      %p295 = por %p293, %p294
      %p296 = scmp.ne.s32.totalorder %s284, %s285
      %p297 = scmp.eq.s32.totalorder %s37, 23
      %p298 = por %p296, %p297
      %p300 = scmp.ne.s32.totalorder %s285, %s299
      %p301 = scmp.eq.s32.totalorder %s37, 0
      %p302 = por %p300, %p301
      %s304 = sadd.s32 %s303, 1
      %p307 = scmp.eq.s32.totalorder %s31, 23
      %p308 = scmp.ne.s32.totalorder %s303, %s305
      %p309 = scmp.eq.s32.totalorder %s31, 0
      %p310 = por %p308, %p309
      %p311 = scmp.ne.s32.totalorder %s303, %s305
      %p312 = scmp.eq.s32.totalorder %s36, 23
      %p313 = por %p311, %p312
      %p314 = scmp.ne.s32.totalorder %s305, %s306
      %p315 = scmp.eq.s32.totalorder %s36, 0
      %p316 = por %p314, %p315
      %p317 = scmp.ne.s32.totalorder %s305, %s306
      %p318 = scmp.eq.s32.totalorder %s37, 23
      %p319 = por %p317, %p318
      %p321 = scmp.ne.s32.totalorder %s306, %s320
      %p322 = scmp.eq.s32.totalorder %s37, 0
      %p323 = por %p321, %p322
      %s325 = sadd.s32 %s324, 1
      %p328 = scmp.eq.s32.totalorder %s31, 23
      %p329 = scmp.ne.s32.totalorder %s324, %s326
      %p330 = scmp.eq.s32.totalorder %s31, 0
      %p331 = por %p329, %p330
      %p332 = scmp.ne.s32.totalorder %s324, %s326
      %p333 = scmp.eq.s32.totalorder %s36, 23
      %p334 = por %p332, %p333
      %p335 = scmp.ne.s32.totalorder %s326, %s327
      %p336 = scmp.eq.s32.totalorder %s36, 0
      %p337 = por %p335, %p336
      %p338 = scmp.ne.s32.totalorder %s326, %s327
      %p339 = scmp.eq.s32.totalorder %s37, 23
      %p340 = por %p338, %p339
      %p342 = scmp.ne.s32.totalorder %s327, %s341
      %p343 = scmp.eq.s32.totalorder %s37, 0
      %p344 = por %p342, %p343
      %s346 = sadd.s32 %s345, 1
      %p349 = scmp.eq.s32.totalorder %s31, 23
      %p350 = scmp.ne.s32.totalorder %s345, %s347
      %p351 = scmp.eq.s32.totalorder %s31, 0
      %p352 = por %p350, %p351
      %p353 = scmp.ne.s32.totalorder %s345, %s347
      %p354 = scmp.eq.s32.totalorder %s36, 23
      %p355 = por %p353, %p354
      %p356 = scmp.ne.s32.totalorder %s347, %s348
      %p357 = scmp.eq.s32.totalorder %s36, 0
      %p358 = por %p356, %p357
      %p359 = scmp.ne.s32.totalorder %s347, %s348
      %p360 = scmp.eq.s32.totalorder %s37, 23
      %p361 = por %p359, %p360
      %p363 = scmp.ne.s32.totalorder %s348, %s362
      %p364 = scmp.eq.s32.totalorder %s37, 0
      %p365 = por %p363, %p364
      %s366 = ssub.s32 %s38, %s57
      %s367 = ssub.s32 %s39, %s53
      %s368 = sor.u32 %s366, %s367
      %p369 = scmp.eq.s32.totalorder %s368, 0
      %s371 = sadd.s32 %s370, 1
      %s372 = scalar_select %p369, %s370, %s371
      %p375 = pneg %p369
      %p376 = scmp.eq.s32.totalorder %s31, 23
      %p377 = por %p375, %p376
      %p378 = scmp.ne.s32.totalorder %s370, %s373
      %p379 = scmp.eq.s32.totalorder %s31, 0
      %p380 = por %p378, %p379
      %p381 = scmp.ne.s32.totalorder %s370, %s373
      %p382 = scmp.eq.s32.totalorder %s36, 23
      %p383 = por %p381, %p382
      %p384 = scmp.ne.s32.totalorder %s373, %s374
      %p385 = scmp.eq.s32.totalorder %s36, 0
      %p386 = por %p384, %p385
      %p387 = scmp.ne.s32.totalorder %s373, %s374
      %p388 = scmp.eq.s32.totalorder %s37, 23
      %p389 = por %p387, %p388
      %p391 = scmp.ne.s32.totalorder %s374, %s390
      %p392 = scmp.eq.s32.totalorder %s37, 0
      %p393 = por %p391, %p392
      %p394 = scmp.le.s32.totalorder 1, %s31
      %p395 = scmp.lt.s32.totalorder %s31, 25
      %p396 = pnand %p394, %p395
      %p397 = pneg %p396
      // Predicated region
      $region9: #{tpu_custom_call.1} parent=5 // pred_check
        _
      $region10: #{tpu_custom_call.1} parent=5 // pred_check_branch
        %399 = sbr.rel (%p396) target = $region12
      $region11: #{tpu_custom_call.1} parent=5 // pred_region
        %s400 = ssub.s32 %s31, 1
        // Predicated region
        $region13: #{tpu_custom_call.1} parent=11 // pred_check
          %p401 = pneg %p127
        $region14: #{tpu_custom_call.1} parent=11 // pred_check_branch
          %403 = sbr.rel (%p401) target = $region16
        $region15: #{tpu_custom_call.1} parent=11 // pred_region
          %s405 = ssub.s32 1024, 1024
          %406 = vsyncadd [#allocation10], %s405
          %s407 = sshll.u32 [#allocation11], 4
          %s408 = int_to_ptr.vmem [resolvable:$true] %s407
          %413 = dma.hbm_to_vmem [thread:$0]  %s2, 1024, %s408, [#allocation10], 64, 64, 4
        $region16: #{tpu_custom_call.1} parent=11 // pred_fallthru
          _
        // Predicated region
        $region17: #{tpu_custom_call.1} parent=11 // pred_check
          %p414 = pneg %p148
        $region18: #{tpu_custom_call.1} parent=11 // pred_check_branch
          %416 = sbr.rel (%p414) target = $region20
        $region19: #{tpu_custom_call.1} parent=11 // pred_region
          _
        $region20: #{tpu_custom_call.1} parent=11 // pred_fallthru
          _
        // Predicated region
        $region21: #{tpu_custom_call.1} parent=11 // pred_check
          %p417 = pneg %p169
        $region22: #{tpu_custom_call.1} parent=11 // pred_check_branch
          %419 = sbr.rel (%p417) target = $region24
        $region23: #{tpu_custom_call.1} parent=11 // pred_region
          %s421 = ssub.s32 1024, 1024
          %422 = vsyncadd [#allocation13], %s421
          %s423 = sshll.u32 [#allocation12], 4
          %s424 = int_to_ptr.vmem [resolvable:$true] %s423
          %429 = dma.hbm_to_vmem [thread:$0]  %s4, 1024, %s424, [#allocation13], 64, 64, 4
        $region24: #{tpu_custom_call.1} parent=11 // pred_fallthru
          _
        // Predicated region
        $region25: #{tpu_custom_call.1} parent=11 // pred_check
          %p430 = pneg %p190
        $region26: #{tpu_custom_call.1} parent=11 // pred_check_branch
          %432 = sbr.rel (%p430) target = $region28
        $region27: #{tpu_custom_call.1} parent=11 // pred_region
          _
        $region28: #{tpu_custom_call.1} parent=11 // pred_fallthru
          _
        // Predicated region
        $region29: #{tpu_custom_call.1} parent=11 // pred_check
          %p433 = pneg %p211
        $region30: #{tpu_custom_call.1} parent=11 // pred_check_branch
          %435 = sbr.rel (%p433) target = $region32
        $region31: #{tpu_custom_call.1} parent=11 // pred_region
          %s437 = ssub.s32 1024, 1024
          %438 = vsyncadd [#allocation13], %s437
          %s439 = sshll.u32 [#allocation14], 4
          %s440 = int_to_ptr.vmem [resolvable:$true] %s439
          %445 = dma.hbm_to_vmem [thread:$0]  %s6, 1024, %s440, [#allocation13], 64, 64, 4
        $region32: #{tpu_custom_call.1} parent=11 // pred_fallthru
          _
        // Predicated region
        $region33: #{tpu_custom_call.1} parent=11 // pred_check
          %p446 = pneg %p232
        $region34: #{tpu_custom_call.1} parent=11 // pred_check_branch
          %448 = sbr.rel (%p446) target = $region36
        $region35: #{tpu_custom_call.1} parent=11 // pred_region
          _
        $region36: #{tpu_custom_call.1} parent=11 // pred_fallthru
          _
        // Predicated region
        $region37: #{tpu_custom_call.1} parent=11 // pred_check
          %p449 = pneg %p253
        $region38: #{tpu_custom_call.1} parent=11 // pred_check_branch
          %451 = sbr.rel (%p449) target = $region40
        $region39: #{tpu_custom_call.1} parent=11 // pred_region
          %s453 = ssub.s32 1024, 1024
          %454 = vsyncadd [#allocation16], %s453
          %s455 = sshll.u32 [#allocation15], 4
          %s456 = int_to_ptr.vmem [resolvable:$true] %s455
          %461 = dma.hbm_to_vmem [thread:$0]  %s8, 1024, %s456, [#allocation16], 64, 64, 4
        $region40: #{tpu_custom_call.1} parent=11 // pred_fallthru
          _
        // Predicated region
        $region41: #{tpu_custom_call.1} parent=11 // pred_check
          %p462 = pneg %p274
        $region42: #{tpu_custom_call.1} parent=11 // pred_check_branch
          %464 = sbr.rel (%p462) target = $region44
        $region43: #{tpu_custom_call.1} parent=11 // pred_region
          _
        $region44: #{tpu_custom_call.1} parent=11 // pred_fallthru
          _
        // Predicated region
        $region45: #{tpu_custom_call.1} parent=11 // pred_check
          %p465 = pneg %p295
        $region46: #{tpu_custom_call.1} parent=11 // pred_check_branch
          %467 = sbr.rel (%p465) target = $region48
        $region47: #{tpu_custom_call.1} parent=11 // pred_region
          _
        $region48: #{tpu_custom_call.1} parent=11 // pred_fallthru
          _
        // Predicated region
        $region49: #{tpu_custom_call.1} parent=11 // pred_check
          %p468 = pneg %p316
        $region50: #{tpu_custom_call.1} parent=11 // pred_check_branch
          %470 = sbr.rel (%p468) target = $region52
        $region51: #{tpu_custom_call.1} parent=11 // pred_region
          _
        $region52: #{tpu_custom_call.1} parent=11 // pred_fallthru
          _
        // Predicated region
        $region53: #{tpu_custom_call.1} parent=11 // pred_check
          %p471 = pneg %p337
        $region54: #{tpu_custom_call.1} parent=11 // pred_check_branch
          %473 = sbr.rel (%p471) target = $region56
        $region55: #{tpu_custom_call.1} parent=11 // pred_region
          %s475 = ssub.s32 1024, 1024
          %476 = vsyncadd [#allocation16], %s475
          %s477 = sshll.u32 [#allocation17], 4
          %s478 = int_to_ptr.vmem [resolvable:$true] %s477
          %483 = dma.hbm_to_vmem [thread:$0]  %s12, 1024, %s478, [#allocation16], 64, 64, 4
        $region56: #{tpu_custom_call.1} parent=11 // pred_fallthru
          _
        // Predicated region
        $region57: #{tpu_custom_call.1} parent=11 // pred_check
          %p484 = pneg %p358
        $region58: #{tpu_custom_call.1} parent=11 // pred_check_branch
          %486 = sbr.rel (%p484) target = $region60
        $region59: #{tpu_custom_call.1} parent=11 // pred_region
          _
        $region60: #{tpu_custom_call.1} parent=11 // pred_fallthru
          _
      $region12: #{tpu_custom_call.1} parent=5 // pred_fallthru
        _
      %p487 = scmp.lt.s32.totalorder %s31, 24
      // Predicated region
      $region61: #{tpu_custom_call.1} parent=5 // pred_check
        %p488 = pneg %p487
      $region62: #{tpu_custom_call.1} parent=5 // pred_check_branch
        %490 = sbr.rel (%p488) target = $region64
      $region63: #{tpu_custom_call.1} parent=5 // pred_region
        // Predicated region
        $region65: #{tpu_custom_call.1} parent=63 // pred_check
          %p491 = pneg %p72
        $region66: #{tpu_custom_call.1} parent=63 // pred_check_branch
          %493 = sbr.rel (%p491) target = $region68
        $region67: #{tpu_custom_call.1} parent=63 // pred_region
          %s494 = sand.u32 %s62, 1
          %s495 = scalar_lea.sflag [#allocation7], %s494
          %s496 = sand.u32 %s62, 1
          %s497 = smul.addr %s496, 32
          %s498 = scalar_lea.vmem [#allocation6], %s497
          %s499 = smul.u32 4, %s39
          %s501 = ssub.s32 512, 512
          %502 = vsyncadd %s495, %s501
          %s503 = smul.addr %s38, 8
          %s504 = sadd.s32 %s499, %s503
          %s505 = smul.addr %s504, 128
          %s506 = scalar_lea.hbm %s0, %s505
          %s507 = sshll.u32 %s498, 4
          %s508 = int_to_ptr.vmem [resolvable:$true] %s507
          %513 = dma.hbm_to_vmem [thread:$0]  %s506, 512, %s508, %s495, 128, 128, 8
        $region68: #{tpu_custom_call.1} parent=63 // pred_fallthru
          _
        // Predicated region
        $region69: #{tpu_custom_call.1} parent=63 // pred_check
          %p514 = pneg %p100
        $region70: #{tpu_custom_call.1} parent=63 // pred_check_branch
          %516 = sbr.rel (%p514) target = $region72
        $region71: #{tpu_custom_call.1} parent=63 // pred_region
          %s517 = sand.u32 %s31, 1
          %s518 = scalar_lea.sflag [#allocation10], %s517
          %s519 = sand.u32 %s90, 1
          %s520 = smul.addr %s519, 32
          %s521 = scalar_lea.vmem [#allocation9], %s520
          %s522 = smul.u32 4, %s40
          %s524 = ssub.s32 512, 512
          %525 = vsyncadd %s518, %s524
          %s526 = smul.addr %s38, 8
          %s527 = sadd.s32 %s522, %s526
          %s528 = smul.addr %s527, 128
          %s529 = scalar_lea.hbm %s1, %s528
          %s530 = sshll.u32 %s521, 4
          %s531 = int_to_ptr.vmem [resolvable:$true] %s530
          %536 = dma.hbm_to_vmem [thread:$0]  %s529, 512, %s531, %s518, 128, 128, 8
        $region72: #{tpu_custom_call.1} parent=63 // pred_fallthru
          _
      $region64: #{tpu_custom_call.1} parent=5 // pred_fallthru
        _
      %p537 = scmp.le.s32.totalorder 1, %s31
      %p538 = scmp.lt.s32.totalorder %s31, 25
      %p539 = pnand %p537, %p538
      %p540 = pneg %p539
      // Predicated region
      $region73: #{tpu_custom_call.1} parent=5 // pred_check
        _
      $region74: #{tpu_custom_call.1} parent=5 // pred_check_branch
        %542 = sbr.rel (%p539) target = $region76
      $region75: #{tpu_custom_call.1} parent=5 // pred_region
        %s543 = ssub.s32 %s31, 1
        %s544 = sand.u32 %s65, 1
        %s545 = scalar_lea.sflag [#allocation7], %s544
        %s546 = sand.u32 %s65, 1
        %s547 = smul.addr %s546, 32
        %s548 = scalar_lea.vmem [#allocation6], %s547
        // Predicated region
        $region77: #{tpu_custom_call.1} parent=75 // pred_check
          %p549 = pneg %p78
        $region78: #{tpu_custom_call.1} parent=75 // pred_check_branch
          %551 = sbr.rel (%p549) target = $region80
        $region79: #{tpu_custom_call.1} parent=75 // pred_region
          %552 = dma.done %s545, 512
        $region80: #{tpu_custom_call.1} parent=75 // pred_fallthru
          _
        %s553 = sand.u32 %s36, 1
        %s554 = scalar_lea.sflag [#allocation10], %s553
        %s555 = sand.u32 %s93, 1
        %s556 = smul.addr %s555, 32
        %s557 = scalar_lea.vmem [#allocation9], %s556
        // Predicated region
        $region81: #{tpu_custom_call.1} parent=75 // pred_check
          %p558 = pneg %p106
        $region82: #{tpu_custom_call.1} parent=75 // pred_check_branch
          %560 = sbr.rel (%p558) target = $region84
        $region83: #{tpu_custom_call.1} parent=75 // pred_region
          %561 = dma.done %s554, 512
        $region84: #{tpu_custom_call.1} parent=75 // pred_fallthru
          _
        // Predicated region
        $region85: #{tpu_custom_call.1} parent=75 // pred_check
          %p562 = pneg %p127
        $region86: #{tpu_custom_call.1} parent=75 // pred_check_branch
          %564 = sbr.rel (%p562) target = $region88
        $region87: #{tpu_custom_call.1} parent=75 // pred_region
          %565 = dma.done [#allocation10], 1024
        $region88: #{tpu_custom_call.1} parent=75 // pred_fallthru
          _
        // Predicated region
        $region89: #{tpu_custom_call.1} parent=75 // pred_check
          %p566 = pneg %p169
        $region90: #{tpu_custom_call.1} parent=75 // pred_check_branch
          %568 = sbr.rel (%p566) target = $region92
        $region91: #{tpu_custom_call.1} parent=75 // pred_region
          %569 = dma.done [#allocation13], 1024
        $region92: #{tpu_custom_call.1} parent=75 // pred_fallthru
          _
        // Predicated region
        $region93: #{tpu_custom_call.1} parent=75 // pred_check
          %p570 = pneg %p211
        $region94: #{tpu_custom_call.1} parent=75 // pred_check_branch
          %572 = sbr.rel (%p570) target = $region96
        $region95: #{tpu_custom_call.1} parent=75 // pred_region
          %573 = dma.done [#allocation13], 1024
        $region96: #{tpu_custom_call.1} parent=75 // pred_fallthru
          _
        // Predicated region
        $region97: #{tpu_custom_call.1} parent=75 // pred_check
          %p574 = pneg %p253
        $region98: #{tpu_custom_call.1} parent=75 // pred_check_branch
          %576 = sbr.rel (%p574) target = $region100
        $region99: #{tpu_custom_call.1} parent=75 // pred_region
          %577 = dma.done [#allocation16], 1024
        $region100: #{tpu_custom_call.1} parent=75 // pred_fallthru
          _
        // Predicated region
        $region101: #{tpu_custom_call.1} parent=75 // pred_check
          %p578 = pneg %p337
        $region102: #{tpu_custom_call.1} parent=75 // pred_check_branch
          %580 = sbr.rel (%p578) target = $region104
        $region103: #{tpu_custom_call.1} parent=75 // pred_region
          %581 = dma.done [#allocation16], 1024
        $region104: #{tpu_custom_call.1} parent=75 // pred_fallthru
          _
        %s582 = sand.u32 %s65, 1
        %s583 = scalar_lea.sflag [#allocation7], %s582
        %s584 = sand.u32 %s65, 1
        %s585 = smul.addr %s584, 32
        %s586 = scalar_lea.vmem [#allocation6], %s585
        %p587 = pneg %p78
        %p588 = pneg %p75
        %s589 = sand.u32 %s36, 1
        %s590 = scalar_lea.sflag [#allocation10], %s589
        %s591 = sand.u32 %s93, 1
        %s592 = smul.addr %s591, 32
        %s593 = scalar_lea.vmem [#allocation9], %s592
        %p594 = pneg %p106
        %p595 = pneg %p103
        %p596 = pneg %p127
        %p597 = pneg %p124
        %p598 = pneg %p148
        %p599 = pneg %p145
        %p600 = pneg %p169
        %p601 = pneg %p166
        %p602 = pneg %p190
        %p603 = pneg %p187
        %p604 = pneg %p211
        %p605 = pneg %p208
        %p606 = pneg %p232
        %p607 = pneg %p229
        %p608 = pneg %p253
        %p609 = pneg %p250
        %p610 = pneg %p274
        %p611 = pneg %p271
        %p612 = pneg %p295
        %p613 = pneg %p292
        %p614 = pneg %p316
        %p615 = pneg %p313
        %p616 = pneg %p337
        %p617 = pneg %p334
        %p618 = pneg %p358
        %p619 = pneg %p355
        %p620 = pneg %p386
        %p621 = pneg %p383
        %s622 = sand.u32 %s373, 1
        %s623 = scalar_lea.sflag [#allocation8], %s622
        %s624 = sand.u32 %s373, 1
        %s625 = smul.addr %s624, 32
        %s626 = scalar_lea.vmem [#allocation18], %s625
        %s627 = smul.u32 4, %s42
        %s628 = smul.u32 4, %s43
        %s629 = smul.u32 4, %s42
        %p631 = scmp.eq.s32.totalorder %s43, 0
        // Predicated region
        $region105: #{tpu_custom_call.1} parent=75 // pred_check
          %p632 = pneg %p631
        $region106: #{tpu_custom_call.1} parent=75 // pred_check_branch
          %634 = sbr.rel (%p632) target = $region108
        $region107: #{tpu_custom_call.1} parent=75 // pred_region
          %v635 = vld [vmem:[%s548] sm:$0xff]
          %v636 = vld [vmem:[%s548 + $0x8] sm:$0xff]
          %v637 = vld [vmem:[%s548 + $0x10] sm:$0xff]
          %v638 = vld [vmem:[%s548 + $0x18] sm:$0xff]
          %v639 = vpack.c.bf16 %v636, %v635
          %v640 = vpack.c.bf16 %v638, %v637
          %v641 = vld [vmem:[#allocation11] sm:$0xf]
          %v642 = vld [vmem:[#allocation11 + $0x4] sm:$0xf]
          %v643 = vld [vmem:[#allocation11 + $0x8] sm:$0xf]
          %v644 = vld [vmem:[#allocation11 + $0xc] sm:$0xf]
          %v645 = vld [vmem:[#allocation11 + $0x10] sm:$0xf]
          %v646 = vld [vmem:[#allocation11 + $0x14] sm:$0xf]
          %v647 = vld [vmem:[#allocation11 + $0x18] sm:$0xf]
          %v648 = vld [vmem:[#allocation11 + $0x1c] sm:$0xf]
          %v649 = vld [vmem:[#allocation11 + $0x20] sm:$0xf]
          %v650 = vld [vmem:[#allocation11 + $0x24] sm:$0xf]
          %v651 = vld [vmem:[#allocation11 + $0x28] sm:$0xf]
          %v652 = vld [vmem:[#allocation11 + $0x2c] sm:$0xf]
          %v653 = vld [vmem:[#allocation11 + $0x30] sm:$0xf]
          %v654 = vld [vmem:[#allocation11 + $0x34] sm:$0xf]
          %v655 = vld [vmem:[#allocation11 + $0x38] sm:$0xf]
          %v656 = vld [vmem:[#allocation11 + $0x3c] sm:$0xf]
          %v657 = vld [vmem:[%s3] sm:$0x1]
          %v658 = vunpack.c.l.bf16 %v657
          %v659 = vlaneseq
          %v660 = vshrl.u32 %v659, 7
          %v661 = vsub.s32 0, %v660
          %v662 = vrot.slane %v658, %v661
          %v679 = vunpack.c.l.b16 %v641
          %v680 = vunpack.c.l.b16 %v642
          %v681 = vunpack.c.l.b16 %v643
          %v682 = vunpack.c.l.b16 %v644
          %v683 = vunpack.c.l.b16 %v645
          %v684 = vunpack.c.l.b16 %v646
          %v685 = vunpack.c.l.b16 %v647
          %v686 = vunpack.c.l.b16 %v648
          %v687 = vunpack.c.l.b16 %v649
          %v688 = vunpack.c.l.b16 %v650
          %v689 = vunpack.c.l.b16 %v651
          %v690 = vunpack.c.l.b16 %v652
          %v691 = vunpack.c.l.b16 %v653
          %v692 = vunpack.c.l.b16 %v654
          %v693 = vunpack.c.l.b16 %v655
          %v694 = vunpack.c.l.b16 %v656
          %v695 = vpack.c.b16 %v680, %v679
          %v696 = vpack.c.b16 %v682, %v681
          %v697 = vpack.c.b16 %v684, %v683
          %v698 = vpack.c.b16 %v686, %v685
          %v699 = vpack.c.b16 %v688, %v687
          %v700 = vpack.c.b16 %v690, %v689
          %v701 = vpack.c.b16 %v692, %v691
          %v702 = vpack.c.b16 %v694, %v693
          %711 = vmatprep.subr.bf16.mxu0 0
          %712 = vmatpush1.bf16.msra.mxu0 %v695
          %713 = vmatprep.subr.bf16.mxu0 0
          %714 = vmatpush1.bf16.msra.mxu0 %v696
          %715 = vmatprep.subr.bf16.mxu0 0
          %716 = vmatpush1.bf16.msra.mxu0 %v697
          %717 = vmatprep.subr.bf16.mxu0 0
          %718 = vmatpush1.bf16.msra.mxu0 %v698
          %719 = vmatprep.subr.bf16.mxu0 0
          %720 = vmatpush1.bf16.msra.mxu0 %v699
          %721 = vmatprep.subr.bf16.mxu0 0
          %722 = vmatpush1.bf16.msra.mxu0 %v700
          %723 = vmatprep.subr.bf16.mxu0 0
          %724 = vmatpush1.bf16.msra.mxu0 %v701
          %725 = vmatprep.subr.bf16.mxu0 0
          %726 = vmatpush1.bf16.msra.mxu0 %v702
          %727 = vmatprep.subr.bf16.mxu0 0
          %728 = vmatpush1.bf16.msra.mxu0 0
          %729 = vmatprep.subr.bf16.mxu0 0
          %730 = vmatpush1.bf16.msra.mxu0 0
          %731 = vmatprep.subr.bf16.mxu0 0
          %732 = vmatpush1.bf16.msra.mxu0 0
          %733 = vmatprep.subr.bf16.mxu0 0
          %734 = vmatpush1.bf16.msra.mxu0 0
          %735 = vmatprep.subr.bf16.mxu0 0
          %736 = vmatpush1.bf16.msra.mxu0 0
          %737 = vmatprep.subr.bf16.mxu0 0
          %738 = vmatpush1.bf16.msra.mxu0 0
          %739 = vmatprep.subr.bf16.mxu0 0
          %740 = vmatpush1.bf16.msra.mxu0 0
          %741 = vmatprep.subr.bf16.mxu0 0
          %742 = vmatpush1.bf16.msra.mxu0 0
          %743 = vmatprep.mubr.bf16.mxu0 0
          %744 = vmatmul.mubr.bf16.gmra.mrb[0].mxu0 %v639
          %v745 = vpop.f32.mrb[0].mxu0
          %v746 = vadd.f32 %v662, %v745
          %v747 = vpop.f32.mrb[0].mxu0
          %v748 = vpop.f32.mrb[0].mxu0
          %v749 = vadd.f32 %v662, %v748
          %v750 = vpop.f32.mrb[0].mxu0
          %751 = vmatprep.mubr.bf16.mxu0 0
          %752 = vmatmul.mubr.bf16.gmra.mrb[0].mxu0 %v640
          %v753 = vpop.f32.mrb[0].mxu0
          %v754 = vadd.f32 %v662, %v753
          %v755 = vpop.f32.mrb[0].mxu0
          %v756 = vpop.f32.mrb[0].mxu0
          %v757 = vadd.f32 %v662, %v756
          %v758 = vpop.f32.mrb[0].mxu0
          %759 = vdwg.mxu0
          %v760 = vmul.f32 %v746, 0.35355338
          %v761 = vmul.f32 %v749, 0.35355338
          %v762 = vmul.f32 %v754, 0.35355338
          %v763 = vmul.f32 %v757, 0.35355338
          %764 = vxpose.xlu0.b32.start [1/16] %v760, 128
          %765 = vxpose.xlu0.b32.cont [2/16] %v761, 128
          %766 = vxpose.xlu0.b32.cont [3/16] %v762, 128
          %767 = vxpose.xlu0.b32.cont [4/16] %v763, 128
          %768 = vxpose.xlu0.b32.cont [5/16] 0.0, 128
          %769 = vxpose.xlu0.b32.cont [6/16] 0.0, 128
          %770 = vxpose.xlu0.b32.cont [7/16] 0.0, 128
          %771 = vxpose.xlu0.b32.cont [8/16] 0.0, 128
          %772 = vxpose.xlu0.b32.cont [9/16] 0.0, 128
          %773 = vxpose.xlu0.b32.cont [10/16] 0.0, 128
          %774 = vxpose.xlu0.b32.cont [11/16] 0.0, 128
          %775 = vxpose.xlu0.b32.cont [12/16] 0.0, 128
          %776 = vxpose.xlu0.b32.cont [13/16] 0.0, 128
          %777 = vxpose.xlu0.b32.cont [14/16] 0.0, 128
          %778 = vxpose.xlu0.b32.cont [15/16] 0.0, 128
          %779 = vxpose.xlu0.b32.end [16/16] 0.0, 128
          %v780 = vpop.trf.xlu0
          %v781 = vpop.trf.xlu0
          %v782 = vpop.trf.xlu0
          %v783 = vpop.trf.xlu0
          %v784 = vpop.trf.xlu0
          %v785 = vpop.trf.xlu0
          %v786 = vpop.trf.xlu0
          %v787 = vpop.trf.xlu0
          %v788 = vpop.trf.xlu0
          %v789 = vpop.trf.xlu0
          %v790 = vpop.trf.xlu0
          %v791 = vpop.trf.xlu0
          %v792 = vpop.trf.xlu0
          %v793 = vpop.trf.xlu0
          %v794 = vpop.trf.xlu0
          %v795 = vpop.trf.xlu0
          %796 = vxpose.xlu0.b32.start [1/16] %v780, 128
          %797 = vxpose.xlu0.b32.cont [2/16] 0.0, 128
          %798 = vxpose.xlu0.b32.cont [3/16] 0.0, 128
          %799 = vxpose.xlu0.b32.cont [4/16] 0.0, 128
          %800 = vxpose.xlu0.b32.cont [5/16] 0.0, 128
          %801 = vxpose.xlu0.b32.cont [6/16] 0.0, 128
          %802 = vxpose.xlu0.b32.cont [7/16] 0.0, 128
          %803 = vxpose.xlu0.b32.cont [8/16] 0.0, 128
          %804 = vxpose.xlu0.b32.cont [9/16] 0.0, 128
          %805 = vxpose.xlu0.b32.cont [10/16] 0.0, 128
          %806 = vxpose.xlu0.b32.cont [11/16] 0.0, 128
          %807 = vxpose.xlu0.b32.cont [12/16] 0.0, 128
          %808 = vxpose.xlu0.b32.cont [13/16] 0.0, 128
          %809 = vxpose.xlu0.b32.cont [14/16] 0.0, 128
          %810 = vxpose.xlu0.b32.cont [15/16] 0.0, 128
          %811 = vxpose.xlu0.b32.end [16/16] 0.0, 128
          %v812 = vpop.trf.xlu0
          %v813 = vpop.trf.xlu0
          %v814 = vpop.trf.xlu0
          %v815 = vpop.trf.xlu0
          %v816 = vpop.trf.xlu0
          %v817 = vpop.trf.xlu0
          %v818 = vpop.trf.xlu0
          %v819 = vpop.trf.xlu0
          %v820 = vpop.trf.xlu0
          %v821 = vpop.trf.xlu0
          %v822 = vpop.trf.xlu0
          %v823 = vpop.trf.xlu0
          %v824 = vpop.trf.xlu0
          %v825 = vpop.trf.xlu0
          %v826 = vpop.trf.xlu0
          %v827 = vpop.trf.xlu0
          %828 = vxpose.xlu0.b32.start [1/16] %v781, 128
          %829 = vxpose.xlu0.b32.cont [2/16] 0.0, 128
          %830 = vxpose.xlu0.b32.cont [3/16] 0.0, 128
          %831 = vxpose.xlu0.b32.cont [4/16] 0.0, 128
          %832 = vxpose.xlu0.b32.cont [5/16] 0.0, 128
          %833 = vxpose.xlu0.b32.cont [6/16] 0.0, 128
          %834 = vxpose.xlu0.b32.cont [7/16] 0.0, 128
          %835 = vxpose.xlu0.b32.cont [8/16] 0.0, 128
          %836 = vxpose.xlu0.b32.cont [9/16] 0.0, 128
          %837 = vxpose.xlu0.b32.cont [10/16] 0.0, 128
          %838 = vxpose.xlu0.b32.cont [11/16] 0.0, 128
          %839 = vxpose.xlu0.b32.cont [12/16] 0.0, 128
          %840 = vxpose.xlu0.b32.cont [13/16] 0.0, 128
          %841 = vxpose.xlu0.b32.cont [14/16] 0.0, 128
          %842 = vxpose.xlu0.b32.cont [15/16] 0.0, 128
          %843 = vxpose.xlu0.b32.end [16/16] 0.0, 128
          %v844 = vpop.trf.xlu0
          %v845 = vpop.trf.xlu0
          %v846 = vpop.trf.xlu0
          %v847 = vpop.trf.xlu0
          %v848 = vpop.trf.xlu0
          %v849 = vpop.trf.xlu0
          %v850 = vpop.trf.xlu0
          %v851 = vpop.trf.xlu0
          %v852 = vpop.trf.xlu0
          %v853 = vpop.trf.xlu0
          %v854 = vpop.trf.xlu0
          %v855 = vpop.trf.xlu0
          %v856 = vpop.trf.xlu0
          %v857 = vpop.trf.xlu0
          %v858 = vpop.trf.xlu0
          %v859 = vpop.trf.xlu0
          %860 = vxpose.xlu0.b32.start [1/16] %v782, 128
          %861 = vxpose.xlu0.b32.cont [2/16] 0.0, 128
          %862 = vxpose.xlu0.b32.cont [3/16] 0.0, 128
          %863 = vxpose.xlu0.b32.cont [4/16] 0.0, 128
          %864 = vxpose.xlu0.b32.cont [5/16] 0.0, 128
          %865 = vxpose.xlu0.b32.cont [6/16] 0.0, 128
          %866 = vxpose.xlu0.b32.cont [7/16] 0.0, 128
          %867 = vxpose.xlu0.b32.cont [8/16] 0.0, 128
          %868 = vxpose.xlu0.b32.cont [9/16] 0.0, 128
          %869 = vxpose.xlu0.b32.cont [10/16] 0.0, 128
          %870 = vxpose.xlu0.b32.cont [11/16] 0.0, 128
          %871 = vxpose.xlu0.b32.cont [12/16] 0.0, 128
          %872 = vxpose.xlu0.b32.cont [13/16] 0.0, 128
          %873 = vxpose.xlu0.b32.cont [14/16] 0.0, 128
          %874 = vxpose.xlu0.b32.cont [15/16] 0.0, 128
          %875 = vxpose.xlu0.b32.end [16/16] 0.0, 128
          %v876 = vpop.trf.xlu0
          %v877 = vpop.trf.xlu0
          %v878 = vpop.trf.xlu0
          %v879 = vpop.trf.xlu0
          %v880 = vpop.trf.xlu0
          %v881 = vpop.trf.xlu0
          %v882 = vpop.trf.xlu0
          %v883 = vpop.trf.xlu0
          %v884 = vpop.trf.xlu0
          %v885 = vpop.trf.xlu0
          %v886 = vpop.trf.xlu0
          %v887 = vpop.trf.xlu0
          %v888 = vpop.trf.xlu0
          %v889 = vpop.trf.xlu0
          %v890 = vpop.trf.xlu0
          %v891 = vpop.trf.xlu0
          %892 = vxpose.xlu0.b32.start [1/16] %v783, 128
          %893 = vxpose.xlu0.b32.cont [2/16] 0.0, 128
          %894 = vxpose.xlu0.b32.cont [3/16] 0.0, 128
          %895 = vxpose.xlu0.b32.cont [4/16] 0.0, 128
          %896 = vxpose.xlu0.b32.cont [5/16] 0.0, 128
          %897 = vxpose.xlu0.b32.cont [6/16] 0.0, 128
          %898 = vxpose.xlu0.b32.cont [7/16] 0.0, 128
          %899 = vxpose.xlu0.b32.cont [8/16] 0.0, 128
          %900 = vxpose.xlu0.b32.cont [9/16] 0.0, 128
          %901 = vxpose.xlu0.b32.cont [10/16] 0.0, 128
          %902 = vxpose.xlu0.b32.cont [11/16] 0.0, 128
          %903 = vxpose.xlu0.b32.cont [12/16] 0.0, 128
          %904 = vxpose.xlu0.b32.cont [13/16] 0.0, 128
          %905 = vxpose.xlu0.b32.cont [14/16] 0.0, 128
          %906 = vxpose.xlu0.b32.cont [15/16] 0.0, 128
          %907 = vxpose.xlu0.b32.end [16/16] 0.0, 128
          %v908 = vpop.trf.xlu0
          %v909 = vpop.trf.xlu0
          %v910 = vpop.trf.xlu0
          %v911 = vpop.trf.xlu0
          %v912 = vpop.trf.xlu0
          %v913 = vpop.trf.xlu0
          %v914 = vpop.trf.xlu0
          %v915 = vpop.trf.xlu0
          %v916 = vpop.trf.xlu0
          %v917 = vpop.trf.xlu0
          %v918 = vpop.trf.xlu0
          %v919 = vpop.trf.xlu0
          %v920 = vpop.trf.xlu0
          %v921 = vpop.trf.xlu0
          %v922 = vpop.trf.xlu0
          %v923 = vpop.trf.xlu0
          %924 = vxpose.xlu0.b32.start [1/16] %v784, 128
          %925 = vxpose.xlu0.b32.cont [2/16] 0.0, 128
          %926 = vxpose.xlu0.b32.cont [3/16] 0.0, 128
          %927 = vxpose.xlu0.b32.cont [4/16] 0.0, 128
          %928 = vxpose.xlu0.b32.cont [5/16] 0.0, 128
          %929 = vxpose.xlu0.b32.cont [6/16] 0.0, 128
          %930 = vxpose.xlu0.b32.cont [7/16] 0.0, 128
          %931 = vxpose.xlu0.b32.cont [8/16] 0.0, 128
          %932 = vxpose.xlu0.b32.cont [9/16] 0.0, 128
          %933 = vxpose.xlu0.b32.cont [10/16] 0.0, 128
          %934 = vxpose.xlu0.b32.cont [11/16] 0.0, 128
          %935 = vxpose.xlu0.b32.cont [12/16] 0.0, 128
          %936 = vxpose.xlu0.b32.cont [13/16] 0.0, 128
          %937 = vxpose.xlu0.b32.cont [14/16] 0.0, 128
          %938 = vxpose.xlu0.b32.cont [15/16] 0.0, 128
          %939 = vxpose.xlu0.b32.end [16/16] 0.0, 128
          %v940 = vpop.trf.xlu0
          %v941 = vpop.trf.xlu0
          %v942 = vpop.trf.xlu0
          %v943 = vpop.trf.xlu0
          %v944 = vpop.trf.xlu0
          %v945 = vpop.trf.xlu0
          %v946 = vpop.trf.xlu0
          %v947 = vpop.trf.xlu0
          %v948 = vpop.trf.xlu0
          %v949 = vpop.trf.xlu0
          %v950 = vpop.trf.xlu0
          %v951 = vpop.trf.xlu0
          %v952 = vpop.trf.xlu0
          %v953 = vpop.trf.xlu0
          %v954 = vpop.trf.xlu0
          %v955 = vpop.trf.xlu0
          %956 = vxpose.xlu0.b32.start [1/16] %v785, 128
          %957 = vxpose.xlu0.b32.cont [2/16] 0.0, 128
          %958 = vxpose.xlu0.b32.cont [3/16] 0.0, 128
          %959 = vxpose.xlu0.b32.cont [4/16] 0.0, 128
          %960 = vxpose.xlu0.b32.cont [5/16] 0.0, 128
          %961 = vxpose.xlu0.b32.cont [6/16] 0.0, 128
          %962 = vxpose.xlu0.b32.cont [7/16] 0.0, 128
          %963 = vxpose.xlu0.b32.cont [8/16] 0.0, 128
          %964 = vxpose.xlu0.b32.cont [9/16] 0.0, 128
          %965 = vxpose.xlu0.b32.cont [10/16] 0.0, 128
          %966 = vxpose.xlu0.b32.cont [11/16] 0.0, 128
          %967 = vxpose.xlu0.b32.cont [12/16] 0.0, 128
          %968 = vxpose.xlu0.b32.cont [13/16] 0.0, 128
          %969 = vxpose.xlu0.b32.cont [14/16] 0.0, 128
          %970 = vxpose.xlu0.b32.cont [15/16] 0.0, 128
          %971 = vxpose.xlu0.b32.end [16/16] 0.0, 128
          %v972 = vpop.trf.xlu0
          %v973 = vpop.trf.xlu0
          %v974 = vpop.trf.xlu0
          %v975 = vpop.trf.xlu0
          %v976 = vpop.trf.xlu0
          %v977 = vpop.trf.xlu0
          %v978 = vpop.trf.xlu0
          %v979 = vpop.trf.xlu0
          %v980 = vpop.trf.xlu0
          %v981 = vpop.trf.xlu0
          %v982 = vpop.trf.xlu0
          %v983 = vpop.trf.xlu0
          %v984 = vpop.trf.xlu0
          %v985 = vpop.trf.xlu0
          %v986 = vpop.trf.xlu0
          %v987 = vpop.trf.xlu0
          %988 = vxpose.xlu0.b32.start [1/16] %v786, 128
          %989 = vxpose.xlu0.b32.cont [2/16] 0.0, 128
          %990 = vxpose.xlu0.b32.cont [3/16] 0.0, 128
          %991 = vxpose.xlu0.b32.cont [4/16] 0.0, 128
          %992 = vxpose.xlu0.b32.cont [5/16] 0.0, 128
          %993 = vxpose.xlu0.b32.cont [6/16] 0.0, 128
          %994 = vxpose.xlu0.b32.cont [7/16] 0.0, 128
          %995 = vxpose.xlu0.b32.cont [8/16] 0.0, 128
          %996 = vxpose.xlu0.b32.cont [9/16] 0.0, 128
          %997 = vxpose.xlu0.b32.cont [10/16] 0.0, 128
          %998 = vxpose.xlu0.b32.cont [11/16] 0.0, 128
          %999 = vxpose.xlu0.b32.cont [12/16] 0.0, 128
          %1000 = vxpose.xlu0.b32.cont [13/16] 0.0, 128
          %1001 = vxpose.xlu0.b32.cont [14/16] 0.0, 128
          %1002 = vxpose.xlu0.b32.cont [15/16] 0.0, 128
          %1003 = vxpose.xlu0.b32.end [16/16] 0.0, 128
          %v1004 = vpop.trf.xlu0
          %v1005 = vpop.trf.xlu0
          %v1006 = vpop.trf.xlu0
          %v1007 = vpop.trf.xlu0
          %v1008 = vpop.trf.xlu0
          %v1009 = vpop.trf.xlu0
          %v1010 = vpop.trf.xlu0
          %v1011 = vpop.trf.xlu0
          %v1012 = vpop.trf.xlu0
          %v1013 = vpop.trf.xlu0
          %v1014 = vpop.trf.xlu0
          %v1015 = vpop.trf.xlu0
          %v1016 = vpop.trf.xlu0
          %v1017 = vpop.trf.xlu0
          %v1018 = vpop.trf.xlu0
          %v1019 = vpop.trf.xlu0
          %1020 = vxpose.xlu0.b32.start [1/16] %v787, 128
          %1021 = vxpose.xlu0.b32.cont [2/16] 0.0, 128
          %1022 = vxpose.xlu0.b32.cont [3/16] 0.0, 128
          %1023 = vxpose.xlu0.b32.cont [4/16] 0.0, 128
          %1024 = vxpose.xlu0.b32.cont [5/16] 0.0, 128
          %1025 = vxpose.xlu0.b32.cont [6/16] 0.0, 128
          %1026 = vxpose.xlu0.b32.cont [7/16] 0.0, 128
          %1027 = vxpose.xlu0.b32.cont [8/16] 0.0, 128
          %1028 = vxpose.xlu0.b32.cont [9/16] 0.0, 128
          %1029 = vxpose.xlu0.b32.cont [10/16] 0.0, 128
          %1030 = vxpose.xlu0.b32.cont [11/16] 0.0, 128
          %1031 = vxpose.xlu0.b32.cont [12/16] 0.0, 128
          %1032 = vxpose.xlu0.b32.cont [13/16] 0.0, 128
          %1033 = vxpose.xlu0.b32.cont [14/16] 0.0, 128
          %1034 = vxpose.xlu0.b32.cont [15/16] 0.0, 128
          %1035 = vxpose.xlu0.b32.end [16/16] 0.0, 128
          %v1036 = vpop.trf.xlu0
          %v1037 = vpop.trf.xlu0
          %v1038 = vpop.trf.xlu0
          %v1039 = vpop.trf.xlu0
          %v1040 = vpop.trf.xlu0
          %v1041 = vpop.trf.xlu0
          %v1042 = vpop.trf.xlu0
          %v1043 = vpop.trf.xlu0
          %v1044 = vpop.trf.xlu0
          %v1045 = vpop.trf.xlu0
          %v1046 = vpop.trf.xlu0
          %v1047 = vpop.trf.xlu0
          %v1048 = vpop.trf.xlu0
          %v1049 = vpop.trf.xlu0
          %v1050 = vpop.trf.xlu0
          %v1051 = vpop.trf.xlu0
          %1052 = vxpose.xlu0.b32.start [1/16] %v788, 128
          %1053 = vxpose.xlu0.b32.cont [2/16] 0.0, 128
          %1054 = vxpose.xlu0.b32.cont [3/16] 0.0, 128
          %1055 = vxpose.xlu0.b32.cont [4/16] 0.0, 128
          %1056 = vxpose.xlu0.b32.cont [5/16] 0.0, 128
          %1057 = vxpose.xlu0.b32.cont [6/16] 0.0, 128
          %1058 = vxpose.xlu0.b32.cont [7/16] 0.0, 128
          %1059 = vxpose.xlu0.b32.cont [8/16] 0.0, 128
          %1060 = vxpose.xlu0.b32.cont [9/16] 0.0, 128
          %1061 = vxpose.xlu0.b32.cont [10/16] 0.0, 128
          %1062 = vxpose.xlu0.b32.cont [11/16] 0.0, 128
          %1063 = vxpose.xlu0.b32.cont [12/16] 0.0, 128
          %1064 = vxpose.xlu0.b32.cont [13/16] 0.0, 128
          %1065 = vxpose.xlu0.b32.cont [14/16] 0.0, 128
          %1066 = vxpose.xlu0.b32.cont [15/16] 0.0, 128
          %1067 = vxpose.xlu0.b32.end [16/16] 0.0, 128
          %v1068 = vpop.trf.xlu0
          %v1069 = vpop.trf.xlu0
          %v1070 = vpop.trf.xlu0
          %v1071 = vpop.trf.xlu0
          %v1072 = vpop.trf.xlu0
          %v1073 = vpop.trf.xlu0
          %v1074 = vpop.trf.xlu0
          %v1075 = vpop.trf.xlu0
          %v1076 = vpop.trf.xlu0
          %v1077 = vpop.trf.xlu0
          %v1078 = vpop.trf.xlu0
          %v1079 = vpop.trf.xlu0
          %v1080 = vpop.trf.xlu0
          %v1081 = vpop.trf.xlu0
          %v1082 = vpop.trf.xlu0
          %v1083 = vpop.trf.xlu0
          %1084 = vxpose.xlu0.b32.start [1/16] %v789, 128
          %1085 = vxpose.xlu0.b32.cont [2/16] 0.0, 128
          %1086 = vxpose.xlu0.b32.cont [3/16] 0.0, 128
          %1087 = vxpose.xlu0.b32.cont [4/16] 0.0, 128
          %1088 = vxpose.xlu0.b32.cont [5/16] 0.0, 128
          %1089 = vxpose.xlu0.b32.cont [6/16] 0.0, 128
          %1090 = vxpose.xlu0.b32.cont [7/16] 0.0, 128
          %1091 = vxpose.xlu0.b32.cont [8/16] 0.0, 128
          %1092 = vxpose.xlu0.b32.cont [9/16] 0.0, 128
          %1093 = vxpose.xlu0.b32.cont [10/16] 0.0, 128
          %1094 = vxpose.xlu0.b32.cont [11/16] 0.0, 128
          %1095 = vxpose.xlu0.b32.cont [12/16] 0.0, 128
          %1096 = vxpose.xlu0.b32.cont [13/16] 0.0, 128
          %1097 = vxpose.xlu0.b32.cont [14/16] 0.0, 128
          %1098 = vxpose.xlu0.b32.cont [15/16] 0.0, 128
          %1099 = vxpose.xlu0.b32.end [16/16] 0.0, 128
          %v1100 = vpop.trf.xlu0
          %v1101 = vpop.trf.xlu0
          %v1102 = vpop.trf.xlu0
          %v1103 = vpop.trf.xlu0
          %v1104 = vpop.trf.xlu0
          %v1105 = vpop.trf.xlu0
          %v1106 = vpop.trf.xlu0
          %v1107 = vpop.trf.xlu0
          %v1108 = vpop.trf.xlu0
          %v1109 = vpop.trf.xlu0
          %v1110 = vpop.trf.xlu0
          %v1111 = vpop.trf.xlu0
          %v1112 = vpop.trf.xlu0
          %v1113 = vpop.trf.xlu0
          %v1114 = vpop.trf.xlu0
          %v1115 = vpop.trf.xlu0
          %1116 = vxpose.xlu0.b32.start [1/16] %v790, 128
          %1117 = vxpose.xlu0.b32.cont [2/16] 0.0, 128
          %1118 = vxpose.xlu0.b32.cont [3/16] 0.0, 128
          %1119 = vxpose.xlu0.b32.cont [4/16] 0.0, 128
          %1120 = vxpose.xlu0.b32.cont [5/16] 0.0, 128
          %1121 = vxpose.xlu0.b32.cont [6/16] 0.0, 128
          %1122 = vxpose.xlu0.b32.cont [7/16] 0.0, 128
          %1123 = vxpose.xlu0.b32.cont [8/16] 0.0, 128
          %1124 = vxpose.xlu0.b32.cont [9/16] 0.0, 128
          %1125 = vxpose.xlu0.b32.cont [10/16] 0.0, 128
          %1126 = vxpose.xlu0.b32.cont [11/16] 0.0, 128
          %1127 = vxpose.xlu0.b32.cont [12/16] 0.0, 128
          %1128 = vxpose.xlu0.b32.cont [13/16] 0.0, 128
          %1129 = vxpose.xlu0.b32.cont [14/16] 0.0, 128
          %1130 = vxpose.xlu0.b32.cont [15/16] 0.0, 128
          %1131 = vxpose.xlu0.b32.end [16/16] 0.0, 128
          %v1132 = vpop.trf.xlu0
          %v1133 = vpop.trf.xlu0
          %v1134 = vpop.trf.xlu0
          %v1135 = vpop.trf.xlu0
          %v1136 = vpop.trf.xlu0
          %v1137 = vpop.trf.xlu0
          %v1138 = vpop.trf.xlu0
          %v1139 = vpop.trf.xlu0
          %v1140 = vpop.trf.xlu0
          %v1141 = vpop.trf.xlu0
          %v1142 = vpop.trf.xlu0
          %v1143 = vpop.trf.xlu0
          %v1144 = vpop.trf.xlu0
          %v1145 = vpop.trf.xlu0
          %v1146 = vpop.trf.xlu0
          %v1147 = vpop.trf.xlu0
          %1148 = vxpose.xlu0.b32.start [1/16] %v791, 128
          %1149 = vxpose.xlu0.b32.cont [2/16] 0.0, 128
          %1150 = vxpose.xlu0.b32.cont [3/16] 0.0, 128
          %1151 = vxpose.xlu0.b32.cont [4/16] 0.0, 128
          %1152 = vxpose.xlu0.b32.cont [5/16] 0.0, 128
          %1153 = vxpose.xlu0.b32.cont [6/16] 0.0, 128
          %1154 = vxpose.xlu0.b32.cont [7/16] 0.0, 128
          %1155 = vxpose.xlu0.b32.cont [8/16] 0.0, 128
          %1156 = vxpose.xlu0.b32.cont [9/16] 0.0, 128
          %1157 = vxpose.xlu0.b32.cont [10/16] 0.0, 128
          %1158 = vxpose.xlu0.b32.cont [11/16] 0.0, 128
          %1159 = vxpose.xlu0.b32.cont [12/16] 0.0, 128
          %1160 = vxpose.xlu0.b32.cont [13/16] 0.0, 128
          %1161 = vxpose.xlu0.b32.cont [14/16] 0.0, 128
          %1162 = vxpose.xlu0.b32.cont [15/16] 0.0, 128
          %1163 = vxpose.xlu0.b32.end [16/16] 0.0, 128
          %v1164 = vpop.trf.xlu0
          %v1165 = vpop.trf.xlu0
          %v1166 = vpop.trf.xlu0
          %v1167 = vpop.trf.xlu0
          %v1168 = vpop.trf.xlu0
          %v1169 = vpop.trf.xlu0
          %v1170 = vpop.trf.xlu0
          %v1171 = vpop.trf.xlu0
          %v1172 = vpop.trf.xlu0
          %v1173 = vpop.trf.xlu0
          %v1174 = vpop.trf.xlu0
          %v1175 = vpop.trf.xlu0
          %v1176 = vpop.trf.xlu0
          %v1177 = vpop.trf.xlu0
          %v1178 = vpop.trf.xlu0
          %v1179 = vpop.trf.xlu0
          %1180 = vxpose.xlu0.b32.start [1/16] %v792, 128
          %1181 = vxpose.xlu0.b32.cont [2/16] 0.0, 128
          %1182 = vxpose.xlu0.b32.cont [3/16] 0.0, 128
          %1183 = vxpose.xlu0.b32.cont [4/16] 0.0, 128
          %1184 = vxpose.xlu0.b32.cont [5/16] 0.0, 128
          %1185 = vxpose.xlu0.b32.cont [6/16] 0.0, 128
          %1186 = vxpose.xlu0.b32.cont [7/16] 0.0, 128
          %1187 = vxpose.xlu0.b32.cont [8/16] 0.0, 128
          %1188 = vxpose.xlu0.b32.cont [9/16] 0.0, 128
          %1189 = vxpose.xlu0.b32.cont [10/16] 0.0, 128
          %1190 = vxpose.xlu0.b32.cont [11/16] 0.0, 128
          %1191 = vxpose.xlu0.b32.cont [12/16] 0.0, 128
          %1192 = vxpose.xlu0.b32.cont [13/16] 0.0, 128
          %1193 = vxpose.xlu0.b32.cont [14/16] 0.0, 128
          %1194 = vxpose.xlu0.b32.cont [15/16] 0.0, 128
          %1195 = vxpose.xlu0.b32.end [16/16] 0.0, 128
          %v1196 = vpop.trf.xlu0
          %v1197 = vpop.trf.xlu0
          %v1198 = vpop.trf.xlu0
          %v1199 = vpop.trf.xlu0
          %v1200 = vpop.trf.xlu0
          %v1201 = vpop.trf.xlu0
          %v1202 = vpop.trf.xlu0
          %v1203 = vpop.trf.xlu0
          %v1204 = vpop.trf.xlu0
          %v1205 = vpop.trf.xlu0
          %v1206 = vpop.trf.xlu0
          %v1207 = vpop.trf.xlu0
          %v1208 = vpop.trf.xlu0
          %v1209 = vpop.trf.xlu0
          %v1210 = vpop.trf.xlu0
          %v1211 = vpop.trf.xlu0
          %1212 = vxpose.xlu0.b32.start [1/16] %v793, 128
          %1213 = vxpose.xlu0.b32.cont [2/16] 0.0, 128
          %1214 = vxpose.xlu0.b32.cont [3/16] 0.0, 128
          %1215 = vxpose.xlu0.b32.cont [4/16] 0.0, 128
          %1216 = vxpose.xlu0.b32.cont [5/16] 0.0, 128
          %1217 = vxpose.xlu0.b32.cont [6/16] 0.0, 128
          %1218 = vxpose.xlu0.b32.cont [7/16] 0.0, 128
          %1219 = vxpose.xlu0.b32.cont [8/16] 0.0, 128
          %1220 = vxpose.xlu0.b32.cont [9/16] 0.0, 128
          %1221 = vxpose.xlu0.b32.cont [10/16] 0.0, 128
          %1222 = vxpose.xlu0.b32.cont [11/16] 0.0, 128
          %1223 = vxpose.xlu0.b32.cont [12/16] 0.0, 128
          %1224 = vxpose.xlu0.b32.cont [13/16] 0.0, 128
          %1225 = vxpose.xlu0.b32.cont [14/16] 0.0, 128
          %1226 = vxpose.xlu0.b32.cont [15/16] 0.0, 128
          %1227 = vxpose.xlu0.b32.end [16/16] 0.0, 128
          %v1228 = vpop.trf.xlu0
          %v1229 = vpop.trf.xlu0
          %v1230 = vpop.trf.xlu0
          %v1231 = vpop.trf.xlu0
          %v1232 = vpop.trf.xlu0
          %v1233 = vpop.trf.xlu0
          %v1234 = vpop.trf.xlu0
          %v1235 = vpop.trf.xlu0
          %v1236 = vpop.trf.xlu0
          %v1237 = vpop.trf.xlu0
          %v1238 = vpop.trf.xlu0
          %v1239 = vpop.trf.xlu0
          %v1240 = vpop.trf.xlu0
          %v1241 = vpop.trf.xlu0
          %v1242 = vpop.trf.xlu0
          %v1243 = vpop.trf.xlu0
          %1244 = vxpose.xlu0.b32.start [1/16] %v794, 128
          %1245 = vxpose.xlu0.b32.cont [2/16] 0.0, 128
          %1246 = vxpose.xlu0.b32.cont [3/16] 0.0, 128
          %1247 = vxpose.xlu0.b32.cont [4/16] 0.0, 128
          %1248 = vxpose.xlu0.b32.cont [5/16] 0.0, 128
          %1249 = vxpose.xlu0.b32.cont [6/16] 0.0, 128
          %1250 = vxpose.xlu0.b32.cont [7/16] 0.0, 128
          %1251 = vxpose.xlu0.b32.cont [8/16] 0.0, 128
          %1252 = vxpose.xlu0.b32.cont [9/16] 0.0, 128
          %1253 = vxpose.xlu0.b32.cont [10/16] 0.0, 128
          %1254 = vxpose.xlu0.b32.cont [11/16] 0.0, 128
          %1255 = vxpose.xlu0.b32.cont [12/16] 0.0, 128
          %1256 = vxpose.xlu0.b32.cont [13/16] 0.0, 128
          %1257 = vxpose.xlu0.b32.cont [14/16] 0.0, 128
          %1258 = vxpose.xlu0.b32.cont [15/16] 0.0, 128
          %1259 = vxpose.xlu0.b32.end [16/16] 0.0, 128
          %v1260 = vpop.trf.xlu0
          %v1261 = vpop.trf.xlu0
          %v1262 = vpop.trf.xlu0
          %v1263 = vpop.trf.xlu0
          %v1264 = vpop.trf.xlu0
          %v1265 = vpop.trf.xlu0
          %v1266 = vpop.trf.xlu0
          %v1267 = vpop.trf.xlu0
          %v1268 = vpop.trf.xlu0
          %v1269 = vpop.trf.xlu0
          %v1270 = vpop.trf.xlu0
          %v1271 = vpop.trf.xlu0
          %v1272 = vpop.trf.xlu0
          %v1273 = vpop.trf.xlu0
          %v1274 = vpop.trf.xlu0
          %v1275 = vpop.trf.xlu0
          %1276 = vxpose.xlu0.b32.start [1/16] %v795, 128
          %1277 = vxpose.xlu0.b32.cont [2/16] 0.0, 128
          %1278 = vxpose.xlu0.b32.cont [3/16] 0.0, 128
          %1279 = vxpose.xlu0.b32.cont [4/16] 0.0, 128
          %1280 = vxpose.xlu0.b32.cont [5/16] 0.0, 128
          %1281 = vxpose.xlu0.b32.cont [6/16] 0.0, 128
          %1282 = vxpose.xlu0.b32.cont [7/16] 0.0, 128
          %1283 = vxpose.xlu0.b32.cont [8/16] 0.0, 128
          %1284 = vxpose.xlu0.b32.cont [9/16] 0.0, 128
          %1285 = vxpose.xlu0.b32.cont [10/16] 0.0, 128
          %1286 = vxpose.xlu0.b32.cont [11/16] 0.0, 128
          %1287 = vxpose.xlu0.b32.cont [12/16] 0.0, 128
          %1288 = vxpose.xlu0.b32.cont [13/16] 0.0, 128
          %1289 = vxpose.xlu0.b32.cont [14/16] 0.0, 128
          %1290 = vxpose.xlu0.b32.cont [15/16] 0.0, 128
          %1291 = vxpose.xlu0.b32.end [16/16] 0.0, 128
          %v1292 = vpop.trf.xlu0
          %v1293 = vpop.trf.xlu0
          %v1294 = vpop.trf.xlu0
          %v1295 = vpop.trf.xlu0
          %v1296 = vpop.trf.xlu0
          %v1297 = vpop.trf.xlu0
          %v1298 = vpop.trf.xlu0
          %v1299 = vpop.trf.xlu0
          %v1300 = vpop.trf.xlu0
          %v1301 = vpop.trf.xlu0
          %v1302 = vpop.trf.xlu0
          %v1303 = vpop.trf.xlu0
          %v1304 = vpop.trf.xlu0
          %v1305 = vpop.trf.xlu0
          %v1306 = vpop.trf.xlu0
          %v1307 = vpop.trf.xlu0
          %v1308 = vpack.c.bf16 %v813, %v812
          %v1309 = vpack.c.bf16 %v815, %v814
          %v1310 = vpack.c.bf16 %v845, %v844
          %v1311 = vpack.c.bf16 %v847, %v846
          %v1312 = vpack.c.bf16 %v877, %v876
          %v1313 = vpack.c.bf16 %v879, %v878
          %v1314 = vpack.c.bf16 %v909, %v908
          %v1315 = vpack.c.bf16 %v911, %v910
          %v1316 = vpack.c.bf16 %v941, %v940
          %v1317 = vpack.c.bf16 %v943, %v942
          %v1318 = vpack.c.bf16 %v973, %v972
          %v1319 = vpack.c.bf16 %v975, %v974
          %v1320 = vpack.c.bf16 %v1005, %v1004
          %v1321 = vpack.c.bf16 %v1007, %v1006
          %v1322 = vpack.c.bf16 %v1037, %v1036
          %v1323 = vpack.c.bf16 %v1039, %v1038
          %v1324 = vpack.c.bf16 %v1069, %v1068
          %v1325 = vpack.c.bf16 %v1071, %v1070
          %v1326 = vpack.c.bf16 %v1101, %v1100
          %v1327 = vpack.c.bf16 %v1103, %v1102
          %v1328 = vpack.c.bf16 %v1133, %v1132
          %v1329 = vpack.c.bf16 %v1135, %v1134
          %v1330 = vpack.c.bf16 %v1165, %v1164
          %v1331 = vpack.c.bf16 %v1167, %v1166
          %v1332 = vpack.c.bf16 %v1197, %v1196
          %v1333 = vpack.c.bf16 %v1199, %v1198
          %v1334 = vpack.c.bf16 %v1229, %v1228
          %v1335 = vpack.c.bf16 %v1231, %v1230
          %v1336 = vpack.c.bf16 %v1261, %v1260
          %v1337 = vpack.c.bf16 %v1263, %v1262
          %v1338 = vpack.c.bf16 %v1293, %v1292
          %v1339 = vpack.c.bf16 %v1295, %v1294
          %vm1340 = vcmask 64512
          %1341 = vst.msk [vmem:[#allocation2] sm:$0xff] %vm1340, %v1308
          %1342 = vst.msk [vmem:[#allocation2 + $0x8] sm:$0xff] %vm1340, %v1309
          %1343 = vst.msk [vmem:[#allocation2 + $0x10] sm:$0xff] %vm1340, %v1310
          %1344 = vst.msk [vmem:[#allocation2 + $0x18] sm:$0xff] %vm1340, %v1311
          %1345 = vst.msk [vmem:[#allocation2 + $0x20] sm:$0xff] %vm1340, %v1312
          %1346 = vst.msk [vmem:[#allocation2 + $0x28] sm:$0xff] %vm1340, %v1313
          %1347 = vst.msk [vmem:[#allocation2 + $0x30] sm:$0xff] %vm1340, %v1314
          %1348 = vst.msk [vmem:[#allocation2 + $0x38] sm:$0xff] %vm1340, %v1315
          %1349 = vst.msk [vmem:[#allocation2 + $0x40] sm:$0xff] %vm1340, %v1316
          %1350 = vst.msk [vmem:[#allocation2 + $0x48] sm:$0xff] %vm1340, %v1317
          %1351 = vst.msk [vmem:[#allocation2 + $0x50] sm:$0xff] %vm1340, %v1318
          %1352 = vst.msk [vmem:[#allocation2 + $0x58] sm:$0xff] %vm1340, %v1319
          %1353 = vst.msk [vmem:[#allocation2 + $0x60] sm:$0xff] %vm1340, %v1320
          %1354 = vst.msk [vmem:[#allocation2 + $0x68] sm:$0xff] %vm1340, %v1321
          %1355 = vst.msk [vmem:[#allocation2 + $0x70] sm:$0xff] %vm1340, %v1322
          %1356 = vst.msk [vmem:[#allocation2 + $0x78] sm:$0xff] %vm1340, %v1323
          %1357 = vst.msk [vmem:[#allocation2 + $0x80] sm:$0xff] %vm1340, %v1324
          %1358 = vst.msk [vmem:[#allocation2 + $0x88] sm:$0xff] %vm1340, %v1325
          %1359 = vst.msk [vmem:[#allocation2 + $0x90] sm:$0xff] %vm1340, %v1326
          %1360 = vst.msk [vmem:[#allocation2 + $0x98] sm:$0xff] %vm1340, %v1327
          %1361 = vst.msk [vmem:[#allocation2 + $0xa0] sm:$0xff] %vm1340, %v1328
          %1362 = vst.msk [vmem:[#allocation2 + $0xa8] sm:$0xff] %vm1340, %v1329
          %1363 = vst.msk [vmem:[#allocation2 + $0xb0] sm:$0xff] %vm1340, %v1330
          %1364 = vst.msk [vmem:[#allocation2 + $0xb8] sm:$0xff] %vm1340, %v1331
          %1365 = vst.msk [vmem:[#allocation2 + $0xc0] sm:$0xff] %vm1340, %v1332
          %1366 = vst.msk [vmem:[#allocation2 + $0xc8] sm:$0xff] %vm1340, %v1333
          %1367 = vst.msk [vmem:[#allocation2 + $0xd0] sm:$0xff] %vm1340, %v1334
          %1368 = vst.msk [vmem:[#allocation2 + $0xd8] sm:$0xff] %vm1340, %v1335
          %1369 = vst.msk [vmem:[#allocation2 + $0xe0] sm:$0xff] %vm1340, %v1336
          %1370 = vst.msk [vmem:[#allocation2 + $0xe8] sm:$0xff] %vm1340, %v1337
          %1371 = vst.msk [vmem:[#allocation2 + $0xf0] sm:$0xff] %vm1340, %v1338
          %1372 = vst.msk [vmem:[#allocation2 + $0xf8] sm:$0xff] %vm1340, %v1339
          %vm1373 = vcmask 7168
          %1374 = vst.msk [vmem:[#allocation3] sm:$0xff] %vm1373, -inf
          %1375 = vst.msk [vmem:[#allocation3 + $0x8] sm:$0xff] %vm1373, -inf
          %1376 = vst.msk [vmem:[#allocation3 + $0x10] sm:$0xff] %vm1373, -inf
          %1377 = vst.msk [vmem:[#allocation3 + $0x18] sm:$0xff] %vm1373, -inf
          %1378 = vst.msk [vmem:[#allocation3 + $0x20] sm:$0xff] %vm1373, -inf
          %1379 = vst.msk [vmem:[#allocation3 + $0x28] sm:$0xff] %vm1373, -inf
          %1380 = vst.msk [vmem:[#allocation3 + $0x30] sm:$0xff] %vm1373, -inf
          %1381 = vst.msk [vmem:[#allocation3 + $0x38] sm:$0xff] %vm1373, -inf
          %1382 = vst.msk [vmem:[#allocation3 + $0x40] sm:$0xff] %vm1373, -inf
          %1383 = vst.msk [vmem:[#allocation3 + $0x48] sm:$0xff] %vm1373, -inf
          %1384 = vst.msk [vmem:[#allocation3 + $0x50] sm:$0xff] %vm1373, -inf
          %1385 = vst.msk [vmem:[#allocation3 + $0x58] sm:$0xff] %vm1373, -inf
          %1386 = vst.msk [vmem:[#allocation3 + $0x60] sm:$0xff] %vm1373, -inf
          %1387 = vst.msk [vmem:[#allocation3 + $0x68] sm:$0xff] %vm1373, -inf
          %1388 = vst.msk [vmem:[#allocation3 + $0x70] sm:$0xff] %vm1373, -inf
          %1389 = vst.msk [vmem:[#allocation3 + $0x78] sm:$0xff] %vm1373, -inf
          %1390 = vst.msk [vmem:[#allocation3 + $0x80] sm:$0xff] %vm1373, -inf
          %1391 = vst.msk [vmem:[#allocation3 + $0x88] sm:$0xff] %vm1373, -inf
          %1392 = vst.msk [vmem:[#allocation3 + $0x90] sm:$0xff] %vm1373, -inf
          %1393 = vst.msk [vmem:[#allocation3 + $0x98] sm:$0xff] %vm1373, -inf
          %1394 = vst.msk [vmem:[#allocation3 + $0xa0] sm:$0xff] %vm1373, -inf
          %1395 = vst.msk [vmem:[#allocation3 + $0xa8] sm:$0xff] %vm1373, -inf
          %1396 = vst.msk [vmem:[#allocation3 + $0xb0] sm:$0xff] %vm1373, -inf
          %1397 = vst.msk [vmem:[#allocation3 + $0xb8] sm:$0xff] %vm1373, -inf
          %1398 = vst.msk [vmem:[#allocation3 + $0xc0] sm:$0xff] %vm1373, -inf
          %1399 = vst.msk [vmem:[#allocation3 + $0xc8] sm:$0xff] %vm1373, -inf
          %1400 = vst.msk [vmem:[#allocation3 + $0xd0] sm:$0xff] %vm1373, -inf
          %1401 = vst.msk [vmem:[#allocation3 + $0xd8] sm:$0xff] %vm1373, -inf
          %1402 = vst.msk [vmem:[#allocation3 + $0xe0] sm:$0xff] %vm1373, -inf
          %1403 = vst.msk [vmem:[#allocation3 + $0xe8] sm:$0xff] %vm1373, -inf
          %1404 = vst.msk [vmem:[#allocation3 + $0xf0] sm:$0xff] %vm1373, -inf
          %1405 = vst.msk [vmem:[#allocation3 + $0xf8] sm:$0xff] %vm1373, -inf
          %1406 = vst.msk [vmem:[#allocation3 + $0x100] sm:$0xff] %vm1373, -inf
          %1407 = vst.msk [vmem:[#allocation3 + $0x108] sm:$0xff] %vm1373, -inf
          %1408 = vst.msk [vmem:[#allocation3 + $0x110] sm:$0xff] %vm1373, -inf
          %1409 = vst.msk [vmem:[#allocation3 + $0x118] sm:$0xff] %vm1373, -inf
          %1410 = vst.msk [vmem:[#allocation3 + $0x120] sm:$0xff] %vm1373, -inf
          %1411 = vst.msk [vmem:[#allocation3 + $0x128] sm:$0xff] %vm1373, -inf
          %1412 = vst.msk [vmem:[#allocation3 + $0x130] sm:$0xff] %vm1373, -inf
          %1413 = vst.msk [vmem:[#allocation3 + $0x138] sm:$0xff] %vm1373, -inf
          %1414 = vst.msk [vmem:[#allocation3 + $0x140] sm:$0xff] %vm1373, -inf
          %1415 = vst.msk [vmem:[#allocation3 + $0x148] sm:$0xff] %vm1373, -inf
          %1416 = vst.msk [vmem:[#allocation3 + $0x150] sm:$0xff] %vm1373, -inf
          %1417 = vst.msk [vmem:[#allocation3 + $0x158] sm:$0xff] %vm1373, -inf
          %1418 = vst.msk [vmem:[#allocation3 + $0x160] sm:$0xff] %vm1373, -inf
          %1419 = vst.msk [vmem:[#allocation3 + $0x168] sm:$0xff] %vm1373, -inf
          %1420 = vst.msk [vmem:[#allocation3 + $0x170] sm:$0xff] %vm1373, -inf
          %1421 = vst.msk [vmem:[#allocation3 + $0x178] sm:$0xff] %vm1373, -inf
          %1422 = vst.msk [vmem:[#allocation3 + $0x180] sm:$0xff] %vm1373, -inf
          %1423 = vst.msk [vmem:[#allocation3 + $0x188] sm:$0xff] %vm1373, -inf
          %1424 = vst.msk [vmem:[#allocation3 + $0x190] sm:$0xff] %vm1373, -inf
          %1425 = vst.msk [vmem:[#allocation3 + $0x198] sm:$0xff] %vm1373, -inf
          %1426 = vst.msk [vmem:[#allocation3 + $0x1a0] sm:$0xff] %vm1373, -inf
          %1427 = vst.msk [vmem:[#allocation3 + $0x1a8] sm:$0xff] %vm1373, -inf
          %1428 = vst.msk [vmem:[#allocation3 + $0x1b0] sm:$0xff] %vm1373, -inf
          %1429 = vst.msk [vmem:[#allocation3 + $0x1b8] sm:$0xff] %vm1373, -inf
          %1430 = vst.msk [vmem:[#allocation3 + $0x1c0] sm:$0xff] %vm1373, -inf
          %1431 = vst.msk [vmem:[#allocation3 + $0x1c8] sm:$0xff] %vm1373, -inf
          %1432 = vst.msk [vmem:[#allocation3 + $0x1d0] sm:$0xff] %vm1373, -inf
          %1433 = vst.msk [vmem:[#allocation3 + $0x1d8] sm:$0xff] %vm1373, -inf
          %1434 = vst.msk [vmem:[#allocation3 + $0x1e0] sm:$0xff] %vm1373, -inf
          %1435 = vst.msk [vmem:[#allocation3 + $0x1e8] sm:$0xff] %vm1373, -inf
          %1436 = vst.msk [vmem:[#allocation3 + $0x1f0] sm:$0xff] %vm1373, -inf
          %1437 = vst.msk [vmem:[#allocation3 + $0x1f8] sm:$0xff] %vm1373, -inf
          %1438 = vst.msk [vmem:[#allocation4] sm:$0xff] %vm1373, 0.0
          %1439 = vst.msk [vmem:[#allocation4 + $0x8] sm:$0xff] %vm1373, 0.0
          %1440 = vst.msk [vmem:[#allocation4 + $0x10] sm:$0xff] %vm1373, 0.0
          %1441 = vst.msk [vmem:[#allocation4 + $0x18] sm:$0xff] %vm1373, 0.0
          %1442 = vst.msk [vmem:[#allocation4 + $0x20] sm:$0xff] %vm1373, 0.0
          %1443 = vst.msk [vmem:[#allocation4 + $0x28] sm:$0xff] %vm1373, 0.0
          %1444 = vst.msk [vmem:[#allocation4 + $0x30] sm:$0xff] %vm1373, 0.0
          %1445 = vst.msk [vmem:[#allocation4 + $0x38] sm:$0xff] %vm1373, 0.0
          %1446 = vst.msk [vmem:[#allocation4 + $0x40] sm:$0xff] %vm1373, 0.0
          %1447 = vst.msk [vmem:[#allocation4 + $0x48] sm:$0xff] %vm1373, 0.0
          %1448 = vst.msk [vmem:[#allocation4 + $0x50] sm:$0xff] %vm1373, 0.0
          %1449 = vst.msk [vmem:[#allocation4 + $0x58] sm:$0xff] %vm1373, 0.0
          %1450 = vst.msk [vmem:[#allocation4 + $0x60] sm:$0xff] %vm1373, 0.0
          %1451 = vst.msk [vmem:[#allocation4 + $0x68] sm:$0xff] %vm1373, 0.0
          %1452 = vst.msk [vmem:[#allocation4 + $0x70] sm:$0xff] %vm1373, 0.0
          %1453 = vst.msk [vmem:[#allocation4 + $0x78] sm:$0xff] %vm1373, 0.0
          %1454 = vst.msk [vmem:[#allocation4 + $0x80] sm:$0xff] %vm1373, 0.0
          %1455 = vst.msk [vmem:[#allocation4 + $0x88] sm:$0xff] %vm1373, 0.0
          %1456 = vst.msk [vmem:[#allocation4 + $0x90] sm:$0xff] %vm1373, 0.0
          %1457 = vst.msk [vmem:[#allocation4 + $0x98] sm:$0xff] %vm1373, 0.0
          %1458 = vst.msk [vmem:[#allocation4 + $0xa0] sm:$0xff] %vm1373, 0.0
          %1459 = vst.msk [vmem:[#allocation4 + $0xa8] sm:$0xff] %vm1373, 0.0
          %1460 = vst.msk [vmem:[#allocation4 + $0xb0] sm:$0xff] %vm1373, 0.0
          %1461 = vst.msk [vmem:[#allocation4 + $0xb8] sm:$0xff] %vm1373, 0.0
          %1462 = vst.msk [vmem:[#allocation4 + $0xc0] sm:$0xff] %vm1373, 0.0
          %1463 = vst.msk [vmem:[#allocation4 + $0xc8] sm:$0xff] %vm1373, 0.0
          %1464 = vst.msk [vmem:[#allocation4 + $0xd0] sm:$0xff] %vm1373, 0.0
          %1465 = vst.msk [vmem:[#allocation4 + $0xd8] sm:$0xff] %vm1373, 0.0
          %1466 = vst.msk [vmem:[#allocation4 + $0xe0] sm:$0xff] %vm1373, 0.0
          %1467 = vst.msk [vmem:[#allocation4 + $0xe8] sm:$0xff] %vm1373, 0.0
          %1468 = vst.msk [vmem:[#allocation4 + $0xf0] sm:$0xff] %vm1373, 0.0
          %1469 = vst.msk [vmem:[#allocation4 + $0xf8] sm:$0xff] %vm1373, 0.0
          %1470 = vst.msk [vmem:[#allocation4 + $0x100] sm:$0xff] %vm1373, 0.0
          %1471 = vst.msk [vmem:[#allocation4 + $0x108] sm:$0xff] %vm1373, 0.0
          %1472 = vst.msk [vmem:[#allocation4 + $0x110] sm:$0xff] %vm1373, 0.0
          %1473 = vst.msk [vmem:[#allocation4 + $0x118] sm:$0xff] %vm1373, 0.0
          %1474 = vst.msk [vmem:[#allocation4 + $0x120] sm:$0xff] %vm1373, 0.0
          %1475 = vst.msk [vmem:[#allocation4 + $0x128] sm:$0xff] %vm1373, 0.0
          %1476 = vst.msk [vmem:[#allocation4 + $0x130] sm:$0xff] %vm1373, 0.0
          %1477 = vst.msk [vmem:[#allocation4 + $0x138] sm:$0xff] %vm1373, 0.0
          %1478 = vst.msk [vmem:[#allocation4 + $0x140] sm:$0xff] %vm1373, 0.0
          %1479 = vst.msk [vmem:[#allocation4 + $0x148] sm:$0xff] %vm1373, 0.0
          %1480 = vst.msk [vmem:[#allocation4 + $0x150] sm:$0xff] %vm1373, 0.0
          %1481 = vst.msk [vmem:[#allocation4 + $0x158] sm:$0xff] %vm1373, 0.0
          %1482 = vst.msk [vmem:[#allocation4 + $0x160] sm:$0xff] %vm1373, 0.0
          %1483 = vst.msk [vmem:[#allocation4 + $0x168] sm:$0xff] %vm1373, 0.0
          %1484 = vst.msk [vmem:[#allocation4 + $0x170] sm:$0xff] %vm1373, 0.0
          %1485 = vst.msk [vmem:[#allocation4 + $0x178] sm:$0xff] %vm1373, 0.0
          %1486 = vst.msk [vmem:[#allocation4 + $0x180] sm:$0xff] %vm1373, 0.0
          %1487 = vst.msk [vmem:[#allocation4 + $0x188] sm:$0xff] %vm1373, 0.0
          %1488 = vst.msk [vmem:[#allocation4 + $0x190] sm:$0xff] %vm1373, 0.0
          %1489 = vst.msk [vmem:[#allocation4 + $0x198] sm:$0xff] %vm1373, 0.0
          %1490 = vst.msk [vmem:[#allocation4 + $0x1a0] sm:$0xff] %vm1373, 0.0
          %1491 = vst.msk [vmem:[#allocation4 + $0x1a8] sm:$0xff] %vm1373, 0.0
          %1492 = vst.msk [vmem:[#allocation4 + $0x1b0] sm:$0xff] %vm1373, 0.0
          %1493 = vst.msk [vmem:[#allocation4 + $0x1b8] sm:$0xff] %vm1373, 0.0
          %1494 = vst.msk [vmem:[#allocation4 + $0x1c0] sm:$0xff] %vm1373, 0.0
          %1495 = vst.msk [vmem:[#allocation4 + $0x1c8] sm:$0xff] %vm1373, 0.0
          %1496 = vst.msk [vmem:[#allocation4 + $0x1d0] sm:$0xff] %vm1373, 0.0
          %1497 = vst.msk [vmem:[#allocation4 + $0x1d8] sm:$0xff] %vm1373, 0.0
          %1498 = vst.msk [vmem:[#allocation4 + $0x1e0] sm:$0xff] %vm1373, 0.0
          %1499 = vst.msk [vmem:[#allocation4 + $0x1e8] sm:$0xff] %vm1373, 0.0
          %1500 = vst.msk [vmem:[#allocation4 + $0x1f0] sm:$0xff] %vm1373, 0.0
          %1501 = vst.msk [vmem:[#allocation4 + $0x1f8] sm:$0xff] %vm1373, 0.0
          %1502 = vst.msk [vmem:[#allocation5] sm:$0xff] %vm1340, 0.0
          %1503 = vst.msk [vmem:[#allocation5 + $0x8] sm:$0xff] %vm1340, 0.0
          %1504 = vst.msk [vmem:[#allocation5 + $0x10] sm:$0xff] %vm1340, 0.0
          %1505 = vst.msk [vmem:[#allocation5 + $0x18] sm:$0xff] %vm1340, 0.0
          %1506 = vst.msk [vmem:[#allocation5 + $0x20] sm:$0xff] %vm1340, 0.0
          %1507 = vst.msk [vmem:[#allocation5 + $0x28] sm:$0xff] %vm1340, 0.0
          %1508 = vst.msk [vmem:[#allocation5 + $0x30] sm:$0xff] %vm1340, 0.0
          %1509 = vst.msk [vmem:[#allocation5 + $0x38] sm:$0xff] %vm1340, 0.0
          %1510 = vst.msk [vmem:[#allocation5 + $0x40] sm:$0xff] %vm1340, 0.0
          %1511 = vst.msk [vmem:[#allocation5 + $0x48] sm:$0xff] %vm1340, 0.0
          %1512 = vst.msk [vmem:[#allocation5 + $0x50] sm:$0xff] %vm1340, 0.0
          %1513 = vst.msk [vmem:[#allocation5 + $0x58] sm:$0xff] %vm1340, 0.0
          %1514 = vst.msk [vmem:[#allocation5 + $0x60] sm:$0xff] %vm1340, 0.0
          %1515 = vst.msk [vmem:[#allocation5 + $0x68] sm:$0xff] %vm1340, 0.0
          %1516 = vst.msk [vmem:[#allocation5 + $0x70] sm:$0xff] %vm1340, 0.0
          %1517 = vst.msk [vmem:[#allocation5 + $0x78] sm:$0xff] %vm1340, 0.0
          %1518 = vst.msk [vmem:[#allocation5 + $0x80] sm:$0xff] %vm1340, 0.0
          %1519 = vst.msk [vmem:[#allocation5 + $0x88] sm:$0xff] %vm1340, 0.0
          %1520 = vst.msk [vmem:[#allocation5 + $0x90] sm:$0xff] %vm1340, 0.0
          %1521 = vst.msk [vmem:[#allocation5 + $0x98] sm:$0xff] %vm1340, 0.0
          %1522 = vst.msk [vmem:[#allocation5 + $0xa0] sm:$0xff] %vm1340, 0.0
          %1523 = vst.msk [vmem:[#allocation5 + $0xa8] sm:$0xff] %vm1340, 0.0
          %1524 = vst.msk [vmem:[#allocation5 + $0xb0] sm:$0xff] %vm1340, 0.0
          %1525 = vst.msk [vmem:[#allocation5 + $0xb8] sm:$0xff] %vm1340, 0.0
          %1526 = vst.msk [vmem:[#allocation5 + $0xc0] sm:$0xff] %vm1340, 0.0
          %1527 = vst.msk [vmem:[#allocation5 + $0xc8] sm:$0xff] %vm1340, 0.0
          %1528 = vst.msk [vmem:[#allocation5 + $0xd0] sm:$0xff] %vm1340, 0.0
          %1529 = vst.msk [vmem:[#allocation5 + $0xd8] sm:$0xff] %vm1340, 0.0
          %1530 = vst.msk [vmem:[#allocation5 + $0xe0] sm:$0xff] %vm1340, 0.0
          %1531 = vst.msk [vmem:[#allocation5 + $0xe8] sm:$0xff] %vm1340, 0.0
          %1532 = vst.msk [vmem:[#allocation5 + $0xf0] sm:$0xff] %vm1340, 0.0
          %1533 = vst.msk [vmem:[#allocation5 + $0xf8] sm:$0xff] %vm1340, 0.0
          %1534 = vst.msk [vmem:[#allocation5 + $0x100] sm:$0xff] %vm1340, 0.0
          %1535 = vst.msk [vmem:[#allocation5 + $0x108] sm:$0xff] %vm1340, 0.0
          %1536 = vst.msk [vmem:[#allocation5 + $0x110] sm:$0xff] %vm1340, 0.0
          %1537 = vst.msk [vmem:[#allocation5 + $0x118] sm:$0xff] %vm1340, 0.0
          %1538 = vst.msk [vmem:[#allocation5 + $0x120] sm:$0xff] %vm1340, 0.0
          %1539 = vst.msk [vmem:[#allocation5 + $0x128] sm:$0xff] %vm1340, 0.0
          %1540 = vst.msk [vmem:[#allocation5 + $0x130] sm:$0xff] %vm1340, 0.0
          %1541 = vst.msk [vmem:[#allocation5 + $0x138] sm:$0xff] %vm1340, 0.0
          %1542 = vst.msk [vmem:[#allocation5 + $0x140] sm:$0xff] %vm1340, 0.0
          %1543 = vst.msk [vmem:[#allocation5 + $0x148] sm:$0xff] %vm1340, 0.0
          %1544 = vst.msk [vmem:[#allocation5 + $0x150] sm:$0xff] %vm1340, 0.0
          %1545 = vst.msk [vmem:[#allocation5 + $0x158] sm:$0xff] %vm1340, 0.0
          %1546 = vst.msk [vmem:[#allocation5 + $0x160] sm:$0xff] %vm1340, 0.0
          %1547 = vst.msk [vmem:[#allocation5 + $0x168] sm:$0xff] %vm1340, 0.0
          %1548 = vst.msk [vmem:[#allocation5 + $0x170] sm:$0xff] %vm1340, 0.0
          %1549 = vst.msk [vmem:[#allocation5 + $0x178] sm:$0xff] %vm1340, 0.0
          %1550 = vst.msk [vmem:[#allocation5 + $0x180] sm:$0xff] %vm1340, 0.0
          %1551 = vst.msk [vmem:[#allocation5 + $0x188] sm:$0xff] %vm1340, 0.0
          %1552 = vst.msk [vmem:[#allocation5 + $0x190] sm:$0xff] %vm1340, 0.0
          %1553 = vst.msk [vmem:[#allocation5 + $0x198] sm:$0xff] %vm1340, 0.0
          %1554 = vst.msk [vmem:[#allocation5 + $0x1a0] sm:$0xff] %vm1340, 0.0
          %1555 = vst.msk [vmem:[#allocation5 + $0x1a8] sm:$0xff] %vm1340, 0.0
          %1556 = vst.msk [vmem:[#allocation5 + $0x1b0] sm:$0xff] %vm1340, 0.0
          %1557 = vst.msk [vmem:[#allocation5 + $0x1b8] sm:$0xff] %vm1340, 0.0
          %1558 = vst.msk [vmem:[#allocation5 + $0x1c0] sm:$0xff] %vm1340, 0.0
          %1559 = vst.msk [vmem:[#allocation5 + $0x1c8] sm:$0xff] %vm1340, 0.0
          %1560 = vst.msk [vmem:[#allocation5 + $0x1d0] sm:$0xff] %vm1340, 0.0
          %1561 = vst.msk [vmem:[#allocation5 + $0x1d8] sm:$0xff] %vm1340, 0.0
          %1562 = vst.msk [vmem:[#allocation5 + $0x1e0] sm:$0xff] %vm1340, 0.0
          %1563 = vst.msk [vmem:[#allocation5 + $0x1e8] sm:$0xff] %vm1340, 0.0
          %1564 = vst.msk [vmem:[#allocation5 + $0x1f0] sm:$0xff] %vm1340, 0.0
          %1565 = vst.msk [vmem:[#allocation5 + $0x1f8] sm:$0xff] %vm1340, 0.0
        $region108: #{tpu_custom_call.1} parent=75 // pred_fallthru
          _
        %v1566 = vld [vmem:[%s557] sm:$0xff]
        %v1567 = vld [vmem:[%s557 + $0x8] sm:$0xff]
        %v1568 = vld [vmem:[%s557 + $0x10] sm:$0xff]
        %v1569 = vld [vmem:[%s557 + $0x18] sm:$0xff]
        %v1570 = vpack.c.bf16 %v1567, %v1566
        %v1571 = vpack.c.bf16 %v1569, %v1568
        %v1572 = vld [vmem:[#allocation12] sm:$0xf]
        %v1573 = vld [vmem:[#allocation12 + $0x4] sm:$0xf]
        %v1574 = vld [vmem:[#allocation12 + $0x8] sm:$0xf]
        %v1575 = vld [vmem:[#allocation12 + $0xc] sm:$0xf]
        %v1576 = vld [vmem:[#allocation12 + $0x10] sm:$0xf]
        %v1577 = vld [vmem:[#allocation12 + $0x14] sm:$0xf]
        %v1578 = vld [vmem:[#allocation12 + $0x18] sm:$0xf]
        %v1579 = vld [vmem:[#allocation12 + $0x1c] sm:$0xf]
        %v1580 = vld [vmem:[#allocation12 + $0x20] sm:$0xf]
        %v1581 = vld [vmem:[#allocation12 + $0x24] sm:$0xf]
        %v1582 = vld [vmem:[#allocation12 + $0x28] sm:$0xf]
        %v1583 = vld [vmem:[#allocation12 + $0x2c] sm:$0xf]
        %v1584 = vld [vmem:[#allocation12 + $0x30] sm:$0xf]
        %v1585 = vld [vmem:[#allocation12 + $0x34] sm:$0xf]
        %v1586 = vld [vmem:[#allocation12 + $0x38] sm:$0xf]
        %v1587 = vld [vmem:[#allocation12 + $0x3c] sm:$0xf]
        %v1588 = vld [vmem:[%s5] sm:$0x1]
        %v1589 = vunpack.c.l.bf16 %v1588
        %v1590 = vlaneseq
        %v1591 = vshrl.u32 %v1590, 7
        %v1592 = vsub.s32 0, %v1591
        %v1593 = vrot.slane %v1589, %v1592
        %v1610 = vunpack.c.l.b16 %v1572
        %v1611 = vunpack.c.l.b16 %v1573
        %v1612 = vunpack.c.l.b16 %v1574
        %v1613 = vunpack.c.l.b16 %v1575
        %v1614 = vunpack.c.l.b16 %v1576
        %v1615 = vunpack.c.l.b16 %v1577
        %v1616 = vunpack.c.l.b16 %v1578
        %v1617 = vunpack.c.l.b16 %v1579
        %v1618 = vunpack.c.l.b16 %v1580
        %v1619 = vunpack.c.l.b16 %v1581
        %v1620 = vunpack.c.l.b16 %v1582
        %v1621 = vunpack.c.l.b16 %v1583
        %v1622 = vunpack.c.l.b16 %v1584
        %v1623 = vunpack.c.l.b16 %v1585
        %v1624 = vunpack.c.l.b16 %v1586
        %v1625 = vunpack.c.l.b16 %v1587
        %v1626 = vpack.c.b16 %v1611, %v1610
        %v1627 = vpack.c.b16 %v1613, %v1612
        %v1628 = vpack.c.b16 %v1615, %v1614
        %v1629 = vpack.c.b16 %v1617, %v1616
        %v1630 = vpack.c.b16 %v1619, %v1618
        %v1631 = vpack.c.b16 %v1621, %v1620
        %v1632 = vpack.c.b16 %v1623, %v1622
        %v1633 = vpack.c.b16 %v1625, %v1624
        %1642 = vmatprep.subr.bf16.mxu0 0
        %1643 = vmatpush1.bf16.msra.mxu0 %v1626
        %1644 = vmatprep.subr.bf16.mxu0 0
        %1645 = vmatpush1.bf16.msra.mxu0 %v1627
        %1646 = vmatprep.subr.bf16.mxu0 0
        %1647 = vmatpush1.bf16.msra.mxu0 %v1628
        %1648 = vmatprep.subr.bf16.mxu0 0
        %1649 = vmatpush1.bf16.msra.mxu0 %v1629
        %1650 = vmatprep.subr.bf16.mxu0 0
        %1651 = vmatpush1.bf16.msra.mxu0 %v1630
        %1652 = vmatprep.subr.bf16.mxu0 0
        %1653 = vmatpush1.bf16.msra.mxu0 %v1631
        %1654 = vmatprep.subr.bf16.mxu0 0
        %1655 = vmatpush1.bf16.msra.mxu0 %v1632
        %1656 = vmatprep.subr.bf16.mxu0 0
        %1657 = vmatpush1.bf16.msra.mxu0 %v1633
        %1658 = vmatprep.subr.bf16.mxu0 0
        %1659 = vmatpush1.bf16.msra.mxu0 0
        %1660 = vmatprep.subr.bf16.mxu0 0
        %1661 = vmatpush1.bf16.msra.mxu0 0
        %1662 = vmatprep.subr.bf16.mxu0 0
        %1663 = vmatpush1.bf16.msra.mxu0 0
        %1664 = vmatprep.subr.bf16.mxu0 0
        %1665 = vmatpush1.bf16.msra.mxu0 0
        %1666 = vmatprep.subr.bf16.mxu0 0
        %1667 = vmatpush1.bf16.msra.mxu0 0
        %1668 = vmatprep.subr.bf16.mxu0 0
        %1669 = vmatpush1.bf16.msra.mxu0 0
        %1670 = vmatprep.subr.bf16.mxu0 0
        %1671 = vmatpush1.bf16.msra.mxu0 0
        %1672 = vmatprep.subr.bf16.mxu0 0
        %1673 = vmatpush1.bf16.msra.mxu0 0
        %1674 = vmatprep.mubr.bf16.mxu0 0
        %1675 = vmatmul.mubr.bf16.gmra.mrb[0].mxu0 %v1570
        %v1676 = vpop.f32.mrb[0].mxu0
        %v1677 = vadd.f32 %v1593, %v1676
        %v1678 = vpop.f32.mrb[0].mxu0
        %v1679 = vpop.f32.mrb[0].mxu0
        %v1680 = vadd.f32 %v1593, %v1679
        %v1681 = vpop.f32.mrb[0].mxu0
        %1682 = vmatprep.mubr.bf16.mxu0 0
        %1683 = vmatmul.mubr.bf16.gmra.mrb[0].mxu0 %v1571
        %v1684 = vpop.f32.mrb[0].mxu0
        %v1685 = vadd.f32 %v1593, %v1684
        %v1686 = vpop.f32.mrb[0].mxu0
        %v1687 = vpop.f32.mrb[0].mxu0
        %v1688 = vadd.f32 %v1593, %v1687
        %v1689 = vpop.f32.mrb[0].mxu0
        %1690 = vdwg.mxu0
        %v1691 = vld [vmem:[#allocation14] sm:$0xf]
        %v1692 = vld [vmem:[#allocation14 + $0x4] sm:$0xf]
        %v1693 = vld [vmem:[#allocation14 + $0x8] sm:$0xf]
        %v1694 = vld [vmem:[#allocation14 + $0xc] sm:$0xf]
        %v1695 = vld [vmem:[#allocation14 + $0x10] sm:$0xf]
        %v1696 = vld [vmem:[#allocation14 + $0x14] sm:$0xf]
        %v1697 = vld [vmem:[#allocation14 + $0x18] sm:$0xf]
        %v1698 = vld [vmem:[#allocation14 + $0x1c] sm:$0xf]
        %v1699 = vld [vmem:[#allocation14 + $0x20] sm:$0xf]
        %v1700 = vld [vmem:[#allocation14 + $0x24] sm:$0xf]
        %v1701 = vld [vmem:[#allocation14 + $0x28] sm:$0xf]
        %v1702 = vld [vmem:[#allocation14 + $0x2c] sm:$0xf]
        %v1703 = vld [vmem:[#allocation14 + $0x30] sm:$0xf]
        %v1704 = vld [vmem:[#allocation14 + $0x34] sm:$0xf]
        %v1705 = vld [vmem:[#allocation14 + $0x38] sm:$0xf]
        %v1706 = vld [vmem:[#allocation14 + $0x3c] sm:$0xf]
        %v1707 = vld [vmem:[%s7] sm:$0x1]
        %v1708 = vunpack.c.l.bf16 %v1707
        %v1709 = vlaneseq
        %v1710 = vshrl.u32 %v1709, 7
        %v1711 = vsub.s32 0, %v1710
        %v1712 = vrot.slane %v1708, %v1711
        %v1729 = vunpack.c.l.b16 %v1691
        %v1730 = vunpack.c.l.b16 %v1692
        %v1731 = vunpack.c.l.b16 %v1693
        %v1732 = vunpack.c.l.b16 %v1694
        %v1733 = vunpack.c.l.b16 %v1695
        %v1734 = vunpack.c.l.b16 %v1696
        %v1735 = vunpack.c.l.b16 %v1697
        %v1736 = vunpack.c.l.b16 %v1698
        %v1737 = vunpack.c.l.b16 %v1699
        %v1738 = vunpack.c.l.b16 %v1700
        %v1739 = vunpack.c.l.b16 %v1701
        %v1740 = vunpack.c.l.b16 %v1702
        %v1741 = vunpack.c.l.b16 %v1703
        %v1742 = vunpack.c.l.b16 %v1704
        %v1743 = vunpack.c.l.b16 %v1705
        %v1744 = vunpack.c.l.b16 %v1706
        %v1745 = vpack.c.b16 %v1730, %v1729
        %v1746 = vpack.c.b16 %v1732, %v1731
        %v1747 = vpack.c.b16 %v1734, %v1733
        %v1748 = vpack.c.b16 %v1736, %v1735
        %v1749 = vpack.c.b16 %v1738, %v1737
        %v1750 = vpack.c.b16 %v1740, %v1739
        %v1751 = vpack.c.b16 %v1742, %v1741
        %v1752 = vpack.c.b16 %v1744, %v1743
        %1761 = vmatprep.subr.bf16.mxu0 0
        %1762 = vmatpush1.bf16.msra.mxu0 %v1745
        %1763 = vmatprep.subr.bf16.mxu0 0
        %1764 = vmatpush1.bf16.msra.mxu0 %v1746
        %1765 = vmatprep.subr.bf16.mxu0 0
        %1766 = vmatpush1.bf16.msra.mxu0 %v1747
        %1767 = vmatprep.subr.bf16.mxu0 0
        %1768 = vmatpush1.bf16.msra.mxu0 %v1748
        %1769 = vmatprep.subr.bf16.mxu0 0
        %1770 = vmatpush1.bf16.msra.mxu0 %v1749
        %1771 = vmatprep.subr.bf16.mxu0 0
        %1772 = vmatpush1.bf16.msra.mxu0 %v1750
        %1773 = vmatprep.subr.bf16.mxu0 0
        %1774 = vmatpush1.bf16.msra.mxu0 %v1751
        %1775 = vmatprep.subr.bf16.mxu0 0
        %1776 = vmatpush1.bf16.msra.mxu0 %v1752
        %1777 = vmatprep.subr.bf16.mxu0 0
        %1778 = vmatpush1.bf16.msra.mxu0 0
        %1779 = vmatprep.subr.bf16.mxu0 0
        %1780 = vmatpush1.bf16.msra.mxu0 0
        %1781 = vmatprep.subr.bf16.mxu0 0
        %1782 = vmatpush1.bf16.msra.mxu0 0
        %1783 = vmatprep.subr.bf16.mxu0 0
        %1784 = vmatpush1.bf16.msra.mxu0 0
        %1785 = vmatprep.subr.bf16.mxu0 0
        %1786 = vmatpush1.bf16.msra.mxu0 0
        %1787 = vmatprep.subr.bf16.mxu0 0
        %1788 = vmatpush1.bf16.msra.mxu0 0
        %1789 = vmatprep.subr.bf16.mxu0 0
        %1790 = vmatpush1.bf16.msra.mxu0 0
        %1791 = vmatprep.subr.bf16.mxu0 0
        %1792 = vmatpush1.bf16.msra.mxu0 0
        %1793 = vmatprep.mubr.bf16.mxu0 0
        %1794 = vmatmul.mubr.bf16.gmra.mrb[0].mxu0 %v1570
        %v1795 = vpop.f32.mrb[0].mxu0
        %v1796 = vadd.f32 %v1712, %v1795
        %v1797 = vpop.f32.mrb[0].mxu0
        %v1798 = vpop.f32.mrb[0].mxu0
        %v1799 = vadd.f32 %v1712, %v1798
        %v1800 = vpop.f32.mrb[0].mxu0
        %1801 = vmatprep.mubr.bf16.mxu0 0
        %1802 = vmatmul.mubr.bf16.gmra.mrb[0].mxu0 %v1571
        %v1803 = vpop.f32.mrb[0].mxu0
        %v1804 = vadd.f32 %v1712, %v1803
        %v1805 = vpop.f32.mrb[0].mxu0
        %v1806 = vpop.f32.mrb[0].mxu0
        %v1807 = vadd.f32 %v1712, %v1806
        %v1808 = vpop.f32.mrb[0].mxu0
        %1809 = vdwg.mxu0
        %1810 = vxpose.xlu0.b32.start [1/16] %v1677, 128
        %1811 = vxpose.xlu0.b32.cont [2/16] %v1680, 128
        %1812 = vxpose.xlu0.b32.cont [3/16] %v1685, 128
        %1813 = vxpose.xlu0.b32.cont [4/16] %v1688, 128
        %1814 = vxpose.xlu0.b32.cont [5/16] 0.0, 128
        %1815 = vxpose.xlu0.b32.cont [6/16] 0.0, 128
        %1816 = vxpose.xlu0.b32.cont [7/16] 0.0, 128
        %1817 = vxpose.xlu0.b32.cont [8/16] 0.0, 128
        %1818 = vxpose.xlu0.b32.cont [9/16] 0.0, 128
        %1819 = vxpose.xlu0.b32.cont [10/16] 0.0, 128
        %1820 = vxpose.xlu0.b32.cont [11/16] 0.0, 128
        %1821 = vxpose.xlu0.b32.cont [12/16] 0.0, 128
        %1822 = vxpose.xlu0.b32.cont [13/16] 0.0, 128
        %1823 = vxpose.xlu0.b32.cont [14/16] 0.0, 128
        %1824 = vxpose.xlu0.b32.cont [15/16] 0.0, 128
        %1825 = vxpose.xlu0.b32.end [16/16] 0.0, 128
        %v1826 = vpop.trf.xlu0
        %v1827 = vpop.trf.xlu0
        %v1828 = vpop.trf.xlu0
        %v1829 = vpop.trf.xlu0
        %v1830 = vpop.trf.xlu0
        %v1831 = vpop.trf.xlu0
        %v1832 = vpop.trf.xlu0
        %v1833 = vpop.trf.xlu0
        %v1834 = vpop.trf.xlu0
        %v1835 = vpop.trf.xlu0
        %v1836 = vpop.trf.xlu0
        %v1837 = vpop.trf.xlu0
        %v1838 = vpop.trf.xlu0
        %v1839 = vpop.trf.xlu0
        %v1840 = vpop.trf.xlu0
        %v1841 = vpop.trf.xlu0
        %v1842 = vpack.c.bf16 %v1826, %v1826
        %v1843 = vpack.c.bf16 %v1827, %v1827
        %v1844 = vpack.c.bf16 %v1828, %v1828
        %v1845 = vpack.c.bf16 %v1829, %v1829
        %v1846 = vpack.c.bf16 %v1830, %v1830
        %v1847 = vpack.c.bf16 %v1831, %v1831
        %v1848 = vpack.c.bf16 %v1832, %v1832
        %v1849 = vpack.c.bf16 %v1833, %v1833
        %v1850 = vpack.c.bf16 %v1834, %v1834
        %v1851 = vpack.c.bf16 %v1835, %v1835
        %v1852 = vpack.c.bf16 %v1836, %v1836
        %v1853 = vpack.c.bf16 %v1837, %v1837
        %v1854 = vpack.c.bf16 %v1838, %v1838
        %v1855 = vpack.c.bf16 %v1839, %v1839
        %v1856 = vpack.c.bf16 %v1840, %v1840
        %v1857 = vpack.c.bf16 %v1841, %v1841
        %1858 = vxpose.xlu0.b32.start [1/16] %v1796, 128
        %1859 = vxpose.xlu0.b32.cont [2/16] %v1799, 128
        %1860 = vxpose.xlu0.b32.cont [3/16] %v1804, 128
        %1861 = vxpose.xlu0.b32.cont [4/16] %v1807, 128
        %1862 = vxpose.xlu0.b32.cont [5/16] 0.0, 128
        %1863 = vxpose.xlu0.b32.cont [6/16] 0.0, 128
        %1864 = vxpose.xlu0.b32.cont [7/16] 0.0, 128
        %1865 = vxpose.xlu0.b32.cont [8/16] 0.0, 128
        %1866 = vxpose.xlu0.b32.cont [9/16] 0.0, 128
        %1867 = vxpose.xlu0.b32.cont [10/16] 0.0, 128
        %1868 = vxpose.xlu0.b32.cont [11/16] 0.0, 128
        %1869 = vxpose.xlu0.b32.cont [12/16] 0.0, 128
        %1870 = vxpose.xlu0.b32.cont [13/16] 0.0, 128
        %1871 = vxpose.xlu0.b32.cont [14/16] 0.0, 128
        %1872 = vxpose.xlu0.b32.cont [15/16] 0.0, 128
        %1873 = vxpose.xlu0.b32.end [16/16] 0.0, 128
        %v1874 = vpop.trf.xlu0
        %v1875 = vpop.trf.xlu0
        %v1876 = vpop.trf.xlu0
        %v1877 = vpop.trf.xlu0
        %v1878 = vpop.trf.xlu0
        %v1879 = vpop.trf.xlu0
        %v1880 = vpop.trf.xlu0
        %v1881 = vpop.trf.xlu0
        %v1882 = vpop.trf.xlu0
        %v1883 = vpop.trf.xlu0
        %v1884 = vpop.trf.xlu0
        %v1885 = vpop.trf.xlu0
        %v1886 = vpop.trf.xlu0
        %v1887 = vpop.trf.xlu0
        %v1888 = vpop.trf.xlu0
        %v1889 = vpop.trf.xlu0
        %v1890 = vpack.c.bf16 %v1874, %v1874
        %v1891 = vpack.c.bf16 %v1875, %v1875
        %v1892 = vpack.c.bf16 %v1876, %v1876
        %v1893 = vpack.c.bf16 %v1877, %v1877
        %v1894 = vpack.c.bf16 %v1878, %v1878
        %v1895 = vpack.c.bf16 %v1879, %v1879
        %v1896 = vpack.c.bf16 %v1880, %v1880
        %v1897 = vpack.c.bf16 %v1881, %v1881
        %v1898 = vpack.c.bf16 %v1882, %v1882
        %v1899 = vpack.c.bf16 %v1883, %v1883
        %v1900 = vpack.c.bf16 %v1884, %v1884
        %v1901 = vpack.c.bf16 %v1885, %v1885
        %v1902 = vpack.c.bf16 %v1886, %v1886
        %v1903 = vpack.c.bf16 %v1887, %v1887
        %v1904 = vpack.c.bf16 %v1888, %v1888
        %v1905 = vpack.c.bf16 %v1889, %v1889
        %v1906 = vld [vmem:[#allocation2] sm:$0xff]
        %v1907 = vld [vmem:[#allocation2 + $0x8] sm:$0xff]
        %v1908 = vld [vmem:[#allocation2 + $0x10] sm:$0xff]
        %v1909 = vld [vmem:[#allocation2 + $0x18] sm:$0xff]
        %v1910 = vld [vmem:[#allocation2 + $0x20] sm:$0xff]
        %v1911 = vld [vmem:[#allocation2 + $0x28] sm:$0xff]
        %v1912 = vld [vmem:[#allocation2 + $0x30] sm:$0xff]
        %v1913 = vld [vmem:[#allocation2 + $0x38] sm:$0xff]
        %v1914 = vld [vmem:[#allocation2 + $0x40] sm:$0xff]
        %v1915 = vld [vmem:[#allocation2 + $0x48] sm:$0xff]
        %v1916 = vld [vmem:[#allocation2 + $0x50] sm:$0xff]
        %v1917 = vld [vmem:[#allocation2 + $0x58] sm:$0xff]
        %v1918 = vld [vmem:[#allocation2 + $0x60] sm:$0xff]
        %v1919 = vld [vmem:[#allocation2 + $0x68] sm:$0xff]
        %v1920 = vld [vmem:[#allocation2 + $0x70] sm:$0xff]
        %v1921 = vld [vmem:[#allocation2 + $0x78] sm:$0xff]
        %v1922 = vld [vmem:[#allocation2 + $0x80] sm:$0xff]
        %v1923 = vld [vmem:[#allocation2 + $0x88] sm:$0xff]
        %v1924 = vld [vmem:[#allocation2 + $0x90] sm:$0xff]
        %v1925 = vld [vmem:[#allocation2 + $0x98] sm:$0xff]
        %v1926 = vld [vmem:[#allocation2 + $0xa0] sm:$0xff]
        %v1927 = vld [vmem:[#allocation2 + $0xa8] sm:$0xff]
        %v1928 = vld [vmem:[#allocation2 + $0xb0] sm:$0xff]
        %v1929 = vld [vmem:[#allocation2 + $0xb8] sm:$0xff]
        %v1930 = vld [vmem:[#allocation2 + $0xc0] sm:$0xff]
        %v1931 = vld [vmem:[#allocation2 + $0xc8] sm:$0xff]
        %v1932 = vld [vmem:[#allocation2 + $0xd0] sm:$0xff]
        %v1933 = vld [vmem:[#allocation2 + $0xd8] sm:$0xff]
        %v1934 = vld [vmem:[#allocation2 + $0xe0] sm:$0xff]
        %v1935 = vld [vmem:[#allocation2 + $0xe8] sm:$0xff]
        %v1936 = vld [vmem:[#allocation2 + $0xf0] sm:$0xff]
        %v1937 = vld [vmem:[#allocation2 + $0xf8] sm:$0xff]
        %vm1938 = vcmask 64512
        %v1940 = vsel %vm1938, %v1906, 0
        %v1943 = vsel %vm1938, %v1907, 0
        %vm1945 = vcmask 1043456
        %v1947 = vsel %vm1945, %v1842, 0
        %1949 = vmatprep.subr.bf16.mxu0 0
        %1950 = vmatpush1.bf16.msra.mxu0 %v1947
        %1951 = vmatprep.subr.bf16.mxu0 0
        %1952 = vmatpush1.bf16.msra.mxu0 0
        %1953 = vmatprep.subr.bf16.mxu0 0
        %1954 = vmatpush1.bf16.msra.mxu0 0
        %1955 = vmatprep.subr.bf16.mxu0 0
        %1956 = vmatpush1.bf16.msra.mxu0 0
        %1957 = vmatprep.subr.bf16.mxu0 0
        %1958 = vmatpush1.bf16.msra.mxu0 0
        %1959 = vmatprep.subr.bf16.mxu0 0
        %1960 = vmatpush1.bf16.msra.mxu0 0
        %1961 = vmatprep.subr.bf16.mxu0 0
        %1962 = vmatpush1.bf16.msra.mxu0 0
        %1963 = vmatprep.subr.bf16.mxu0 0
        %1964 = vmatpush1.bf16.msra.mxu0 0
        %1965 = vmatprep.subr.bf16.mxu0 0
        %1966 = vmatpush1.bf16.msra.mxu0 0
        %1967 = vmatprep.subr.bf16.mxu0 0
        %1968 = vmatpush1.bf16.msra.mxu0 0
        %1969 = vmatprep.subr.bf16.mxu0 0
        %1970 = vmatpush1.bf16.msra.mxu0 0
        %1971 = vmatprep.subr.bf16.mxu0 0
        %1972 = vmatpush1.bf16.msra.mxu0 0
        %1973 = vmatprep.subr.bf16.mxu0 0
        %1974 = vmatpush1.bf16.msra.mxu0 0
        %1975 = vmatprep.subr.bf16.mxu0 0
        %1976 = vmatpush1.bf16.msra.mxu0 0
        %1977 = vmatprep.subr.bf16.mxu0 0
        %1978 = vmatpush1.bf16.msra.mxu0 0
        %1979 = vmatprep.subr.bf16.mxu0 0
        %1980 = vmatpush1.bf16.msra.mxu0 0
        %1981 = vmatprep.mubr.bf16.mxu0 0
        %1982 = vmatmul.mubr.bf16.gmra.mrb[0].mxu0 %v1940
        %v1983 = vpop.f32.mrb[0].mxu0
        %v1984 = vadd.f32 0.0, %v1983
        %v1985 = vpop.f32.mrb[0].mxu0
        %v1986 = vpop.f32.mrb[0].mxu0
        %v1987 = vadd.f32 0.0, %v1986
        %v1988 = vpop.f32.mrb[0].mxu0
        %1989 = vmatprep.mubr.bf16.mxu0 0
        %1990 = vmatmul.mubr.bf16.gmra.mrb[0].mxu0 %v1943
        %v1991 = vpop.f32.mrb[0].mxu0
        %v1992 = vadd.f32 0.0, %v1991
        %v1993 = vpop.f32.mrb[0].mxu0
        %v1994 = vpop.f32.mrb[0].mxu0
        %v1995 = vadd.f32 0.0, %v1994
        %v1996 = vpop.f32.mrb[0].mxu0
        %1997 = vdwg.mxu0
        %v1999 = vsel %vm1938, %v1908, 0
        %v2002 = vsel %vm1938, %v1909, 0
        %v2005 = vsel %vm1945, %v1843, 0
        %2007 = vmatprep.subr.bf16.mxu0 0
        %2008 = vmatpush1.bf16.msra.mxu0 %v2005
        %2009 = vmatprep.subr.bf16.mxu0 0
        %2010 = vmatpush1.bf16.msra.mxu0 0
        %2011 = vmatprep.subr.bf16.mxu0 0
        %2012 = vmatpush1.bf16.msra.mxu0 0
        %2013 = vmatprep.subr.bf16.mxu0 0
        %2014 = vmatpush1.bf16.msra.mxu0 0
        %2015 = vmatprep.subr.bf16.mxu0 0
        %2016 = vmatpush1.bf16.msra.mxu0 0
        %2017 = vmatprep.subr.bf16.mxu0 0
        %2018 = vmatpush1.bf16.msra.mxu0 0
        %2019 = vmatprep.subr.bf16.mxu0 0
        %2020 = vmatpush1.bf16.msra.mxu0 0
        %2021 = vmatprep.subr.bf16.mxu0 0
        %2022 = vmatpush1.bf16.msra.mxu0 0
        %2023 = vmatprep.subr.bf16.mxu0 0
        %2024 = vmatpush1.bf16.msra.mxu0 0
        %2025 = vmatprep.subr.bf16.mxu0 0
        %2026 = vmatpush1.bf16.msra.mxu0 0
        %2027 = vmatprep.subr.bf16.mxu0 0
        %2028 = vmatpush1.bf16.msra.mxu0 0
        %2029 = vmatprep.subr.bf16.mxu0 0
        %2030 = vmatpush1.bf16.msra.mxu0 0
        %2031 = vmatprep.subr.bf16.mxu0 0
        %2032 = vmatpush1.bf16.msra.mxu0 0
        %2033 = vmatprep.subr.bf16.mxu0 0
        %2034 = vmatpush1.bf16.msra.mxu0 0
        %2035 = vmatprep.subr.bf16.mxu0 0
        %2036 = vmatpush1.bf16.msra.mxu0 0
        %2037 = vmatprep.subr.bf16.mxu0 0
        %2038 = vmatpush1.bf16.msra.mxu0 0
        %2039 = vmatprep.mubr.bf16.mxu0 0
        %2040 = vmatmul.mubr.bf16.gmra.mrb[0].mxu0 %v1999
        %v2041 = vpop.f32.mrb[0].mxu0
        %v2042 = vadd.f32 0.0, %v2041
        %v2043 = vpop.f32.mrb[0].mxu0
        %v2044 = vpop.f32.mrb[0].mxu0
        %v2045 = vadd.f32 0.0, %v2044
        %v2046 = vpop.f32.mrb[0].mxu0
        %2047 = vmatprep.mubr.bf16.mxu0 0
        %2048 = vmatmul.mubr.bf16.gmra.mrb[0].mxu0 %v2002
        %v2049 = vpop.f32.mrb[0].mxu0
        %v2050 = vadd.f32 0.0, %v2049
        %v2051 = vpop.f32.mrb[0].mxu0
        %v2052 = vpop.f32.mrb[0].mxu0
        %v2053 = vadd.f32 0.0, %v2052
        %v2054 = vpop.f32.mrb[0].mxu0
        %2055 = vdwg.mxu0
        %v2057 = vsel %vm1938, %v1910, 0
        %v2060 = vsel %vm1938, %v1911, 0
        %v2063 = vsel %vm1945, %v1844, 0
        %2065 = vmatprep.subr.bf16.mxu0 0
        %2066 = vmatpush1.bf16.msra.mxu0 %v2063
        %2067 = vmatprep.subr.bf16.mxu0 0
        %2068 = vmatpush1.bf16.msra.mxu0 0
        %2069 = vmatprep.subr.bf16.mxu0 0
        %2070 = vmatpush1.bf16.msra.mxu0 0
        %2071 = vmatprep.subr.bf16.mxu0 0
        %2072 = vmatpush1.bf16.msra.mxu0 0
        %2073 = vmatprep.subr.bf16.mxu0 0
        %2074 = vmatpush1.bf16.msra.mxu0 0
        %2075 = vmatprep.subr.bf16.mxu0 0
        %2076 = vmatpush1.bf16.msra.mxu0 0
        %2077 = vmatprep.subr.bf16.mxu0 0
        %2078 = vmatpush1.bf16.msra.mxu0 0
        %2079 = vmatprep.subr.bf16.mxu0 0
        %2080 = vmatpush1.bf16.msra.mxu0 0
        %2081 = vmatprep.subr.bf16.mxu0 0
        %2082 = vmatpush1.bf16.msra.mxu0 0
        %2083 = vmatprep.subr.bf16.mxu0 0
        %2084 = vmatpush1.bf16.msra.mxu0 0
        %2085 = vmatprep.subr.bf16.mxu0 0
        %2086 = vmatpush1.bf16.msra.mxu0 0
        %2087 = vmatprep.subr.bf16.mxu0 0
        %2088 = vmatpush1.bf16.msra.mxu0 0
        %2089 = vmatprep.subr.bf16.mxu0 0
        %2090 = vmatpush1.bf16.msra.mxu0 0
        %2091 = vmatprep.subr.bf16.mxu0 0
        %2092 = vmatpush1.bf16.msra.mxu0 0
        %2093 = vmatprep.subr.bf16.mxu0 0
        %2094 = vmatpush1.bf16.msra.mxu0 0
        %2095 = vmatprep.subr.bf16.mxu0 0
        %2096 = vmatpush1.bf16.msra.mxu0 0
        %2097 = vmatprep.mubr.bf16.mxu0 0
        %2098 = vmatmul.mubr.bf16.gmra.mrb[0].mxu0 %v2057
        %v2099 = vpop.f32.mrb[0].mxu0
        %v2100 = vadd.f32 0.0, %v2099
        %v2101 = vpop.f32.mrb[0].mxu0
        %v2102 = vpop.f32.mrb[0].mxu0
        %v2103 = vadd.f32 0.0, %v2102
        %v2104 = vpop.f32.mrb[0].mxu0
        %2105 = vmatprep.mubr.bf16.mxu0 0
        %2106 = vmatmul.mubr.bf16.gmra.mrb[0].mxu0 %v2060
        %v2107 = vpop.f32.mrb[0].mxu0
        %v2108 = vadd.f32 0.0, %v2107
        %v2109 = vpop.f32.mrb[0].mxu0
        %v2110 = vpop.f32.mrb[0].mxu0
        %v2111 = vadd.f32 0.0, %v2110
        %v2112 = vpop.f32.mrb[0].mxu0
        %2113 = vdwg.mxu0
        %v2115 = vsel %vm1938, %v1912, 0
        %v2118 = vsel %vm1938, %v1913, 0
        %v2121 = vsel %vm1945, %v1845, 0
        %2123 = vmatprep.subr.bf16.mxu0 0
        %2124 = vmatpush1.bf16.msra.mxu0 %v2121
        %2125 = vmatprep.subr.bf16.mxu0 0
        %2126 = vmatpush1.bf16.msra.mxu0 0
        %2127 = vmatprep.subr.bf16.mxu0 0
        %2128 = vmatpush1.bf16.msra.mxu0 0
        %2129 = vmatprep.subr.bf16.mxu0 0
        %2130 = vmatpush1.bf16.msra.mxu0 0
        %2131 = vmatprep.subr.bf16.mxu0 0
        %2132 = vmatpush1.bf16.msra.mxu0 0
        %2133 = vmatprep.subr.bf16.mxu0 0
        %2134 = vmatpush1.bf16.msra.mxu0 0
        %2135 = vmatprep.subr.bf16.mxu0 0
        %2136 = vmatpush1.bf16.msra.mxu0 0
        %2137 = vmatprep.subr.bf16.mxu0 0
        %2138 = vmatpush1.bf16.msra.mxu0 0
        %2139 = vmatprep.subr.bf16.mxu0 0
        %2140 = vmatpush1.bf16.msra.mxu0 0
        %2141 = vmatprep.subr.bf16.mxu0 0
        %2142 = vmatpush1.bf16.msra.mxu0 0
        %2143 = vmatprep.subr.bf16.mxu0 0
        %2144 = vmatpush1.bf16.msra.mxu0 0
        %2145 = vmatprep.subr.bf16.mxu0 0
        %2146 = vmatpush1.bf16.msra.mxu0 0
        %2147 = vmatprep.subr.bf16.mxu0 0
        %2148 = vmatpush1.bf16.msra.mxu0 0
        %2149 = vmatprep.subr.bf16.mxu0 0
        %2150 = vmatpush1.bf16.msra.mxu0 0
        %2151 = vmatprep.subr.bf16.mxu0 0
        %2152 = vmatpush1.bf16.msra.mxu0 0
        %2153 = vmatprep.subr.bf16.mxu0 0
        %2154 = vmatpush1.bf16.msra.mxu0 0
        %2155 = vmatprep.mubr.bf16.mxu0 0
        %2156 = vmatmul.mubr.bf16.gmra.mrb[0].mxu0 %v2115
        %v2157 = vpop.f32.mrb[0].mxu0
        %v2158 = vadd.f32 0.0, %v2157
        %v2159 = vpop.f32.mrb[0].mxu0
        %v2160 = vpop.f32.mrb[0].mxu0
        %v2161 = vadd.f32 0.0, %v2160
        %v2162 = vpop.f32.mrb[0].mxu0
        %2163 = vmatprep.mubr.bf16.mxu0 0
        %2164 = vmatmul.mubr.bf16.gmra.mrb[0].mxu0 %v2118
        %v2165 = vpop.f32.mrb[0].mxu0
        %v2166 = vadd.f32 0.0, %v2165
        %v2167 = vpop.f32.mrb[0].mxu0
        %v2168 = vpop.f32.mrb[0].mxu0
        %v2169 = vadd.f32 0.0, %v2168
        %v2170 = vpop.f32.mrb[0].mxu0
        %2171 = vdwg.mxu0
        %v2173 = vsel %vm1938, %v1914, 0
        %v2176 = vsel %vm1938, %v1915, 0
        %v2179 = vsel %vm1945, %v1846, 0
        %2181 = vmatprep.subr.bf16.mxu0 0
        %2182 = vmatpush1.bf16.msra.mxu0 %v2179
        %2183 = vmatprep.subr.bf16.mxu0 0
        %2184 = vmatpush1.bf16.msra.mxu0 0
        %2185 = vmatprep.subr.bf16.mxu0 0
        %2186 = vmatpush1.bf16.msra.mxu0 0
        %2187 = vmatprep.subr.bf16.mxu0 0
        %2188 = vmatpush1.bf16.msra.mxu0 0
        %2189 = vmatprep.subr.bf16.mxu0 0
        %2190 = vmatpush1.bf16.msra.mxu0 0
        %2191 = vmatprep.subr.bf16.mxu0 0
        %2192 = vmatpush1.bf16.msra.mxu0 0
        %2193 = vmatprep.subr.bf16.mxu0 0
        %2194 = vmatpush1.bf16.msra.mxu0 0
        %2195 = vmatprep.subr.bf16.mxu0 0
        %2196 = vmatpush1.bf16.msra.mxu0 0
        %2197 = vmatprep.subr.bf16.mxu0 0
        %2198 = vmatpush1.bf16.msra.mxu0 0
        %2199 = vmatprep.subr.bf16.mxu0 0
        %2200 = vmatpush1.bf16.msra.mxu0 0
        %2201 = vmatprep.subr.bf16.mxu0 0
        %2202 = vmatpush1.bf16.msra.mxu0 0
        %2203 = vmatprep.subr.bf16.mxu0 0
        %2204 = vmatpush1.bf16.msra.mxu0 0
        %2205 = vmatprep.subr.bf16.mxu0 0
        %2206 = vmatpush1.bf16.msra.mxu0 0
        %2207 = vmatprep.subr.bf16.mxu0 0
        %2208 = vmatpush1.bf16.msra.mxu0 0
        %2209 = vmatprep.subr.bf16.mxu0 0
        %2210 = vmatpush1.bf16.msra.mxu0 0
        %2211 = vmatprep.subr.bf16.mxu0 0
        %2212 = vmatpush1.bf16.msra.mxu0 0
        %2213 = vmatprep.mubr.bf16.mxu0 0
        %2214 = vmatmul.mubr.bf16.gmra.mrb[0].mxu0 %v2173
        %v2215 = vpop.f32.mrb[0].mxu0
        %v2216 = vadd.f32 0.0, %v2215
        %v2217 = vpop.f32.mrb[0].mxu0
        %v2218 = vpop.f32.mrb[0].mxu0
        %v2219 = vadd.f32 0.0, %v2218
        %v2220 = vpop.f32.mrb[0].mxu0
        %2221 = vmatprep.mubr.bf16.mxu0 0
        %2222 = vmatmul.mubr.bf16.gmra.mrb[0].mxu0 %v2176
        %v2223 = vpop.f32.mrb[0].mxu0
        %v2224 = vadd.f32 0.0, %v2223
        %v2225 = vpop.f32.mrb[0].mxu0
        %v2226 = vpop.f32.mrb[0].mxu0
        %v2227 = vadd.f32 0.0, %v2226
        %v2228 = vpop.f32.mrb[0].mxu0
        %2229 = vdwg.mxu0
        %v2231 = vsel %vm1938, %v1916, 0
        %v2234 = vsel %vm1938, %v1917, 0
        %v2237 = vsel %vm1945, %v1847, 0
        %2239 = vmatprep.subr.bf16.mxu0 0
        %2240 = vmatpush1.bf16.msra.mxu0 %v2237
        %2241 = vmatprep.subr.bf16.mxu0 0
        %2242 = vmatpush1.bf16.msra.mxu0 0
        %2243 = vmatprep.subr.bf16.mxu0 0
        %2244 = vmatpush1.bf16.msra.mxu0 0
        %2245 = vmatprep.subr.bf16.mxu0 0
        %2246 = vmatpush1.bf16.msra.mxu0 0
        %2247 = vmatprep.subr.bf16.mxu0 0
        %2248 = vmatpush1.bf16.msra.mxu0 0
        %2249 = vmatprep.subr.bf16.mxu0 0
        %2250 = vmatpush1.bf16.msra.mxu0 0
        %2251 = vmatprep.subr.bf16.mxu0 0
        %2252 = vmatpush1.bf16.msra.mxu0 0
        %2253 = vmatprep.subr.bf16.mxu0 0
        %2254 = vmatpush1.bf16.msra.mxu0 0
        %2255 = vmatprep.subr.bf16.mxu0 0
        %2256 = vmatpush1.bf16.msra.mxu0 0
        %2257 = vmatprep.subr.bf16.mxu0 0
        %2258 = vmatpush1.bf16.msra.mxu0 0
        %2259 = vmatprep.subr.bf16.mxu0 0
        %2260 = vmatpush1.bf16.msra.mxu0 0
        %2261 = vmatprep.subr.bf16.mxu0 0
        %2262 = vmatpush1.bf16.msra.mxu0 0
        %2263 = vmatprep.subr.bf16.mxu0 0
        %2264 = vmatpush1.bf16.msra.mxu0 0
        %2265 = vmatprep.subr.bf16.mxu0 0
        %2266 = vmatpush1.bf16.msra.mxu0 0
        %2267 = vmatprep.subr.bf16.mxu0 0
        %2268 = vmatpush1.bf16.msra.mxu0 0
        %2269 = vmatprep.subr.bf16.mxu0 0
        %2270 = vmatpush1.bf16.msra.mxu0 0
        %2271 = vmatprep.mubr.bf16.mxu0 0
        %2272 = vmatmul.mubr.bf16.gmra.mrb[0].mxu0 %v2231
        %v2273 = vpop.f32.mrb[0].mxu0
        %v2274 = vadd.f32 0.0, %v2273
        %v2275 = vpop.f32.mrb[0].mxu0
        %v2276 = vpop.f32.mrb[0].mxu0
        %v2277 = vadd.f32 0.0, %v2276
        %v2278 = vpop.f32.mrb[0].mxu0
        %2279 = vmatprep.mubr.bf16.mxu0 0
        %2280 = vmatmul.mubr.bf16.gmra.mrb[0].mxu0 %v2234
        %v2281 = vpop.f32.mrb[0].mxu0
        %v2282 = vadd.f32 0.0, %v2281
        %v2283 = vpop.f32.mrb[0].mxu0
        %v2284 = vpop.f32.mrb[0].mxu0
        %v2285 = vadd.f32 0.0, %v2284
        %v2286 = vpop.f32.mrb[0].mxu0
        %2287 = vdwg.mxu0
        %v2289 = vsel %vm1938, %v1918, 0
        %v2292 = vsel %vm1938, %v1919, 0
        %v2295 = vsel %vm1945, %v1848, 0
        %2297 = vmatprep.subr.bf16.mxu0 0
        %2298 = vmatpush1.bf16.msra.mxu0 %v2295
        %2299 = vmatprep.subr.bf16.mxu0 0
        %2300 = vmatpush1.bf16.msra.mxu0 0
        %2301 = vmatprep.subr.bf16.mxu0 0
        %2302 = vmatpush1.bf16.msra.mxu0 0
        %2303 = vmatprep.subr.bf16.mxu0 0
        %2304 = vmatpush1.bf16.msra.mxu0 0
        %2305 = vmatprep.subr.bf16.mxu0 0
        %2306 = vmatpush1.bf16.msra.mxu0 0
        %2307 = vmatprep.subr.bf16.mxu0 0
        %2308 = vmatpush1.bf16.msra.mxu0 0
        %2309 = vmatprep.subr.bf16.mxu0 0
        %2310 = vmatpush1.bf16.msra.mxu0 0
        %2311 = vmatprep.subr.bf16.mxu0 0
        %2312 = vmatpush1.bf16.msra.mxu0 0
        %2313 = vmatprep.subr.bf16.mxu0 0
        %2314 = vmatpush1.bf16.msra.mxu0 0
        %2315 = vmatprep.subr.bf16.mxu0 0
        %2316 = vmatpush1.bf16.msra.mxu0 0
        %2317 = vmatprep.subr.bf16.mxu0 0
        %2318 = vmatpush1.bf16.msra.mxu0 0
        %2319 = vmatprep.subr.bf16.mxu0 0
        %2320 = vmatpush1.bf16.msra.mxu0 0
        %2321 = vmatprep.subr.bf16.mxu0 0
        %2322 = vmatpush1.bf16.msra.mxu0 0
        %2323 = vmatprep.subr.bf16.mxu0 0
        %2324 = vmatpush1.bf16.msra.mxu0 0
        %2325 = vmatprep.subr.bf16.mxu0 0
        %2326 = vmatpush1.bf16.msra.mxu0 0
        %2327 = vmatprep.subr.bf16.mxu0 0
        %2328 = vmatpush1.bf16.msra.mxu0 0
        %2329 = vmatprep.mubr.bf16.mxu0 0
        %2330 = vmatmul.mubr.bf16.gmra.mrb[0].mxu0 %v2289
        %v2331 = vpop.f32.mrb[0].mxu0
        %v2332 = vadd.f32 0.0, %v2331
        %v2333 = vpop.f32.mrb[0].mxu0
        %v2334 = vpop.f32.mrb[0].mxu0
        %v2335 = vadd.f32 0.0, %v2334
        %v2336 = vpop.f32.mrb[0].mxu0
        %2337 = vmatprep.mubr.bf16.mxu0 0
        %2338 = vmatmul.mubr.bf16.gmra.mrb[0].mxu0 %v2292
        %v2339 = vpop.f32.mrb[0].mxu0
        %v2340 = vadd.f32 0.0, %v2339
        %v2341 = vpop.f32.mrb[0].mxu0
        %v2342 = vpop.f32.mrb[0].mxu0
        %v2343 = vadd.f32 0.0, %v2342
        %v2344 = vpop.f32.mrb[0].mxu0
        %2345 = vdwg.mxu0
        %v2347 = vsel %vm1938, %v1920, 0
        %v2350 = vsel %vm1938, %v1921, 0
        %v2353 = vsel %vm1945, %v1849, 0
        %2355 = vmatprep.subr.bf16.mxu0 0
        %2356 = vmatpush1.bf16.msra.mxu0 %v2353
        %2357 = vmatprep.subr.bf16.mxu0 0
        %2358 = vmatpush1.bf16.msra.mxu0 0
        %2359 = vmatprep.subr.bf16.mxu0 0
        %2360 = vmatpush1.bf16.msra.mxu0 0
        %2361 = vmatprep.subr.bf16.mxu0 0
        %2362 = vmatpush1.bf16.msra.mxu0 0
        %2363 = vmatprep.subr.bf16.mxu0 0
        %2364 = vmatpush1.bf16.msra.mxu0 0
        %2365 = vmatprep.subr.bf16.mxu0 0
        %2366 = vmatpush1.bf16.msra.mxu0 0
        %2367 = vmatprep.subr.bf16.mxu0 0
        %2368 = vmatpush1.bf16.msra.mxu0 0
        %2369 = vmatprep.subr.bf16.mxu0 0
        %2370 = vmatpush1.bf16.msra.mxu0 0
        %2371 = vmatprep.subr.bf16.mxu0 0
        %2372 = vmatpush1.bf16.msra.mxu0 0
        %2373 = vmatprep.subr.bf16.mxu0 0
        %2374 = vmatpush1.bf16.msra.mxu0 0
        %2375 = vmatprep.subr.bf16.mxu0 0
        %2376 = vmatpush1.bf16.msra.mxu0 0
        %2377 = vmatprep.subr.bf16.mxu0 0
        %2378 = vmatpush1.bf16.msra.mxu0 0
        %2379 = vmatprep.subr.bf16.mxu0 0
        %2380 = vmatpush1.bf16.msra.mxu0 0
        %2381 = vmatprep.subr.bf16.mxu0 0
        %2382 = vmatpush1.bf16.msra.mxu0 0
        %2383 = vmatprep.subr.bf16.mxu0 0
        %2384 = vmatpush1.bf16.msra.mxu0 0
        %2385 = vmatprep.subr.bf16.mxu0 0
        %2386 = vmatpush1.bf16.msra.mxu0 0
        %2387 = vmatprep.mubr.bf16.mxu0 0
        %2388 = vmatmul.mubr.bf16.gmra.mrb[0].mxu0 %v2347
        %v2389 = vpop.f32.mrb[0].mxu0
        %v2390 = vadd.f32 0.0, %v2389
        %v2391 = vpop.f32.mrb[0].mxu0
        %v2392 = vpop.f32.mrb[0].mxu0
        %v2393 = vadd.f32 0.0, %v2392
        %v2394 = vpop.f32.mrb[0].mxu0
        %2395 = vmatprep.mubr.bf16.mxu0 0
        %2396 = vmatmul.mubr.bf16.gmra.mrb[0].mxu0 %v2350
        %v2397 = vpop.f32.mrb[0].mxu0
        %v2398 = vadd.f32 0.0, %v2397
        %v2399 = vpop.f32.mrb[0].mxu0
        %v2400 = vpop.f32.mrb[0].mxu0
        %v2401 = vadd.f32 0.0, %v2400
        %v2402 = vpop.f32.mrb[0].mxu0
        %2403 = vdwg.mxu0
        %v2405 = vsel %vm1938, %v1922, 0
        %v2408 = vsel %vm1938, %v1923, 0
        %v2411 = vsel %vm1945, %v1850, 0
        %2413 = vmatprep.subr.bf16.mxu0 0
        %2414 = vmatpush1.bf16.msra.mxu0 %v2411
        %2415 = vmatprep.subr.bf16.mxu0 0
        %2416 = vmatpush1.bf16.msra.mxu0 0
        %2417 = vmatprep.subr.bf16.mxu0 0
        %2418 = vmatpush1.bf16.msra.mxu0 0
        %2419 = vmatprep.subr.bf16.mxu0 0
        %2420 = vmatpush1.bf16.msra.mxu0 0
        %2421 = vmatprep.subr.bf16.mxu0 0
        %2422 = vmatpush1.bf16.msra.mxu0 0
        %2423 = vmatprep.subr.bf16.mxu0 0
        %2424 = vmatpush1.bf16.msra.mxu0 0
        %2425 = vmatprep.subr.bf16.mxu0 0
        %2426 = vmatpush1.bf16.msra.mxu0 0
        %2427 = vmatprep.subr.bf16.mxu0 0
        %2428 = vmatpush1.bf16.msra.mxu0 0
        %2429 = vmatprep.subr.bf16.mxu0 0
        %2430 = vmatpush1.bf16.msra.mxu0 0
        %2431 = vmatprep.subr.bf16.mxu0 0
        %2432 = vmatpush1.bf16.msra.mxu0 0
        %2433 = vmatprep.subr.bf16.mxu0 0
        %2434 = vmatpush1.bf16.msra.mxu0 0
        %2435 = vmatprep.subr.bf16.mxu0 0
        %2436 = vmatpush1.bf16.msra.mxu0 0
        %2437 = vmatprep.subr.bf16.mxu0 0
        %2438 = vmatpush1.bf16.msra.mxu0 0
        %2439 = vmatprep.subr.bf16.mxu0 0
        %2440 = vmatpush1.bf16.msra.mxu0 0
        %2441 = vmatprep.subr.bf16.mxu0 0
        %2442 = vmatpush1.bf16.msra.mxu0 0
        %2443 = vmatprep.subr.bf16.mxu0 0
        %2444 = vmatpush1.bf16.msra.mxu0 0
        %2445 = vmatprep.mubr.bf16.mxu0 0
        %2446 = vmatmul.mubr.bf16.gmra.mrb[0].mxu0 %v2405
        %v2447 = vpop.f32.mrb[0].mxu0
        %v2448 = vadd.f32 0.0, %v2447
        %v2449 = vpop.f32.mrb[0].mxu0
        %v2450 = vpop.f32.mrb[0].mxu0
        %v2451 = vadd.f32 0.0, %v2450
        %v2452 = vpop.f32.mrb[0].mxu0
        %2453 = vmatprep.mubr.bf16.mxu0 0
        %2454 = vmatmul.mubr.bf16.gmra.mrb[0].mxu0 %v2408
        %v2455 = vpop.f32.mrb[0].mxu0
        %v2456 = vadd.f32 0.0, %v2455
        %v2457 = vpop.f32.mrb[0].mxu0
        %v2458 = vpop.f32.mrb[0].mxu0
        %v2459 = vadd.f32 0.0, %v2458
        %v2460 = vpop.f32.mrb[0].mxu0
        %2461 = vdwg.mxu0
        %v2463 = vsel %vm1938, %v1924, 0
        %v2466 = vsel %vm1938, %v1925, 0
        %v2469 = vsel %vm1945, %v1851, 0
        %2471 = vmatprep.subr.bf16.mxu0 0
        %2472 = vmatpush1.bf16.msra.mxu0 %v2469
        %2473 = vmatprep.subr.bf16.mxu0 0
        %2474 = vmatpush1.bf16.msra.mxu0 0
        %2475 = vmatprep.subr.bf16.mxu0 0
        %2476 = vmatpush1.bf16.msra.mxu0 0
        %2477 = vmatprep.subr.bf16.mxu0 0
        %2478 = vmatpush1.bf16.msra.mxu0 0
        %2479 = vmatprep.subr.bf16.mxu0 0
        %2480 = vmatpush1.bf16.msra.mxu0 0
        %2481 = vmatprep.subr.bf16.mxu0 0
        %2482 = vmatpush1.bf16.msra.mxu0 0
        %2483 = vmatprep.subr.bf16.mxu0 0
        %2484 = vmatpush1.bf16.msra.mxu0 0
        %2485 = vmatprep.subr.bf16.mxu0 0
        %2486 = vmatpush1.bf16.msra.mxu0 0
        %2487 = vmatprep.subr.bf16.mxu0 0
        %2488 = vmatpush1.bf16.msra.mxu0 0
        %2489 = vmatprep.subr.bf16.mxu0 0
        %2490 = vmatpush1.bf16.msra.mxu0 0
        %2491 = vmatprep.subr.bf16.mxu0 0
        %2492 = vmatpush1.bf16.msra.mxu0 0
        %2493 = vmatprep.subr.bf16.mxu0 0
        %2494 = vmatpush1.bf16.msra.mxu0 0
        %2495 = vmatprep.subr.bf16.mxu0 0
        %2496 = vmatpush1.bf16.msra.mxu0 0
        %2497 = vmatprep.subr.bf16.mxu0 0
        %2498 = vmatpush1.bf16.msra.mxu0 0
        %2499 = vmatprep.subr.bf16.mxu0 0
        %2500 = vmatpush1.bf16.msra.mxu0 0
        %2501 = vmatprep.subr.bf16.mxu0 0
        %2502 = vmatpush1.bf16.msra.mxu0 0
        %2503 = vmatprep.mubr.bf16.mxu0 0
        %2504 = vmatmul.mubr.bf16.gmra.mrb[0].mxu0 %v2463
        %v2505 = vpop.f32.mrb[0].mxu0
        %v2506 = vadd.f32 0.0, %v2505
        %v2507 = vpop.f32.mrb[0].mxu0
        %v2508 = vpop.f32.mrb[0].mxu0
        %v2509 = vadd.f32 0.0, %v2508
        %v2510 = vpop.f32.mrb[0].mxu0
        %2511 = vmatprep.mubr.bf16.mxu0 0
        %2512 = vmatmul.mubr.bf16.gmra.mrb[0].mxu0 %v2466
        %v2513 = vpop.f32.mrb[0].mxu0
        %v2514 = vadd.f32 0.0, %v2513
        %v2515 = vpop.f32.mrb[0].mxu0
        %v2516 = vpop.f32.mrb[0].mxu0
        %v2517 = vadd.f32 0.0, %v2516
        %v2518 = vpop.f32.mrb[0].mxu0
        %2519 = vdwg.mxu0
        %v2521 = vsel %vm1938, %v1926, 0
        %v2524 = vsel %vm1938, %v1927, 0
        %v2527 = vsel %vm1945, %v1852, 0
        %2529 = vmatprep.subr.bf16.mxu0 0
        %2530 = vmatpush1.bf16.msra.mxu0 %v2527
        %2531 = vmatprep.subr.bf16.mxu0 0
        %2532 = vmatpush1.bf16.msra.mxu0 0
        %2533 = vmatprep.subr.bf16.mxu0 0
        %2534 = vmatpush1.bf16.msra.mxu0 0
        %2535 = vmatprep.subr.bf16.mxu0 0
        %2536 = vmatpush1.bf16.msra.mxu0 0
        %2537 = vmatprep.subr.bf16.mxu0 0
        %2538 = vmatpush1.bf16.msra.mxu0 0
        %2539 = vmatprep.subr.bf16.mxu0 0
        %2540 = vmatpush1.bf16.msra.mxu0 0
        %2541 = vmatprep.subr.bf16.mxu0 0
        %2542 = vmatpush1.bf16.msra.mxu0 0
        %2543 = vmatprep.subr.bf16.mxu0 0
        %2544 = vmatpush1.bf16.msra.mxu0 0
        %2545 = vmatprep.subr.bf16.mxu0 0
        %2546 = vmatpush1.bf16.msra.mxu0 0
        %2547 = vmatprep.subr.bf16.mxu0 0
        %2548 = vmatpush1.bf16.msra.mxu0 0
        %2549 = vmatprep.subr.bf16.mxu0 0
        %2550 = vmatpush1.bf16.msra.mxu0 0
        %2551 = vmatprep.subr.bf16.mxu0 0
        %2552 = vmatpush1.bf16.msra.mxu0 0
        %2553 = vmatprep.subr.bf16.mxu0 0
        %2554 = vmatpush1.bf16.msra.mxu0 0
        %2555 = vmatprep.subr.bf16.mxu0 0
        %2556 = vmatpush1.bf16.msra.mxu0 0
        %2557 = vmatprep.subr.bf16.mxu0 0
        %2558 = vmatpush1.bf16.msra.mxu0 0
        %2559 = vmatprep.subr.bf16.mxu0 0
        %2560 = vmatpush1.bf16.msra.mxu0 0
        %2561 = vmatprep.mubr.bf16.mxu0 0
        %2562 = vmatmul.mubr.bf16.gmra.mrb[0].mxu0 %v2521
        %v2563 = vpop.f32.mrb[0].mxu0
        %v2564 = vadd.f32 0.0, %v2563
        %v2565 = vpop.f32.mrb[0].mxu0
        %v2566 = vpop.f32.mrb[0].mxu0
        %v2567 = vadd.f32 0.0, %v2566
        %v2568 = vpop.f32.mrb[0].mxu0
        %2569 = vmatprep.mubr.bf16.mxu0 0
        %2570 = vmatmul.mubr.bf16.gmra.mrb[0].mxu0 %v2524
        %v2571 = vpop.f32.mrb[0].mxu0
        %v2572 = vadd.f32 0.0, %v2571
        %v2573 = vpop.f32.mrb[0].mxu0
        %v2574 = vpop.f32.mrb[0].mxu0
        %v2575 = vadd.f32 0.0, %v2574
        %v2576 = vpop.f32.mrb[0].mxu0
        %2577 = vdwg.mxu0
        %v2579 = vsel %vm1938, %v1928, 0
        %v2582 = vsel %vm1938, %v1929, 0
        %v2585 = vsel %vm1945, %v1853, 0
        %2587 = vmatprep.subr.bf16.mxu0 0
        %2588 = vmatpush1.bf16.msra.mxu0 %v2585
        %2589 = vmatprep.subr.bf16.mxu0 0
        %2590 = vmatpush1.bf16.msra.mxu0 0
        %2591 = vmatprep.subr.bf16.mxu0 0
        %2592 = vmatpush1.bf16.msra.mxu0 0
        %2593 = vmatprep.subr.bf16.mxu0 0
        %2594 = vmatpush1.bf16.msra.mxu0 0
        %2595 = vmatprep.subr.bf16.mxu0 0
        %2596 = vmatpush1.bf16.msra.mxu0 0
        %2597 = vmatprep.subr.bf16.mxu0 0
        %2598 = vmatpush1.bf16.msra.mxu0 0
        %2599 = vmatprep.subr.bf16.mxu0 0
        %2600 = vmatpush1.bf16.msra.mxu0 0
        %2601 = vmatprep.subr.bf16.mxu0 0
        %2602 = vmatpush1.bf16.msra.mxu0 0
        %2603 = vmatprep.subr.bf16.mxu0 0
        %2604 = vmatpush1.bf16.msra.mxu0 0
        %2605 = vmatprep.subr.bf16.mxu0 0
        %2606 = vmatpush1.bf16.msra.mxu0 0
        %2607 = vmatprep.subr.bf16.mxu0 0
        %2608 = vmatpush1.bf16.msra.mxu0 0
        %2609 = vmatprep.subr.bf16.mxu0 0
        %2610 = vmatpush1.bf16.msra.mxu0 0
        %2611 = vmatprep.subr.bf16.mxu0 0
        %2612 = vmatpush1.bf16.msra.mxu0 0
        %2613 = vmatprep.subr.bf16.mxu0 0
        %2614 = vmatpush1.bf16.msra.mxu0 0
        %2615 = vmatprep.subr.bf16.mxu0 0
        %2616 = vmatpush1.bf16.msra.mxu0 0
        %2617 = vmatprep.subr.bf16.mxu0 0
        %2618 = vmatpush1.bf16.msra.mxu0 0
        %2619 = vmatprep.mubr.bf16.mxu0 0
        %2620 = vmatmul.mubr.bf16.gmra.mrb[0].mxu0 %v2579
        %v2621 = vpop.f32.mrb[0].mxu0
        %v2622 = vadd.f32 0.0, %v2621
        %v2623 = vpop.f32.mrb[0].mxu0
        %v2624 = vpop.f32.mrb[0].mxu0
        %v2625 = vadd.f32 0.0, %v2624
        %v2626 = vpop.f32.mrb[0].mxu0
        %2627 = vmatprep.mubr.bf16.mxu0 0
        %2628 = vmatmul.mubr.bf16.gmra.mrb[0].mxu0 %v2582
        %v2629 = vpop.f32.mrb[0].mxu0
        %v2630 = vadd.f32 0.0, %v2629
        %v2631 = vpop.f32.mrb[0].mxu0
        %v2632 = vpop.f32.mrb[0].mxu0
        %v2633 = vadd.f32 0.0, %v2632
        %v2634 = vpop.f32.mrb[0].mxu0
        %2635 = vdwg.mxu0
        %v2637 = vsel %vm1938, %v1930, 0
        %v2640 = vsel %vm1938, %v1931, 0
        %v2643 = vsel %vm1945, %v1854, 0
        %2645 = vmatprep.subr.bf16.mxu0 0
        %2646 = vmatpush1.bf16.msra.mxu0 %v2643
        %2647 = vmatprep.subr.bf16.mxu0 0
        %2648 = vmatpush1.bf16.msra.mxu0 0
        %2649 = vmatprep.subr.bf16.mxu0 0
        %2650 = vmatpush1.bf16.msra.mxu0 0
        %2651 = vmatprep.subr.bf16.mxu0 0
        %2652 = vmatpush1.bf16.msra.mxu0 0
        %2653 = vmatprep.subr.bf16.mxu0 0
        %2654 = vmatpush1.bf16.msra.mxu0 0
        %2655 = vmatprep.subr.bf16.mxu0 0
        %2656 = vmatpush1.bf16.msra.mxu0 0
        %2657 = vmatprep.subr.bf16.mxu0 0
        %2658 = vmatpush1.bf16.msra.mxu0 0
        %2659 = vmatprep.subr.bf16.mxu0 0
        %2660 = vmatpush1.bf16.msra.mxu0 0
        %2661 = vmatprep.subr.bf16.mxu0 0
        %2662 = vmatpush1.bf16.msra.mxu0 0
        %2663 = vmatprep.subr.bf16.mxu0 0
        %2664 = vmatpush1.bf16.msra.mxu0 0
        %2665 = vmatprep.subr.bf16.mxu0 0
        %2666 = vmatpush1.bf16.msra.mxu0 0
        %2667 = vmatprep.subr.bf16.mxu0 0
        %2668 = vmatpush1.bf16.msra.mxu0 0
        %2669 = vmatprep.subr.bf16.mxu0 0
        %2670 = vmatpush1.bf16.msra.mxu0 0
        %2671 = vmatprep.subr.bf16.mxu0 0
        %2672 = vmatpush1.bf16.msra.mxu0 0
        %2673 = vmatprep.subr.bf16.mxu0 0
        %2674 = vmatpush1.bf16.msra.mxu0 0
        %2675 = vmatprep.subr.bf16.mxu0 0
        %2676 = vmatpush1.bf16.msra.mxu0 0
        %2677 = vmatprep.mubr.bf16.mxu0 0
        %2678 = vmatmul.mubr.bf16.gmra.mrb[0].mxu0 %v2637
        %v2679 = vpop.f32.mrb[0].mxu0
        %v2680 = vadd.f32 0.0, %v2679
        %v2681 = vpop.f32.mrb[0].mxu0
        %v2682 = vpop.f32.mrb[0].mxu0
        %v2683 = vadd.f32 0.0, %v2682
        %v2684 = vpop.f32.mrb[0].mxu0
        %2685 = vmatprep.mubr.bf16.mxu0 0
        %2686 = vmatmul.mubr.bf16.gmra.mrb[0].mxu0 %v2640
        %v2687 = vpop.f32.mrb[0].mxu0
        %v2688 = vadd.f32 0.0, %v2687
        %v2689 = vpop.f32.mrb[0].mxu0
        %v2690 = vpop.f32.mrb[0].mxu0
        %v2691 = vadd.f32 0.0, %v2690
        %v2692 = vpop.f32.mrb[0].mxu0
        %2693 = vdwg.mxu0
        %v2695 = vsel %vm1938, %v1932, 0
        %v2698 = vsel %vm1938, %v1933, 0
        %v2701 = vsel %vm1945, %v1855, 0
        %2703 = vmatprep.subr.bf16.mxu0 0
        %2704 = vmatpush1.bf16.msra.mxu0 %v2701
        %2705 = vmatprep.subr.bf16.mxu0 0
        %2706 = vmatpush1.bf16.msra.mxu0 0
        %2707 = vmatprep.subr.bf16.mxu0 0
        %2708 = vmatpush1.bf16.msra.mxu0 0
        %2709 = vmatprep.subr.bf16.mxu0 0
        %2710 = vmatpush1.bf16.msra.mxu0 0
        %2711 = vmatprep.subr.bf16.mxu0 0
        %2712 = vmatpush1.bf16.msra.mxu0 0
        %2713 = vmatprep.subr.bf16.mxu0 0
        %2714 = vmatpush1.bf16.msra.mxu0 0
        %2715 = vmatprep.subr.bf16.mxu0 0
        %2716 = vmatpush1.bf16.msra.mxu0 0
        %2717 = vmatprep.subr.bf16.mxu0 0
        %2718 = vmatpush1.bf16.msra.mxu0 0
        %2719 = vmatprep.subr.bf16.mxu0 0
        %2720 = vmatpush1.bf16.msra.mxu0 0
        %2721 = vmatprep.subr.bf16.mxu0 0
        %2722 = vmatpush1.bf16.msra.mxu0 0
        %2723 = vmatprep.subr.bf16.mxu0 0
        %2724 = vmatpush1.bf16.msra.mxu0 0
        %2725 = vmatprep.subr.bf16.mxu0 0
        %2726 = vmatpush1.bf16.msra.mxu0 0
        %2727 = vmatprep.subr.bf16.mxu0 0
        %2728 = vmatpush1.bf16.msra.mxu0 0
        %2729 = vmatprep.subr.bf16.mxu0 0
        %2730 = vmatpush1.bf16.msra.mxu0 0
        %2731 = vmatprep.subr.bf16.mxu0 0
        %2732 = vmatpush1.bf16.msra.mxu0 0
        %2733 = vmatprep.subr.bf16.mxu0 0
        %2734 = vmatpush1.bf16.msra.mxu0 0
        %2735 = vmatprep.mubr.bf16.mxu0 0
        %2736 = vmatmul.mubr.bf16.gmra.mrb[0].mxu0 %v2695
        %v2737 = vpop.f32.mrb[0].mxu0
        %v2738 = vadd.f32 0.0, %v2737
        %v2739 = vpop.f32.mrb[0].mxu0
        %v2740 = vpop.f32.mrb[0].mxu0
        %v2741 = vadd.f32 0.0, %v2740
        %v2742 = vpop.f32.mrb[0].mxu0
        %2743 = vmatprep.mubr.bf16.mxu0 0
        %2744 = vmatmul.mubr.bf16.gmra.mrb[0].mxu0 %v2698
        %v2745 = vpop.f32.mrb[0].mxu0
        %v2746 = vadd.f32 0.0, %v2745
        %v2747 = vpop.f32.mrb[0].mxu0
        %v2748 = vpop.f32.mrb[0].mxu0
        %v2749 = vadd.f32 0.0, %v2748
        %v2750 = vpop.f32.mrb[0].mxu0
        %2751 = vdwg.mxu0
        %v2753 = vsel %vm1938, %v1934, 0
        %v2756 = vsel %vm1938, %v1935, 0
        %v2759 = vsel %vm1945, %v1856, 0
        %2761 = vmatprep.subr.bf16.mxu0 0
        %2762 = vmatpush1.bf16.msra.mxu0 %v2759
        %2763 = vmatprep.subr.bf16.mxu0 0
        %2764 = vmatpush1.bf16.msra.mxu0 0
        %2765 = vmatprep.subr.bf16.mxu0 0
        %2766 = vmatpush1.bf16.msra.mxu0 0
        %2767 = vmatprep.subr.bf16.mxu0 0
        %2768 = vmatpush1.bf16.msra.mxu0 0
        %2769 = vmatprep.subr.bf16.mxu0 0
        %2770 = vmatpush1.bf16.msra.mxu0 0
        %2771 = vmatprep.subr.bf16.mxu0 0
        %2772 = vmatpush1.bf16.msra.mxu0 0
        %2773 = vmatprep.subr.bf16.mxu0 0
        %2774 = vmatpush1.bf16.msra.mxu0 0
        %2775 = vmatprep.subr.bf16.mxu0 0
        %2776 = vmatpush1.bf16.msra.mxu0 0
        %2777 = vmatprep.subr.bf16.mxu0 0
        %2778 = vmatpush1.bf16.msra.mxu0 0
        %2779 = vmatprep.subr.bf16.mxu0 0
        %2780 = vmatpush1.bf16.msra.mxu0 0
        %2781 = vmatprep.subr.bf16.mxu0 0
        %2782 = vmatpush1.bf16.msra.mxu0 0
        %2783 = vmatprep.subr.bf16.mxu0 0
        %2784 = vmatpush1.bf16.msra.mxu0 0
        %2785 = vmatprep.subr.bf16.mxu0 0
        %2786 = vmatpush1.bf16.msra.mxu0 0
        %2787 = vmatprep.subr.bf16.mxu0 0
        %2788 = vmatpush1.bf16.msra.mxu0 0
        %2789 = vmatprep.subr.bf16.mxu0 0
        %2790 = vmatpush1.bf16.msra.mxu0 0
        %2791 = vmatprep.subr.bf16.mxu0 0
        %2792 = vmatpush1.bf16.msra.mxu0 0
        %2793 = vmatprep.mubr.bf16.mxu0 0
        %2794 = vmatmul.mubr.bf16.gmra.mrb[0].mxu0 %v2753
        %v2795 = vpop.f32.mrb[0].mxu0
        %v2796 = vadd.f32 0.0, %v2795
        %v2797 = vpop.f32.mrb[0].mxu0
        %v2798 = vpop.f32.mrb[0].mxu0
        %v2799 = vadd.f32 0.0, %v2798
        %v2800 = vpop.f32.mrb[0].mxu0
        %2801 = vmatprep.mubr.bf16.mxu0 0
        %2802 = vmatmul.mubr.bf16.gmra.mrb[0].mxu0 %v2756
        %v2803 = vpop.f32.mrb[0].mxu0
        %v2804 = vadd.f32 0.0, %v2803
        %v2805 = vpop.f32.mrb[0].mxu0
        %v2806 = vpop.f32.mrb[0].mxu0
        %v2807 = vadd.f32 0.0, %v2806
        %v2808 = vpop.f32.mrb[0].mxu0
        %2809 = vdwg.mxu0
        %v2811 = vsel %vm1938, %v1936, 0
        %v2814 = vsel %vm1938, %v1937, 0
        %v2817 = vsel %vm1945, %v1857, 0
        %2819 = vmatprep.subr.bf16.mxu0 0
        %2820 = vmatpush1.bf16.msra.mxu0 %v2817
        %2821 = vmatprep.subr.bf16.mxu0 0
        %2822 = vmatpush1.bf16.msra.mxu0 0
        %2823 = vmatprep.subr.bf16.mxu0 0
        %2824 = vmatpush1.bf16.msra.mxu0 0
        %2825 = vmatprep.subr.bf16.mxu0 0
        %2826 = vmatpush1.bf16.msra.mxu0 0
        %2827 = vmatprep.subr.bf16.mxu0 0
        %2828 = vmatpush1.bf16.msra.mxu0 0
        %2829 = vmatprep.subr.bf16.mxu0 0
        %2830 = vmatpush1.bf16.msra.mxu0 0
        %2831 = vmatprep.subr.bf16.mxu0 0
        %2832 = vmatpush1.bf16.msra.mxu0 0
        %2833 = vmatprep.subr.bf16.mxu0 0
        %2834 = vmatpush1.bf16.msra.mxu0 0
        %2835 = vmatprep.subr.bf16.mxu0 0
        %2836 = vmatpush1.bf16.msra.mxu0 0
        %2837 = vmatprep.subr.bf16.mxu0 0
        %2838 = vmatpush1.bf16.msra.mxu0 0
        %2839 = vmatprep.subr.bf16.mxu0 0
        %2840 = vmatpush1.bf16.msra.mxu0 0
        %2841 = vmatprep.subr.bf16.mxu0 0
        %2842 = vmatpush1.bf16.msra.mxu0 0
        %2843 = vmatprep.subr.bf16.mxu0 0
        %2844 = vmatpush1.bf16.msra.mxu0 0
        %2845 = vmatprep.subr.bf16.mxu0 0
        %2846 = vmatpush1.bf16.msra.mxu0 0
        %2847 = vmatprep.subr.bf16.mxu0 0
        %2848 = vmatpush1.bf16.msra.mxu0 0
        %2849 = vmatprep.subr.bf16.mxu0 0
        %2850 = vmatpush1.bf16.msra.mxu0 0
        %2851 = vmatprep.mubr.bf16.mxu0 0
        %2852 = vmatmul.mubr.bf16.gmra.mrb[0].mxu0 %v2811
        %v2853 = vpop.f32.mrb[0].mxu0
        %v2854 = vadd.f32 0.0, %v2853
        %v2855 = vpop.f32.mrb[0].mxu0
        %v2856 = vpop.f32.mrb[0].mxu0
        %v2857 = vadd.f32 0.0, %v2856
        %v2858 = vpop.f32.mrb[0].mxu0
        %2859 = vmatprep.mubr.bf16.mxu0 0
        %2860 = vmatmul.mubr.bf16.gmra.mrb[0].mxu0 %v2814
        %v2861 = vpop.f32.mrb[0].mxu0
        %v2862 = vadd.f32 0.0, %v2861
        %v2863 = vpop.f32.mrb[0].mxu0
        %v2864 = vpop.f32.mrb[0].mxu0
        %v2865 = vadd.f32 0.0, %v2864
        %v2866 = vpop.f32.mrb[0].mxu0
        %2867 = vdwg.mxu0
        %v2868 = vld [vmem:[#allocation3] sm:$0xff]
        %v2869 = vld [vmem:[#allocation3 + $0x8] sm:$0xff]
        %v2870 = vld [vmem:[#allocation3 + $0x10] sm:$0xff]
        %v2871 = vld [vmem:[#allocation3 + $0x18] sm:$0xff]
        %v2872 = vld [vmem:[#allocation3 + $0x20] sm:$0xff]
        %v2873 = vld [vmem:[#allocation3 + $0x28] sm:$0xff]
        %v2874 = vld [vmem:[#allocation3 + $0x30] sm:$0xff]
        %v2875 = vld [vmem:[#allocation3 + $0x38] sm:$0xff]
        %v2876 = vld [vmem:[#allocation3 + $0x40] sm:$0xff]
        %v2877 = vld [vmem:[#allocation3 + $0x48] sm:$0xff]
        %v2878 = vld [vmem:[#allocation3 + $0x50] sm:$0xff]
        %v2879 = vld [vmem:[#allocation3 + $0x58] sm:$0xff]
        %v2880 = vld [vmem:[#allocation3 + $0x60] sm:$0xff]
        %v2881 = vld [vmem:[#allocation3 + $0x68] sm:$0xff]
        %v2882 = vld [vmem:[#allocation3 + $0x70] sm:$0xff]
        %v2883 = vld [vmem:[#allocation3 + $0x78] sm:$0xff]
        %v2884 = vld [vmem:[#allocation3 + $0x80] sm:$0xff]
        %v2885 = vld [vmem:[#allocation3 + $0x88] sm:$0xff]
        %v2886 = vld [vmem:[#allocation3 + $0x90] sm:$0xff]
        %v2887 = vld [vmem:[#allocation3 + $0x98] sm:$0xff]
        %v2888 = vld [vmem:[#allocation3 + $0xa0] sm:$0xff]
        %v2889 = vld [vmem:[#allocation3 + $0xa8] sm:$0xff]
        %v2890 = vld [vmem:[#allocation3 + $0xb0] sm:$0xff]
        %v2891 = vld [vmem:[#allocation3 + $0xb8] sm:$0xff]
        %v2892 = vld [vmem:[#allocation3 + $0xc0] sm:$0xff]
        %v2893 = vld [vmem:[#allocation3 + $0xc8] sm:$0xff]
        %v2894 = vld [vmem:[#allocation3 + $0xd0] sm:$0xff]
        %v2895 = vld [vmem:[#allocation3 + $0xd8] sm:$0xff]
        %v2896 = vld [vmem:[#allocation3 + $0xe0] sm:$0xff]
        %v2897 = vld [vmem:[#allocation3 + $0xe8] sm:$0xff]
        %v2898 = vld [vmem:[#allocation3 + $0xf0] sm:$0xff]
        %v2899 = vld [vmem:[#allocation3 + $0xf8] sm:$0xff]
        %v2900 = vld [vmem:[#allocation3 + $0x100] sm:$0xff]
        %v2901 = vld [vmem:[#allocation3 + $0x108] sm:$0xff]
        %v2902 = vld [vmem:[#allocation3 + $0x110] sm:$0xff]
        %v2903 = vld [vmem:[#allocation3 + $0x118] sm:$0xff]
        %v2904 = vld [vmem:[#allocation3 + $0x120] sm:$0xff]
        %v2905 = vld [vmem:[#allocation3 + $0x128] sm:$0xff]
        %v2906 = vld [vmem:[#allocation3 + $0x130] sm:$0xff]
        %v2907 = vld [vmem:[#allocation3 + $0x138] sm:$0xff]
        %v2908 = vld [vmem:[#allocation3 + $0x140] sm:$0xff]
        %v2909 = vld [vmem:[#allocation3 + $0x148] sm:$0xff]
        %v2910 = vld [vmem:[#allocation3 + $0x150] sm:$0xff]
        %v2911 = vld [vmem:[#allocation3 + $0x158] sm:$0xff]
        %v2912 = vld [vmem:[#allocation3 + $0x160] sm:$0xff]
        %v2913 = vld [vmem:[#allocation3 + $0x168] sm:$0xff]
        %v2914 = vld [vmem:[#allocation3 + $0x170] sm:$0xff]
        %v2915 = vld [vmem:[#allocation3 + $0x178] sm:$0xff]
        %v2916 = vld [vmem:[#allocation3 + $0x180] sm:$0xff]
        %v2917 = vld [vmem:[#allocation3 + $0x188] sm:$0xff]
        %v2918 = vld [vmem:[#allocation3 + $0x190] sm:$0xff]
        %v2919 = vld [vmem:[#allocation3 + $0x198] sm:$0xff]
        %v2920 = vld [vmem:[#allocation3 + $0x1a0] sm:$0xff]
        %v2921 = vld [vmem:[#allocation3 + $0x1a8] sm:$0xff]
        %v2922 = vld [vmem:[#allocation3 + $0x1b0] sm:$0xff]
        %v2923 = vld [vmem:[#allocation3 + $0x1b8] sm:$0xff]
        %v2924 = vld [vmem:[#allocation3 + $0x1c0] sm:$0xff]
        %v2925 = vld [vmem:[#allocation3 + $0x1c8] sm:$0xff]
        %v2926 = vld [vmem:[#allocation3 + $0x1d0] sm:$0xff]
        %v2927 = vld [vmem:[#allocation3 + $0x1d8] sm:$0xff]
        %v2928 = vld [vmem:[#allocation3 + $0x1e0] sm:$0xff]
        %v2929 = vld [vmem:[#allocation3 + $0x1e8] sm:$0xff]
        %v2930 = vld [vmem:[#allocation3 + $0x1f0] sm:$0xff]
        %v2931 = vld [vmem:[#allocation3 + $0x1f8] sm:$0xff]
        %vm2932 = vcmask 261120
        %v2933 = vsel %vm2932, %v1984, -inf
        %2934 = vmax.xlane.f32.xlu0 %v2933
        %v2935 = vpop.xlane.xlu0 %2934
        %v2936 = vsel %vm2932, %v1987, -inf
        %2937 = vmax.xlane.f32.xlu0 %v2936
        %v2938 = vpop.xlane.xlu0 %2937
        %v2939 = vsel %vm2932, %v1992, -inf
        %2940 = vmax.xlane.f32.xlu0 %v2939
        %v2941 = vpop.xlane.xlu0 %2940
        %v2942 = vsel %vm2932, %v1995, -inf
        %2943 = vmax.xlane.f32.xlu0 %v2942
        %v2944 = vpop.xlane.xlu0 %2943
        %v2945 = vsel %vm2932, %v2042, -inf
        %2946 = vmax.xlane.f32.xlu0 %v2945
        %v2947 = vpop.xlane.xlu0 %2946
        %v2948 = vsel %vm2932, %v2045, -inf
        %2949 = vmax.xlane.f32.xlu0 %v2948
        %v2950 = vpop.xlane.xlu0 %2949
        %v2951 = vsel %vm2932, %v2050, -inf
        %2952 = vmax.xlane.f32.xlu0 %v2951
        %v2953 = vpop.xlane.xlu0 %2952
        %v2954 = vsel %vm2932, %v2053, -inf
        %2955 = vmax.xlane.f32.xlu0 %v2954
        %v2956 = vpop.xlane.xlu0 %2955
        %v2957 = vsel %vm2932, %v2100, -inf
        %2958 = vmax.xlane.f32.xlu0 %v2957
        %v2959 = vpop.xlane.xlu0 %2958
        %v2960 = vsel %vm2932, %v2103, -inf
        %2961 = vmax.xlane.f32.xlu0 %v2960
        %v2962 = vpop.xlane.xlu0 %2961
        %v2963 = vsel %vm2932, %v2108, -inf
        %2964 = vmax.xlane.f32.xlu0 %v2963
        %v2965 = vpop.xlane.xlu0 %2964
        %v2966 = vsel %vm2932, %v2111, -inf
        %2967 = vmax.xlane.f32.xlu0 %v2966
        %v2968 = vpop.xlane.xlu0 %2967
        %v2969 = vsel %vm2932, %v2158, -inf
        %2970 = vmax.xlane.f32.xlu0 %v2969
        %v2971 = vpop.xlane.xlu0 %2970
        %v2972 = vsel %vm2932, %v2161, -inf
        %2973 = vmax.xlane.f32.xlu0 %v2972
        %v2974 = vpop.xlane.xlu0 %2973
        %v2975 = vsel %vm2932, %v2166, -inf
        %2976 = vmax.xlane.f32.xlu0 %v2975
        %v2977 = vpop.xlane.xlu0 %2976
        %v2978 = vsel %vm2932, %v2169, -inf
        %2979 = vmax.xlane.f32.xlu0 %v2978
        %v2980 = vpop.xlane.xlu0 %2979
        %v2981 = vsel %vm2932, %v2216, -inf
        %2982 = vmax.xlane.f32.xlu0 %v2981
        %v2983 = vpop.xlane.xlu0 %2982
        %v2984 = vsel %vm2932, %v2219, -inf
        %2985 = vmax.xlane.f32.xlu0 %v2984
        %v2986 = vpop.xlane.xlu0 %2985
        %v2987 = vsel %vm2932, %v2224, -inf
        %2988 = vmax.xlane.f32.xlu0 %v2987
        %v2989 = vpop.xlane.xlu0 %2988
        %v2990 = vsel %vm2932, %v2227, -inf
        %2991 = vmax.xlane.f32.xlu0 %v2990
        %v2992 = vpop.xlane.xlu0 %2991
        %v2993 = vsel %vm2932, %v2274, -inf
        %2994 = vmax.xlane.f32.xlu0 %v2993
        %v2995 = vpop.xlane.xlu0 %2994
        %v2996 = vsel %vm2932, %v2277, -inf
        %2997 = vmax.xlane.f32.xlu0 %v2996
        %v2998 = vpop.xlane.xlu0 %2997
        %v2999 = vsel %vm2932, %v2282, -inf
        %3000 = vmax.xlane.f32.xlu0 %v2999
        %v3001 = vpop.xlane.xlu0 %3000
        %v3002 = vsel %vm2932, %v2285, -inf
        %3003 = vmax.xlane.f32.xlu0 %v3002
        %v3004 = vpop.xlane.xlu0 %3003
        %v3005 = vsel %vm2932, %v2332, -inf
        %3006 = vmax.xlane.f32.xlu0 %v3005
        %v3007 = vpop.xlane.xlu0 %3006
        %v3008 = vsel %vm2932, %v2335, -inf
        %3009 = vmax.xlane.f32.xlu0 %v3008
        %v3010 = vpop.xlane.xlu0 %3009
        %v3011 = vsel %vm2932, %v2340, -inf
        %3012 = vmax.xlane.f32.xlu0 %v3011
        %v3013 = vpop.xlane.xlu0 %3012
        %v3014 = vsel %vm2932, %v2343, -inf
        %3015 = vmax.xlane.f32.xlu0 %v3014
        %v3016 = vpop.xlane.xlu0 %3015
        %v3017 = vsel %vm2932, %v2390, -inf
        %3018 = vmax.xlane.f32.xlu0 %v3017
        %v3019 = vpop.xlane.xlu0 %3018
        %v3020 = vsel %vm2932, %v2393, -inf
        %3021 = vmax.xlane.f32.xlu0 %v3020
        %v3022 = vpop.xlane.xlu0 %3021
        %v3023 = vsel %vm2932, %v2398, -inf
        %3024 = vmax.xlane.f32.xlu0 %v3023
        %v3025 = vpop.xlane.xlu0 %3024
        %v3026 = vsel %vm2932, %v2401, -inf
        %3027 = vmax.xlane.f32.xlu0 %v3026
        %v3028 = vpop.xlane.xlu0 %3027
        %v3029 = vsel %vm2932, %v2448, -inf
        %3030 = vmax.xlane.f32.xlu0 %v3029
        %v3031 = vpop.xlane.xlu0 %3030
        %v3032 = vsel %vm2932, %v2451, -inf
        %3033 = vmax.xlane.f32.xlu0 %v3032
        %v3034 = vpop.xlane.xlu0 %3033
        %v3035 = vsel %vm2932, %v2456, -inf
        %3036 = vmax.xlane.f32.xlu0 %v3035
        %v3037 = vpop.xlane.xlu0 %3036
        %v3038 = vsel %vm2932, %v2459, -inf
        %3039 = vmax.xlane.f32.xlu0 %v3038
        %v3040 = vpop.xlane.xlu0 %3039
        %v3041 = vsel %vm2932, %v2506, -inf
        %3042 = vmax.xlane.f32.xlu0 %v3041
        %v3043 = vpop.xlane.xlu0 %3042
        %v3044 = vsel %vm2932, %v2509, -inf
        %3045 = vmax.xlane.f32.xlu0 %v3044
        %v3046 = vpop.xlane.xlu0 %3045
        %v3047 = vsel %vm2932, %v2514, -inf
        %3048 = vmax.xlane.f32.xlu0 %v3047
        %v3049 = vpop.xlane.xlu0 %3048
        %v3050 = vsel %vm2932, %v2517, -inf
        %3051 = vmax.xlane.f32.xlu0 %v3050
        %v3052 = vpop.xlane.xlu0 %3051
        %v3053 = vsel %vm2932, %v2564, -inf
        %3054 = vmax.xlane.f32.xlu0 %v3053
        %v3055 = vpop.xlane.xlu0 %3054
        %v3056 = vsel %vm2932, %v2567, -inf
        %3057 = vmax.xlane.f32.xlu0 %v3056
        %v3058 = vpop.xlane.xlu0 %3057
        %v3059 = vsel %vm2932, %v2572, -inf
        %3060 = vmax.xlane.f32.xlu0 %v3059
        %v3061 = vpop.xlane.xlu0 %3060
        %v3062 = vsel %vm2932, %v2575, -inf
        %3063 = vmax.xlane.f32.xlu0 %v3062
        %v3064 = vpop.xlane.xlu0 %3063
        %v3065 = vsel %vm2932, %v2622, -inf
        %3066 = vmax.xlane.f32.xlu0 %v3065
        %v3067 = vpop.xlane.xlu0 %3066
        %v3068 = vsel %vm2932, %v2625, -inf
        %3069 = vmax.xlane.f32.xlu0 %v3068
        %v3070 = vpop.xlane.xlu0 %3069
        %v3071 = vsel %vm2932, %v2630, -inf
        %3072 = vmax.xlane.f32.xlu0 %v3071
        %v3073 = vpop.xlane.xlu0 %3072
        %v3074 = vsel %vm2932, %v2633, -inf
        %3075 = vmax.xlane.f32.xlu0 %v3074
        %v3076 = vpop.xlane.xlu0 %3075
        %v3077 = vsel %vm2932, %v2680, -inf
        %3078 = vmax.xlane.f32.xlu0 %v3077
        %v3079 = vpop.xlane.xlu0 %3078
        %v3080 = vsel %vm2932, %v2683, -inf
        %3081 = vmax.xlane.f32.xlu0 %v3080
        %v3082 = vpop.xlane.xlu0 %3081
        %v3083 = vsel %vm2932, %v2688, -inf
        %3084 = vmax.xlane.f32.xlu0 %v3083
        %v3085 = vpop.xlane.xlu0 %3084
        %v3086 = vsel %vm2932, %v2691, -inf
        %3087 = vmax.xlane.f32.xlu0 %v3086
        %v3088 = vpop.xlane.xlu0 %3087
        %v3089 = vsel %vm2932, %v2738, -inf
        %3090 = vmax.xlane.f32.xlu0 %v3089
        %v3091 = vpop.xlane.xlu0 %3090
        %v3092 = vsel %vm2932, %v2741, -inf
        %3093 = vmax.xlane.f32.xlu0 %v3092
        %v3094 = vpop.xlane.xlu0 %3093
        %v3095 = vsel %vm2932, %v2746, -inf
        %3096 = vmax.xlane.f32.xlu0 %v3095
        %v3097 = vpop.xlane.xlu0 %3096
        %v3098 = vsel %vm2932, %v2749, -inf
        %3099 = vmax.xlane.f32.xlu0 %v3098
        %v3100 = vpop.xlane.xlu0 %3099
        %v3101 = vsel %vm2932, %v2796, -inf
        %3102 = vmax.xlane.f32.xlu0 %v3101
        %v3103 = vpop.xlane.xlu0 %3102
        %v3104 = vsel %vm2932, %v2799, -inf
        %3105 = vmax.xlane.f32.xlu0 %v3104
        %v3106 = vpop.xlane.xlu0 %3105
        %v3107 = vsel %vm2932, %v2804, -inf
        %3108 = vmax.xlane.f32.xlu0 %v3107
        %v3109 = vpop.xlane.xlu0 %3108
        %v3110 = vsel %vm2932, %v2807, -inf
        %3111 = vmax.xlane.f32.xlu0 %v3110
        %v3112 = vpop.xlane.xlu0 %3111
        %v3113 = vsel %vm2932, %v2854, -inf
        %3114 = vmax.xlane.f32.xlu0 %v3113
        %v3115 = vpop.xlane.xlu0 %3114
        %v3116 = vsel %vm2932, %v2857, -inf
        %3117 = vmax.xlane.f32.xlu0 %v3116
        %v3118 = vpop.xlane.xlu0 %3117
        %v3119 = vsel %vm2932, %v2862, -inf
        %3120 = vmax.xlane.f32.xlu0 %v3119
        %v3121 = vpop.xlane.xlu0 %3120
        %v3122 = vsel %vm2932, %v2865, -inf
        %3123 = vmax.xlane.f32.xlu0 %v3122
        %v3124 = vpop.xlane.xlu0 %3123
        %v3125 = vmax.f32 %v2868, %v2935
        %v3126 = vmax.f32 %v2869, %v2938
        %v3127 = vmax.f32 %v2870, %v2941
        %v3128 = vmax.f32 %v2871, %v2944
        %v3129 = vmax.f32 %v2872, %v2947
        %v3130 = vmax.f32 %v2873, %v2950
        %v3131 = vmax.f32 %v2874, %v2953
        %v3132 = vmax.f32 %v2875, %v2956
        %v3133 = vmax.f32 %v2876, %v2959
        %v3134 = vmax.f32 %v2877, %v2962
        %v3135 = vmax.f32 %v2878, %v2965
        %v3136 = vmax.f32 %v2879, %v2968
        %v3137 = vmax.f32 %v2880, %v2971
        %v3138 = vmax.f32 %v2881, %v2974
        %v3139 = vmax.f32 %v2882, %v2977
        %v3140 = vmax.f32 %v2883, %v2980
        %v3141 = vmax.f32 %v2884, %v2983
        %v3142 = vmax.f32 %v2885, %v2986
        %v3143 = vmax.f32 %v2886, %v2989
        %v3144 = vmax.f32 %v2887, %v2992
        %v3145 = vmax.f32 %v2888, %v2995
        %v3146 = vmax.f32 %v2889, %v2998
        %v3147 = vmax.f32 %v2890, %v3001
        %v3148 = vmax.f32 %v2891, %v3004
        %v3149 = vmax.f32 %v2892, %v3007
        %v3150 = vmax.f32 %v2893, %v3010
        %v3151 = vmax.f32 %v2894, %v3013
        %v3152 = vmax.f32 %v2895, %v3016
        %v3153 = vmax.f32 %v2896, %v3019
        %v3154 = vmax.f32 %v2897, %v3022
        %v3155 = vmax.f32 %v2898, %v3025
        %v3156 = vmax.f32 %v2899, %v3028
        %v3157 = vmax.f32 %v2900, %v3031
        %v3158 = vmax.f32 %v2901, %v3034
        %v3159 = vmax.f32 %v2902, %v3037
        %v3160 = vmax.f32 %v2903, %v3040
        %v3161 = vmax.f32 %v2904, %v3043
        %v3162 = vmax.f32 %v2905, %v3046
        %v3163 = vmax.f32 %v2906, %v3049
        %v3164 = vmax.f32 %v2907, %v3052
        %v3165 = vmax.f32 %v2908, %v3055
        %v3166 = vmax.f32 %v2909, %v3058
        %v3167 = vmax.f32 %v2910, %v3061
        %v3168 = vmax.f32 %v2911, %v3064
        %v3169 = vmax.f32 %v2912, %v3067
        %v3170 = vmax.f32 %v2913, %v3070
        %v3171 = vmax.f32 %v2914, %v3073
        %v3172 = vmax.f32 %v2915, %v3076
        %v3173 = vmax.f32 %v2916, %v3079
        %v3174 = vmax.f32 %v2917, %v3082
        %v3175 = vmax.f32 %v2918, %v3085
        %v3176 = vmax.f32 %v2919, %v3088
        %v3177 = vmax.f32 %v2920, %v3091
        %v3178 = vmax.f32 %v2921, %v3094
        %v3179 = vmax.f32 %v2922, %v3097
        %v3180 = vmax.f32 %v2923, %v3100
        %v3181 = vmax.f32 %v2924, %v3103
        %v3182 = vmax.f32 %v2925, %v3106
        %v3183 = vmax.f32 %v2926, %v3109
        %v3184 = vmax.f32 %v2927, %v3112
        %v3185 = vmax.f32 %v2928, %v3115
        %v3186 = vmax.f32 %v2929, %v3118
        %v3187 = vmax.f32 %v2930, %v3121
        %v3188 = vmax.f32 %v2931, %v3124
        %v3189 = vsub.f32 %v2868, %v3125
        %v3190 = vsub.f32 %v2869, %v3126
        %v3191 = vsub.f32 %v2870, %v3127
        %v3192 = vsub.f32 %v2871, %v3128
        %v3193 = vsub.f32 %v2872, %v3129
        %v3194 = vsub.f32 %v2873, %v3130
        %v3195 = vsub.f32 %v2874, %v3131
        %v3196 = vsub.f32 %v2875, %v3132
        %v3197 = vsub.f32 %v2876, %v3133
        %v3198 = vsub.f32 %v2877, %v3134
        %v3199 = vsub.f32 %v2878, %v3135
        %v3200 = vsub.f32 %v2879, %v3136
        %v3201 = vsub.f32 %v2880, %v3137
        %v3202 = vsub.f32 %v2881, %v3138
        %v3203 = vsub.f32 %v2882, %v3139
        %v3204 = vsub.f32 %v2883, %v3140
        %v3205 = vsub.f32 %v2884, %v3141
        %v3206 = vsub.f32 %v2885, %v3142
        %v3207 = vsub.f32 %v2886, %v3143
        %v3208 = vsub.f32 %v2887, %v3144
        %v3209 = vsub.f32 %v2888, %v3145
        %v3210 = vsub.f32 %v2889, %v3146
        %v3211 = vsub.f32 %v2890, %v3147
        %v3212 = vsub.f32 %v2891, %v3148
        %v3213 = vsub.f32 %v2892, %v3149
        %v3214 = vsub.f32 %v2893, %v3150
        %v3215 = vsub.f32 %v2894, %v3151
        %v3216 = vsub.f32 %v2895, %v3152
        %v3217 = vsub.f32 %v2896, %v3153
        %v3218 = vsub.f32 %v2897, %v3154
        %v3219 = vsub.f32 %v2898, %v3155
        %v3220 = vsub.f32 %v2899, %v3156
        %v3221 = vsub.f32 %v2900, %v3157
        %v3222 = vsub.f32 %v2901, %v3158
        %v3223 = vsub.f32 %v2902, %v3159
        %v3224 = vsub.f32 %v2903, %v3160
        %v3225 = vsub.f32 %v2904, %v3161
        %v3226 = vsub.f32 %v2905, %v3162
        %v3227 = vsub.f32 %v2906, %v3163
        %v3228 = vsub.f32 %v2907, %v3164
        %v3229 = vsub.f32 %v2908, %v3165
        %v3230 = vsub.f32 %v2909, %v3166
        %v3231 = vsub.f32 %v2910, %v3167
        %v3232 = vsub.f32 %v2911, %v3168
        %v3233 = vsub.f32 %v2912, %v3169
        %v3234 = vsub.f32 %v2913, %v3170
        %v3235 = vsub.f32 %v2914, %v3171
        %v3236 = vsub.f32 %v2915, %v3172
        %v3237 = vsub.f32 %v2916, %v3173
        %v3238 = vsub.f32 %v2917, %v3174
        %v3239 = vsub.f32 %v2918, %v3175
        %v3240 = vsub.f32 %v2919, %v3176
        %v3241 = vsub.f32 %v2920, %v3177
        %v3242 = vsub.f32 %v2921, %v3178
        %v3243 = vsub.f32 %v2922, %v3179
        %v3244 = vsub.f32 %v2923, %v3180
        %v3245 = vsub.f32 %v2924, %v3181
        %v3246 = vsub.f32 %v2925, %v3182
        %v3247 = vsub.f32 %v2926, %v3183
        %v3248 = vsub.f32 %v2927, %v3184
        %v3249 = vsub.f32 %v2928, %v3185
        %v3250 = vsub.f32 %v2929, %v3186
        %v3251 = vsub.f32 %v2930, %v3187
        %v3252 = vsub.f32 %v2931, %v3188
        %v3253 = vmul.f32 %v3189, 1.442695
        %v3254 = vpow.pop %v3253
        %v3255 = vmul.f32 %v3190, 1.442695
        %v3256 = vpow.pop %v3255
        %v3257 = vmul.f32 %v3191, 1.442695
        %v3258 = vpow.pop %v3257
        %v3259 = vmul.f32 %v3192, 1.442695
        %v3260 = vpow.pop %v3259
        %v3261 = vmul.f32 %v3193, 1.442695
        %v3262 = vpow.pop %v3261
        %v3263 = vmul.f32 %v3194, 1.442695
        %v3264 = vpow.pop %v3263
        %v3265 = vmul.f32 %v3195, 1.442695
        %v3266 = vpow.pop %v3265
        %v3267 = vmul.f32 %v3196, 1.442695
        %v3268 = vpow.pop %v3267
        %v3269 = vmul.f32 %v3197, 1.442695
        %v3270 = vpow.pop %v3269
        %v3271 = vmul.f32 %v3198, 1.442695
        %v3272 = vpow.pop %v3271
        %v3273 = vmul.f32 %v3199, 1.442695
        %v3274 = vpow.pop %v3273
        %v3275 = vmul.f32 %v3200, 1.442695
        %v3276 = vpow.pop %v3275
        %v3277 = vmul.f32 %v3201, 1.442695
        %v3278 = vpow.pop %v3277
        %v3279 = vmul.f32 %v3202, 1.442695
        %v3280 = vpow.pop %v3279
        %v3281 = vmul.f32 %v3203, 1.442695
        %v3282 = vpow.pop %v3281
        %v3283 = vmul.f32 %v3204, 1.442695
        %v3284 = vpow.pop %v3283
        %v3285 = vmul.f32 %v3205, 1.442695
        %v3286 = vpow.pop %v3285
        %v3287 = vmul.f32 %v3206, 1.442695
        %v3288 = vpow.pop %v3287
        %v3289 = vmul.f32 %v3207, 1.442695
        %v3290 = vpow.pop %v3289
        %v3291 = vmul.f32 %v3208, 1.442695
        %v3292 = vpow.pop %v3291
        %v3293 = vmul.f32 %v3209, 1.442695
        %v3294 = vpow.pop %v3293
        %v3295 = vmul.f32 %v3210, 1.442695
        %v3296 = vpow.pop %v3295
        %v3297 = vmul.f32 %v3211, 1.442695
        %v3298 = vpow.pop %v3297
        %v3299 = vmul.f32 %v3212, 1.442695
        %v3300 = vpow.pop %v3299
        %v3301 = vmul.f32 %v3213, 1.442695
        %v3302 = vpow.pop %v3301
        %v3303 = vmul.f32 %v3214, 1.442695
        %v3304 = vpow.pop %v3303
        %v3305 = vmul.f32 %v3215, 1.442695
        %v3306 = vpow.pop %v3305
        %v3307 = vmul.f32 %v3216, 1.442695
        %v3308 = vpow.pop %v3307
        %v3309 = vmul.f32 %v3217, 1.442695
        %v3310 = vpow.pop %v3309
        %v3311 = vmul.f32 %v3218, 1.442695
        %v3312 = vpow.pop %v3311
        %v3313 = vmul.f32 %v3219, 1.442695
        %v3314 = vpow.pop %v3313
        %v3315 = vmul.f32 %v3220, 1.442695
        %v3316 = vpow.pop %v3315
        %v3317 = vmul.f32 %v3221, 1.442695
        %v3318 = vpow.pop %v3317
        %v3319 = vmul.f32 %v3222, 1.442695
        %v3320 = vpow.pop %v3319
        %v3321 = vmul.f32 %v3223, 1.442695
        %v3322 = vpow.pop %v3321
        %v3323 = vmul.f32 %v3224, 1.442695
        %v3324 = vpow.pop %v3323
        %v3325 = vmul.f32 %v3225, 1.442695
        %v3326 = vpow.pop %v3325
        %v3327 = vmul.f32 %v3226, 1.442695
        %v3328 = vpow.pop %v3327
        %v3329 = vmul.f32 %v3227, 1.442695
        %v3330 = vpow.pop %v3329
        %v3331 = vmul.f32 %v3228, 1.442695
        %v3332 = vpow.pop %v3331
        %v3333 = vmul.f32 %v3229, 1.442695
        %v3334 = vpow.pop %v3333
        %v3335 = vmul.f32 %v3230, 1.442695
        %v3336 = vpow.pop %v3335
        %v3337 = vmul.f32 %v3231, 1.442695
        %v3338 = vpow.pop %v3337
        %v3339 = vmul.f32 %v3232, 1.442695
        %v3340 = vpow.pop %v3339
        %v3341 = vmul.f32 %v3233, 1.442695
        %v3342 = vpow.pop %v3341
        %v3343 = vmul.f32 %v3234, 1.442695
        %v3344 = vpow.pop %v3343
        %v3345 = vmul.f32 %v3235, 1.442695
        %v3346 = vpow.pop %v3345
        %v3347 = vmul.f32 %v3236, 1.442695
        %v3348 = vpow.pop %v3347
        %v3349 = vmul.f32 %v3237, 1.442695
        %v3350 = vpow.pop %v3349
        %v3351 = vmul.f32 %v3238, 1.442695
        %v3352 = vpow.pop %v3351
        %v3353 = vmul.f32 %v3239, 1.442695
        %v3354 = vpow.pop %v3353
        %v3355 = vmul.f32 %v3240, 1.442695
        %v3356 = vpow.pop %v3355
        %v3357 = vmul.f32 %v3241, 1.442695
        %v3358 = vpow.pop %v3357
        %v3359 = vmul.f32 %v3242, 1.442695
        %v3360 = vpow.pop %v3359
        %v3361 = vmul.f32 %v3243, 1.442695
        %v3362 = vpow.pop %v3361
        %v3363 = vmul.f32 %v3244, 1.442695
        %v3364 = vpow.pop %v3363
        %v3365 = vmul.f32 %v3245, 1.442695
        %v3366 = vpow.pop %v3365
        %v3367 = vmul.f32 %v3246, 1.442695
        %v3368 = vpow.pop %v3367
        %v3369 = vmul.f32 %v3247, 1.442695
        %v3370 = vpow.pop %v3369
        %v3371 = vmul.f32 %v3248, 1.442695
        %v3372 = vpow.pop %v3371
        %v3373 = vmul.f32 %v3249, 1.442695
        %v3374 = vpow.pop %v3373
        %v3375 = vmul.f32 %v3250, 1.442695
        %v3376 = vpow.pop %v3375
        %v3377 = vmul.f32 %v3251, 1.442695
        %v3378 = vpow.pop %v3377
        %v3379 = vmul.f32 %v3252, 1.442695
        %v3380 = vpow.pop %v3379
        %3382 = vset.pattern.permute.xlu0 0
        %3383 = vperm.xlu0 %3382, %v3125
        %v3384 = vpop.permute.xlu0 %3383
        %3387 = vset.pattern.permute.xlu0 0
        %3388 = vperm.xlu0 %3387, %v3126
        %v3389 = vpop.permute.xlu0 %3388
        %3392 = vset.pattern.permute.xlu0 0
        %3393 = vperm.xlu0 %3392, %v3127
        %v3394 = vpop.permute.xlu0 %3393
        %3397 = vset.pattern.permute.xlu0 0
        %3398 = vperm.xlu0 %3397, %v3128
        %v3399 = vpop.permute.xlu0 %3398
        %3402 = vset.pattern.permute.xlu0 0
        %3403 = vperm.xlu0 %3402, %v3129
        %v3404 = vpop.permute.xlu0 %3403
        %3407 = vset.pattern.permute.xlu0 0
        %3408 = vperm.xlu0 %3407, %v3130
        %v3409 = vpop.permute.xlu0 %3408
        %3412 = vset.pattern.permute.xlu0 0
        %3413 = vperm.xlu0 %3412, %v3131
        %v3414 = vpop.permute.xlu0 %3413
        %3417 = vset.pattern.permute.xlu0 0
        %3418 = vperm.xlu0 %3417, %v3132
        %v3419 = vpop.permute.xlu0 %3418
        %3422 = vset.pattern.permute.xlu0 0
        %3423 = vperm.xlu0 %3422, %v3133
        %v3424 = vpop.permute.xlu0 %3423
        %3427 = vset.pattern.permute.xlu0 0
        %3428 = vperm.xlu0 %3427, %v3134
        %v3429 = vpop.permute.xlu0 %3428
        %3432 = vset.pattern.permute.xlu0 0
        %3433 = vperm.xlu0 %3432, %v3135
        %v3434 = vpop.permute.xlu0 %3433
        %3437 = vset.pattern.permute.xlu0 0
        %3438 = vperm.xlu0 %3437, %v3136
        %v3439 = vpop.permute.xlu0 %3438
        %3442 = vset.pattern.permute.xlu0 0
        %3443 = vperm.xlu0 %3442, %v3137
        %v3444 = vpop.permute.xlu0 %3443
        %3447 = vset.pattern.permute.xlu0 0
        %3448 = vperm.xlu0 %3447, %v3138
        %v3449 = vpop.permute.xlu0 %3448
        %3452 = vset.pattern.permute.xlu0 0
        %3453 = vperm.xlu0 %3452, %v3139
        %v3454 = vpop.permute.xlu0 %3453
        %3457 = vset.pattern.permute.xlu0 0
        %3458 = vperm.xlu0 %3457, %v3140
        %v3459 = vpop.permute.xlu0 %3458
        %3462 = vset.pattern.permute.xlu0 0
        %3463 = vperm.xlu0 %3462, %v3141
        %v3464 = vpop.permute.xlu0 %3463
        %3467 = vset.pattern.permute.xlu0 0
        %3468 = vperm.xlu0 %3467, %v3142
        %v3469 = vpop.permute.xlu0 %3468
        %3472 = vset.pattern.permute.xlu0 0
        %3473 = vperm.xlu0 %3472, %v3143
        %v3474 = vpop.permute.xlu0 %3473
        %3477 = vset.pattern.permute.xlu0 0
        %3478 = vperm.xlu0 %3477, %v3144
        %v3479 = vpop.permute.xlu0 %3478
        %3482 = vset.pattern.permute.xlu0 0
        %3483 = vperm.xlu0 %3482, %v3145
        %v3484 = vpop.permute.xlu0 %3483
        %3487 = vset.pattern.permute.xlu0 0
        %3488 = vperm.xlu0 %3487, %v3146
        %v3489 = vpop.permute.xlu0 %3488
        %3492 = vset.pattern.permute.xlu0 0
        %3493 = vperm.xlu0 %3492, %v3147
        %v3494 = vpop.permute.xlu0 %3493
        %3497 = vset.pattern.permute.xlu0 0
        %3498 = vperm.xlu0 %3497, %v3148
        %v3499 = vpop.permute.xlu0 %3498
        %3502 = vset.pattern.permute.xlu0 0
        %3503 = vperm.xlu0 %3502, %v3149
        %v3504 = vpop.permute.xlu0 %3503
        %3507 = vset.pattern.permute.xlu0 0
        %3508 = vperm.xlu0 %3507, %v3150
        %v3509 = vpop.permute.xlu0 %3508
        %3512 = vset.pattern.permute.xlu0 0
        %3513 = vperm.xlu0 %3512, %v3151
        %v3514 = vpop.permute.xlu0 %3513
        %3517 = vset.pattern.permute.xlu0 0
        %3518 = vperm.xlu0 %3517, %v3152
        %v3519 = vpop.permute.xlu0 %3518
        %3522 = vset.pattern.permute.xlu0 0
        %3523 = vperm.xlu0 %3522, %v3153
        %v3524 = vpop.permute.xlu0 %3523
        %3527 = vset.pattern.permute.xlu0 0
        %3528 = vperm.xlu0 %3527, %v3154
        %v3529 = vpop.permute.xlu0 %3528
        %3532 = vset.pattern.permute.xlu0 0
        %3533 = vperm.xlu0 %3532, %v3155
        %v3534 = vpop.permute.xlu0 %3533
        %3537 = vset.pattern.permute.xlu0 0
        %3538 = vperm.xlu0 %3537, %v3156
        %v3539 = vpop.permute.xlu0 %3538
        %3542 = vset.pattern.permute.xlu0 0
        %3543 = vperm.xlu0 %3542, %v3157
        %v3544 = vpop.permute.xlu0 %3543
        %3547 = vset.pattern.permute.xlu0 0
        %3548 = vperm.xlu0 %3547, %v3158
        %v3549 = vpop.permute.xlu0 %3548
        %3552 = vset.pattern.permute.xlu0 0
        %3553 = vperm.xlu0 %3552, %v3159
        %v3554 = vpop.permute.xlu0 %3553
        %3557 = vset.pattern.permute.xlu0 0
        %3558 = vperm.xlu0 %3557, %v3160
        %v3559 = vpop.permute.xlu0 %3558
        %3562 = vset.pattern.permute.xlu0 0
        %3563 = vperm.xlu0 %3562, %v3161
        %v3564 = vpop.permute.xlu0 %3563
        %3567 = vset.pattern.permute.xlu0 0
        %3568 = vperm.xlu0 %3567, %v3162
        %v3569 = vpop.permute.xlu0 %3568
        %3572 = vset.pattern.permute.xlu0 0
        %3573 = vperm.xlu0 %3572, %v3163
        %v3574 = vpop.permute.xlu0 %3573
        %3577 = vset.pattern.permute.xlu0 0
        %3578 = vperm.xlu0 %3577, %v3164
        %v3579 = vpop.permute.xlu0 %3578
        %3582 = vset.pattern.permute.xlu0 0
        %3583 = vperm.xlu0 %3582, %v3165
        %v3584 = vpop.permute.xlu0 %3583
        %3587 = vset.pattern.permute.xlu0 0
        %3588 = vperm.xlu0 %3587, %v3166
        %v3589 = vpop.permute.xlu0 %3588
        %3592 = vset.pattern.permute.xlu0 0
        %3593 = vperm.xlu0 %3592, %v3167
        %v3594 = vpop.permute.xlu0 %3593
        %3597 = vset.pattern.permute.xlu0 0
        %3598 = vperm.xlu0 %3597, %v3168
        %v3599 = vpop.permute.xlu0 %3598
        %3602 = vset.pattern.permute.xlu0 0
        %3603 = vperm.xlu0 %3602, %v3169
        %v3604 = vpop.permute.xlu0 %3603
        %3607 = vset.pattern.permute.xlu0 0
        %3608 = vperm.xlu0 %3607, %v3170
        %v3609 = vpop.permute.xlu0 %3608
        %3612 = vset.pattern.permute.xlu0 0
        %3613 = vperm.xlu0 %3612, %v3171
        %v3614 = vpop.permute.xlu0 %3613
        %3617 = vset.pattern.permute.xlu0 0
        %3618 = vperm.xlu0 %3617, %v3172
        %v3619 = vpop.permute.xlu0 %3618
        %3622 = vset.pattern.permute.xlu0 0
        %3623 = vperm.xlu0 %3622, %v3173
        %v3624 = vpop.permute.xlu0 %3623
        %3627 = vset.pattern.permute.xlu0 0
        %3628 = vperm.xlu0 %3627, %v3174
        %v3629 = vpop.permute.xlu0 %3628
        %3632 = vset.pattern.permute.xlu0 0
        %3633 = vperm.xlu0 %3632, %v3175
        %v3634 = vpop.permute.xlu0 %3633
        %3637 = vset.pattern.permute.xlu0 0
        %3638 = vperm.xlu0 %3637, %v3176
        %v3639 = vpop.permute.xlu0 %3638
        %3642 = vset.pattern.permute.xlu0 0
        %3643 = vperm.xlu0 %3642, %v3177
        %v3644 = vpop.permute.xlu0 %3643
        %3647 = vset.pattern.permute.xlu0 0
        %3648 = vperm.xlu0 %3647, %v3178
        %v3649 = vpop.permute.xlu0 %3648
        %3652 = vset.pattern.permute.xlu0 0
        %3653 = vperm.xlu0 %3652, %v3179
        %v3654 = vpop.permute.xlu0 %3653
        %3657 = vset.pattern.permute.xlu0 0
        %3658 = vperm.xlu0 %3657, %v3180
        %v3659 = vpop.permute.xlu0 %3658
        %3662 = vset.pattern.permute.xlu0 0
        %3663 = vperm.xlu0 %3662, %v3181
        %v3664 = vpop.permute.xlu0 %3663
        %3667 = vset.pattern.permute.xlu0 0
        %3668 = vperm.xlu0 %3667, %v3182
        %v3669 = vpop.permute.xlu0 %3668
        %3672 = vset.pattern.permute.xlu0 0
        %3673 = vperm.xlu0 %3672, %v3183
        %v3674 = vpop.permute.xlu0 %3673
        %3677 = vset.pattern.permute.xlu0 0
        %3678 = vperm.xlu0 %3677, %v3184
        %v3679 = vpop.permute.xlu0 %3678
        %3682 = vset.pattern.permute.xlu0 0
        %3683 = vperm.xlu0 %3682, %v3185
        %v3684 = vpop.permute.xlu0 %3683
        %3687 = vset.pattern.permute.xlu0 0
        %3688 = vperm.xlu0 %3687, %v3186
        %v3689 = vpop.permute.xlu0 %3688
        %3692 = vset.pattern.permute.xlu0 0
        %3693 = vperm.xlu0 %3692, %v3187
        %v3694 = vpop.permute.xlu0 %3693
        %3697 = vset.pattern.permute.xlu0 0
        %3698 = vperm.xlu0 %3697, %v3188
        %v3699 = vpop.permute.xlu0 %3698
        %v3701 = vsub.f32 %v1984, %v3384
        %v3702 = vsub.f32 %v1987, %v3389
        %v3703 = vsub.f32 %v1992, %v3394
        %v3704 = vsub.f32 %v1995, %v3399
        %v3705 = vsub.f32 %v2042, %v3404
        %v3706 = vsub.f32 %v2045, %v3409
        %v3707 = vsub.f32 %v2050, %v3414
        %v3708 = vsub.f32 %v2053, %v3419
        %v3709 = vsub.f32 %v2100, %v3424
        %v3710 = vsub.f32 %v2103, %v3429
        %v3711 = vsub.f32 %v2108, %v3434
        %v3712 = vsub.f32 %v2111, %v3439
        %v3713 = vsub.f32 %v2158, %v3444
        %v3714 = vsub.f32 %v2161, %v3449
        %v3715 = vsub.f32 %v2166, %v3454
        %v3716 = vsub.f32 %v2169, %v3459
        %v3717 = vsub.f32 %v2216, %v3464
        %v3718 = vsub.f32 %v2219, %v3469
        %v3719 = vsub.f32 %v2224, %v3474
        %v3720 = vsub.f32 %v2227, %v3479
        %v3721 = vsub.f32 %v2274, %v3484
        %v3722 = vsub.f32 %v2277, %v3489
        %v3723 = vsub.f32 %v2282, %v3494
        %v3724 = vsub.f32 %v2285, %v3499
        %v3725 = vsub.f32 %v2332, %v3504
        %v3726 = vsub.f32 %v2335, %v3509
        %v3727 = vsub.f32 %v2340, %v3514
        %v3728 = vsub.f32 %v2343, %v3519
        %v3729 = vsub.f32 %v2390, %v3524
        %v3730 = vsub.f32 %v2393, %v3529
        %v3731 = vsub.f32 %v2398, %v3534
        %v3732 = vsub.f32 %v2401, %v3539
        %v3733 = vsub.f32 %v2448, %v3544
        %v3734 = vsub.f32 %v2451, %v3549
        %v3735 = vsub.f32 %v2456, %v3554
        %v3736 = vsub.f32 %v2459, %v3559
        %v3737 = vsub.f32 %v2506, %v3564
        %v3738 = vsub.f32 %v2509, %v3569
        %v3739 = vsub.f32 %v2514, %v3574
        %v3740 = vsub.f32 %v2517, %v3579
        %v3741 = vsub.f32 %v2564, %v3584
        %v3742 = vsub.f32 %v2567, %v3589
        %v3743 = vsub.f32 %v2572, %v3594
        %v3744 = vsub.f32 %v2575, %v3599
        %v3745 = vsub.f32 %v2622, %v3604
        %v3746 = vsub.f32 %v2625, %v3609
        %v3747 = vsub.f32 %v2630, %v3614
        %v3748 = vsub.f32 %v2633, %v3619
        %v3749 = vsub.f32 %v2680, %v3624
        %v3750 = vsub.f32 %v2683, %v3629
        %v3751 = vsub.f32 %v2688, %v3634
        %v3752 = vsub.f32 %v2691, %v3639
        %v3753 = vsub.f32 %v2738, %v3644
        %v3754 = vsub.f32 %v2741, %v3649
        %v3755 = vsub.f32 %v2746, %v3654
        %v3756 = vsub.f32 %v2749, %v3659
        %v3757 = vsub.f32 %v2796, %v3664
        %v3758 = vsub.f32 %v2799, %v3669
        %v3759 = vsub.f32 %v2804, %v3674
        %v3760 = vsub.f32 %v2807, %v3679
        %v3761 = vsub.f32 %v2854, %v3684
        %v3762 = vsub.f32 %v2857, %v3689
        %v3763 = vsub.f32 %v2862, %v3694
        %v3764 = vsub.f32 %v2865, %v3699
        %v3765 = vmul.f32 %v3701, 1.442695
        %v3766 = vpow.pop %v3765
        %v3767 = vmul.f32 %v3702, 1.442695
        %v3768 = vpow.pop %v3767
        %v3769 = vmul.f32 %v3703, 1.442695
        %v3770 = vpow.pop %v3769
        %v3771 = vmul.f32 %v3704, 1.442695
        %v3772 = vpow.pop %v3771
        %v3773 = vmul.f32 %v3705, 1.442695
        %v3774 = vpow.pop %v3773
        %v3775 = vmul.f32 %v3706, 1.442695
        %v3776 = vpow.pop %v3775
        %v3777 = vmul.f32 %v3707, 1.442695
        %v3778 = vpow.pop %v3777
        %v3779 = vmul.f32 %v3708, 1.442695
        %v3780 = vpow.pop %v3779
        %v3781 = vmul.f32 %v3709, 1.442695
        %v3782 = vpow.pop %v3781
        %v3783 = vmul.f32 %v3710, 1.442695
        %v3784 = vpow.pop %v3783
        %v3785 = vmul.f32 %v3711, 1.442695
        %v3786 = vpow.pop %v3785
        %v3787 = vmul.f32 %v3712, 1.442695
        %v3788 = vpow.pop %v3787
        %v3789 = vmul.f32 %v3713, 1.442695
        %v3790 = vpow.pop %v3789
        %v3791 = vmul.f32 %v3714, 1.442695
        %v3792 = vpow.pop %v3791
        %v3793 = vmul.f32 %v3715, 1.442695
        %v3794 = vpow.pop %v3793
        %v3795 = vmul.f32 %v3716, 1.442695
        %v3796 = vpow.pop %v3795
        %v3797 = vmul.f32 %v3717, 1.442695
        %v3798 = vpow.pop %v3797
        %v3799 = vmul.f32 %v3718, 1.442695
        %v3800 = vpow.pop %v3799
        %v3801 = vmul.f32 %v3719, 1.442695
        %v3802 = vpow.pop %v3801
        %v3803 = vmul.f32 %v3720, 1.442695
        %v3804 = vpow.pop %v3803
        %v3805 = vmul.f32 %v3721, 1.442695
        %v3806 = vpow.pop %v3805
        %v3807 = vmul.f32 %v3722, 1.442695
        %v3808 = vpow.pop %v3807
        %v3809 = vmul.f32 %v3723, 1.442695
        %v3810 = vpow.pop %v3809
        %v3811 = vmul.f32 %v3724, 1.442695
        %v3812 = vpow.pop %v3811
        %v3813 = vmul.f32 %v3725, 1.442695
        %v3814 = vpow.pop %v3813
        %v3815 = vmul.f32 %v3726, 1.442695
        %v3816 = vpow.pop %v3815
        %v3817 = vmul.f32 %v3727, 1.442695
        %v3818 = vpow.pop %v3817
        %v3819 = vmul.f32 %v3728, 1.442695
        %v3820 = vpow.pop %v3819
        %v3821 = vmul.f32 %v3729, 1.442695
        %v3822 = vpow.pop %v3821
        %v3823 = vmul.f32 %v3730, 1.442695
        %v3824 = vpow.pop %v3823
        %v3825 = vmul.f32 %v3731, 1.442695
        %v3826 = vpow.pop %v3825
        %v3827 = vmul.f32 %v3732, 1.442695
        %v3828 = vpow.pop %v3827
        %v3829 = vmul.f32 %v3733, 1.442695
        %v3830 = vpow.pop %v3829
        %v3831 = vmul.f32 %v3734, 1.442695
        %v3832 = vpow.pop %v3831
        %v3833 = vmul.f32 %v3735, 1.442695
        %v3834 = vpow.pop %v3833
        %v3835 = vmul.f32 %v3736, 1.442695
        %v3836 = vpow.pop %v3835
        %v3837 = vmul.f32 %v3737, 1.442695
        %v3838 = vpow.pop %v3837
        %v3839 = vmul.f32 %v3738, 1.442695
        %v3840 = vpow.pop %v3839
        %v3841 = vmul.f32 %v3739, 1.442695
        %v3842 = vpow.pop %v3841
        %v3843 = vmul.f32 %v3740, 1.442695
        %v3844 = vpow.pop %v3843
        %v3845 = vmul.f32 %v3741, 1.442695
        %v3846 = vpow.pop %v3845
        %v3847 = vmul.f32 %v3742, 1.442695
        %v3848 = vpow.pop %v3847
        %v3849 = vmul.f32 %v3743, 1.442695
        %v3850 = vpow.pop %v3849
        %v3851 = vmul.f32 %v3744, 1.442695
        %v3852 = vpow.pop %v3851
        %v3853 = vmul.f32 %v3745, 1.442695
        %v3854 = vpow.pop %v3853
        %v3855 = vmul.f32 %v3746, 1.442695
        %v3856 = vpow.pop %v3855
        %v3857 = vmul.f32 %v3747, 1.442695
        %v3858 = vpow.pop %v3857
        %v3859 = vmul.f32 %v3748, 1.442695
        %v3860 = vpow.pop %v3859
        %v3861 = vmul.f32 %v3749, 1.442695
        %v3862 = vpow.pop %v3861
        %v3863 = vmul.f32 %v3750, 1.442695
        %v3864 = vpow.pop %v3863
        %v3865 = vmul.f32 %v3751, 1.442695
        %v3866 = vpow.pop %v3865
        %v3867 = vmul.f32 %v3752, 1.442695
        %v3868 = vpow.pop %v3867
        %v3869 = vmul.f32 %v3753, 1.442695
        %v3870 = vpow.pop %v3869
        %v3871 = vmul.f32 %v3754, 1.442695
        %v3872 = vpow.pop %v3871
        %v3873 = vmul.f32 %v3755, 1.442695
        %v3874 = vpow.pop %v3873
        %v3875 = vmul.f32 %v3756, 1.442695
        %v3876 = vpow.pop %v3875
        %v3877 = vmul.f32 %v3757, 1.442695
        %v3878 = vpow.pop %v3877
        %v3879 = vmul.f32 %v3758, 1.442695
        %v3880 = vpow.pop %v3879
        %v3881 = vmul.f32 %v3759, 1.442695
        %v3882 = vpow.pop %v3881
        %v3883 = vmul.f32 %v3760, 1.442695
        %v3884 = vpow.pop %v3883
        %v3885 = vmul.f32 %v3761, 1.442695
        %v3886 = vpow.pop %v3885
        %v3887 = vmul.f32 %v3762, 1.442695
        %v3888 = vpow.pop %v3887
        %v3889 = vmul.f32 %v3763, 1.442695
        %v3890 = vpow.pop %v3889
        %v3891 = vmul.f32 %v3764, 1.442695
        %v3892 = vpow.pop %v3891
        %v3893 = vld [vmem:[#allocation4] sm:$0xff]
        %v3894 = vld [vmem:[#allocation4 + $0x8] sm:$0xff]
        %v3895 = vld [vmem:[#allocation4 + $0x10] sm:$0xff]
        %v3896 = vld [vmem:[#allocation4 + $0x18] sm:$0xff]
        %v3897 = vld [vmem:[#allocation4 + $0x20] sm:$0xff]
        %v3898 = vld [vmem:[#allocation4 + $0x28] sm:$0xff]
        %v3899 = vld [vmem:[#allocation4 + $0x30] sm:$0xff]
        %v3900 = vld [vmem:[#allocation4 + $0x38] sm:$0xff]
        %v3901 = vld [vmem:[#allocation4 + $0x40] sm:$0xff]
        %v3902 = vld [vmem:[#allocation4 + $0x48] sm:$0xff]
        %v3903 = vld [vmem:[#allocation4 + $0x50] sm:$0xff]
        %v3904 = vld [vmem:[#allocation4 + $0x58] sm:$0xff]
        %v3905 = vld [vmem:[#allocation4 + $0x60] sm:$0xff]
        %v3906 = vld [vmem:[#allocation4 + $0x68] sm:$0xff]
        %v3907 = vld [vmem:[#allocation4 + $0x70] sm:$0xff]
        %v3908 = vld [vmem:[#allocation4 + $0x78] sm:$0xff]
        %v3909 = vld [vmem:[#allocation4 + $0x80] sm:$0xff]
        %v3910 = vld [vmem:[#allocation4 + $0x88] sm:$0xff]
        %v3911 = vld [vmem:[#allocation4 + $0x90] sm:$0xff]
        %v3912 = vld [vmem:[#allocation4 + $0x98] sm:$0xff]
        %v3913 = vld [vmem:[#allocation4 + $0xa0] sm:$0xff]
        %v3914 = vld [vmem:[#allocation4 + $0xa8] sm:$0xff]
        %v3915 = vld [vmem:[#allocation4 + $0xb0] sm:$0xff]
        %v3916 = vld [vmem:[#allocation4 + $0xb8] sm:$0xff]
        %v3917 = vld [vmem:[#allocation4 + $0xc0] sm:$0xff]
        %v3918 = vld [vmem:[#allocation4 + $0xc8] sm:$0xff]
        %v3919 = vld [vmem:[#allocation4 + $0xd0] sm:$0xff]
        %v3920 = vld [vmem:[#allocation4 + $0xd8] sm:$0xff]
        %v3921 = vld [vmem:[#allocation4 + $0xe0] sm:$0xff]
        %v3922 = vld [vmem:[#allocation4 + $0xe8] sm:$0xff]
        %v3923 = vld [vmem:[#allocation4 + $0xf0] sm:$0xff]
        %v3924 = vld [vmem:[#allocation4 + $0xf8] sm:$0xff]
        %v3925 = vld [vmem:[#allocation4 + $0x100] sm:$0xff]
        %v3926 = vld [vmem:[#allocation4 + $0x108] sm:$0xff]
        %v3927 = vld [vmem:[#allocation4 + $0x110] sm:$0xff]
        %v3928 = vld [vmem:[#allocation4 + $0x118] sm:$0xff]
        %v3929 = vld [vmem:[#allocation4 + $0x120] sm:$0xff]
        %v3930 = vld [vmem:[#allocation4 + $0x128] sm:$0xff]
        %v3931 = vld [vmem:[#allocation4 + $0x130] sm:$0xff]
        %v3932 = vld [vmem:[#allocation4 + $0x138] sm:$0xff]
        %v3933 = vld [vmem:[#allocation4 + $0x140] sm:$0xff]
        %v3934 = vld [vmem:[#allocation4 + $0x148] sm:$0xff]
        %v3935 = vld [vmem:[#allocation4 + $0x150] sm:$0xff]
        %v3936 = vld [vmem:[#allocation4 + $0x158] sm:$0xff]
        %v3937 = vld [vmem:[#allocation4 + $0x160] sm:$0xff]
        %v3938 = vld [vmem:[#allocation4 + $0x168] sm:$0xff]
        %v3939 = vld [vmem:[#allocation4 + $0x170] sm:$0xff]
        %v3940 = vld [vmem:[#allocation4 + $0x178] sm:$0xff]
        %v3941 = vld [vmem:[#allocation4 + $0x180] sm:$0xff]
        %v3942 = vld [vmem:[#allocation4 + $0x188] sm:$0xff]
        %v3943 = vld [vmem:[#allocation4 + $0x190] sm:$0xff]
        %v3944 = vld [vmem:[#allocation4 + $0x198] sm:$0xff]
        %v3945 = vld [vmem:[#allocation4 + $0x1a0] sm:$0xff]
        %v3946 = vld [vmem:[#allocation4 + $0x1a8] sm:$0xff]
        %v3947 = vld [vmem:[#allocation4 + $0x1b0] sm:$0xff]
        %v3948 = vld [vmem:[#allocation4 + $0x1b8] sm:$0xff]
        %v3949 = vld [vmem:[#allocation4 + $0x1c0] sm:$0xff]
        %v3950 = vld [vmem:[#allocation4 + $0x1c8] sm:$0xff]
        %v3951 = vld [vmem:[#allocation4 + $0x1d0] sm:$0xff]
        %v3952 = vld [vmem:[#allocation4 + $0x1d8] sm:$0xff]
        %v3953 = vld [vmem:[#allocation4 + $0x1e0] sm:$0xff]
        %v3954 = vld [vmem:[#allocation4 + $0x1e8] sm:$0xff]
        %v3955 = vld [vmem:[#allocation4 + $0x1f0] sm:$0xff]
        %v3956 = vld [vmem:[#allocation4 + $0x1f8] sm:$0xff]
        %v3957 = vmul.f32 %v3254, %v3893
        %v3958 = vmul.f32 %v3256, %v3894
        %v3959 = vmul.f32 %v3258, %v3895
        %v3960 = vmul.f32 %v3260, %v3896
        %v3961 = vmul.f32 %v3262, %v3897
        %v3962 = vmul.f32 %v3264, %v3898
        %v3963 = vmul.f32 %v3266, %v3899
        %v3964 = vmul.f32 %v3268, %v3900
        %v3965 = vmul.f32 %v3270, %v3901
        %v3966 = vmul.f32 %v3272, %v3902
        %v3967 = vmul.f32 %v3274, %v3903
        %v3968 = vmul.f32 %v3276, %v3904
        %v3969 = vmul.f32 %v3278, %v3905
        %v3970 = vmul.f32 %v3280, %v3906
        %v3971 = vmul.f32 %v3282, %v3907
        %v3972 = vmul.f32 %v3284, %v3908
        %v3973 = vmul.f32 %v3286, %v3909
        %v3974 = vmul.f32 %v3288, %v3910
        %v3975 = vmul.f32 %v3290, %v3911
        %v3976 = vmul.f32 %v3292, %v3912
        %v3977 = vmul.f32 %v3294, %v3913
        %v3978 = vmul.f32 %v3296, %v3914
        %v3979 = vmul.f32 %v3298, %v3915
        %v3980 = vmul.f32 %v3300, %v3916
        %v3981 = vmul.f32 %v3302, %v3917
        %v3982 = vmul.f32 %v3304, %v3918
        %v3983 = vmul.f32 %v3306, %v3919
        %v3984 = vmul.f32 %v3308, %v3920
        %v3985 = vmul.f32 %v3310, %v3921
        %v3986 = vmul.f32 %v3312, %v3922
        %v3987 = vmul.f32 %v3314, %v3923
        %v3988 = vmul.f32 %v3316, %v3924
        %v3989 = vmul.f32 %v3318, %v3925
        %v3990 = vmul.f32 %v3320, %v3926
        %v3991 = vmul.f32 %v3322, %v3927
        %v3992 = vmul.f32 %v3324, %v3928
        %v3993 = vmul.f32 %v3326, %v3929
        %v3994 = vmul.f32 %v3328, %v3930
        %v3995 = vmul.f32 %v3330, %v3931
        %v3996 = vmul.f32 %v3332, %v3932
        %v3997 = vmul.f32 %v3334, %v3933
        %v3998 = vmul.f32 %v3336, %v3934
        %v3999 = vmul.f32 %v3338, %v3935
        %v4000 = vmul.f32 %v3340, %v3936
        %v4001 = vmul.f32 %v3342, %v3937
        %v4002 = vmul.f32 %v3344, %v3938
        %v4003 = vmul.f32 %v3346, %v3939
        %v4004 = vmul.f32 %v3348, %v3940
        %v4005 = vmul.f32 %v3350, %v3941
        %v4006 = vmul.f32 %v3352, %v3942
        %v4007 = vmul.f32 %v3354, %v3943
        %v4008 = vmul.f32 %v3356, %v3944
        %v4009 = vmul.f32 %v3358, %v3945
        %v4010 = vmul.f32 %v3360, %v3946
        %v4011 = vmul.f32 %v3362, %v3947
        %v4012 = vmul.f32 %v3364, %v3948
        %v4013 = vmul.f32 %v3366, %v3949
        %v4014 = vmul.f32 %v3368, %v3950
        %v4015 = vmul.f32 %v3370, %v3951
        %v4016 = vmul.f32 %v3372, %v3952
        %v4017 = vmul.f32 %v3374, %v3953
        %v4018 = vmul.f32 %v3376, %v3954
        %v4019 = vmul.f32 %v3378, %v3955
        %v4020 = vmul.f32 %v3380, %v3956
        %v4021 = vsel %vm2932, %v3766, 0.0
        %4022 = vadd.xlane.f32.xlu0 %v4021
        %v4023 = vpop.xlane.xlu0 %4022
        %v4024 = vsel %vm2932, %v3768, 0.0
        %4025 = vadd.xlane.f32.xlu0 %v4024
        %v4026 = vpop.xlane.xlu0 %4025
        %v4027 = vsel %vm2932, %v3770, 0.0
        %4028 = vadd.xlane.f32.xlu0 %v4027
        %v4029 = vpop.xlane.xlu0 %4028
        %v4030 = vsel %vm2932, %v3772, 0.0
        %4031 = vadd.xlane.f32.xlu0 %v4030
        %v4032 = vpop.xlane.xlu0 %4031
        %v4033 = vsel %vm2932, %v3774, 0.0
        %4034 = vadd.xlane.f32.xlu0 %v4033
        %v4035 = vpop.xlane.xlu0 %4034
        %v4036 = vsel %vm2932, %v3776, 0.0
        %4037 = vadd.xlane.f32.xlu0 %v4036
        %v4038 = vpop.xlane.xlu0 %4037
        %v4039 = vsel %vm2932, %v3778, 0.0
        %4040 = vadd.xlane.f32.xlu0 %v4039
        %v4041 = vpop.xlane.xlu0 %4040
        %v4042 = vsel %vm2932, %v3780, 0.0
        %4043 = vadd.xlane.f32.xlu0 %v4042
        %v4044 = vpop.xlane.xlu0 %4043
        %v4045 = vsel %vm2932, %v3782, 0.0
        %4046 = vadd.xlane.f32.xlu0 %v4045
        %v4047 = vpop.xlane.xlu0 %4046
        %v4048 = vsel %vm2932, %v3784, 0.0
        %4049 = vadd.xlane.f32.xlu0 %v4048
        %v4050 = vpop.xlane.xlu0 %4049
        %v4051 = vsel %vm2932, %v3786, 0.0
        %4052 = vadd.xlane.f32.xlu0 %v4051
        %v4053 = vpop.xlane.xlu0 %4052
        %v4054 = vsel %vm2932, %v3788, 0.0
        %4055 = vadd.xlane.f32.xlu0 %v4054
        %v4056 = vpop.xlane.xlu0 %4055
        %v4057 = vsel %vm2932, %v3790, 0.0
        %4058 = vadd.xlane.f32.xlu0 %v4057
        %v4059 = vpop.xlane.xlu0 %4058
        %v4060 = vsel %vm2932, %v3792, 0.0
        %4061 = vadd.xlane.f32.xlu0 %v4060
        %v4062 = vpop.xlane.xlu0 %4061
        %v4063 = vsel %vm2932, %v3794, 0.0
        %4064 = vadd.xlane.f32.xlu0 %v4063
        %v4065 = vpop.xlane.xlu0 %4064
        %v4066 = vsel %vm2932, %v3796, 0.0
        %4067 = vadd.xlane.f32.xlu0 %v4066
        %v4068 = vpop.xlane.xlu0 %4067
        %v4069 = vsel %vm2932, %v3798, 0.0
        %4070 = vadd.xlane.f32.xlu0 %v4069
        %v4071 = vpop.xlane.xlu0 %4070
        %v4072 = vsel %vm2932, %v3800, 0.0
        %4073 = vadd.xlane.f32.xlu0 %v4072
        %v4074 = vpop.xlane.xlu0 %4073
        %v4075 = vsel %vm2932, %v3802, 0.0
        %4076 = vadd.xlane.f32.xlu0 %v4075
        %v4077 = vpop.xlane.xlu0 %4076
        %v4078 = vsel %vm2932, %v3804, 0.0
        %4079 = vadd.xlane.f32.xlu0 %v4078
        %v4080 = vpop.xlane.xlu0 %4079
        %v4081 = vsel %vm2932, %v3806, 0.0
        %4082 = vadd.xlane.f32.xlu0 %v4081
        %v4083 = vpop.xlane.xlu0 %4082
        %v4084 = vsel %vm2932, %v3808, 0.0
        %4085 = vadd.xlane.f32.xlu0 %v4084
        %v4086 = vpop.xlane.xlu0 %4085
        %v4087 = vsel %vm2932, %v3810, 0.0
        %4088 = vadd.xlane.f32.xlu0 %v4087
        %v4089 = vpop.xlane.xlu0 %4088
        %v4090 = vsel %vm2932, %v3812, 0.0
        %4091 = vadd.xlane.f32.xlu0 %v4090
        %v4092 = vpop.xlane.xlu0 %4091
        %v4093 = vsel %vm2932, %v3814, 0.0
        %4094 = vadd.xlane.f32.xlu0 %v4093
        %v4095 = vpop.xlane.xlu0 %4094
        %v4096 = vsel %vm2932, %v3816, 0.0
        %4097 = vadd.xlane.f32.xlu0 %v4096
        %v4098 = vpop.xlane.xlu0 %4097
        %v4099 = vsel %vm2932, %v3818, 0.0
        %4100 = vadd.xlane.f32.xlu0 %v4099
        %v4101 = vpop.xlane.xlu0 %4100
        %v4102 = vsel %vm2932, %v3820, 0.0
        %4103 = vadd.xlane.f32.xlu0 %v4102
        %v4104 = vpop.xlane.xlu0 %4103
        %v4105 = vsel %vm2932, %v3822, 0.0
        %4106 = vadd.xlane.f32.xlu0 %v4105
        %v4107 = vpop.xlane.xlu0 %4106
        %v4108 = vsel %vm2932, %v3824, 0.0
        %4109 = vadd.xlane.f32.xlu0 %v4108
        %v4110 = vpop.xlane.xlu0 %4109
        %v4111 = vsel %vm2932, %v3826, 0.0
        %4112 = vadd.xlane.f32.xlu0 %v4111
        %v4113 = vpop.xlane.xlu0 %4112
        %v4114 = vsel %vm2932, %v3828, 0.0
        %4115 = vadd.xlane.f32.xlu0 %v4114
        %v4116 = vpop.xlane.xlu0 %4115
        %v4117 = vsel %vm2932, %v3830, 0.0
        %4118 = vadd.xlane.f32.xlu0 %v4117
        %v4119 = vpop.xlane.xlu0 %4118
        %v4120 = vsel %vm2932, %v3832, 0.0
        %4121 = vadd.xlane.f32.xlu0 %v4120
        %v4122 = vpop.xlane.xlu0 %4121
        %v4123 = vsel %vm2932, %v3834, 0.0
        %4124 = vadd.xlane.f32.xlu0 %v4123
        %v4125 = vpop.xlane.xlu0 %4124
        %v4126 = vsel %vm2932, %v3836, 0.0
        %4127 = vadd.xlane.f32.xlu0 %v4126
        %v4128 = vpop.xlane.xlu0 %4127
        %v4129 = vsel %vm2932, %v3838, 0.0
        %4130 = vadd.xlane.f32.xlu0 %v4129
        %v4131 = vpop.xlane.xlu0 %4130
        %v4132 = vsel %vm2932, %v3840, 0.0
        %4133 = vadd.xlane.f32.xlu0 %v4132
        %v4134 = vpop.xlane.xlu0 %4133
        %v4135 = vsel %vm2932, %v3842, 0.0
        %4136 = vadd.xlane.f32.xlu0 %v4135
        %v4137 = vpop.xlane.xlu0 %4136
        %v4138 = vsel %vm2932, %v3844, 0.0
        %4139 = vadd.xlane.f32.xlu0 %v4138
        %v4140 = vpop.xlane.xlu0 %4139
        %v4141 = vsel %vm2932, %v3846, 0.0
        %4142 = vadd.xlane.f32.xlu0 %v4141
        %v4143 = vpop.xlane.xlu0 %4142
        %v4144 = vsel %vm2932, %v3848, 0.0
        %4145 = vadd.xlane.f32.xlu0 %v4144
        %v4146 = vpop.xlane.xlu0 %4145
        %v4147 = vsel %vm2932, %v3850, 0.0
        %4148 = vadd.xlane.f32.xlu0 %v4147
        %v4149 = vpop.xlane.xlu0 %4148
        %v4150 = vsel %vm2932, %v3852, 0.0
        %4151 = vadd.xlane.f32.xlu0 %v4150
        %v4152 = vpop.xlane.xlu0 %4151
        %v4153 = vsel %vm2932, %v3854, 0.0
        %4154 = vadd.xlane.f32.xlu0 %v4153
        %v4155 = vpop.xlane.xlu0 %4154
        %v4156 = vsel %vm2932, %v3856, 0.0
        %4157 = vadd.xlane.f32.xlu0 %v4156
        %v4158 = vpop.xlane.xlu0 %4157
        %v4159 = vsel %vm2932, %v3858, 0.0
        %4160 = vadd.xlane.f32.xlu0 %v4159
        %v4161 = vpop.xlane.xlu0 %4160
        %v4162 = vsel %vm2932, %v3860, 0.0
        %4163 = vadd.xlane.f32.xlu0 %v4162
        %v4164 = vpop.xlane.xlu0 %4163
        %v4165 = vsel %vm2932, %v3862, 0.0
        %4166 = vadd.xlane.f32.xlu0 %v4165
        %v4167 = vpop.xlane.xlu0 %4166
        %v4168 = vsel %vm2932, %v3864, 0.0
        %4169 = vadd.xlane.f32.xlu0 %v4168
        %v4170 = vpop.xlane.xlu0 %4169
        %v4171 = vsel %vm2932, %v3866, 0.0
        %4172 = vadd.xlane.f32.xlu0 %v4171
        %v4173 = vpop.xlane.xlu0 %4172
        %v4174 = vsel %vm2932, %v3868, 0.0
        %4175 = vadd.xlane.f32.xlu0 %v4174
        %v4176 = vpop.xlane.xlu0 %4175
        %v4177 = vsel %vm2932, %v3870, 0.0
        %4178 = vadd.xlane.f32.xlu0 %v4177
        %v4179 = vpop.xlane.xlu0 %4178
        %v4180 = vsel %vm2932, %v3872, 0.0
        %4181 = vadd.xlane.f32.xlu0 %v4180
        %v4182 = vpop.xlane.xlu0 %4181
        %v4183 = vsel %vm2932, %v3874, 0.0
        %4184 = vadd.xlane.f32.xlu0 %v4183
        %v4185 = vpop.xlane.xlu0 %4184
        %v4186 = vsel %vm2932, %v3876, 0.0
        %4187 = vadd.xlane.f32.xlu0 %v4186
        %v4188 = vpop.xlane.xlu0 %4187
        %v4189 = vsel %vm2932, %v3878, 0.0
        %4190 = vadd.xlane.f32.xlu0 %v4189
        %v4191 = vpop.xlane.xlu0 %4190
        %v4192 = vsel %vm2932, %v3880, 0.0
        %4193 = vadd.xlane.f32.xlu0 %v4192
        %v4194 = vpop.xlane.xlu0 %4193
        %v4195 = vsel %vm2932, %v3882, 0.0
        %4196 = vadd.xlane.f32.xlu0 %v4195
        %v4197 = vpop.xlane.xlu0 %4196
        %v4198 = vsel %vm2932, %v3884, 0.0
        %4199 = vadd.xlane.f32.xlu0 %v4198
        %v4200 = vpop.xlane.xlu0 %4199
        %v4201 = vsel %vm2932, %v3886, 0.0
        %4202 = vadd.xlane.f32.xlu0 %v4201
        %v4203 = vpop.xlane.xlu0 %4202
        %v4204 = vsel %vm2932, %v3888, 0.0
        %4205 = vadd.xlane.f32.xlu0 %v4204
        %v4206 = vpop.xlane.xlu0 %4205
        %v4207 = vsel %vm2932, %v3890, 0.0
        %4208 = vadd.xlane.f32.xlu0 %v4207
        %v4209 = vpop.xlane.xlu0 %4208
        %v4210 = vsel %vm2932, %v3892, 0.0
        %4211 = vadd.xlane.f32.xlu0 %v4210
        %v4212 = vpop.xlane.xlu0 %4211
        %v4213 = vadd.f32 %v3957, %v4023
        %v4214 = vadd.f32 %v3958, %v4026
        %v4215 = vadd.f32 %v3959, %v4029
        %v4216 = vadd.f32 %v3960, %v4032
        %v4217 = vadd.f32 %v3961, %v4035
        %v4218 = vadd.f32 %v3962, %v4038
        %v4219 = vadd.f32 %v3963, %v4041
        %v4220 = vadd.f32 %v3964, %v4044
        %v4221 = vadd.f32 %v3965, %v4047
        %v4222 = vadd.f32 %v3966, %v4050
        %v4223 = vadd.f32 %v3967, %v4053
        %v4224 = vadd.f32 %v3968, %v4056
        %v4225 = vadd.f32 %v3969, %v4059
        %v4226 = vadd.f32 %v3970, %v4062
        %v4227 = vadd.f32 %v3971, %v4065
        %v4228 = vadd.f32 %v3972, %v4068
        %v4229 = vadd.f32 %v3973, %v4071
        %v4230 = vadd.f32 %v3974, %v4074
        %v4231 = vadd.f32 %v3975, %v4077
        %v4232 = vadd.f32 %v3976, %v4080
        %v4233 = vadd.f32 %v3977, %v4083
        %v4234 = vadd.f32 %v3978, %v4086
        %v4235 = vadd.f32 %v3979, %v4089
        %v4236 = vadd.f32 %v3980, %v4092
        %v4237 = vadd.f32 %v3981, %v4095
        %v4238 = vadd.f32 %v3982, %v4098
        %v4239 = vadd.f32 %v3983, %v4101
        %v4240 = vadd.f32 %v3984, %v4104
        %v4241 = vadd.f32 %v3985, %v4107
        %v4242 = vadd.f32 %v3986, %v4110
        %v4243 = vadd.f32 %v3987, %v4113
        %v4244 = vadd.f32 %v3988, %v4116
        %v4245 = vadd.f32 %v3989, %v4119
        %v4246 = vadd.f32 %v3990, %v4122
        %v4247 = vadd.f32 %v3991, %v4125
        %v4248 = vadd.f32 %v3992, %v4128
        %v4249 = vadd.f32 %v3993, %v4131
        %v4250 = vadd.f32 %v3994, %v4134
        %v4251 = vadd.f32 %v3995, %v4137
        %v4252 = vadd.f32 %v3996, %v4140
        %v4253 = vadd.f32 %v3997, %v4143
        %v4254 = vadd.f32 %v3998, %v4146
        %v4255 = vadd.f32 %v3999, %v4149
        %v4256 = vadd.f32 %v4000, %v4152
        %v4257 = vadd.f32 %v4001, %v4155
        %v4258 = vadd.f32 %v4002, %v4158
        %v4259 = vadd.f32 %v4003, %v4161
        %v4260 = vadd.f32 %v4004, %v4164
        %v4261 = vadd.f32 %v4005, %v4167
        %v4262 = vadd.f32 %v4006, %v4170
        %v4263 = vadd.f32 %v4007, %v4173
        %v4264 = vadd.f32 %v4008, %v4176
        %v4265 = vadd.f32 %v4009, %v4179
        %v4266 = vadd.f32 %v4010, %v4182
        %v4267 = vadd.f32 %v4011, %v4185
        %v4268 = vadd.f32 %v4012, %v4188
        %v4269 = vadd.f32 %v4013, %v4191
        %v4270 = vadd.f32 %v4014, %v4194
        %v4271 = vadd.f32 %v4015, %v4197
        %v4272 = vadd.f32 %v4016, %v4200
        %v4273 = vadd.f32 %v4017, %v4203
        %v4274 = vadd.f32 %v4018, %v4206
        %v4275 = vadd.f32 %v4019, %v4209
        %v4276 = vadd.f32 %v4020, %v4212
        %vm4277 = vcmask 7168
        %4278 = vst.msk [vmem:[#allocation4] sm:$0xff] %vm4277, %v4213
        %4279 = vst.msk [vmem:[#allocation4 + $0x8] sm:$0xff] %vm4277, %v4214
        %4280 = vst.msk [vmem:[#allocation4 + $0x10] sm:$0xff] %vm4277, %v4215
        %4281 = vst.msk [vmem:[#allocation4 + $0x18] sm:$0xff] %vm4277, %v4216
        %4282 = vst.msk [vmem:[#allocation4 + $0x20] sm:$0xff] %vm4277, %v4217
        %4283 = vst.msk [vmem:[#allocation4 + $0x28] sm:$0xff] %vm4277, %v4218
        %4284 = vst.msk [vmem:[#allocation4 + $0x30] sm:$0xff] %vm4277, %v4219
        %4285 = vst.msk [vmem:[#allocation4 + $0x38] sm:$0xff] %vm4277, %v4220
        %4286 = vst.msk [vmem:[#allocation4 + $0x40] sm:$0xff] %vm4277, %v4221
        %4287 = vst.msk [vmem:[#allocation4 + $0x48] sm:$0xff] %vm4277, %v4222
        %4288 = vst.msk [vmem:[#allocation4 + $0x50] sm:$0xff] %vm4277, %v4223
        %4289 = vst.msk [vmem:[#allocation4 + $0x58] sm:$0xff] %vm4277, %v4224
        %4290 = vst.msk [vmem:[#allocation4 + $0x60] sm:$0xff] %vm4277, %v4225
        %4291 = vst.msk [vmem:[#allocation4 + $0x68] sm:$0xff] %vm4277, %v4226
        %4292 = vst.msk [vmem:[#allocation4 + $0x70] sm:$0xff] %vm4277, %v4227
        %4293 = vst.msk [vmem:[#allocation4 + $0x78] sm:$0xff] %vm4277, %v4228
        %4294 = vst.msk [vmem:[#allocation4 + $0x80] sm:$0xff] %vm4277, %v4229
        %4295 = vst.msk [vmem:[#allocation4 + $0x88] sm:$0xff] %vm4277, %v4230
        %4296 = vst.msk [vmem:[#allocation4 + $0x90] sm:$0xff] %vm4277, %v4231
        %4297 = vst.msk [vmem:[#allocation4 + $0x98] sm:$0xff] %vm4277, %v4232
        %4298 = vst.msk [vmem:[#allocation4 + $0xa0] sm:$0xff] %vm4277, %v4233
        %4299 = vst.msk [vmem:[#allocation4 + $0xa8] sm:$0xff] %vm4277, %v4234
        %4300 = vst.msk [vmem:[#allocation4 + $0xb0] sm:$0xff] %vm4277, %v4235
        %4301 = vst.msk [vmem:[#allocation4 + $0xb8] sm:$0xff] %vm4277, %v4236
        %4302 = vst.msk [vmem:[#allocation4 + $0xc0] sm:$0xff] %vm4277, %v4237
        %4303 = vst.msk [vmem:[#allocation4 + $0xc8] sm:$0xff] %vm4277, %v4238
        %4304 = vst.msk [vmem:[#allocation4 + $0xd0] sm:$0xff] %vm4277, %v4239
        %4305 = vst.msk [vmem:[#allocation4 + $0xd8] sm:$0xff] %vm4277, %v4240
        %4306 = vst.msk [vmem:[#allocation4 + $0xe0] sm:$0xff] %vm4277, %v4241
        %4307 = vst.msk [vmem:[#allocation4 + $0xe8] sm:$0xff] %vm4277, %v4242
        %4308 = vst.msk [vmem:[#allocation4 + $0xf0] sm:$0xff] %vm4277, %v4243
        %4309 = vst.msk [vmem:[#allocation4 + $0xf8] sm:$0xff] %vm4277, %v4244
        %4310 = vst.msk [vmem:[#allocation4 + $0x100] sm:$0xff] %vm4277, %v4245
        %4311 = vst.msk [vmem:[#allocation4 + $0x108] sm:$0xff] %vm4277, %v4246
        %4312 = vst.msk [vmem:[#allocation4 + $0x110] sm:$0xff] %vm4277, %v4247
        %4313 = vst.msk [vmem:[#allocation4 + $0x118] sm:$0xff] %vm4277, %v4248
        %4314 = vst.msk [vmem:[#allocation4 + $0x120] sm:$0xff] %vm4277, %v4249
        %4315 = vst.msk [vmem:[#allocation4 + $0x128] sm:$0xff] %vm4277, %v4250
        %4316 = vst.msk [vmem:[#allocation4 + $0x130] sm:$0xff] %vm4277, %v4251
        %4317 = vst.msk [vmem:[#allocation4 + $0x138] sm:$0xff] %vm4277, %v4252
        %4318 = vst.msk [vmem:[#allocation4 + $0x140] sm:$0xff] %vm4277, %v4253
        %4319 = vst.msk [vmem:[#allocation4 + $0x148] sm:$0xff] %vm4277, %v4254
        %4320 = vst.msk [vmem:[#allocation4 + $0x150] sm:$0xff] %vm4277, %v4255
        %4321 = vst.msk [vmem:[#allocation4 + $0x158] sm:$0xff] %vm4277, %v4256
        %4322 = vst.msk [vmem:[#allocation4 + $0x160] sm:$0xff] %vm4277, %v4257
        %4323 = vst.msk [vmem:[#allocation4 + $0x168] sm:$0xff] %vm4277, %v4258
        %4324 = vst.msk [vmem:[#allocation4 + $0x170] sm:$0xff] %vm4277, %v4259
        %4325 = vst.msk [vmem:[#allocation4 + $0x178] sm:$0xff] %vm4277, %v4260
        %4326 = vst.msk [vmem:[#allocation4 + $0x180] sm:$0xff] %vm4277, %v4261
        %4327 = vst.msk [vmem:[#allocation4 + $0x188] sm:$0xff] %vm4277, %v4262
        %4328 = vst.msk [vmem:[#allocation4 + $0x190] sm:$0xff] %vm4277, %v4263
        %4329 = vst.msk [vmem:[#allocation4 + $0x198] sm:$0xff] %vm4277, %v4264
        %4330 = vst.msk [vmem:[#allocation4 + $0x1a0] sm:$0xff] %vm4277, %v4265
        %4331 = vst.msk [vmem:[#allocation4 + $0x1a8] sm:$0xff] %vm4277, %v4266
        %4332 = vst.msk [vmem:[#allocation4 + $0x1b0] sm:$0xff] %vm4277, %v4267
        %4333 = vst.msk [vmem:[#allocation4 + $0x1b8] sm:$0xff] %vm4277, %v4268
        %4334 = vst.msk [vmem:[#allocation4 + $0x1c0] sm:$0xff] %vm4277, %v4269
        %4335 = vst.msk [vmem:[#allocation4 + $0x1c8] sm:$0xff] %vm4277, %v4270
        %4336 = vst.msk [vmem:[#allocation4 + $0x1d0] sm:$0xff] %vm4277, %v4271
        %4337 = vst.msk [vmem:[#allocation4 + $0x1d8] sm:$0xff] %vm4277, %v4272
        %4338 = vst.msk [vmem:[#allocation4 + $0x1e0] sm:$0xff] %vm4277, %v4273
        %4339 = vst.msk [vmem:[#allocation4 + $0x1e8] sm:$0xff] %vm4277, %v4274
        %4340 = vst.msk [vmem:[#allocation4 + $0x1f0] sm:$0xff] %vm4277, %v4275
        %4341 = vst.msk [vmem:[#allocation4 + $0x1f8] sm:$0xff] %vm4277, %v4276
        %v4342 = vpack.c.bf16 %v3768, %v3766
        %v4343 = vpack.c.bf16 %v3772, %v3770
        %v4344 = vpack.c.bf16 %v3776, %v3774
        %v4345 = vpack.c.bf16 %v3780, %v3778
        %v4346 = vpack.c.bf16 %v3784, %v3782
        %v4347 = vpack.c.bf16 %v3788, %v3786
        %v4348 = vpack.c.bf16 %v3792, %v3790
        %v4349 = vpack.c.bf16 %v3796, %v3794
        %v4350 = vpack.c.bf16 %v3800, %v3798
        %v4351 = vpack.c.bf16 %v3804, %v3802
        %v4352 = vpack.c.bf16 %v3808, %v3806
        %v4353 = vpack.c.bf16 %v3812, %v3810
        %v4354 = vpack.c.bf16 %v3816, %v3814
        %v4355 = vpack.c.bf16 %v3820, %v3818
        %v4356 = vpack.c.bf16 %v3824, %v3822
        %v4357 = vpack.c.bf16 %v3828, %v3826
        %v4358 = vpack.c.bf16 %v3832, %v3830
        %v4359 = vpack.c.bf16 %v3836, %v3834
        %v4360 = vpack.c.bf16 %v3840, %v3838
        %v4361 = vpack.c.bf16 %v3844, %v3842
        %v4362 = vpack.c.bf16 %v3848, %v3846
        %v4363 = vpack.c.bf16 %v3852, %v3850
        %v4364 = vpack.c.bf16 %v3856, %v3854
        %v4365 = vpack.c.bf16 %v3860, %v3858
        %v4366 = vpack.c.bf16 %v3864, %v3862
        %v4367 = vpack.c.bf16 %v3868, %v3866
        %v4368 = vpack.c.bf16 %v3872, %v3870
        %v4369 = vpack.c.bf16 %v3876, %v3874
        %v4370 = vpack.c.bf16 %v3880, %v3878
        %v4371 = vpack.c.bf16 %v3884, %v3882
        %v4372 = vpack.c.bf16 %v3888, %v3886
        %v4373 = vpack.c.bf16 %v3892, %v3890
        %v4375 = vsel %vm2932, %v4342, 0
        %v4378 = vsel %vm2932, %v4343, 0
        %v4381 = vsel %vm2932, %v1890, 0
        %4383 = vmatprep.subr.bf16.mxu0 0
        %4384 = vmatpush1.bf16.xpose.msra.mxu0 %v4381
        %4385 = vmatprep.subr.bf16.mxu0 0
        %4386 = vmatpush1.bf16.xpose.msra.mxu0 0
        %4387 = vmatprep.subr.bf16.mxu0 0
        %4388 = vmatpush1.bf16.xpose.msra.mxu0 0
        %4389 = vmatprep.subr.bf16.mxu0 0
        %4390 = vmatpush1.bf16.xpose.msra.mxu0 0
        %4391 = vmatprep.subr.bf16.mxu0 0
        %4392 = vmatpush1.bf16.xpose.msra.mxu0 0
        %4393 = vmatprep.subr.bf16.mxu0 0
        %4394 = vmatpush1.bf16.xpose.msra.mxu0 0
        %4395 = vmatprep.subr.bf16.mxu0 0
        %4396 = vmatpush1.bf16.xpose.msra.mxu0 0
        %4397 = vmatprep.subr.bf16.mxu0 0
        %4398 = vmatpush1.bf16.xpose.msra.mxu0 0
        %4399 = vmatprep.subr.bf16.mxu0 0
        %4400 = vmatpush1.bf16.xpose.msra.mxu0 0
        %4401 = vmatprep.subr.bf16.mxu0 0
        %4402 = vmatpush1.bf16.xpose.msra.mxu0 0
        %4403 = vmatprep.subr.bf16.mxu0 0
        %4404 = vmatpush1.bf16.xpose.msra.mxu0 0
        %4405 = vmatprep.subr.bf16.mxu0 0
        %4406 = vmatpush1.bf16.xpose.msra.mxu0 0
        %4407 = vmatprep.subr.bf16.mxu0 0
        %4408 = vmatpush1.bf16.xpose.msra.mxu0 0
        %4409 = vmatprep.subr.bf16.mxu0 0
        %4410 = vmatpush1.bf16.xpose.msra.mxu0 0
        %4411 = vmatprep.subr.bf16.mxu0 0
        %4412 = vmatpush1.bf16.xpose.msra.mxu0 0
        %4413 = vmatprep.subr.bf16.mxu0 0
        %4414 = vmatpush1.bf16.xpose.msra.mxu0 0
        %4415 = vmatprep.mubr.bf16.mxu0 0
        %4416 = vmatmul.mubr.bf16.gmra.mrb[0].mxu0 %v4375
        %v4417 = vpop.f32.mrb[0].mxu0
        %v4418 = vadd.f32 0.0, %v4417
        %v4419 = vpop.f32.mrb[0].mxu0
        %v4420 = vpop.f32.mrb[0].mxu0
        %v4421 = vadd.f32 0.0, %v4420
        %v4422 = vpop.f32.mrb[0].mxu0
        %4423 = vmatprep.mubr.bf16.mxu0 0
        %4424 = vmatmul.mubr.bf16.gmra.mrb[0].mxu0 %v4378
        %v4425 = vpop.f32.mrb[0].mxu0
        %v4426 = vadd.f32 0.0, %v4425
        %v4427 = vpop.f32.mrb[0].mxu0
        %v4428 = vpop.f32.mrb[0].mxu0
        %v4429 = vadd.f32 0.0, %v4428
        %v4430 = vpop.f32.mrb[0].mxu0
        %4431 = vdwg.mxu0
        %v4433 = vsel %vm2932, %v4344, 0
        %v4436 = vsel %vm2932, %v4345, 0
        %v4439 = vsel %vm2932, %v1891, 0
        %4441 = vmatprep.subr.bf16.mxu0 0
        %4442 = vmatpush1.bf16.xpose.msra.mxu0 %v4439
        %4443 = vmatprep.subr.bf16.mxu0 0
        %4444 = vmatpush1.bf16.xpose.msra.mxu0 0
        %4445 = vmatprep.subr.bf16.mxu0 0
        %4446 = vmatpush1.bf16.xpose.msra.mxu0 0
        %4447 = vmatprep.subr.bf16.mxu0 0
        %4448 = vmatpush1.bf16.xpose.msra.mxu0 0
        %4449 = vmatprep.subr.bf16.mxu0 0
        %4450 = vmatpush1.bf16.xpose.msra.mxu0 0
        %4451 = vmatprep.subr.bf16.mxu0 0
        %4452 = vmatpush1.bf16.xpose.msra.mxu0 0
        %4453 = vmatprep.subr.bf16.mxu0 0
        %4454 = vmatpush1.bf16.xpose.msra.mxu0 0
        %4455 = vmatprep.subr.bf16.mxu0 0
        %4456 = vmatpush1.bf16.xpose.msra.mxu0 0
        %4457 = vmatprep.subr.bf16.mxu0 0
        %4458 = vmatpush1.bf16.xpose.msra.mxu0 0
        %4459 = vmatprep.subr.bf16.mxu0 0
        %4460 = vmatpush1.bf16.xpose.msra.mxu0 0
        %4461 = vmatprep.subr.bf16.mxu0 0
        %4462 = vmatpush1.bf16.xpose.msra.mxu0 0
        %4463 = vmatprep.subr.bf16.mxu0 0
        %4464 = vmatpush1.bf16.xpose.msra.mxu0 0
        %4465 = vmatprep.subr.bf16.mxu0 0
        %4466 = vmatpush1.bf16.xpose.msra.mxu0 0
        %4467 = vmatprep.subr.bf16.mxu0 0
        %4468 = vmatpush1.bf16.xpose.msra.mxu0 0
        %4469 = vmatprep.subr.bf16.mxu0 0
        %4470 = vmatpush1.bf16.xpose.msra.mxu0 0
        %4471 = vmatprep.subr.bf16.mxu0 0
        %4472 = vmatpush1.bf16.xpose.msra.mxu0 0
        %4473 = vmatprep.mubr.bf16.mxu0 0
        %4474 = vmatmul.mubr.bf16.gmra.mrb[0].mxu0 %v4433
        %v4475 = vpop.f32.mrb[0].mxu0
        %v4476 = vadd.f32 0.0, %v4475
        %v4477 = vpop.f32.mrb[0].mxu0
        %v4478 = vpop.f32.mrb[0].mxu0
        %v4479 = vadd.f32 0.0, %v4478
        %v4480 = vpop.f32.mrb[0].mxu0
        %4481 = vmatprep.mubr.bf16.mxu0 0
        %4482 = vmatmul.mubr.bf16.gmra.mrb[0].mxu0 %v4436
        %v4483 = vpop.f32.mrb[0].mxu0
        %v4484 = vadd.f32 0.0, %v4483
        %v4485 = vpop.f32.mrb[0].mxu0
        %v4486 = vpop.f32.mrb[0].mxu0
        %v4487 = vadd.f32 0.0, %v4486
        %v4488 = vpop.f32.mrb[0].mxu0
        %4489 = vdwg.mxu0
        %v4491 = vsel %vm2932, %v4346, 0
        %v4494 = vsel %vm2932, %v4347, 0
        %v4497 = vsel %vm2932, %v1892, 0
        %4499 = vmatprep.subr.bf16.mxu0 0
        %4500 = vmatpush1.bf16.xpose.msra.mxu0 %v4497
        %4501 = vmatprep.subr.bf16.mxu0 0
        %4502 = vmatpush1.bf16.xpose.msra.mxu0 0
        %4503 = vmatprep.subr.bf16.mxu0 0
        %4504 = vmatpush1.bf16.xpose.msra.mxu0 0
        %4505 = vmatprep.subr.bf16.mxu0 0
        %4506 = vmatpush1.bf16.xpose.msra.mxu0 0
        %4507 = vmatprep.subr.bf16.mxu0 0
        %4508 = vmatpush1.bf16.xpose.msra.mxu0 0
        %4509 = vmatprep.subr.bf16.mxu0 0
        %4510 = vmatpush1.bf16.xpose.msra.mxu0 0
        %4511 = vmatprep.subr.bf16.mxu0 0
        %4512 = vmatpush1.bf16.xpose.msra.mxu0 0
        %4513 = vmatprep.subr.bf16.mxu0 0
        %4514 = vmatpush1.bf16.xpose.msra.mxu0 0
        %4515 = vmatprep.subr.bf16.mxu0 0
        %4516 = vmatpush1.bf16.xpose.msra.mxu0 0
        %4517 = vmatprep.subr.bf16.mxu0 0
        %4518 = vmatpush1.bf16.xpose.msra.mxu0 0
        %4519 = vmatprep.subr.bf16.mxu0 0
        %4520 = vmatpush1.bf16.xpose.msra.mxu0 0
        %4521 = vmatprep.subr.bf16.mxu0 0
        %4522 = vmatpush1.bf16.xpose.msra.mxu0 0
        %4523 = vmatprep.subr.bf16.mxu0 0
        %4524 = vmatpush1.bf16.xpose.msra.mxu0 0
        %4525 = vmatprep.subr.bf16.mxu0 0
        %4526 = vmatpush1.bf16.xpose.msra.mxu0 0
        %4527 = vmatprep.subr.bf16.mxu0 0
        %4528 = vmatpush1.bf16.xpose.msra.mxu0 0
        %4529 = vmatprep.subr.bf16.mxu0 0
        %4530 = vmatpush1.bf16.xpose.msra.mxu0 0
        %4531 = vmatprep.mubr.bf16.mxu0 0
        %4532 = vmatmul.mubr.bf16.gmra.mrb[0].mxu0 %v4491
        %v4533 = vpop.f32.mrb[0].mxu0
        %v4534 = vadd.f32 0.0, %v4533
        %v4535 = vpop.f32.mrb[0].mxu0
        %v4536 = vpop.f32.mrb[0].mxu0
        %v4537 = vadd.f32 0.0, %v4536
        %v4538 = vpop.f32.mrb[0].mxu0
        %4539 = vmatprep.mubr.bf16.mxu0 0
        %4540 = vmatmul.mubr.bf16.gmra.mrb[0].mxu0 %v4494
        %v4541 = vpop.f32.mrb[0].mxu0
        %v4542 = vadd.f32 0.0, %v4541
        %v4543 = vpop.f32.mrb[0].mxu0
        %v4544 = vpop.f32.mrb[0].mxu0
        %v4545 = vadd.f32 0.0, %v4544
        %v4546 = vpop.f32.mrb[0].mxu0
        %4547 = vdwg.mxu0
        %v4549 = vsel %vm2932, %v4348, 0
        %v4552 = vsel %vm2932, %v4349, 0
        %v4555 = vsel %vm2932, %v1893, 0
        %4557 = vmatprep.subr.bf16.mxu0 0
        %4558 = vmatpush1.bf16.xpose.msra.mxu0 %v4555
        %4559 = vmatprep.subr.bf16.mxu0 0
        %4560 = vmatpush1.bf16.xpose.msra.mxu0 0
        %4561 = vmatprep.subr.bf16.mxu0 0
        %4562 = vmatpush1.bf16.xpose.msra.mxu0 0
        %4563 = vmatprep.subr.bf16.mxu0 0
        %4564 = vmatpush1.bf16.xpose.msra.mxu0 0
        %4565 = vmatprep.subr.bf16.mxu0 0
        %4566 = vmatpush1.bf16.xpose.msra.mxu0 0
        %4567 = vmatprep.subr.bf16.mxu0 0
        %4568 = vmatpush1.bf16.xpose.msra.mxu0 0
        %4569 = vmatprep.subr.bf16.mxu0 0
        %4570 = vmatpush1.bf16.xpose.msra.mxu0 0
        %4571 = vmatprep.subr.bf16.mxu0 0
        %4572 = vmatpush1.bf16.xpose.msra.mxu0 0
        %4573 = vmatprep.subr.bf16.mxu0 0
        %4574 = vmatpush1.bf16.xpose.msra.mxu0 0
        %4575 = vmatprep.subr.bf16.mxu0 0
        %4576 = vmatpush1.bf16.xpose.msra.mxu0 0
        %4577 = vmatprep.subr.bf16.mxu0 0
        %4578 = vmatpush1.bf16.xpose.msra.mxu0 0
        %4579 = vmatprep.subr.bf16.mxu0 0
        %4580 = vmatpush1.bf16.xpose.msra.mxu0 0
        %4581 = vmatprep.subr.bf16.mxu0 0
        %4582 = vmatpush1.bf16.xpose.msra.mxu0 0
        %4583 = vmatprep.subr.bf16.mxu0 0
        %4584 = vmatpush1.bf16.xpose.msra.mxu0 0
        %4585 = vmatprep.subr.bf16.mxu0 0
        %4586 = vmatpush1.bf16.xpose.msra.mxu0 0
        %4587 = vmatprep.subr.bf16.mxu0 0
        %4588 = vmatpush1.bf16.xpose.msra.mxu0 0
        %4589 = vmatprep.mubr.bf16.mxu0 0
        %4590 = vmatmul.mubr.bf16.gmra.mrb[0].mxu0 %v4549
        %v4591 = vpop.f32.mrb[0].mxu0
        %v4592 = vadd.f32 0.0, %v4591
        %v4593 = vpop.f32.mrb[0].mxu0
        %v4594 = vpop.f32.mrb[0].mxu0
        %v4595 = vadd.f32 0.0, %v4594
        %v4596 = vpop.f32.mrb[0].mxu0
        %4597 = vmatprep.mubr.bf16.mxu0 0
        %4598 = vmatmul.mubr.bf16.gmra.mrb[0].mxu0 %v4552
        %v4599 = vpop.f32.mrb[0].mxu0
        %v4600 = vadd.f32 0.0, %v4599
        %v4601 = vpop.f32.mrb[0].mxu0
        %v4602 = vpop.f32.mrb[0].mxu0
        %v4603 = vadd.f32 0.0, %v4602
        %v4604 = vpop.f32.mrb[0].mxu0
        %4605 = vdwg.mxu0
        %v4607 = vsel %vm2932, %v4350, 0
        %v4610 = vsel %vm2932, %v4351, 0
        %v4613 = vsel %vm2932, %v1894, 0
        %4615 = vmatprep.subr.bf16.mxu0 0
        %4616 = vmatpush1.bf16.xpose.msra.mxu0 %v4613
        %4617 = vmatprep.subr.bf16.mxu0 0
        %4618 = vmatpush1.bf16.xpose.msra.mxu0 0
        %4619 = vmatprep.subr.bf16.mxu0 0
        %4620 = vmatpush1.bf16.xpose.msra.mxu0 0
        %4621 = vmatprep.subr.bf16.mxu0 0
        %4622 = vmatpush1.bf16.xpose.msra.mxu0 0
        %4623 = vmatprep.subr.bf16.mxu0 0
        %4624 = vmatpush1.bf16.xpose.msra.mxu0 0
        %4625 = vmatprep.subr.bf16.mxu0 0
        %4626 = vmatpush1.bf16.xpose.msra.mxu0 0
        %4627 = vmatprep.subr.bf16.mxu0 0
        %4628 = vmatpush1.bf16.xpose.msra.mxu0 0
        %4629 = vmatprep.subr.bf16.mxu0 0
        %4630 = vmatpush1.bf16.xpose.msra.mxu0 0
        %4631 = vmatprep.subr.bf16.mxu0 0
        %4632 = vmatpush1.bf16.xpose.msra.mxu0 0
        %4633 = vmatprep.subr.bf16.mxu0 0
        %4634 = vmatpush1.bf16.xpose.msra.mxu0 0
        %4635 = vmatprep.subr.bf16.mxu0 0
        %4636 = vmatpush1.bf16.xpose.msra.mxu0 0
        %4637 = vmatprep.subr.bf16.mxu0 0
        %4638 = vmatpush1.bf16.xpose.msra.mxu0 0
        %4639 = vmatprep.subr.bf16.mxu0 0
        %4640 = vmatpush1.bf16.xpose.msra.mxu0 0
        %4641 = vmatprep.subr.bf16.mxu0 0
        %4642 = vmatpush1.bf16.xpose.msra.mxu0 0
        %4643 = vmatprep.subr.bf16.mxu0 0
        %4644 = vmatpush1.bf16.xpose.msra.mxu0 0
        %4645 = vmatprep.subr.bf16.mxu0 0
        %4646 = vmatpush1.bf16.xpose.msra.mxu0 0
        %4647 = vmatprep.mubr.bf16.mxu0 0
        %4648 = vmatmul.mubr.bf16.gmra.mrb[0].mxu0 %v4607
        %v4649 = vpop.f32.mrb[0].mxu0
        %v4650 = vadd.f32 0.0, %v4649
        %v4651 = vpop.f32.mrb[0].mxu0
        %v4652 = vpop.f32.mrb[0].mxu0
        %v4653 = vadd.f32 0.0, %v4652
        %v4654 = vpop.f32.mrb[0].mxu0
        %4655 = vmatprep.mubr.bf16.mxu0 0
        %4656 = vmatmul.mubr.bf16.gmra.mrb[0].mxu0 %v4610
        %v4657 = vpop.f32.mrb[0].mxu0
        %v4658 = vadd.f32 0.0, %v4657
        %v4659 = vpop.f32.mrb[0].mxu0
        %v4660 = vpop.f32.mrb[0].mxu0
        %v4661 = vadd.f32 0.0, %v4660
        %v4662 = vpop.f32.mrb[0].mxu0
        %4663 = vdwg.mxu0
        %v4665 = vsel %vm2932, %v4352, 0
        %v4668 = vsel %vm2932, %v4353, 0
        %v4671 = vsel %vm2932, %v1895, 0
        %4673 = vmatprep.subr.bf16.mxu0 0
        %4674 = vmatpush1.bf16.xpose.msra.mxu0 %v4671
        %4675 = vmatprep.subr.bf16.mxu0 0
        %4676 = vmatpush1.bf16.xpose.msra.mxu0 0
        %4677 = vmatprep.subr.bf16.mxu0 0
        %4678 = vmatpush1.bf16.xpose.msra.mxu0 0
        %4679 = vmatprep.subr.bf16.mxu0 0
        %4680 = vmatpush1.bf16.xpose.msra.mxu0 0
        %4681 = vmatprep.subr.bf16.mxu0 0
        %4682 = vmatpush1.bf16.xpose.msra.mxu0 0
        %4683 = vmatprep.subr.bf16.mxu0 0
        %4684 = vmatpush1.bf16.xpose.msra.mxu0 0
        %4685 = vmatprep.subr.bf16.mxu0 0
        %4686 = vmatpush1.bf16.xpose.msra.mxu0 0
        %4687 = vmatprep.subr.bf16.mxu0 0
        %4688 = vmatpush1.bf16.xpose.msra.mxu0 0
        %4689 = vmatprep.subr.bf16.mxu0 0
        %4690 = vmatpush1.bf16.xpose.msra.mxu0 0
        %4691 = vmatprep.subr.bf16.mxu0 0
        %4692 = vmatpush1.bf16.xpose.msra.mxu0 0
        %4693 = vmatprep.subr.bf16.mxu0 0
        %4694 = vmatpush1.bf16.xpose.msra.mxu0 0
        %4695 = vmatprep.subr.bf16.mxu0 0
        %4696 = vmatpush1.bf16.xpose.msra.mxu0 0
        %4697 = vmatprep.subr.bf16.mxu0 0
        %4698 = vmatpush1.bf16.xpose.msra.mxu0 0
        %4699 = vmatprep.subr.bf16.mxu0 0
        %4700 = vmatpush1.bf16.xpose.msra.mxu0 0
        %4701 = vmatprep.subr.bf16.mxu0 0
        %4702 = vmatpush1.bf16.xpose.msra.mxu0 0
        %4703 = vmatprep.subr.bf16.mxu0 0
        %4704 = vmatpush1.bf16.xpose.msra.mxu0 0
        %4705 = vmatprep.mubr.bf16.mxu0 0
        %4706 = vmatmul.mubr.bf16.gmra.mrb[0].mxu0 %v4665
        %v4707 = vpop.f32.mrb[0].mxu0
        %v4708 = vadd.f32 0.0, %v4707
        %v4709 = vpop.f32.mrb[0].mxu0
        %v4710 = vpop.f32.mrb[0].mxu0
        %v4711 = vadd.f32 0.0, %v4710
        %v4712 = vpop.f32.mrb[0].mxu0
        %4713 = vmatprep.mubr.bf16.mxu0 0
        %4714 = vmatmul.mubr.bf16.gmra.mrb[0].mxu0 %v4668
        %v4715 = vpop.f32.mrb[0].mxu0
        %v4716 = vadd.f32 0.0, %v4715
        %v4717 = vpop.f32.mrb[0].mxu0
        %v4718 = vpop.f32.mrb[0].mxu0
        %v4719 = vadd.f32 0.0, %v4718
        %v4720 = vpop.f32.mrb[0].mxu0
        %4721 = vdwg.mxu0
        %v4723 = vsel %vm2932, %v4354, 0
        %v4726 = vsel %vm2932, %v4355, 0
        %v4729 = vsel %vm2932, %v1896, 0
        %4731 = vmatprep.subr.bf16.mxu0 0
        %4732 = vmatpush1.bf16.xpose.msra.mxu0 %v4729
        %4733 = vmatprep.subr.bf16.mxu0 0
        %4734 = vmatpush1.bf16.xpose.msra.mxu0 0
        %4735 = vmatprep.subr.bf16.mxu0 0
        %4736 = vmatpush1.bf16.xpose.msra.mxu0 0
        %4737 = vmatprep.subr.bf16.mxu0 0
        %4738 = vmatpush1.bf16.xpose.msra.mxu0 0
        %4739 = vmatprep.subr.bf16.mxu0 0
        %4740 = vmatpush1.bf16.xpose.msra.mxu0 0
        %4741 = vmatprep.subr.bf16.mxu0 0
        %4742 = vmatpush1.bf16.xpose.msra.mxu0 0
        %4743 = vmatprep.subr.bf16.mxu0 0
        %4744 = vmatpush1.bf16.xpose.msra.mxu0 0
        %4745 = vmatprep.subr.bf16.mxu0 0
        %4746 = vmatpush1.bf16.xpose.msra.mxu0 0
        %4747 = vmatprep.subr.bf16.mxu0 0
        %4748 = vmatpush1.bf16.xpose.msra.mxu0 0
        %4749 = vmatprep.subr.bf16.mxu0 0
        %4750 = vmatpush1.bf16.xpose.msra.mxu0 0
        %4751 = vmatprep.subr.bf16.mxu0 0
        %4752 = vmatpush1.bf16.xpose.msra.mxu0 0
        %4753 = vmatprep.subr.bf16.mxu0 0
        %4754 = vmatpush1.bf16.xpose.msra.mxu0 0
        %4755 = vmatprep.subr.bf16.mxu0 0
        %4756 = vmatpush1.bf16.xpose.msra.mxu0 0
        %4757 = vmatprep.subr.bf16.mxu0 0
        %4758 = vmatpush1.bf16.xpose.msra.mxu0 0
        %4759 = vmatprep.subr.bf16.mxu0 0
        %4760 = vmatpush1.bf16.xpose.msra.mxu0 0
        %4761 = vmatprep.subr.bf16.mxu0 0
        %4762 = vmatpush1.bf16.xpose.msra.mxu0 0
        %4763 = vmatprep.mubr.bf16.mxu0 0
        %4764 = vmatmul.mubr.bf16.gmra.mrb[0].mxu0 %v4723
        %v4765 = vpop.f32.mrb[0].mxu0
        %v4766 = vadd.f32 0.0, %v4765
        %v4767 = vpop.f32.mrb[0].mxu0
        %v4768 = vpop.f32.mrb[0].mxu0
        %v4769 = vadd.f32 0.0, %v4768
        %v4770 = vpop.f32.mrb[0].mxu0
        %4771 = vmatprep.mubr.bf16.mxu0 0
        %4772 = vmatmul.mubr.bf16.gmra.mrb[0].mxu0 %v4726
        %v4773 = vpop.f32.mrb[0].mxu0
        %v4774 = vadd.f32 0.0, %v4773
        %v4775 = vpop.f32.mrb[0].mxu0
        %v4776 = vpop.f32.mrb[0].mxu0
        %v4777 = vadd.f32 0.0, %v4776
        %v4778 = vpop.f32.mrb[0].mxu0
        %4779 = vdwg.mxu0
        %v4781 = vsel %vm2932, %v4356, 0
        %v4784 = vsel %vm2932, %v4357, 0
        %v4787 = vsel %vm2932, %v1897, 0
        %4789 = vmatprep.subr.bf16.mxu0 0
        %4790 = vmatpush1.bf16.xpose.msra.mxu0 %v4787
        %4791 = vmatprep.subr.bf16.mxu0 0
        %4792 = vmatpush1.bf16.xpose.msra.mxu0 0
        %4793 = vmatprep.subr.bf16.mxu0 0
        %4794 = vmatpush1.bf16.xpose.msra.mxu0 0
        %4795 = vmatprep.subr.bf16.mxu0 0
        %4796 = vmatpush1.bf16.xpose.msra.mxu0 0
        %4797 = vmatprep.subr.bf16.mxu0 0
        %4798 = vmatpush1.bf16.xpose.msra.mxu0 0
        %4799 = vmatprep.subr.bf16.mxu0 0
        %4800 = vmatpush1.bf16.xpose.msra.mxu0 0
        %4801 = vmatprep.subr.bf16.mxu0 0
        %4802 = vmatpush1.bf16.xpose.msra.mxu0 0
        %4803 = vmatprep.subr.bf16.mxu0 0
        %4804 = vmatpush1.bf16.xpose.msra.mxu0 0
        %4805 = vmatprep.subr.bf16.mxu0 0
        %4806 = vmatpush1.bf16.xpose.msra.mxu0 0
        %4807 = vmatprep.subr.bf16.mxu0 0
        %4808 = vmatpush1.bf16.xpose.msra.mxu0 0
        %4809 = vmatprep.subr.bf16.mxu0 0
        %4810 = vmatpush1.bf16.xpose.msra.mxu0 0
        %4811 = vmatprep.subr.bf16.mxu0 0
        %4812 = vmatpush1.bf16.xpose.msra.mxu0 0
        %4813 = vmatprep.subr.bf16.mxu0 0
        %4814 = vmatpush1.bf16.xpose.msra.mxu0 0
        %4815 = vmatprep.subr.bf16.mxu0 0
        %4816 = vmatpush1.bf16.xpose.msra.mxu0 0
        %4817 = vmatprep.subr.bf16.mxu0 0
        %4818 = vmatpush1.bf16.xpose.msra.mxu0 0
        %4819 = vmatprep.subr.bf16.mxu0 0
        %4820 = vmatpush1.bf16.xpose.msra.mxu0 0
        %4821 = vmatprep.mubr.bf16.mxu0 0
        %4822 = vmatmul.mubr.bf16.gmra.mrb[0].mxu0 %v4781
        %v4823 = vpop.f32.mrb[0].mxu0
        %v4824 = vadd.f32 0.0, %v4823
        %v4825 = vpop.f32.mrb[0].mxu0
        %v4826 = vpop.f32.mrb[0].mxu0
        %v4827 = vadd.f32 0.0, %v4826
        %v4828 = vpop.f32.mrb[0].mxu0
        %4829 = vmatprep.mubr.bf16.mxu0 0
        %4830 = vmatmul.mubr.bf16.gmra.mrb[0].mxu0 %v4784
        %v4831 = vpop.f32.mrb[0].mxu0
        %v4832 = vadd.f32 0.0, %v4831
        %v4833 = vpop.f32.mrb[0].mxu0
        %v4834 = vpop.f32.mrb[0].mxu0
        %v4835 = vadd.f32 0.0, %v4834
        %v4836 = vpop.f32.mrb[0].mxu0
        %4837 = vdwg.mxu0
        %v4839 = vsel %vm2932, %v4358, 0
        %v4842 = vsel %vm2932, %v4359, 0
        %v4845 = vsel %vm2932, %v1898, 0
        %4847 = vmatprep.subr.bf16.mxu0 0
        %4848 = vmatpush1.bf16.xpose.msra.mxu0 %v4845
        %4849 = vmatprep.subr.bf16.mxu0 0
        %4850 = vmatpush1.bf16.xpose.msra.mxu0 0
        %4851 = vmatprep.subr.bf16.mxu0 0
        %4852 = vmatpush1.bf16.xpose.msra.mxu0 0
        %4853 = vmatprep.subr.bf16.mxu0 0
        %4854 = vmatpush1.bf16.xpose.msra.mxu0 0
        %4855 = vmatprep.subr.bf16.mxu0 0
        %4856 = vmatpush1.bf16.xpose.msra.mxu0 0
        %4857 = vmatprep.subr.bf16.mxu0 0
        %4858 = vmatpush1.bf16.xpose.msra.mxu0 0
        %4859 = vmatprep.subr.bf16.mxu0 0
        %4860 = vmatpush1.bf16.xpose.msra.mxu0 0
        %4861 = vmatprep.subr.bf16.mxu0 0
        %4862 = vmatpush1.bf16.xpose.msra.mxu0 0
        %4863 = vmatprep.subr.bf16.mxu0 0
        %4864 = vmatpush1.bf16.xpose.msra.mxu0 0
        %4865 = vmatprep.subr.bf16.mxu0 0
        %4866 = vmatpush1.bf16.xpose.msra.mxu0 0
        %4867 = vmatprep.subr.bf16.mxu0 0
        %4868 = vmatpush1.bf16.xpose.msra.mxu0 0
        %4869 = vmatprep.subr.bf16.mxu0 0
        %4870 = vmatpush1.bf16.xpose.msra.mxu0 0
        %4871 = vmatprep.subr.bf16.mxu0 0
        %4872 = vmatpush1.bf16.xpose.msra.mxu0 0
        %4873 = vmatprep.subr.bf16.mxu0 0
        %4874 = vmatpush1.bf16.xpose.msra.mxu0 0
        %4875 = vmatprep.subr.bf16.mxu0 0
        %4876 = vmatpush1.bf16.xpose.msra.mxu0 0
        %4877 = vmatprep.subr.bf16.mxu0 0
        %4878 = vmatpush1.bf16.xpose.msra.mxu0 0
        %4879 = vmatprep.mubr.bf16.mxu0 0
        %4880 = vmatmul.mubr.bf16.gmra.mrb[0].mxu0 %v4839
        %v4881 = vpop.f32.mrb[0].mxu0
        %v4882 = vadd.f32 0.0, %v4881
        %v4883 = vpop.f32.mrb[0].mxu0
        %v4884 = vpop.f32.mrb[0].mxu0
        %v4885 = vadd.f32 0.0, %v4884
        %v4886 = vpop.f32.mrb[0].mxu0
        %4887 = vmatprep.mubr.bf16.mxu0 0
        %4888 = vmatmul.mubr.bf16.gmra.mrb[0].mxu0 %v4842
        %v4889 = vpop.f32.mrb[0].mxu0
        %v4890 = vadd.f32 0.0, %v4889
        %v4891 = vpop.f32.mrb[0].mxu0
        %v4892 = vpop.f32.mrb[0].mxu0
        %v4893 = vadd.f32 0.0, %v4892
        %v4894 = vpop.f32.mrb[0].mxu0
        %4895 = vdwg.mxu0
        %v4897 = vsel %vm2932, %v4360, 0
        %v4900 = vsel %vm2932, %v4361, 0
        %v4903 = vsel %vm2932, %v1899, 0
        %4905 = vmatprep.subr.bf16.mxu0 0
        %4906 = vmatpush1.bf16.xpose.msra.mxu0 %v4903
        %4907 = vmatprep.subr.bf16.mxu0 0
        %4908 = vmatpush1.bf16.xpose.msra.mxu0 0
        %4909 = vmatprep.subr.bf16.mxu0 0
        %4910 = vmatpush1.bf16.xpose.msra.mxu0 0
        %4911 = vmatprep.subr.bf16.mxu0 0
        %4912 = vmatpush1.bf16.xpose.msra.mxu0 0
        %4913 = vmatprep.subr.bf16.mxu0 0
        %4914 = vmatpush1.bf16.xpose.msra.mxu0 0
        %4915 = vmatprep.subr.bf16.mxu0 0
        %4916 = vmatpush1.bf16.xpose.msra.mxu0 0
        %4917 = vmatprep.subr.bf16.mxu0 0
        %4918 = vmatpush1.bf16.xpose.msra.mxu0 0
        %4919 = vmatprep.subr.bf16.mxu0 0
        %4920 = vmatpush1.bf16.xpose.msra.mxu0 0
        %4921 = vmatprep.subr.bf16.mxu0 0
        %4922 = vmatpush1.bf16.xpose.msra.mxu0 0
        %4923 = vmatprep.subr.bf16.mxu0 0
        %4924 = vmatpush1.bf16.xpose.msra.mxu0 0
        %4925 = vmatprep.subr.bf16.mxu0 0
        %4926 = vmatpush1.bf16.xpose.msra.mxu0 0
        %4927 = vmatprep.subr.bf16.mxu0 0
        %4928 = vmatpush1.bf16.xpose.msra.mxu0 0
        %4929 = vmatprep.subr.bf16.mxu0 0
        %4930 = vmatpush1.bf16.xpose.msra.mxu0 0
        %4931 = vmatprep.subr.bf16.mxu0 0
        %4932 = vmatpush1.bf16.xpose.msra.mxu0 0
        %4933 = vmatprep.subr.bf16.mxu0 0
        %4934 = vmatpush1.bf16.xpose.msra.mxu0 0
        %4935 = vmatprep.subr.bf16.mxu0 0
        %4936 = vmatpush1.bf16.xpose.msra.mxu0 0
        %4937 = vmatprep.mubr.bf16.mxu0 0
        %4938 = vmatmul.mubr.bf16.gmra.mrb[0].mxu0 %v4897
        %v4939 = vpop.f32.mrb[0].mxu0
        %v4940 = vadd.f32 0.0, %v4939
        %v4941 = vpop.f32.mrb[0].mxu0
        %v4942 = vpop.f32.mrb[0].mxu0
        %v4943 = vadd.f32 0.0, %v4942
        %v4944 = vpop.f32.mrb[0].mxu0
        %4945 = vmatprep.mubr.bf16.mxu0 0
        %4946 = vmatmul.mubr.bf16.gmra.mrb[0].mxu0 %v4900
        %v4947 = vpop.f32.mrb[0].mxu0
        %v4948 = vadd.f32 0.0, %v4947
        %v4949 = vpop.f32.mrb[0].mxu0
        %v4950 = vpop.f32.mrb[0].mxu0
        %v4951 = vadd.f32 0.0, %v4950
        %v4952 = vpop.f32.mrb[0].mxu0
        %4953 = vdwg.mxu0
        %v4955 = vsel %vm2932, %v4362, 0
        %v4958 = vsel %vm2932, %v4363, 0
        %v4961 = vsel %vm2932, %v1900, 0
        %4963 = vmatprep.subr.bf16.mxu0 0
        %4964 = vmatpush1.bf16.xpose.msra.mxu0 %v4961
        %4965 = vmatprep.subr.bf16.mxu0 0
        %4966 = vmatpush1.bf16.xpose.msra.mxu0 0
        %4967 = vmatprep.subr.bf16.mxu0 0
        %4968 = vmatpush1.bf16.xpose.msra.mxu0 0
        %4969 = vmatprep.subr.bf16.mxu0 0
        %4970 = vmatpush1.bf16.xpose.msra.mxu0 0
        %4971 = vmatprep.subr.bf16.mxu0 0
        %4972 = vmatpush1.bf16.xpose.msra.mxu0 0
        %4973 = vmatprep.subr.bf16.mxu0 0
        %4974 = vmatpush1.bf16.xpose.msra.mxu0 0
        %4975 = vmatprep.subr.bf16.mxu0 0
        %4976 = vmatpush1.bf16.xpose.msra.mxu0 0
        %4977 = vmatprep.subr.bf16.mxu0 0
        %4978 = vmatpush1.bf16.xpose.msra.mxu0 0
        %4979 = vmatprep.subr.bf16.mxu0 0
        %4980 = vmatpush1.bf16.xpose.msra.mxu0 0
        %4981 = vmatprep.subr.bf16.mxu0 0
        %4982 = vmatpush1.bf16.xpose.msra.mxu0 0
        %4983 = vmatprep.subr.bf16.mxu0 0
        %4984 = vmatpush1.bf16.xpose.msra.mxu0 0
        %4985 = vmatprep.subr.bf16.mxu0 0
        %4986 = vmatpush1.bf16.xpose.msra.mxu0 0
        %4987 = vmatprep.subr.bf16.mxu0 0
        %4988 = vmatpush1.bf16.xpose.msra.mxu0 0
        %4989 = vmatprep.subr.bf16.mxu0 0
        %4990 = vmatpush1.bf16.xpose.msra.mxu0 0
        %4991 = vmatprep.subr.bf16.mxu0 0
        %4992 = vmatpush1.bf16.xpose.msra.mxu0 0
        %4993 = vmatprep.subr.bf16.mxu0 0
        %4994 = vmatpush1.bf16.xpose.msra.mxu0 0
        %4995 = vmatprep.mubr.bf16.mxu0 0
        %4996 = vmatmul.mubr.bf16.gmra.mrb[0].mxu0 %v4955
        %v4997 = vpop.f32.mrb[0].mxu0
        %v4998 = vadd.f32 0.0, %v4997
        %v4999 = vpop.f32.mrb[0].mxu0
        %v5000 = vpop.f32.mrb[0].mxu0
        %v5001 = vadd.f32 0.0, %v5000
        %v5002 = vpop.f32.mrb[0].mxu0
        %5003 = vmatprep.mubr.bf16.mxu0 0
        %5004 = vmatmul.mubr.bf16.gmra.mrb[0].mxu0 %v4958
        %v5005 = vpop.f32.mrb[0].mxu0
        %v5006 = vadd.f32 0.0, %v5005
        %v5007 = vpop.f32.mrb[0].mxu0
        %v5008 = vpop.f32.mrb[0].mxu0
        %v5009 = vadd.f32 0.0, %v5008
        %v5010 = vpop.f32.mrb[0].mxu0
        %5011 = vdwg.mxu0
        %v5013 = vsel %vm2932, %v4364, 0
        %v5016 = vsel %vm2932, %v4365, 0
        %v5019 = vsel %vm2932, %v1901, 0
        %5021 = vmatprep.subr.bf16.mxu0 0
        %5022 = vmatpush1.bf16.xpose.msra.mxu0 %v5019
        %5023 = vmatprep.subr.bf16.mxu0 0
        %5024 = vmatpush1.bf16.xpose.msra.mxu0 0
        %5025 = vmatprep.subr.bf16.mxu0 0
        %5026 = vmatpush1.bf16.xpose.msra.mxu0 0
        %5027 = vmatprep.subr.bf16.mxu0 0
        %5028 = vmatpush1.bf16.xpose.msra.mxu0 0
        %5029 = vmatprep.subr.bf16.mxu0 0
        %5030 = vmatpush1.bf16.xpose.msra.mxu0 0
        %5031 = vmatprep.subr.bf16.mxu0 0
        %5032 = vmatpush1.bf16.xpose.msra.mxu0 0
        %5033 = vmatprep.subr.bf16.mxu0 0
        %5034 = vmatpush1.bf16.xpose.msra.mxu0 0
        %5035 = vmatprep.subr.bf16.mxu0 0
        %5036 = vmatpush1.bf16.xpose.msra.mxu0 0
        %5037 = vmatprep.subr.bf16.mxu0 0
        %5038 = vmatpush1.bf16.xpose.msra.mxu0 0
        %5039 = vmatprep.subr.bf16.mxu0 0
        %5040 = vmatpush1.bf16.xpose.msra.mxu0 0
        %5041 = vmatprep.subr.bf16.mxu0 0
        %5042 = vmatpush1.bf16.xpose.msra.mxu0 0
        %5043 = vmatprep.subr.bf16.mxu0 0
        %5044 = vmatpush1.bf16.xpose.msra.mxu0 0
        %5045 = vmatprep.subr.bf16.mxu0 0
        %5046 = vmatpush1.bf16.xpose.msra.mxu0 0
        %5047 = vmatprep.subr.bf16.mxu0 0
        %5048 = vmatpush1.bf16.xpose.msra.mxu0 0
        %5049 = vmatprep.subr.bf16.mxu0 0
        %5050 = vmatpush1.bf16.xpose.msra.mxu0 0
        %5051 = vmatprep.subr.bf16.mxu0 0
        %5052 = vmatpush1.bf16.xpose.msra.mxu0 0
        %5053 = vmatprep.mubr.bf16.mxu0 0
        %5054 = vmatmul.mubr.bf16.gmra.mrb[0].mxu0 %v5013
        %v5055 = vpop.f32.mrb[0].mxu0
        %v5056 = vadd.f32 0.0, %v5055
        %v5057 = vpop.f32.mrb[0].mxu0
        %v5058 = vpop.f32.mrb[0].mxu0
        %v5059 = vadd.f32 0.0, %v5058
        %v5060 = vpop.f32.mrb[0].mxu0
        %5061 = vmatprep.mubr.bf16.mxu0 0
        %5062 = vmatmul.mubr.bf16.gmra.mrb[0].mxu0 %v5016
        %v5063 = vpop.f32.mrb[0].mxu0
        %v5064 = vadd.f32 0.0, %v5063
        %v5065 = vpop.f32.mrb[0].mxu0
        %v5066 = vpop.f32.mrb[0].mxu0
        %v5067 = vadd.f32 0.0, %v5066
        %v5068 = vpop.f32.mrb[0].mxu0
        %5069 = vdwg.mxu0
        %v5071 = vsel %vm2932, %v4366, 0
        %v5074 = vsel %vm2932, %v4367, 0
        %v5077 = vsel %vm2932, %v1902, 0
        %5079 = vmatprep.subr.bf16.mxu0 0
        %5080 = vmatpush1.bf16.xpose.msra.mxu0 %v5077
        %5081 = vmatprep.subr.bf16.mxu0 0
        %5082 = vmatpush1.bf16.xpose.msra.mxu0 0
        %5083 = vmatprep.subr.bf16.mxu0 0
        %5084 = vmatpush1.bf16.xpose.msra.mxu0 0
        %5085 = vmatprep.subr.bf16.mxu0 0
        %5086 = vmatpush1.bf16.xpose.msra.mxu0 0
        %5087 = vmatprep.subr.bf16.mxu0 0
        %5088 = vmatpush1.bf16.xpose.msra.mxu0 0
        %5089 = vmatprep.subr.bf16.mxu0 0
        %5090 = vmatpush1.bf16.xpose.msra.mxu0 0
        %5091 = vmatprep.subr.bf16.mxu0 0
        %5092 = vmatpush1.bf16.xpose.msra.mxu0 0
        %5093 = vmatprep.subr.bf16.mxu0 0
        %5094 = vmatpush1.bf16.xpose.msra.mxu0 0
        %5095 = vmatprep.subr.bf16.mxu0 0
        %5096 = vmatpush1.bf16.xpose.msra.mxu0 0
        %5097 = vmatprep.subr.bf16.mxu0 0
        %5098 = vmatpush1.bf16.xpose.msra.mxu0 0
        %5099 = vmatprep.subr.bf16.mxu0 0
        %5100 = vmatpush1.bf16.xpose.msra.mxu0 0
        %5101 = vmatprep.subr.bf16.mxu0 0
        %5102 = vmatpush1.bf16.xpose.msra.mxu0 0
        %5103 = vmatprep.subr.bf16.mxu0 0
        %5104 = vmatpush1.bf16.xpose.msra.mxu0 0
        %5105 = vmatprep.subr.bf16.mxu0 0
        %5106 = vmatpush1.bf16.xpose.msra.mxu0 0
        %5107 = vmatprep.subr.bf16.mxu0 0
        %5108 = vmatpush1.bf16.xpose.msra.mxu0 0
        %5109 = vmatprep.subr.bf16.mxu0 0
        %5110 = vmatpush1.bf16.xpose.msra.mxu0 0
        %5111 = vmatprep.mubr.bf16.mxu0 0
        %5112 = vmatmul.mubr.bf16.gmra.mrb[0].mxu0 %v5071
        %v5113 = vpop.f32.mrb[0].mxu0
        %v5114 = vadd.f32 0.0, %v5113
        %v5115 = vpop.f32.mrb[0].mxu0
        %v5116 = vpop.f32.mrb[0].mxu0
        %v5117 = vadd.f32 0.0, %v5116
        %v5118 = vpop.f32.mrb[0].mxu0
        %5119 = vmatprep.mubr.bf16.mxu0 0
        %5120 = vmatmul.mubr.bf16.gmra.mrb[0].mxu0 %v5074
        %v5121 = vpop.f32.mrb[0].mxu0
        %v5122 = vadd.f32 0.0, %v5121
        %v5123 = vpop.f32.mrb[0].mxu0
        %v5124 = vpop.f32.mrb[0].mxu0
        %v5125 = vadd.f32 0.0, %v5124
        %v5126 = vpop.f32.mrb[0].mxu0
        %5127 = vdwg.mxu0
        %v5129 = vsel %vm2932, %v4368, 0
        %v5132 = vsel %vm2932, %v4369, 0
        %v5135 = vsel %vm2932, %v1903, 0
        %5137 = vmatprep.subr.bf16.mxu0 0
        %5138 = vmatpush1.bf16.xpose.msra.mxu0 %v5135
        %5139 = vmatprep.subr.bf16.mxu0 0
        %5140 = vmatpush1.bf16.xpose.msra.mxu0 0
        %5141 = vmatprep.subr.bf16.mxu0 0
        %5142 = vmatpush1.bf16.xpose.msra.mxu0 0
        %5143 = vmatprep.subr.bf16.mxu0 0
        %5144 = vmatpush1.bf16.xpose.msra.mxu0 0
        %5145 = vmatprep.subr.bf16.mxu0 0
        %5146 = vmatpush1.bf16.xpose.msra.mxu0 0
        %5147 = vmatprep.subr.bf16.mxu0 0
        %5148 = vmatpush1.bf16.xpose.msra.mxu0 0
        %5149 = vmatprep.subr.bf16.mxu0 0
        %5150 = vmatpush1.bf16.xpose.msra.mxu0 0
        %5151 = vmatprep.subr.bf16.mxu0 0
        %5152 = vmatpush1.bf16.xpose.msra.mxu0 0
        %5153 = vmatprep.subr.bf16.mxu0 0
        %5154 = vmatpush1.bf16.xpose.msra.mxu0 0
        %5155 = vmatprep.subr.bf16.mxu0 0
        %5156 = vmatpush1.bf16.xpose.msra.mxu0 0
        %5157 = vmatprep.subr.bf16.mxu0 0
        %5158 = vmatpush1.bf16.xpose.msra.mxu0 0
        %5159 = vmatprep.subr.bf16.mxu0 0
        %5160 = vmatpush1.bf16.xpose.msra.mxu0 0
        %5161 = vmatprep.subr.bf16.mxu0 0
        %5162 = vmatpush1.bf16.xpose.msra.mxu0 0
        %5163 = vmatprep.subr.bf16.mxu0 0
        %5164 = vmatpush1.bf16.xpose.msra.mxu0 0
        %5165 = vmatprep.subr.bf16.mxu0 0
        %5166 = vmatpush1.bf16.xpose.msra.mxu0 0
        %5167 = vmatprep.subr.bf16.mxu0 0
        %5168 = vmatpush1.bf16.xpose.msra.mxu0 0
        %5169 = vmatprep.mubr.bf16.mxu0 0
        %5170 = vmatmul.mubr.bf16.gmra.mrb[0].mxu0 %v5129
        %v5171 = vpop.f32.mrb[0].mxu0
        %v5172 = vadd.f32 0.0, %v5171
        %v5173 = vpop.f32.mrb[0].mxu0
        %v5174 = vpop.f32.mrb[0].mxu0
        %v5175 = vadd.f32 0.0, %v5174
        %v5176 = vpop.f32.mrb[0].mxu0
        %5177 = vmatprep.mubr.bf16.mxu0 0
        %5178 = vmatmul.mubr.bf16.gmra.mrb[0].mxu0 %v5132
        %v5179 = vpop.f32.mrb[0].mxu0
        %v5180 = vadd.f32 0.0, %v5179
        %v5181 = vpop.f32.mrb[0].mxu0
        %v5182 = vpop.f32.mrb[0].mxu0
        %v5183 = vadd.f32 0.0, %v5182
        %v5184 = vpop.f32.mrb[0].mxu0
        %5185 = vdwg.mxu0
        %v5187 = vsel %vm2932, %v4370, 0
        %v5190 = vsel %vm2932, %v4371, 0
        %v5193 = vsel %vm2932, %v1904, 0
        %5195 = vmatprep.subr.bf16.mxu0 0
        %5196 = vmatpush1.bf16.xpose.msra.mxu0 %v5193
        %5197 = vmatprep.subr.bf16.mxu0 0
        %5198 = vmatpush1.bf16.xpose.msra.mxu0 0
        %5199 = vmatprep.subr.bf16.mxu0 0
        %5200 = vmatpush1.bf16.xpose.msra.mxu0 0
        %5201 = vmatprep.subr.bf16.mxu0 0
        %5202 = vmatpush1.bf16.xpose.msra.mxu0 0
        %5203 = vmatprep.subr.bf16.mxu0 0
        %5204 = vmatpush1.bf16.xpose.msra.mxu0 0
        %5205 = vmatprep.subr.bf16.mxu0 0
        %5206 = vmatpush1.bf16.xpose.msra.mxu0 0
        %5207 = vmatprep.subr.bf16.mxu0 0
        %5208 = vmatpush1.bf16.xpose.msra.mxu0 0
        %5209 = vmatprep.subr.bf16.mxu0 0
        %5210 = vmatpush1.bf16.xpose.msra.mxu0 0
        %5211 = vmatprep.subr.bf16.mxu0 0
        %5212 = vmatpush1.bf16.xpose.msra.mxu0 0
        %5213 = vmatprep.subr.bf16.mxu0 0
        %5214 = vmatpush1.bf16.xpose.msra.mxu0 0
        %5215 = vmatprep.subr.bf16.mxu0 0
        %5216 = vmatpush1.bf16.xpose.msra.mxu0 0
        %5217 = vmatprep.subr.bf16.mxu0 0
        %5218 = vmatpush1.bf16.xpose.msra.mxu0 0
        %5219 = vmatprep.subr.bf16.mxu0 0
        %5220 = vmatpush1.bf16.xpose.msra.mxu0 0
        %5221 = vmatprep.subr.bf16.mxu0 0
        %5222 = vmatpush1.bf16.xpose.msra.mxu0 0
        %5223 = vmatprep.subr.bf16.mxu0 0
        %5224 = vmatpush1.bf16.xpose.msra.mxu0 0
        %5225 = vmatprep.subr.bf16.mxu0 0
        %5226 = vmatpush1.bf16.xpose.msra.mxu0 0
        %5227 = vmatprep.mubr.bf16.mxu0 0
        %5228 = vmatmul.mubr.bf16.gmra.mrb[0].mxu0 %v5187
        %v5229 = vpop.f32.mrb[0].mxu0
        %v5230 = vadd.f32 0.0, %v5229
        %v5231 = vpop.f32.mrb[0].mxu0
        %v5232 = vpop.f32.mrb[0].mxu0
        %v5233 = vadd.f32 0.0, %v5232
        %v5234 = vpop.f32.mrb[0].mxu0
        %5235 = vmatprep.mubr.bf16.mxu0 0
        %5236 = vmatmul.mubr.bf16.gmra.mrb[0].mxu0 %v5190
        %v5237 = vpop.f32.mrb[0].mxu0
        %v5238 = vadd.f32 0.0, %v5237
        %v5239 = vpop.f32.mrb[0].mxu0
        %v5240 = vpop.f32.mrb[0].mxu0
        %v5241 = vadd.f32 0.0, %v5240
        %v5242 = vpop.f32.mrb[0].mxu0
        %5243 = vdwg.mxu0
        %v5245 = vsel %vm2932, %v4372, 0
        %v5248 = vsel %vm2932, %v4373, 0
        %v5251 = vsel %vm2932, %v1905, 0
        %5253 = vmatprep.subr.bf16.mxu0 0
        %5254 = vmatpush1.bf16.xpose.msra.mxu0 %v5251
        %5255 = vmatprep.subr.bf16.mxu0 0
        %5256 = vmatpush1.bf16.xpose.msra.mxu0 0
        %5257 = vmatprep.subr.bf16.mxu0 0
        %5258 = vmatpush1.bf16.xpose.msra.mxu0 0
        %5259 = vmatprep.subr.bf16.mxu0 0
        %5260 = vmatpush1.bf16.xpose.msra.mxu0 0
        %5261 = vmatprep.subr.bf16.mxu0 0
        %5262 = vmatpush1.bf16.xpose.msra.mxu0 0
        %5263 = vmatprep.subr.bf16.mxu0 0
        %5264 = vmatpush1.bf16.xpose.msra.mxu0 0
        %5265 = vmatprep.subr.bf16.mxu0 0
        %5266 = vmatpush1.bf16.xpose.msra.mxu0 0
        %5267 = vmatprep.subr.bf16.mxu0 0
        %5268 = vmatpush1.bf16.xpose.msra.mxu0 0
        %5269 = vmatprep.subr.bf16.mxu0 0
        %5270 = vmatpush1.bf16.xpose.msra.mxu0 0
        %5271 = vmatprep.subr.bf16.mxu0 0
        %5272 = vmatpush1.bf16.xpose.msra.mxu0 0
        %5273 = vmatprep.subr.bf16.mxu0 0
        %5274 = vmatpush1.bf16.xpose.msra.mxu0 0
        %5275 = vmatprep.subr.bf16.mxu0 0
        %5276 = vmatpush1.bf16.xpose.msra.mxu0 0
        %5277 = vmatprep.subr.bf16.mxu0 0
        %5278 = vmatpush1.bf16.xpose.msra.mxu0 0
        %5279 = vmatprep.subr.bf16.mxu0 0
        %5280 = vmatpush1.bf16.xpose.msra.mxu0 0
        %5281 = vmatprep.subr.bf16.mxu0 0
        %5282 = vmatpush1.bf16.xpose.msra.mxu0 0
        %5283 = vmatprep.subr.bf16.mxu0 0
        %5284 = vmatpush1.bf16.xpose.msra.mxu0 0
        %5285 = vmatprep.mubr.bf16.mxu0 0
        %5286 = vmatmul.mubr.bf16.gmra.mrb[0].mxu0 %v5245
        %v5287 = vpop.f32.mrb[0].mxu0
        %v5288 = vadd.f32 0.0, %v5287
        %v5289 = vpop.f32.mrb[0].mxu0
        %v5290 = vpop.f32.mrb[0].mxu0
        %v5291 = vadd.f32 0.0, %v5290
        %v5292 = vpop.f32.mrb[0].mxu0
        %5293 = vmatprep.mubr.bf16.mxu0 0
        %5294 = vmatmul.mubr.bf16.gmra.mrb[0].mxu0 %v5248
        %v5295 = vpop.f32.mrb[0].mxu0
        %v5296 = vadd.f32 0.0, %v5295
        %v5297 = vpop.f32.mrb[0].mxu0
        %v5298 = vpop.f32.mrb[0].mxu0
        %v5299 = vadd.f32 0.0, %v5298
        %v5300 = vpop.f32.mrb[0].mxu0
        %5301 = vdwg.mxu0
        %v5302 = vld [vmem:[#allocation5] sm:$0xff]
        %v5303 = vld [vmem:[#allocation5 + $0x8] sm:$0xff]
        %v5304 = vld [vmem:[#allocation5 + $0x10] sm:$0xff]
        %v5305 = vld [vmem:[#allocation5 + $0x18] sm:$0xff]
        %v5306 = vld [vmem:[#allocation5 + $0x20] sm:$0xff]
        %v5307 = vld [vmem:[#allocation5 + $0x28] sm:$0xff]
        %v5308 = vld [vmem:[#allocation5 + $0x30] sm:$0xff]
        %v5309 = vld [vmem:[#allocation5 + $0x38] sm:$0xff]
        %v5310 = vld [vmem:[#allocation5 + $0x40] sm:$0xff]
        %v5311 = vld [vmem:[#allocation5 + $0x48] sm:$0xff]
        %v5312 = vld [vmem:[#allocation5 + $0x50] sm:$0xff]
        %v5313 = vld [vmem:[#allocation5 + $0x58] sm:$0xff]
        %v5314 = vld [vmem:[#allocation5 + $0x60] sm:$0xff]
        %v5315 = vld [vmem:[#allocation5 + $0x68] sm:$0xff]
        %v5316 = vld [vmem:[#allocation5 + $0x70] sm:$0xff]
        %v5317 = vld [vmem:[#allocation5 + $0x78] sm:$0xff]
        %v5318 = vld [vmem:[#allocation5 + $0x80] sm:$0xff]
        %v5319 = vld [vmem:[#allocation5 + $0x88] sm:$0xff]
        %v5320 = vld [vmem:[#allocation5 + $0x90] sm:$0xff]
        %v5321 = vld [vmem:[#allocation5 + $0x98] sm:$0xff]
        %v5322 = vld [vmem:[#allocation5 + $0xa0] sm:$0xff]
        %v5323 = vld [vmem:[#allocation5 + $0xa8] sm:$0xff]
        %v5324 = vld [vmem:[#allocation5 + $0xb0] sm:$0xff]
        %v5325 = vld [vmem:[#allocation5 + $0xb8] sm:$0xff]
        %v5326 = vld [vmem:[#allocation5 + $0xc0] sm:$0xff]
        %v5327 = vld [vmem:[#allocation5 + $0xc8] sm:$0xff]
        %v5328 = vld [vmem:[#allocation5 + $0xd0] sm:$0xff]
        %v5329 = vld [vmem:[#allocation5 + $0xd8] sm:$0xff]
        %v5330 = vld [vmem:[#allocation5 + $0xe0] sm:$0xff]
        %v5331 = vld [vmem:[#allocation5 + $0xe8] sm:$0xff]
        %v5332 = vld [vmem:[#allocation5 + $0xf0] sm:$0xff]
        %v5333 = vld [vmem:[#allocation5 + $0xf8] sm:$0xff]
        %v5334 = vld [vmem:[#allocation5 + $0x100] sm:$0xff]
        %v5335 = vld [vmem:[#allocation5 + $0x108] sm:$0xff]
        %v5336 = vld [vmem:[#allocation5 + $0x110] sm:$0xff]
        %v5337 = vld [vmem:[#allocation5 + $0x118] sm:$0xff]
        %v5338 = vld [vmem:[#allocation5 + $0x120] sm:$0xff]
        %v5339 = vld [vmem:[#allocation5 + $0x128] sm:$0xff]
        %v5340 = vld [vmem:[#allocation5 + $0x130] sm:$0xff]
        %v5341 = vld [vmem:[#allocation5 + $0x138] sm:$0xff]
        %v5342 = vld [vmem:[#allocation5 + $0x140] sm:$0xff]
        %v5343 = vld [vmem:[#allocation5 + $0x148] sm:$0xff]
        %v5344 = vld [vmem:[#allocation5 + $0x150] sm:$0xff]
        %v5345 = vld [vmem:[#allocation5 + $0x158] sm:$0xff]
        %v5346 = vld [vmem:[#allocation5 + $0x160] sm:$0xff]
        %v5347 = vld [vmem:[#allocation5 + $0x168] sm:$0xff]
        %v5348 = vld [vmem:[#allocation5 + $0x170] sm:$0xff]
        %v5349 = vld [vmem:[#allocation5 + $0x178] sm:$0xff]
        %v5350 = vld [vmem:[#allocation5 + $0x180] sm:$0xff]
        %v5351 = vld [vmem:[#allocation5 + $0x188] sm:$0xff]
        %v5352 = vld [vmem:[#allocation5 + $0x190] sm:$0xff]
        %v5353 = vld [vmem:[#allocation5 + $0x198] sm:$0xff]
        %v5354 = vld [vmem:[#allocation5 + $0x1a0] sm:$0xff]
        %v5355 = vld [vmem:[#allocation5 + $0x1a8] sm:$0xff]
        %v5356 = vld [vmem:[#allocation5 + $0x1b0] sm:$0xff]
        %v5357 = vld [vmem:[#allocation5 + $0x1b8] sm:$0xff]
        %v5358 = vld [vmem:[#allocation5 + $0x1c0] sm:$0xff]
        %v5359 = vld [vmem:[#allocation5 + $0x1c8] sm:$0xff]
        %v5360 = vld [vmem:[#allocation5 + $0x1d0] sm:$0xff]
        %v5361 = vld [vmem:[#allocation5 + $0x1d8] sm:$0xff]
        %v5362 = vld [vmem:[#allocation5 + $0x1e0] sm:$0xff]
        %v5363 = vld [vmem:[#allocation5 + $0x1e8] sm:$0xff]
        %v5364 = vld [vmem:[#allocation5 + $0x1f0] sm:$0xff]
        %v5365 = vld [vmem:[#allocation5 + $0x1f8] sm:$0xff]
        %5367 = vset.pattern.permute.xlu0 0
        %5368 = vperm.xlu0 %5367, %v3254
        %v5369 = vpop.permute.xlu0 %5368
        %5372 = vset.pattern.permute.xlu0 0
        %5373 = vperm.xlu0 %5372, %v3256
        %v5374 = vpop.permute.xlu0 %5373
        %5377 = vset.pattern.permute.xlu0 0
        %5378 = vperm.xlu0 %5377, %v3258
        %v5379 = vpop.permute.xlu0 %5378
        %5382 = vset.pattern.permute.xlu0 0
        %5383 = vperm.xlu0 %5382, %v3260
        %v5384 = vpop.permute.xlu0 %5383
        %5387 = vset.pattern.permute.xlu0 0
        %5388 = vperm.xlu0 %5387, %v3262
        %v5389 = vpop.permute.xlu0 %5388
        %5392 = vset.pattern.permute.xlu0 0
        %5393 = vperm.xlu0 %5392, %v3264
        %v5394 = vpop.permute.xlu0 %5393
        %5397 = vset.pattern.permute.xlu0 0
        %5398 = vperm.xlu0 %5397, %v3266
        %v5399 = vpop.permute.xlu0 %5398
        %5402 = vset.pattern.permute.xlu0 0
        %5403 = vperm.xlu0 %5402, %v3268
        %v5404 = vpop.permute.xlu0 %5403
        %5407 = vset.pattern.permute.xlu0 0
        %5408 = vperm.xlu0 %5407, %v3270
        %v5409 = vpop.permute.xlu0 %5408
        %5412 = vset.pattern.permute.xlu0 0
        %5413 = vperm.xlu0 %5412, %v3272
        %v5414 = vpop.permute.xlu0 %5413
        %5417 = vset.pattern.permute.xlu0 0
        %5418 = vperm.xlu0 %5417, %v3274
        %v5419 = vpop.permute.xlu0 %5418
        %5422 = vset.pattern.permute.xlu0 0
        %5423 = vperm.xlu0 %5422, %v3276
        %v5424 = vpop.permute.xlu0 %5423
        %5427 = vset.pattern.permute.xlu0 0
        %5428 = vperm.xlu0 %5427, %v3278
        %v5429 = vpop.permute.xlu0 %5428
        %5432 = vset.pattern.permute.xlu0 0
        %5433 = vperm.xlu0 %5432, %v3280
        %v5434 = vpop.permute.xlu0 %5433
        %5437 = vset.pattern.permute.xlu0 0
        %5438 = vperm.xlu0 %5437, %v3282
        %v5439 = vpop.permute.xlu0 %5438
        %5442 = vset.pattern.permute.xlu0 0
        %5443 = vperm.xlu0 %5442, %v3284
        %v5444 = vpop.permute.xlu0 %5443
        %5447 = vset.pattern.permute.xlu0 0
        %5448 = vperm.xlu0 %5447, %v3286
        %v5449 = vpop.permute.xlu0 %5448
        %5452 = vset.pattern.permute.xlu0 0
        %5453 = vperm.xlu0 %5452, %v3288
        %v5454 = vpop.permute.xlu0 %5453
        %5457 = vset.pattern.permute.xlu0 0
        %5458 = vperm.xlu0 %5457, %v3290
        %v5459 = vpop.permute.xlu0 %5458
        %5462 = vset.pattern.permute.xlu0 0
        %5463 = vperm.xlu0 %5462, %v3292
        %v5464 = vpop.permute.xlu0 %5463
        %5467 = vset.pattern.permute.xlu0 0
        %5468 = vperm.xlu0 %5467, %v3294
        %v5469 = vpop.permute.xlu0 %5468
        %5472 = vset.pattern.permute.xlu0 0
        %5473 = vperm.xlu0 %5472, %v3296
        %v5474 = vpop.permute.xlu0 %5473
        %5477 = vset.pattern.permute.xlu0 0
        %5478 = vperm.xlu0 %5477, %v3298
        %v5479 = vpop.permute.xlu0 %5478
        %5482 = vset.pattern.permute.xlu0 0
        %5483 = vperm.xlu0 %5482, %v3300
        %v5484 = vpop.permute.xlu0 %5483
        %5487 = vset.pattern.permute.xlu0 0
        %5488 = vperm.xlu0 %5487, %v3302
        %v5489 = vpop.permute.xlu0 %5488
        %5492 = vset.pattern.permute.xlu0 0
        %5493 = vperm.xlu0 %5492, %v3304
        %v5494 = vpop.permute.xlu0 %5493
        %5497 = vset.pattern.permute.xlu0 0
        %5498 = vperm.xlu0 %5497, %v3306
        %v5499 = vpop.permute.xlu0 %5498
        %5502 = vset.pattern.permute.xlu0 0
        %5503 = vperm.xlu0 %5502, %v3308
        %v5504 = vpop.permute.xlu0 %5503
        %5507 = vset.pattern.permute.xlu0 0
        %5508 = vperm.xlu0 %5507, %v3310
        %v5509 = vpop.permute.xlu0 %5508
        %5512 = vset.pattern.permute.xlu0 0
        %5513 = vperm.xlu0 %5512, %v3312
        %v5514 = vpop.permute.xlu0 %5513
        %5517 = vset.pattern.permute.xlu0 0
        %5518 = vperm.xlu0 %5517, %v3314
        %v5519 = vpop.permute.xlu0 %5518
        %5522 = vset.pattern.permute.xlu0 0
        %5523 = vperm.xlu0 %5522, %v3316
        %v5524 = vpop.permute.xlu0 %5523
        %5527 = vset.pattern.permute.xlu0 0
        %5528 = vperm.xlu0 %5527, %v3318
        %v5529 = vpop.permute.xlu0 %5528
        %5532 = vset.pattern.permute.xlu0 0
        %5533 = vperm.xlu0 %5532, %v3320
        %v5534 = vpop.permute.xlu0 %5533
        %5537 = vset.pattern.permute.xlu0 0
        %5538 = vperm.xlu0 %5537, %v3322
        %v5539 = vpop.permute.xlu0 %5538
        %5542 = vset.pattern.permute.xlu0 0
        %5543 = vperm.xlu0 %5542, %v3324
        %v5544 = vpop.permute.xlu0 %5543
        %5547 = vset.pattern.permute.xlu0 0
        %5548 = vperm.xlu0 %5547, %v3326
        %v5549 = vpop.permute.xlu0 %5548
        %5552 = vset.pattern.permute.xlu0 0
        %5553 = vperm.xlu0 %5552, %v3328
        %v5554 = vpop.permute.xlu0 %5553
        %5557 = vset.pattern.permute.xlu0 0
        %5558 = vperm.xlu0 %5557, %v3330
        %v5559 = vpop.permute.xlu0 %5558
        %5562 = vset.pattern.permute.xlu0 0
        %5563 = vperm.xlu0 %5562, %v3332
        %v5564 = vpop.permute.xlu0 %5563
        %5567 = vset.pattern.permute.xlu0 0
        %5568 = vperm.xlu0 %5567, %v3334
        %v5569 = vpop.permute.xlu0 %5568
        %5572 = vset.pattern.permute.xlu0 0
        %5573 = vperm.xlu0 %5572, %v3336
        %v5574 = vpop.permute.xlu0 %5573
        %5577 = vset.pattern.permute.xlu0 0
        %5578 = vperm.xlu0 %5577, %v3338
        %v5579 = vpop.permute.xlu0 %5578
        %5582 = vset.pattern.permute.xlu0 0
        %5583 = vperm.xlu0 %5582, %v3340
        %v5584 = vpop.permute.xlu0 %5583
        %5587 = vset.pattern.permute.xlu0 0
        %5588 = vperm.xlu0 %5587, %v3342
        %v5589 = vpop.permute.xlu0 %5588
        %5592 = vset.pattern.permute.xlu0 0
        %5593 = vperm.xlu0 %5592, %v3344
        %v5594 = vpop.permute.xlu0 %5593
        %5597 = vset.pattern.permute.xlu0 0
        %5598 = vperm.xlu0 %5597, %v3346
        %v5599 = vpop.permute.xlu0 %5598
        %5602 = vset.pattern.permute.xlu0 0
        %5603 = vperm.xlu0 %5602, %v3348
        %v5604 = vpop.permute.xlu0 %5603
        %5607 = vset.pattern.permute.xlu0 0
        %5608 = vperm.xlu0 %5607, %v3350
        %v5609 = vpop.permute.xlu0 %5608
        %5612 = vset.pattern.permute.xlu0 0
        %5613 = vperm.xlu0 %5612, %v3352
        %v5614 = vpop.permute.xlu0 %5613
        %5617 = vset.pattern.permute.xlu0 0
        %5618 = vperm.xlu0 %5617, %v3354
        %v5619 = vpop.permute.xlu0 %5618
        %5622 = vset.pattern.permute.xlu0 0
        %5623 = vperm.xlu0 %5622, %v3356
        %v5624 = vpop.permute.xlu0 %5623
        %5627 = vset.pattern.permute.xlu0 0
        %5628 = vperm.xlu0 %5627, %v3358
        %v5629 = vpop.permute.xlu0 %5628
        %5632 = vset.pattern.permute.xlu0 0
        %5633 = vperm.xlu0 %5632, %v3360
        %v5634 = vpop.permute.xlu0 %5633
        %5637 = vset.pattern.permute.xlu0 0
        %5638 = vperm.xlu0 %5637, %v3362
        %v5639 = vpop.permute.xlu0 %5638
        %5642 = vset.pattern.permute.xlu0 0
        %5643 = vperm.xlu0 %5642, %v3364
        %v5644 = vpop.permute.xlu0 %5643
        %5647 = vset.pattern.permute.xlu0 0
        %5648 = vperm.xlu0 %5647, %v3366
        %v5649 = vpop.permute.xlu0 %5648
        %5652 = vset.pattern.permute.xlu0 0
        %5653 = vperm.xlu0 %5652, %v3368
        %v5654 = vpop.permute.xlu0 %5653
        %5657 = vset.pattern.permute.xlu0 0
        %5658 = vperm.xlu0 %5657, %v3370
        %v5659 = vpop.permute.xlu0 %5658
        %5662 = vset.pattern.permute.xlu0 0
        %5663 = vperm.xlu0 %5662, %v3372
        %v5664 = vpop.permute.xlu0 %5663
        %5667 = vset.pattern.permute.xlu0 0
        %5668 = vperm.xlu0 %5667, %v3374
        %v5669 = vpop.permute.xlu0 %5668
        %5672 = vset.pattern.permute.xlu0 0
        %5673 = vperm.xlu0 %5672, %v3376
        %v5674 = vpop.permute.xlu0 %5673
        %5677 = vset.pattern.permute.xlu0 0
        %5678 = vperm.xlu0 %5677, %v3378
        %v5679 = vpop.permute.xlu0 %5678
        %5682 = vset.pattern.permute.xlu0 0
        %5683 = vperm.xlu0 %5682, %v3380
        %v5684 = vpop.permute.xlu0 %5683
        %v5686 = vmul.f32 %v5369, %v5302
        %v5687 = vmul.f32 %v5374, %v5303
        %v5688 = vmul.f32 %v5379, %v5304
        %v5689 = vmul.f32 %v5384, %v5305
        %v5690 = vmul.f32 %v5389, %v5306
        %v5691 = vmul.f32 %v5394, %v5307
        %v5692 = vmul.f32 %v5399, %v5308
        %v5693 = vmul.f32 %v5404, %v5309
        %v5694 = vmul.f32 %v5409, %v5310
        %v5695 = vmul.f32 %v5414, %v5311
        %v5696 = vmul.f32 %v5419, %v5312
        %v5697 = vmul.f32 %v5424, %v5313
        %v5698 = vmul.f32 %v5429, %v5314
        %v5699 = vmul.f32 %v5434, %v5315
        %v5700 = vmul.f32 %v5439, %v5316
        %v5701 = vmul.f32 %v5444, %v5317
        %v5702 = vmul.f32 %v5449, %v5318
        %v5703 = vmul.f32 %v5454, %v5319
        %v5704 = vmul.f32 %v5459, %v5320
        %v5705 = vmul.f32 %v5464, %v5321
        %v5706 = vmul.f32 %v5469, %v5322
        %v5707 = vmul.f32 %v5474, %v5323
        %v5708 = vmul.f32 %v5479, %v5324
        %v5709 = vmul.f32 %v5484, %v5325
        %v5710 = vmul.f32 %v5489, %v5326
        %v5711 = vmul.f32 %v5494, %v5327
        %v5712 = vmul.f32 %v5499, %v5328
        %v5713 = vmul.f32 %v5504, %v5329
        %v5714 = vmul.f32 %v5509, %v5330
        %v5715 = vmul.f32 %v5514, %v5331
        %v5716 = vmul.f32 %v5519, %v5332
        %v5717 = vmul.f32 %v5524, %v5333
        %v5718 = vmul.f32 %v5529, %v5334
        %v5719 = vmul.f32 %v5534, %v5335
        %v5720 = vmul.f32 %v5539, %v5336
        %v5721 = vmul.f32 %v5544, %v5337
        %v5722 = vmul.f32 %v5549, %v5338
        %v5723 = vmul.f32 %v5554, %v5339
        %v5724 = vmul.f32 %v5559, %v5340
        %v5725 = vmul.f32 %v5564, %v5341
        %v5726 = vmul.f32 %v5569, %v5342
        %v5727 = vmul.f32 %v5574, %v5343
        %v5728 = vmul.f32 %v5579, %v5344
        %v5729 = vmul.f32 %v5584, %v5345
        %v5730 = vmul.f32 %v5589, %v5346
        %v5731 = vmul.f32 %v5594, %v5347
        %v5732 = vmul.f32 %v5599, %v5348
        %v5733 = vmul.f32 %v5604, %v5349
        %v5734 = vmul.f32 %v5609, %v5350
        %v5735 = vmul.f32 %v5614, %v5351
        %v5736 = vmul.f32 %v5619, %v5352
        %v5737 = vmul.f32 %v5624, %v5353
        %v5738 = vmul.f32 %v5629, %v5354
        %v5739 = vmul.f32 %v5634, %v5355
        %v5740 = vmul.f32 %v5639, %v5356
        %v5741 = vmul.f32 %v5644, %v5357
        %v5742 = vmul.f32 %v5649, %v5358
        %v5743 = vmul.f32 %v5654, %v5359
        %v5744 = vmul.f32 %v5659, %v5360
        %v5745 = vmul.f32 %v5664, %v5361
        %v5746 = vmul.f32 %v5669, %v5362
        %v5747 = vmul.f32 %v5674, %v5363
        %v5748 = vmul.f32 %v5679, %v5364
        %v5749 = vmul.f32 %v5684, %v5365
        %v5750 = vadd.f32 %v5686, %v4418
        %v5751 = vadd.f32 %v5687, %v4421
        %v5752 = vadd.f32 %v5688, %v4426
        %v5753 = vadd.f32 %v5689, %v4429
        %v5754 = vadd.f32 %v5690, %v4476
        %v5755 = vadd.f32 %v5691, %v4479
        %v5756 = vadd.f32 %v5692, %v4484
        %v5757 = vadd.f32 %v5693, %v4487
        %v5758 = vadd.f32 %v5694, %v4534
        %v5759 = vadd.f32 %v5695, %v4537
        %v5760 = vadd.f32 %v5696, %v4542
        %v5761 = vadd.f32 %v5697, %v4545
        %v5762 = vadd.f32 %v5698, %v4592
        %v5763 = vadd.f32 %v5699, %v4595
        %v5764 = vadd.f32 %v5700, %v4600
        %v5765 = vadd.f32 %v5701, %v4603
        %v5766 = vadd.f32 %v5702, %v4650
        %v5767 = vadd.f32 %v5703, %v4653
        %v5768 = vadd.f32 %v5704, %v4658
        %v5769 = vadd.f32 %v5705, %v4661
        %v5770 = vadd.f32 %v5706, %v4708
        %v5771 = vadd.f32 %v5707, %v4711
        %v5772 = vadd.f32 %v5708, %v4716
        %v5773 = vadd.f32 %v5709, %v4719
        %v5774 = vadd.f32 %v5710, %v4766
        %v5775 = vadd.f32 %v5711, %v4769
        %v5776 = vadd.f32 %v5712, %v4774
        %v5777 = vadd.f32 %v5713, %v4777
        %v5778 = vadd.f32 %v5714, %v4824
        %v5779 = vadd.f32 %v5715, %v4827
        %v5780 = vadd.f32 %v5716, %v4832
        %v5781 = vadd.f32 %v5717, %v4835
        %v5782 = vadd.f32 %v5718, %v4882
        %v5783 = vadd.f32 %v5719, %v4885
        %v5784 = vadd.f32 %v5720, %v4890
        %v5785 = vadd.f32 %v5721, %v4893
        %v5786 = vadd.f32 %v5722, %v4940
        %v5787 = vadd.f32 %v5723, %v4943
        %v5788 = vadd.f32 %v5724, %v4948
        %v5789 = vadd.f32 %v5725, %v4951
        %v5790 = vadd.f32 %v5726, %v4998
        %v5791 = vadd.f32 %v5727, %v5001
        %v5792 = vadd.f32 %v5728, %v5006
        %v5793 = vadd.f32 %v5729, %v5009
        %v5794 = vadd.f32 %v5730, %v5056
        %v5795 = vadd.f32 %v5731, %v5059
        %v5796 = vadd.f32 %v5732, %v5064
        %v5797 = vadd.f32 %v5733, %v5067
        %v5798 = vadd.f32 %v5734, %v5114
        %v5799 = vadd.f32 %v5735, %v5117
        %v5800 = vadd.f32 %v5736, %v5122
        %v5801 = vadd.f32 %v5737, %v5125
        %v5802 = vadd.f32 %v5738, %v5172
        %v5803 = vadd.f32 %v5739, %v5175
        %v5804 = vadd.f32 %v5740, %v5180
        %v5805 = vadd.f32 %v5741, %v5183
        %v5806 = vadd.f32 %v5742, %v5230
        %v5807 = vadd.f32 %v5743, %v5233
        %v5808 = vadd.f32 %v5744, %v5238
        %v5809 = vadd.f32 %v5745, %v5241
        %v5810 = vadd.f32 %v5746, %v5288
        %v5811 = vadd.f32 %v5747, %v5291
        %v5812 = vadd.f32 %v5748, %v5296
        %v5813 = vadd.f32 %v5749, %v5299
        %5814 = vst.msk [vmem:[#allocation5] sm:$0xff] %vm1938, %v5750
        %5815 = vst.msk [vmem:[#allocation5 + $0x8] sm:$0xff] %vm1938, %v5751
        %5816 = vst.msk [vmem:[#allocation5 + $0x10] sm:$0xff] %vm1938, %v5752
        %5817 = vst.msk [vmem:[#allocation5 + $0x18] sm:$0xff] %vm1938, %v5753
        %5818 = vst.msk [vmem:[#allocation5 + $0x20] sm:$0xff] %vm1938, %v5754
        %5819 = vst.msk [vmem:[#allocation5 + $0x28] sm:$0xff] %vm1938, %v5755
        %5820 = vst.msk [vmem:[#allocation5 + $0x30] sm:$0xff] %vm1938, %v5756
        %5821 = vst.msk [vmem:[#allocation5 + $0x38] sm:$0xff] %vm1938, %v5757
        %5822 = vst.msk [vmem:[#allocation5 + $0x40] sm:$0xff] %vm1938, %v5758
        %5823 = vst.msk [vmem:[#allocation5 + $0x48] sm:$0xff] %vm1938, %v5759
        %5824 = vst.msk [vmem:[#allocation5 + $0x50] sm:$0xff] %vm1938, %v5760
        %5825 = vst.msk [vmem:[#allocation5 + $0x58] sm:$0xff] %vm1938, %v5761
        %5826 = vst.msk [vmem:[#allocation5 + $0x60] sm:$0xff] %vm1938, %v5762
        %5827 = vst.msk [vmem:[#allocation5 + $0x68] sm:$0xff] %vm1938, %v5763
        %5828 = vst.msk [vmem:[#allocation5 + $0x70] sm:$0xff] %vm1938, %v5764
        %5829 = vst.msk [vmem:[#allocation5 + $0x78] sm:$0xff] %vm1938, %v5765
        %5830 = vst.msk [vmem:[#allocation5 + $0x80] sm:$0xff] %vm1938, %v5766
        %5831 = vst.msk [vmem:[#allocation5 + $0x88] sm:$0xff] %vm1938, %v5767
        %5832 = vst.msk [vmem:[#allocation5 + $0x90] sm:$0xff] %vm1938, %v5768
        %5833 = vst.msk [vmem:[#allocation5 + $0x98] sm:$0xff] %vm1938, %v5769
        %5834 = vst.msk [vmem:[#allocation5 + $0xa0] sm:$0xff] %vm1938, %v5770
        %5835 = vst.msk [vmem:[#allocation5 + $0xa8] sm:$0xff] %vm1938, %v5771
        %5836 = vst.msk [vmem:[#allocation5 + $0xb0] sm:$0xff] %vm1938, %v5772
        %5837 = vst.msk [vmem:[#allocation5 + $0xb8] sm:$0xff] %vm1938, %v5773
        %5838 = vst.msk [vmem:[#allocation5 + $0xc0] sm:$0xff] %vm1938, %v5774
        %5839 = vst.msk [vmem:[#allocation5 + $0xc8] sm:$0xff] %vm1938, %v5775
        %5840 = vst.msk [vmem:[#allocation5 + $0xd0] sm:$0xff] %vm1938, %v5776
        %5841 = vst.msk [vmem:[#allocation5 + $0xd8] sm:$0xff] %vm1938, %v5777
        %5842 = vst.msk [vmem:[#allocation5 + $0xe0] sm:$0xff] %vm1938, %v5778
        %5843 = vst.msk [vmem:[#allocation5 + $0xe8] sm:$0xff] %vm1938, %v5779
        %5844 = vst.msk [vmem:[#allocation5 + $0xf0] sm:$0xff] %vm1938, %v5780
        %5845 = vst.msk [vmem:[#allocation5 + $0xf8] sm:$0xff] %vm1938, %v5781
        %5846 = vst.msk [vmem:[#allocation5 + $0x100] sm:$0xff] %vm1938, %v5782
        %5847 = vst.msk [vmem:[#allocation5 + $0x108] sm:$0xff] %vm1938, %v5783
        %5848 = vst.msk [vmem:[#allocation5 + $0x110] sm:$0xff] %vm1938, %v5784
        %5849 = vst.msk [vmem:[#allocation5 + $0x118] sm:$0xff] %vm1938, %v5785
        %5850 = vst.msk [vmem:[#allocation5 + $0x120] sm:$0xff] %vm1938, %v5786
        %5851 = vst.msk [vmem:[#allocation5 + $0x128] sm:$0xff] %vm1938, %v5787
        %5852 = vst.msk [vmem:[#allocation5 + $0x130] sm:$0xff] %vm1938, %v5788
        %5853 = vst.msk [vmem:[#allocation5 + $0x138] sm:$0xff] %vm1938, %v5789
        %5854 = vst.msk [vmem:[#allocation5 + $0x140] sm:$0xff] %vm1938, %v5790
        %5855 = vst.msk [vmem:[#allocation5 + $0x148] sm:$0xff] %vm1938, %v5791
        %5856 = vst.msk [vmem:[#allocation5 + $0x150] sm:$0xff] %vm1938, %v5792
        %5857 = vst.msk [vmem:[#allocation5 + $0x158] sm:$0xff] %vm1938, %v5793
        %5858 = vst.msk [vmem:[#allocation5 + $0x160] sm:$0xff] %vm1938, %v5794
        %5859 = vst.msk [vmem:[#allocation5 + $0x168] sm:$0xff] %vm1938, %v5795
        %5860 = vst.msk [vmem:[#allocation5 + $0x170] sm:$0xff] %vm1938, %v5796
        %5861 = vst.msk [vmem:[#allocation5 + $0x178] sm:$0xff] %vm1938, %v5797
        %5862 = vst.msk [vmem:[#allocation5 + $0x180] sm:$0xff] %vm1938, %v5798
        %5863 = vst.msk [vmem:[#allocation5 + $0x188] sm:$0xff] %vm1938, %v5799
        %5864 = vst.msk [vmem:[#allocation5 + $0x190] sm:$0xff] %vm1938, %v5800
        %5865 = vst.msk [vmem:[#allocation5 + $0x198] sm:$0xff] %vm1938, %v5801
        %5866 = vst.msk [vmem:[#allocation5 + $0x1a0] sm:$0xff] %vm1938, %v5802
        %5867 = vst.msk [vmem:[#allocation5 + $0x1a8] sm:$0xff] %vm1938, %v5803
        %5868 = vst.msk [vmem:[#allocation5 + $0x1b0] sm:$0xff] %vm1938, %v5804
        %5869 = vst.msk [vmem:[#allocation5 + $0x1b8] sm:$0xff] %vm1938, %v5805
        %5870 = vst.msk [vmem:[#allocation5 + $0x1c0] sm:$0xff] %vm1938, %v5806
        %5871 = vst.msk [vmem:[#allocation5 + $0x1c8] sm:$0xff] %vm1938, %v5807
        %5872 = vst.msk [vmem:[#allocation5 + $0x1d0] sm:$0xff] %vm1938, %v5808
        %5873 = vst.msk [vmem:[#allocation5 + $0x1d8] sm:$0xff] %vm1938, %v5809
        %5874 = vst.msk [vmem:[#allocation5 + $0x1e0] sm:$0xff] %vm1938, %v5810
        %5875 = vst.msk [vmem:[#allocation5 + $0x1e8] sm:$0xff] %vm1938, %v5811
        %5876 = vst.msk [vmem:[#allocation5 + $0x1f0] sm:$0xff] %vm1938, %v5812
        %5877 = vst.msk [vmem:[#allocation5 + $0x1f8] sm:$0xff] %vm1938, %v5813
        %5878 = vst.msk [vmem:[#allocation3] sm:$0xff] %vm4277, %v3125
        %5879 = vst.msk [vmem:[#allocation3 + $0x8] sm:$0xff] %vm4277, %v3126
        %5880 = vst.msk [vmem:[#allocation3 + $0x10] sm:$0xff] %vm4277, %v3127
        %5881 = vst.msk [vmem:[#allocation3 + $0x18] sm:$0xff] %vm4277, %v3128
        %5882 = vst.msk [vmem:[#allocation3 + $0x20] sm:$0xff] %vm4277, %v3129
        %5883 = vst.msk [vmem:[#allocation3 + $0x28] sm:$0xff] %vm4277, %v3130
        %5884 = vst.msk [vmem:[#allocation3 + $0x30] sm:$0xff] %vm4277, %v3131
        %5885 = vst.msk [vmem:[#allocation3 + $0x38] sm:$0xff] %vm4277, %v3132
        %5886 = vst.msk [vmem:[#allocation3 + $0x40] sm:$0xff] %vm4277, %v3133
        %5887 = vst.msk [vmem:[#allocation3 + $0x48] sm:$0xff] %vm4277, %v3134
        %5888 = vst.msk [vmem:[#allocation3 + $0x50] sm:$0xff] %vm4277, %v3135
        %5889 = vst.msk [vmem:[#allocation3 + $0x58] sm:$0xff] %vm4277, %v3136
        %5890 = vst.msk [vmem:[#allocation3 + $0x60] sm:$0xff] %vm4277, %v3137
        %5891 = vst.msk [vmem:[#allocation3 + $0x68] sm:$0xff] %vm4277, %v3138
        %5892 = vst.msk [vmem:[#allocation3 + $0x70] sm:$0xff] %vm4277, %v3139
        %5893 = vst.msk [vmem:[#allocation3 + $0x78] sm:$0xff] %vm4277, %v3140
        %5894 = vst.msk [vmem:[#allocation3 + $0x80] sm:$0xff] %vm4277, %v3141
        %5895 = vst.msk [vmem:[#allocation3 + $0x88] sm:$0xff] %vm4277, %v3142
        %5896 = vst.msk [vmem:[#allocation3 + $0x90] sm:$0xff] %vm4277, %v3143
        %5897 = vst.msk [vmem:[#allocation3 + $0x98] sm:$0xff] %vm4277, %v3144
        %5898 = vst.msk [vmem:[#allocation3 + $0xa0] sm:$0xff] %vm4277, %v3145
        %5899 = vst.msk [vmem:[#allocation3 + $0xa8] sm:$0xff] %vm4277, %v3146
        %5900 = vst.msk [vmem:[#allocation3 + $0xb0] sm:$0xff] %vm4277, %v3147
        %5901 = vst.msk [vmem:[#allocation3 + $0xb8] sm:$0xff] %vm4277, %v3148
        %5902 = vst.msk [vmem:[#allocation3 + $0xc0] sm:$0xff] %vm4277, %v3149
        %5903 = vst.msk [vmem:[#allocation3 + $0xc8] sm:$0xff] %vm4277, %v3150
        %5904 = vst.msk [vmem:[#allocation3 + $0xd0] sm:$0xff] %vm4277, %v3151
        %5905 = vst.msk [vmem:[#allocation3 + $0xd8] sm:$0xff] %vm4277, %v3152
        %5906 = vst.msk [vmem:[#allocation3 + $0xe0] sm:$0xff] %vm4277, %v3153
        %5907 = vst.msk [vmem:[#allocation3 + $0xe8] sm:$0xff] %vm4277, %v3154
        %5908 = vst.msk [vmem:[#allocation3 + $0xf0] sm:$0xff] %vm4277, %v3155
        %5909 = vst.msk [vmem:[#allocation3 + $0xf8] sm:$0xff] %vm4277, %v3156
        %5910 = vst.msk [vmem:[#allocation3 + $0x100] sm:$0xff] %vm4277, %v3157
        %5911 = vst.msk [vmem:[#allocation3 + $0x108] sm:$0xff] %vm4277, %v3158
        %5912 = vst.msk [vmem:[#allocation3 + $0x110] sm:$0xff] %vm4277, %v3159
        %5913 = vst.msk [vmem:[#allocation3 + $0x118] sm:$0xff] %vm4277, %v3160
        %5914 = vst.msk [vmem:[#allocation3 + $0x120] sm:$0xff] %vm4277, %v3161
        %5915 = vst.msk [vmem:[#allocation3 + $0x128] sm:$0xff] %vm4277, %v3162
        %5916 = vst.msk [vmem:[#allocation3 + $0x130] sm:$0xff] %vm4277, %v3163
        %5917 = vst.msk [vmem:[#allocation3 + $0x138] sm:$0xff] %vm4277, %v3164
        %5918 = vst.msk [vmem:[#allocation3 + $0x140] sm:$0xff] %vm4277, %v3165
        %5919 = vst.msk [vmem:[#allocation3 + $0x148] sm:$0xff] %vm4277, %v3166
        %5920 = vst.msk [vmem:[#allocation3 + $0x150] sm:$0xff] %vm4277, %v3167
        %5921 = vst.msk [vmem:[#allocation3 + $0x158] sm:$0xff] %vm4277, %v3168
        %5922 = vst.msk [vmem:[#allocation3 + $0x160] sm:$0xff] %vm4277, %v3169
        %5923 = vst.msk [vmem:[#allocation3 + $0x168] sm:$0xff] %vm4277, %v3170
        %5924 = vst.msk [vmem:[#allocation3 + $0x170] sm:$0xff] %vm4277, %v3171
        %5925 = vst.msk [vmem:[#allocation3 + $0x178] sm:$0xff] %vm4277, %v3172
        %5926 = vst.msk [vmem:[#allocation3 + $0x180] sm:$0xff] %vm4277, %v3173
        %5927 = vst.msk [vmem:[#allocation3 + $0x188] sm:$0xff] %vm4277, %v3174
        %5928 = vst.msk [vmem:[#allocation3 + $0x190] sm:$0xff] %vm4277, %v3175
        %5929 = vst.msk [vmem:[#allocation3 + $0x198] sm:$0xff] %vm4277, %v3176
        %5930 = vst.msk [vmem:[#allocation3 + $0x1a0] sm:$0xff] %vm4277, %v3177
        %5931 = vst.msk [vmem:[#allocation3 + $0x1a8] sm:$0xff] %vm4277, %v3178
        %5932 = vst.msk [vmem:[#allocation3 + $0x1b0] sm:$0xff] %vm4277, %v3179
        %5933 = vst.msk [vmem:[#allocation3 + $0x1b8] sm:$0xff] %vm4277, %v3180
        %5934 = vst.msk [vmem:[#allocation3 + $0x1c0] sm:$0xff] %vm4277, %v3181
        %5935 = vst.msk [vmem:[#allocation3 + $0x1c8] sm:$0xff] %vm4277, %v3182
        %5936 = vst.msk [vmem:[#allocation3 + $0x1d0] sm:$0xff] %vm4277, %v3183
        %5937 = vst.msk [vmem:[#allocation3 + $0x1d8] sm:$0xff] %vm4277, %v3184
        %5938 = vst.msk [vmem:[#allocation3 + $0x1e0] sm:$0xff] %vm4277, %v3185
        %5939 = vst.msk [vmem:[#allocation3 + $0x1e8] sm:$0xff] %vm4277, %v3186
        %5940 = vst.msk [vmem:[#allocation3 + $0x1f0] sm:$0xff] %vm4277, %v3187
        %5941 = vst.msk [vmem:[#allocation3 + $0x1f8] sm:$0xff] %vm4277, %v3188
        %p5942 = scmp.eq.s32.totalorder %s43, 1
        // Predicated region
        $region109: #{tpu_custom_call.1} parent=75 // pred_check
          %p5943 = pneg %p5942
        $region110: #{tpu_custom_call.1} parent=75 // pred_check_branch
          %5945 = sbr.rel (%p5943) target = $region112
        $region111: #{tpu_custom_call.1} parent=75 // pred_region
          %v5946 = vld [vmem:[#allocation4] sm:$0xff]
          %v5947 = vld [vmem:[#allocation4 + $0x8] sm:$0xff]
          %v5948 = vld [vmem:[#allocation4 + $0x10] sm:$0xff]
          %v5949 = vld [vmem:[#allocation4 + $0x18] sm:$0xff]
          %v5950 = vld [vmem:[#allocation4 + $0x20] sm:$0xff]
          %v5951 = vld [vmem:[#allocation4 + $0x28] sm:$0xff]
          %v5952 = vld [vmem:[#allocation4 + $0x30] sm:$0xff]
          %v5953 = vld [vmem:[#allocation4 + $0x38] sm:$0xff]
          %v5954 = vld [vmem:[#allocation4 + $0x40] sm:$0xff]
          %v5955 = vld [vmem:[#allocation4 + $0x48] sm:$0xff]
          %v5956 = vld [vmem:[#allocation4 + $0x50] sm:$0xff]
          %v5957 = vld [vmem:[#allocation4 + $0x58] sm:$0xff]
          %v5958 = vld [vmem:[#allocation4 + $0x60] sm:$0xff]
          %v5959 = vld [vmem:[#allocation4 + $0x68] sm:$0xff]
          %v5960 = vld [vmem:[#allocation4 + $0x70] sm:$0xff]
          %v5961 = vld [vmem:[#allocation4 + $0x78] sm:$0xff]
          %v5962 = vld [vmem:[#allocation4 + $0x80] sm:$0xff]
          %v5963 = vld [vmem:[#allocation4 + $0x88] sm:$0xff]
          %v5964 = vld [vmem:[#allocation4 + $0x90] sm:$0xff]
          %v5965 = vld [vmem:[#allocation4 + $0x98] sm:$0xff]
          %v5966 = vld [vmem:[#allocation4 + $0xa0] sm:$0xff]
          %v5967 = vld [vmem:[#allocation4 + $0xa8] sm:$0xff]
          %v5968 = vld [vmem:[#allocation4 + $0xb0] sm:$0xff]
          %v5969 = vld [vmem:[#allocation4 + $0xb8] sm:$0xff]
          %v5970 = vld [vmem:[#allocation4 + $0xc0] sm:$0xff]
          %v5971 = vld [vmem:[#allocation4 + $0xc8] sm:$0xff]
          %v5972 = vld [vmem:[#allocation4 + $0xd0] sm:$0xff]
          %v5973 = vld [vmem:[#allocation4 + $0xd8] sm:$0xff]
          %v5974 = vld [vmem:[#allocation4 + $0xe0] sm:$0xff]
          %v5975 = vld [vmem:[#allocation4 + $0xe8] sm:$0xff]
          %v5976 = vld [vmem:[#allocation4 + $0xf0] sm:$0xff]
          %v5977 = vld [vmem:[#allocation4 + $0xf8] sm:$0xff]
          %v5978 = vld [vmem:[#allocation4 + $0x100] sm:$0xff]
          %v5979 = vld [vmem:[#allocation4 + $0x108] sm:$0xff]
          %v5980 = vld [vmem:[#allocation4 + $0x110] sm:$0xff]
          %v5981 = vld [vmem:[#allocation4 + $0x118] sm:$0xff]
          %v5982 = vld [vmem:[#allocation4 + $0x120] sm:$0xff]
          %v5983 = vld [vmem:[#allocation4 + $0x128] sm:$0xff]
          %v5984 = vld [vmem:[#allocation4 + $0x130] sm:$0xff]
          %v5985 = vld [vmem:[#allocation4 + $0x138] sm:$0xff]
          %v5986 = vld [vmem:[#allocation4 + $0x140] sm:$0xff]
          %v5987 = vld [vmem:[#allocation4 + $0x148] sm:$0xff]
          %v5988 = vld [vmem:[#allocation4 + $0x150] sm:$0xff]
          %v5989 = vld [vmem:[#allocation4 + $0x158] sm:$0xff]
          %v5990 = vld [vmem:[#allocation4 + $0x160] sm:$0xff]
          %v5991 = vld [vmem:[#allocation4 + $0x168] sm:$0xff]
          %v5992 = vld [vmem:[#allocation4 + $0x170] sm:$0xff]
          %v5993 = vld [vmem:[#allocation4 + $0x178] sm:$0xff]
          %v5994 = vld [vmem:[#allocation4 + $0x180] sm:$0xff]
          %v5995 = vld [vmem:[#allocation4 + $0x188] sm:$0xff]
          %v5996 = vld [vmem:[#allocation4 + $0x190] sm:$0xff]
          %v5997 = vld [vmem:[#allocation4 + $0x198] sm:$0xff]
          %v5998 = vld [vmem:[#allocation4 + $0x1a0] sm:$0xff]
          %v5999 = vld [vmem:[#allocation4 + $0x1a8] sm:$0xff]
          %v6000 = vld [vmem:[#allocation4 + $0x1b0] sm:$0xff]
          %v6001 = vld [vmem:[#allocation4 + $0x1b8] sm:$0xff]
          %v6002 = vld [vmem:[#allocation4 + $0x1c0] sm:$0xff]
          %v6003 = vld [vmem:[#allocation4 + $0x1c8] sm:$0xff]
          %v6004 = vld [vmem:[#allocation4 + $0x1d0] sm:$0xff]
          %v6005 = vld [vmem:[#allocation4 + $0x1d8] sm:$0xff]
          %v6006 = vld [vmem:[#allocation4 + $0x1e0] sm:$0xff]
          %v6007 = vld [vmem:[#allocation4 + $0x1e8] sm:$0xff]
          %v6008 = vld [vmem:[#allocation4 + $0x1f0] sm:$0xff]
          %v6009 = vld [vmem:[#allocation4 + $0x1f8] sm:$0xff]
          %v6010 = vrcp.pop %v5946
          %v6011 = vrcp.pop %v5947
          %v6012 = vrcp.pop %v5948
          %v6013 = vrcp.pop %v5949
          %v6014 = vrcp.pop %v5950
          %v6015 = vrcp.pop %v5951
          %v6016 = vrcp.pop %v5952
          %v6017 = vrcp.pop %v5953
          %v6018 = vrcp.pop %v5954
          %v6019 = vrcp.pop %v5955
          %v6020 = vrcp.pop %v5956
          %v6021 = vrcp.pop %v5957
          %v6022 = vrcp.pop %v5958
          %v6023 = vrcp.pop %v5959
          %v6024 = vrcp.pop %v5960
          %v6025 = vrcp.pop %v5961
          %v6026 = vrcp.pop %v5962
          %v6027 = vrcp.pop %v5963
          %v6028 = vrcp.pop %v5964
          %v6029 = vrcp.pop %v5965
          %v6030 = vrcp.pop %v5966
          %v6031 = vrcp.pop %v5967
          %v6032 = vrcp.pop %v5968
          %v6033 = vrcp.pop %v5969
          %v6034 = vrcp.pop %v5970
          %v6035 = vrcp.pop %v5971
          %v6036 = vrcp.pop %v5972
          %v6037 = vrcp.pop %v5973
          %v6038 = vrcp.pop %v5974
          %v6039 = vrcp.pop %v5975
          %v6040 = vrcp.pop %v5976
          %v6041 = vrcp.pop %v5977
          %v6042 = vrcp.pop %v5978
          %v6043 = vrcp.pop %v5979
          %v6044 = vrcp.pop %v5980
          %v6045 = vrcp.pop %v5981
          %v6046 = vrcp.pop %v5982
          %v6047 = vrcp.pop %v5983
          %v6048 = vrcp.pop %v5984
          %v6049 = vrcp.pop %v5985
          %v6050 = vrcp.pop %v5986
          %v6051 = vrcp.pop %v5987
          %v6052 = vrcp.pop %v5988
          %v6053 = vrcp.pop %v5989
          %v6054 = vrcp.pop %v5990
          %v6055 = vrcp.pop %v5991
          %v6056 = vrcp.pop %v5992
          %v6057 = vrcp.pop %v5993
          %v6058 = vrcp.pop %v5994
          %v6059 = vrcp.pop %v5995
          %v6060 = vrcp.pop %v5996
          %v6061 = vrcp.pop %v5997
          %v6062 = vrcp.pop %v5998
          %v6063 = vrcp.pop %v5999
          %v6064 = vrcp.pop %v6000
          %v6065 = vrcp.pop %v6001
          %v6066 = vrcp.pop %v6002
          %v6067 = vrcp.pop %v6003
          %v6068 = vrcp.pop %v6004
          %v6069 = vrcp.pop %v6005
          %v6070 = vrcp.pop %v6006
          %v6071 = vrcp.pop %v6007
          %v6072 = vrcp.pop %v6008
          %v6073 = vrcp.pop %v6009
          %v6074 = vld [vmem:[#allocation5] sm:$0xff]
          %v6075 = vld [vmem:[#allocation5 + $0x8] sm:$0xff]
          %v6076 = vld [vmem:[#allocation5 + $0x10] sm:$0xff]
          %v6077 = vld [vmem:[#allocation5 + $0x18] sm:$0xff]
          %v6078 = vld [vmem:[#allocation5 + $0x20] sm:$0xff]
          %v6079 = vld [vmem:[#allocation5 + $0x28] sm:$0xff]
          %v6080 = vld [vmem:[#allocation5 + $0x30] sm:$0xff]
          %v6081 = vld [vmem:[#allocation5 + $0x38] sm:$0xff]
          %v6082 = vld [vmem:[#allocation5 + $0x40] sm:$0xff]
          %v6083 = vld [vmem:[#allocation5 + $0x48] sm:$0xff]
          %v6084 = vld [vmem:[#allocation5 + $0x50] sm:$0xff]
          %v6085 = vld [vmem:[#allocation5 + $0x58] sm:$0xff]
          %v6086 = vld [vmem:[#allocation5 + $0x60] sm:$0xff]
          %v6087 = vld [vmem:[#allocation5 + $0x68] sm:$0xff]
          %v6088 = vld [vmem:[#allocation5 + $0x70] sm:$0xff]
          %v6089 = vld [vmem:[#allocation5 + $0x78] sm:$0xff]
          %v6090 = vld [vmem:[#allocation5 + $0x80] sm:$0xff]
          %v6091 = vld [vmem:[#allocation5 + $0x88] sm:$0xff]
          %v6092 = vld [vmem:[#allocation5 + $0x90] sm:$0xff]
          %v6093 = vld [vmem:[#allocation5 + $0x98] sm:$0xff]
          %v6094 = vld [vmem:[#allocation5 + $0xa0] sm:$0xff]
          %v6095 = vld [vmem:[#allocation5 + $0xa8] sm:$0xff]
          %v6096 = vld [vmem:[#allocation5 + $0xb0] sm:$0xff]
          %v6097 = vld [vmem:[#allocation5 + $0xb8] sm:$0xff]
          %v6098 = vld [vmem:[#allocation5 + $0xc0] sm:$0xff]
          %v6099 = vld [vmem:[#allocation5 + $0xc8] sm:$0xff]
          %v6100 = vld [vmem:[#allocation5 + $0xd0] sm:$0xff]
          %v6101 = vld [vmem:[#allocation5 + $0xd8] sm:$0xff]
          %v6102 = vld [vmem:[#allocation5 + $0xe0] sm:$0xff]
          %v6103 = vld [vmem:[#allocation5 + $0xe8] sm:$0xff]
          %v6104 = vld [vmem:[#allocation5 + $0xf0] sm:$0xff]
          %v6105 = vld [vmem:[#allocation5 + $0xf8] sm:$0xff]
          %v6106 = vld [vmem:[#allocation5 + $0x100] sm:$0xff]
          %v6107 = vld [vmem:[#allocation5 + $0x108] sm:$0xff]
          %v6108 = vld [vmem:[#allocation5 + $0x110] sm:$0xff]
          %v6109 = vld [vmem:[#allocation5 + $0x118] sm:$0xff]
          %v6110 = vld [vmem:[#allocation5 + $0x120] sm:$0xff]
          %v6111 = vld [vmem:[#allocation5 + $0x128] sm:$0xff]
          %v6112 = vld [vmem:[#allocation5 + $0x130] sm:$0xff]
          %v6113 = vld [vmem:[#allocation5 + $0x138] sm:$0xff]
          %v6114 = vld [vmem:[#allocation5 + $0x140] sm:$0xff]
          %v6115 = vld [vmem:[#allocation5 + $0x148] sm:$0xff]
          %v6116 = vld [vmem:[#allocation5 + $0x150] sm:$0xff]
          %v6117 = vld [vmem:[#allocation5 + $0x158] sm:$0xff]
          %v6118 = vld [vmem:[#allocation5 + $0x160] sm:$0xff]
          %v6119 = vld [vmem:[#allocation5 + $0x168] sm:$0xff]
          %v6120 = vld [vmem:[#allocation5 + $0x170] sm:$0xff]
          %v6121 = vld [vmem:[#allocation5 + $0x178] sm:$0xff]
          %v6122 = vld [vmem:[#allocation5 + $0x180] sm:$0xff]
          %v6123 = vld [vmem:[#allocation5 + $0x188] sm:$0xff]
          %v6124 = vld [vmem:[#allocation5 + $0x190] sm:$0xff]
          %v6125 = vld [vmem:[#allocation5 + $0x198] sm:$0xff]
          %v6126 = vld [vmem:[#allocation5 + $0x1a0] sm:$0xff]
          %v6127 = vld [vmem:[#allocation5 + $0x1a8] sm:$0xff]
          %v6128 = vld [vmem:[#allocation5 + $0x1b0] sm:$0xff]
          %v6129 = vld [vmem:[#allocation5 + $0x1b8] sm:$0xff]
          %v6130 = vld [vmem:[#allocation5 + $0x1c0] sm:$0xff]
          %v6131 = vld [vmem:[#allocation5 + $0x1c8] sm:$0xff]
          %v6132 = vld [vmem:[#allocation5 + $0x1d0] sm:$0xff]
          %v6133 = vld [vmem:[#allocation5 + $0x1d8] sm:$0xff]
          %v6134 = vld [vmem:[#allocation5 + $0x1e0] sm:$0xff]
          %v6135 = vld [vmem:[#allocation5 + $0x1e8] sm:$0xff]
          %v6136 = vld [vmem:[#allocation5 + $0x1f0] sm:$0xff]
          %v6137 = vld [vmem:[#allocation5 + $0x1f8] sm:$0xff]
          %6139 = vset.pattern.permute.xlu0 0
          %6140 = vperm.xlu0 %6139, %v6010
          %v6141 = vpop.permute.xlu0 %6140
          %6144 = vset.pattern.permute.xlu0 0
          %6145 = vperm.xlu0 %6144, %v6011
          %v6146 = vpop.permute.xlu0 %6145
          %6149 = vset.pattern.permute.xlu0 0
          %6150 = vperm.xlu0 %6149, %v6012
          %v6151 = vpop.permute.xlu0 %6150
          %6154 = vset.pattern.permute.xlu0 0
          %6155 = vperm.xlu0 %6154, %v6013
          %v6156 = vpop.permute.xlu0 %6155
          %6159 = vset.pattern.permute.xlu0 0
          %6160 = vperm.xlu0 %6159, %v6014
          %v6161 = vpop.permute.xlu0 %6160
          %6164 = vset.pattern.permute.xlu0 0
          %6165 = vperm.xlu0 %6164, %v6015
          %v6166 = vpop.permute.xlu0 %6165
          %6169 = vset.pattern.permute.xlu0 0
          %6170 = vperm.xlu0 %6169, %v6016
          %v6171 = vpop.permute.xlu0 %6170
          %6174 = vset.pattern.permute.xlu0 0
          %6175 = vperm.xlu0 %6174, %v6017
          %v6176 = vpop.permute.xlu0 %6175
          %6179 = vset.pattern.permute.xlu0 0
          %6180 = vperm.xlu0 %6179, %v6018
          %v6181 = vpop.permute.xlu0 %6180
          %6184 = vset.pattern.permute.xlu0 0
          %6185 = vperm.xlu0 %6184, %v6019
          %v6186 = vpop.permute.xlu0 %6185
          %6189 = vset.pattern.permute.xlu0 0
          %6190 = vperm.xlu0 %6189, %v6020
          %v6191 = vpop.permute.xlu0 %6190
          %6194 = vset.pattern.permute.xlu0 0
          %6195 = vperm.xlu0 %6194, %v6021
          %v6196 = vpop.permute.xlu0 %6195
          %6199 = vset.pattern.permute.xlu0 0
          %6200 = vperm.xlu0 %6199, %v6022
          %v6201 = vpop.permute.xlu0 %6200
          %6204 = vset.pattern.permute.xlu0 0
          %6205 = vperm.xlu0 %6204, %v6023
          %v6206 = vpop.permute.xlu0 %6205
          %6209 = vset.pattern.permute.xlu0 0
          %6210 = vperm.xlu0 %6209, %v6024
          %v6211 = vpop.permute.xlu0 %6210
          %6214 = vset.pattern.permute.xlu0 0
          %6215 = vperm.xlu0 %6214, %v6025
          %v6216 = vpop.permute.xlu0 %6215
          %6219 = vset.pattern.permute.xlu0 0
          %6220 = vperm.xlu0 %6219, %v6026
          %v6221 = vpop.permute.xlu0 %6220
          %6224 = vset.pattern.permute.xlu0 0
          %6225 = vperm.xlu0 %6224, %v6027
          %v6226 = vpop.permute.xlu0 %6225
          %6229 = vset.pattern.permute.xlu0 0
          %6230 = vperm.xlu0 %6229, %v6028
          %v6231 = vpop.permute.xlu0 %6230
          %6234 = vset.pattern.permute.xlu0 0
          %6235 = vperm.xlu0 %6234, %v6029
          %v6236 = vpop.permute.xlu0 %6235
          %6239 = vset.pattern.permute.xlu0 0
          %6240 = vperm.xlu0 %6239, %v6030
          %v6241 = vpop.permute.xlu0 %6240
          %6244 = vset.pattern.permute.xlu0 0
          %6245 = vperm.xlu0 %6244, %v6031
          %v6246 = vpop.permute.xlu0 %6245
          %6249 = vset.pattern.permute.xlu0 0
          %6250 = vperm.xlu0 %6249, %v6032
          %v6251 = vpop.permute.xlu0 %6250
          %6254 = vset.pattern.permute.xlu0 0
          %6255 = vperm.xlu0 %6254, %v6033
          %v6256 = vpop.permute.xlu0 %6255
          %6259 = vset.pattern.permute.xlu0 0
          %6260 = vperm.xlu0 %6259, %v6034
          %v6261 = vpop.permute.xlu0 %6260
          %6264 = vset.pattern.permute.xlu0 0
          %6265 = vperm.xlu0 %6264, %v6035
          %v6266 = vpop.permute.xlu0 %6265
          %6269 = vset.pattern.permute.xlu0 0
          %6270 = vperm.xlu0 %6269, %v6036
          %v6271 = vpop.permute.xlu0 %6270
          %6274 = vset.pattern.permute.xlu0 0
          %6275 = vperm.xlu0 %6274, %v6037
          %v6276 = vpop.permute.xlu0 %6275
          %6279 = vset.pattern.permute.xlu0 0
          %6280 = vperm.xlu0 %6279, %v6038
          %v6281 = vpop.permute.xlu0 %6280
          %6284 = vset.pattern.permute.xlu0 0
          %6285 = vperm.xlu0 %6284, %v6039
          %v6286 = vpop.permute.xlu0 %6285
          %6289 = vset.pattern.permute.xlu0 0
          %6290 = vperm.xlu0 %6289, %v6040
          %v6291 = vpop.permute.xlu0 %6290
          %6294 = vset.pattern.permute.xlu0 0
          %6295 = vperm.xlu0 %6294, %v6041
          %v6296 = vpop.permute.xlu0 %6295
          %6299 = vset.pattern.permute.xlu0 0
          %6300 = vperm.xlu0 %6299, %v6042
          %v6301 = vpop.permute.xlu0 %6300
          %6304 = vset.pattern.permute.xlu0 0
          %6305 = vperm.xlu0 %6304, %v6043
          %v6306 = vpop.permute.xlu0 %6305
          %6309 = vset.pattern.permute.xlu0 0
          %6310 = vperm.xlu0 %6309, %v6044
          %v6311 = vpop.permute.xlu0 %6310
          %6314 = vset.pattern.permute.xlu0 0
          %6315 = vperm.xlu0 %6314, %v6045
          %v6316 = vpop.permute.xlu0 %6315
          %6319 = vset.pattern.permute.xlu0 0
          %6320 = vperm.xlu0 %6319, %v6046
          %v6321 = vpop.permute.xlu0 %6320
          %6324 = vset.pattern.permute.xlu0 0
          %6325 = vperm.xlu0 %6324, %v6047
          %v6326 = vpop.permute.xlu0 %6325
          %6329 = vset.pattern.permute.xlu0 0
          %6330 = vperm.xlu0 %6329, %v6048
          %v6331 = vpop.permute.xlu0 %6330
          %6334 = vset.pattern.permute.xlu0 0
          %6335 = vperm.xlu0 %6334, %v6049
          %v6336 = vpop.permute.xlu0 %6335
          %6339 = vset.pattern.permute.xlu0 0
          %6340 = vperm.xlu0 %6339, %v6050
          %v6341 = vpop.permute.xlu0 %6340
          %6344 = vset.pattern.permute.xlu0 0
          %6345 = vperm.xlu0 %6344, %v6051
          %v6346 = vpop.permute.xlu0 %6345
          %6349 = vset.pattern.permute.xlu0 0
          %6350 = vperm.xlu0 %6349, %v6052
          %v6351 = vpop.permute.xlu0 %6350
          %6354 = vset.pattern.permute.xlu0 0
          %6355 = vperm.xlu0 %6354, %v6053
          %v6356 = vpop.permute.xlu0 %6355
          %6359 = vset.pattern.permute.xlu0 0
          %6360 = vperm.xlu0 %6359, %v6054
          %v6361 = vpop.permute.xlu0 %6360
          %6364 = vset.pattern.permute.xlu0 0
          %6365 = vperm.xlu0 %6364, %v6055
          %v6366 = vpop.permute.xlu0 %6365
          %6369 = vset.pattern.permute.xlu0 0
          %6370 = vperm.xlu0 %6369, %v6056
          %v6371 = vpop.permute.xlu0 %6370
          %6374 = vset.pattern.permute.xlu0 0
          %6375 = vperm.xlu0 %6374, %v6057
          %v6376 = vpop.permute.xlu0 %6375
          %6379 = vset.pattern.permute.xlu0 0
          %6380 = vperm.xlu0 %6379, %v6058
          %v6381 = vpop.permute.xlu0 %6380
          %6384 = vset.pattern.permute.xlu0 0
          %6385 = vperm.xlu0 %6384, %v6059
          %v6386 = vpop.permute.xlu0 %6385
          %6389 = vset.pattern.permute.xlu0 0
          %6390 = vperm.xlu0 %6389, %v6060
          %v6391 = vpop.permute.xlu0 %6390
          %6394 = vset.pattern.permute.xlu0 0
          %6395 = vperm.xlu0 %6394, %v6061
          %v6396 = vpop.permute.xlu0 %6395
          %6399 = vset.pattern.permute.xlu0 0
          %6400 = vperm.xlu0 %6399, %v6062
          %v6401 = vpop.permute.xlu0 %6400
          %6404 = vset.pattern.permute.xlu0 0
          %6405 = vperm.xlu0 %6404, %v6063
          %v6406 = vpop.permute.xlu0 %6405
          %6409 = vset.pattern.permute.xlu0 0
          %6410 = vperm.xlu0 %6409, %v6064
          %v6411 = vpop.permute.xlu0 %6410
          %6414 = vset.pattern.permute.xlu0 0
          %6415 = vperm.xlu0 %6414, %v6065
          %v6416 = vpop.permute.xlu0 %6415
          %6419 = vset.pattern.permute.xlu0 0
          %6420 = vperm.xlu0 %6419, %v6066
          %v6421 = vpop.permute.xlu0 %6420
          %6424 = vset.pattern.permute.xlu0 0
          %6425 = vperm.xlu0 %6424, %v6067
          %v6426 = vpop.permute.xlu0 %6425
          %6429 = vset.pattern.permute.xlu0 0
          %6430 = vperm.xlu0 %6429, %v6068
          %v6431 = vpop.permute.xlu0 %6430
          %6434 = vset.pattern.permute.xlu0 0
          %6435 = vperm.xlu0 %6434, %v6069
          %v6436 = vpop.permute.xlu0 %6435
          %6439 = vset.pattern.permute.xlu0 0
          %6440 = vperm.xlu0 %6439, %v6070
          %v6441 = vpop.permute.xlu0 %6440
          %6444 = vset.pattern.permute.xlu0 0
          %6445 = vperm.xlu0 %6444, %v6071
          %v6446 = vpop.permute.xlu0 %6445
          %6449 = vset.pattern.permute.xlu0 0
          %6450 = vperm.xlu0 %6449, %v6072
          %v6451 = vpop.permute.xlu0 %6450
          %6454 = vset.pattern.permute.xlu0 0
          %6455 = vperm.xlu0 %6454, %v6073
          %v6456 = vpop.permute.xlu0 %6455
          %v6458 = vmul.f32 %v6074, %v6141
          %v6459 = vmul.f32 %v6075, %v6146
          %v6460 = vmul.f32 %v6076, %v6151
          %v6461 = vmul.f32 %v6077, %v6156
          %v6462 = vmul.f32 %v6078, %v6161
          %v6463 = vmul.f32 %v6079, %v6166
          %v6464 = vmul.f32 %v6080, %v6171
          %v6465 = vmul.f32 %v6081, %v6176
          %v6466 = vmul.f32 %v6082, %v6181
          %v6467 = vmul.f32 %v6083, %v6186
          %v6468 = vmul.f32 %v6084, %v6191
          %v6469 = vmul.f32 %v6085, %v6196
          %v6470 = vmul.f32 %v6086, %v6201
          %v6471 = vmul.f32 %v6087, %v6206
          %v6472 = vmul.f32 %v6088, %v6211
          %v6473 = vmul.f32 %v6089, %v6216
          %v6474 = vmul.f32 %v6090, %v6221
          %v6475 = vmul.f32 %v6091, %v6226
          %v6476 = vmul.f32 %v6092, %v6231
          %v6477 = vmul.f32 %v6093, %v6236
          %v6478 = vmul.f32 %v6094, %v6241
          %v6479 = vmul.f32 %v6095, %v6246
          %v6480 = vmul.f32 %v6096, %v6251
          %v6481 = vmul.f32 %v6097, %v6256
          %v6482 = vmul.f32 %v6098, %v6261
          %v6483 = vmul.f32 %v6099, %v6266
          %v6484 = vmul.f32 %v6100, %v6271
          %v6485 = vmul.f32 %v6101, %v6276
          %v6486 = vmul.f32 %v6102, %v6281
          %v6487 = vmul.f32 %v6103, %v6286
          %v6488 = vmul.f32 %v6104, %v6291
          %v6489 = vmul.f32 %v6105, %v6296
          %v6490 = vmul.f32 %v6106, %v6301
          %v6491 = vmul.f32 %v6107, %v6306
          %v6492 = vmul.f32 %v6108, %v6311
          %v6493 = vmul.f32 %v6109, %v6316
          %v6494 = vmul.f32 %v6110, %v6321
          %v6495 = vmul.f32 %v6111, %v6326
          %v6496 = vmul.f32 %v6112, %v6331
          %v6497 = vmul.f32 %v6113, %v6336
          %v6498 = vmul.f32 %v6114, %v6341
          %v6499 = vmul.f32 %v6115, %v6346
          %v6500 = vmul.f32 %v6116, %v6351
          %v6501 = vmul.f32 %v6117, %v6356
          %v6502 = vmul.f32 %v6118, %v6361
          %v6503 = vmul.f32 %v6119, %v6366
          %v6504 = vmul.f32 %v6120, %v6371
          %v6505 = vmul.f32 %v6121, %v6376
          %v6506 = vmul.f32 %v6122, %v6381
          %v6507 = vmul.f32 %v6123, %v6386
          %v6508 = vmul.f32 %v6124, %v6391
          %v6509 = vmul.f32 %v6125, %v6396
          %v6510 = vmul.f32 %v6126, %v6401
          %v6511 = vmul.f32 %v6127, %v6406
          %v6512 = vmul.f32 %v6128, %v6411
          %v6513 = vmul.f32 %v6129, %v6416
          %v6514 = vmul.f32 %v6130, %v6421
          %v6515 = vmul.f32 %v6131, %v6426
          %v6516 = vmul.f32 %v6132, %v6431
          %v6517 = vmul.f32 %v6133, %v6436
          %v6518 = vmul.f32 %v6134, %v6441
          %v6519 = vmul.f32 %v6135, %v6446
          %v6520 = vmul.f32 %v6136, %v6451
          %v6521 = vmul.f32 %v6137, %v6456
          %6522 = vxpose.xlu0.b32.start [1/16] %v6458, 128
          %6523 = vxpose.xlu0.b32.cont [2/16] %v6459, 128
          %6524 = vxpose.xlu0.b32.cont [3/16] %v6460, 128
          %6525 = vxpose.xlu0.b32.cont [4/16] %v6461, 128
          %6526 = vxpose.xlu0.b32.cont [5/16] 0.0, 128
          %6527 = vxpose.xlu0.b32.cont [6/16] 0.0, 128
          %6528 = vxpose.xlu0.b32.cont [7/16] 0.0, 128
          %6529 = vxpose.xlu0.b32.cont [8/16] 0.0, 128
          %6530 = vxpose.xlu0.b32.cont [9/16] 0.0, 128
          %6531 = vxpose.xlu0.b32.cont [10/16] 0.0, 128
          %6532 = vxpose.xlu0.b32.cont [11/16] 0.0, 128
          %6533 = vxpose.xlu0.b32.cont [12/16] 0.0, 128
          %6534 = vxpose.xlu0.b32.cont [13/16] 0.0, 128
          %6535 = vxpose.xlu0.b32.cont [14/16] 0.0, 128
          %6536 = vxpose.xlu0.b32.cont [15/16] 0.0, 128
          %6537 = vxpose.xlu0.b32.end [16/16] 0.0, 128
          %v6538 = vpop.trf.xlu0
          %v6539 = vpop.trf.xlu0
          %v6540 = vpop.trf.xlu0
          %v6541 = vpop.trf.xlu0
          %v6542 = vpop.trf.xlu0
          %v6543 = vpop.trf.xlu0
          %v6544 = vpop.trf.xlu0
          %v6545 = vpop.trf.xlu0
          %v6546 = vpop.trf.xlu0
          %v6547 = vpop.trf.xlu0
          %v6548 = vpop.trf.xlu0
          %v6549 = vpop.trf.xlu0
          %v6550 = vpop.trf.xlu0
          %v6551 = vpop.trf.xlu0
          %v6552 = vpop.trf.xlu0
          %v6553 = vpop.trf.xlu0
          %6554 = vxpose.xlu0.b32.start [1/16] %v6462, 128
          %6555 = vxpose.xlu0.b32.cont [2/16] %v6463, 128
          %6556 = vxpose.xlu0.b32.cont [3/16] %v6464, 128
          %6557 = vxpose.xlu0.b32.cont [4/16] %v6465, 128
          %6558 = vxpose.xlu0.b32.cont [5/16] 0.0, 128
          %6559 = vxpose.xlu0.b32.cont [6/16] 0.0, 128
          %6560 = vxpose.xlu0.b32.cont [7/16] 0.0, 128
          %6561 = vxpose.xlu0.b32.cont [8/16] 0.0, 128
          %6562 = vxpose.xlu0.b32.cont [9/16] 0.0, 128
          %6563 = vxpose.xlu0.b32.cont [10/16] 0.0, 128
          %6564 = vxpose.xlu0.b32.cont [11/16] 0.0, 128
          %6565 = vxpose.xlu0.b32.cont [12/16] 0.0, 128
          %6566 = vxpose.xlu0.b32.cont [13/16] 0.0, 128
          %6567 = vxpose.xlu0.b32.cont [14/16] 0.0, 128
          %6568 = vxpose.xlu0.b32.cont [15/16] 0.0, 128
          %6569 = vxpose.xlu0.b32.end [16/16] 0.0, 128
          %v6570 = vpop.trf.xlu0
          %v6571 = vpop.trf.xlu0
          %v6572 = vpop.trf.xlu0
          %v6573 = vpop.trf.xlu0
          %v6574 = vpop.trf.xlu0
          %v6575 = vpop.trf.xlu0
          %v6576 = vpop.trf.xlu0
          %v6577 = vpop.trf.xlu0
          %v6578 = vpop.trf.xlu0
          %v6579 = vpop.trf.xlu0
          %v6580 = vpop.trf.xlu0
          %v6581 = vpop.trf.xlu0
          %v6582 = vpop.trf.xlu0
          %v6583 = vpop.trf.xlu0
          %v6584 = vpop.trf.xlu0
          %v6585 = vpop.trf.xlu0
          %6586 = vxpose.xlu0.b32.start [1/16] %v6466, 128
          %6587 = vxpose.xlu0.b32.cont [2/16] %v6467, 128
          %6588 = vxpose.xlu0.b32.cont [3/16] %v6468, 128
          %6589 = vxpose.xlu0.b32.cont [4/16] %v6469, 128
          %6590 = vxpose.xlu0.b32.cont [5/16] 0.0, 128
          %6591 = vxpose.xlu0.b32.cont [6/16] 0.0, 128
          %6592 = vxpose.xlu0.b32.cont [7/16] 0.0, 128
          %6593 = vxpose.xlu0.b32.cont [8/16] 0.0, 128
          %6594 = vxpose.xlu0.b32.cont [9/16] 0.0, 128
          %6595 = vxpose.xlu0.b32.cont [10/16] 0.0, 128
          %6596 = vxpose.xlu0.b32.cont [11/16] 0.0, 128
          %6597 = vxpose.xlu0.b32.cont [12/16] 0.0, 128
          %6598 = vxpose.xlu0.b32.cont [13/16] 0.0, 128
          %6599 = vxpose.xlu0.b32.cont [14/16] 0.0, 128
          %6600 = vxpose.xlu0.b32.cont [15/16] 0.0, 128
          %6601 = vxpose.xlu0.b32.end [16/16] 0.0, 128
          %v6602 = vpop.trf.xlu0
          %v6603 = vpop.trf.xlu0
          %v6604 = vpop.trf.xlu0
          %v6605 = vpop.trf.xlu0
          %v6606 = vpop.trf.xlu0
          %v6607 = vpop.trf.xlu0
          %v6608 = vpop.trf.xlu0
          %v6609 = vpop.trf.xlu0
          %v6610 = vpop.trf.xlu0
          %v6611 = vpop.trf.xlu0
          %v6612 = vpop.trf.xlu0
          %v6613 = vpop.trf.xlu0
          %v6614 = vpop.trf.xlu0
          %v6615 = vpop.trf.xlu0
          %v6616 = vpop.trf.xlu0
          %v6617 = vpop.trf.xlu0
          %6618 = vxpose.xlu0.b32.start [1/16] %v6470, 128
          %6619 = vxpose.xlu0.b32.cont [2/16] %v6471, 128
          %6620 = vxpose.xlu0.b32.cont [3/16] %v6472, 128
          %6621 = vxpose.xlu0.b32.cont [4/16] %v6473, 128
          %6622 = vxpose.xlu0.b32.cont [5/16] 0.0, 128
          %6623 = vxpose.xlu0.b32.cont [6/16] 0.0, 128
          %6624 = vxpose.xlu0.b32.cont [7/16] 0.0, 128
          %6625 = vxpose.xlu0.b32.cont [8/16] 0.0, 128
          %6626 = vxpose.xlu0.b32.cont [9/16] 0.0, 128
          %6627 = vxpose.xlu0.b32.cont [10/16] 0.0, 128
          %6628 = vxpose.xlu0.b32.cont [11/16] 0.0, 128
          %6629 = vxpose.xlu0.b32.cont [12/16] 0.0, 128
          %6630 = vxpose.xlu0.b32.cont [13/16] 0.0, 128
          %6631 = vxpose.xlu0.b32.cont [14/16] 0.0, 128
          %6632 = vxpose.xlu0.b32.cont [15/16] 0.0, 128
          %6633 = vxpose.xlu0.b32.end [16/16] 0.0, 128
          %v6634 = vpop.trf.xlu0
          %v6635 = vpop.trf.xlu0
          %v6636 = vpop.trf.xlu0
          %v6637 = vpop.trf.xlu0
          %v6638 = vpop.trf.xlu0
          %v6639 = vpop.trf.xlu0
          %v6640 = vpop.trf.xlu0
          %v6641 = vpop.trf.xlu0
          %v6642 = vpop.trf.xlu0
          %v6643 = vpop.trf.xlu0
          %v6644 = vpop.trf.xlu0
          %v6645 = vpop.trf.xlu0
          %v6646 = vpop.trf.xlu0
          %v6647 = vpop.trf.xlu0
          %v6648 = vpop.trf.xlu0
          %v6649 = vpop.trf.xlu0
          %6650 = vxpose.xlu0.b32.start [1/16] %v6474, 128
          %6651 = vxpose.xlu0.b32.cont [2/16] %v6475, 128
          %6652 = vxpose.xlu0.b32.cont [3/16] %v6476, 128
          %6653 = vxpose.xlu0.b32.cont [4/16] %v6477, 128
          %6654 = vxpose.xlu0.b32.cont [5/16] 0.0, 128
          %6655 = vxpose.xlu0.b32.cont [6/16] 0.0, 128
          %6656 = vxpose.xlu0.b32.cont [7/16] 0.0, 128
          %6657 = vxpose.xlu0.b32.cont [8/16] 0.0, 128
          %6658 = vxpose.xlu0.b32.cont [9/16] 0.0, 128
          %6659 = vxpose.xlu0.b32.cont [10/16] 0.0, 128
          %6660 = vxpose.xlu0.b32.cont [11/16] 0.0, 128
          %6661 = vxpose.xlu0.b32.cont [12/16] 0.0, 128
          %6662 = vxpose.xlu0.b32.cont [13/16] 0.0, 128
          %6663 = vxpose.xlu0.b32.cont [14/16] 0.0, 128
          %6664 = vxpose.xlu0.b32.cont [15/16] 0.0, 128
          %6665 = vxpose.xlu0.b32.end [16/16] 0.0, 128
          %v6666 = vpop.trf.xlu0
          %v6667 = vpop.trf.xlu0
          %v6668 = vpop.trf.xlu0
          %v6669 = vpop.trf.xlu0
          %v6670 = vpop.trf.xlu0
          %v6671 = vpop.trf.xlu0
          %v6672 = vpop.trf.xlu0
          %v6673 = vpop.trf.xlu0
          %v6674 = vpop.trf.xlu0
          %v6675 = vpop.trf.xlu0
          %v6676 = vpop.trf.xlu0
          %v6677 = vpop.trf.xlu0
          %v6678 = vpop.trf.xlu0
          %v6679 = vpop.trf.xlu0
          %v6680 = vpop.trf.xlu0
          %v6681 = vpop.trf.xlu0
          %6682 = vxpose.xlu0.b32.start [1/16] %v6478, 128
          %6683 = vxpose.xlu0.b32.cont [2/16] %v6479, 128
          %6684 = vxpose.xlu0.b32.cont [3/16] %v6480, 128
          %6685 = vxpose.xlu0.b32.cont [4/16] %v6481, 128
          %6686 = vxpose.xlu0.b32.cont [5/16] 0.0, 128
          %6687 = vxpose.xlu0.b32.cont [6/16] 0.0, 128
          %6688 = vxpose.xlu0.b32.cont [7/16] 0.0, 128
          %6689 = vxpose.xlu0.b32.cont [8/16] 0.0, 128
          %6690 = vxpose.xlu0.b32.cont [9/16] 0.0, 128
          %6691 = vxpose.xlu0.b32.cont [10/16] 0.0, 128
          %6692 = vxpose.xlu0.b32.cont [11/16] 0.0, 128
          %6693 = vxpose.xlu0.b32.cont [12/16] 0.0, 128
          %6694 = vxpose.xlu0.b32.cont [13/16] 0.0, 128
          %6695 = vxpose.xlu0.b32.cont [14/16] 0.0, 128
          %6696 = vxpose.xlu0.b32.cont [15/16] 0.0, 128
          %6697 = vxpose.xlu0.b32.end [16/16] 0.0, 128
          %v6698 = vpop.trf.xlu0
          %v6699 = vpop.trf.xlu0
          %v6700 = vpop.trf.xlu0
          %v6701 = vpop.trf.xlu0
          %v6702 = vpop.trf.xlu0
          %v6703 = vpop.trf.xlu0
          %v6704 = vpop.trf.xlu0
          %v6705 = vpop.trf.xlu0
          %v6706 = vpop.trf.xlu0
          %v6707 = vpop.trf.xlu0
          %v6708 = vpop.trf.xlu0
          %v6709 = vpop.trf.xlu0
          %v6710 = vpop.trf.xlu0
          %v6711 = vpop.trf.xlu0
          %v6712 = vpop.trf.xlu0
          %v6713 = vpop.trf.xlu0
          %6714 = vxpose.xlu0.b32.start [1/16] %v6482, 128
          %6715 = vxpose.xlu0.b32.cont [2/16] %v6483, 128
          %6716 = vxpose.xlu0.b32.cont [3/16] %v6484, 128
          %6717 = vxpose.xlu0.b32.cont [4/16] %v6485, 128
          %6718 = vxpose.xlu0.b32.cont [5/16] 0.0, 128
          %6719 = vxpose.xlu0.b32.cont [6/16] 0.0, 128
          %6720 = vxpose.xlu0.b32.cont [7/16] 0.0, 128
          %6721 = vxpose.xlu0.b32.cont [8/16] 0.0, 128
          %6722 = vxpose.xlu0.b32.cont [9/16] 0.0, 128
          %6723 = vxpose.xlu0.b32.cont [10/16] 0.0, 128
          %6724 = vxpose.xlu0.b32.cont [11/16] 0.0, 128
          %6725 = vxpose.xlu0.b32.cont [12/16] 0.0, 128
          %6726 = vxpose.xlu0.b32.cont [13/16] 0.0, 128
          %6727 = vxpose.xlu0.b32.cont [14/16] 0.0, 128
          %6728 = vxpose.xlu0.b32.cont [15/16] 0.0, 128
          %6729 = vxpose.xlu0.b32.end [16/16] 0.0, 128
          %v6730 = vpop.trf.xlu0
          %v6731 = vpop.trf.xlu0
          %v6732 = vpop.trf.xlu0
          %v6733 = vpop.trf.xlu0
          %v6734 = vpop.trf.xlu0
          %v6735 = vpop.trf.xlu0
          %v6736 = vpop.trf.xlu0
          %v6737 = vpop.trf.xlu0
          %v6738 = vpop.trf.xlu0
          %v6739 = vpop.trf.xlu0
          %v6740 = vpop.trf.xlu0
          %v6741 = vpop.trf.xlu0
          %v6742 = vpop.trf.xlu0
          %v6743 = vpop.trf.xlu0
          %v6744 = vpop.trf.xlu0
          %v6745 = vpop.trf.xlu0
          %6746 = vxpose.xlu0.b32.start [1/16] %v6486, 128
          %6747 = vxpose.xlu0.b32.cont [2/16] %v6487, 128
          %6748 = vxpose.xlu0.b32.cont [3/16] %v6488, 128
          %6749 = vxpose.xlu0.b32.cont [4/16] %v6489, 128
          %6750 = vxpose.xlu0.b32.cont [5/16] 0.0, 128
          %6751 = vxpose.xlu0.b32.cont [6/16] 0.0, 128
          %6752 = vxpose.xlu0.b32.cont [7/16] 0.0, 128
          %6753 = vxpose.xlu0.b32.cont [8/16] 0.0, 128
          %6754 = vxpose.xlu0.b32.cont [9/16] 0.0, 128
          %6755 = vxpose.xlu0.b32.cont [10/16] 0.0, 128
          %6756 = vxpose.xlu0.b32.cont [11/16] 0.0, 128
          %6757 = vxpose.xlu0.b32.cont [12/16] 0.0, 128
          %6758 = vxpose.xlu0.b32.cont [13/16] 0.0, 128
          %6759 = vxpose.xlu0.b32.cont [14/16] 0.0, 128
          %6760 = vxpose.xlu0.b32.cont [15/16] 0.0, 128
          %6761 = vxpose.xlu0.b32.end [16/16] 0.0, 128
          %v6762 = vpop.trf.xlu0
          %v6763 = vpop.trf.xlu0
          %v6764 = vpop.trf.xlu0
          %v6765 = vpop.trf.xlu0
          %v6766 = vpop.trf.xlu0
          %v6767 = vpop.trf.xlu0
          %v6768 = vpop.trf.xlu0
          %v6769 = vpop.trf.xlu0
          %v6770 = vpop.trf.xlu0
          %v6771 = vpop.trf.xlu0
          %v6772 = vpop.trf.xlu0
          %v6773 = vpop.trf.xlu0
          %v6774 = vpop.trf.xlu0
          %v6775 = vpop.trf.xlu0
          %v6776 = vpop.trf.xlu0
          %v6777 = vpop.trf.xlu0
          %6778 = vxpose.xlu0.b32.start [1/16] %v6490, 128
          %6779 = vxpose.xlu0.b32.cont [2/16] %v6491, 128
          %6780 = vxpose.xlu0.b32.cont [3/16] %v6492, 128
          %6781 = vxpose.xlu0.b32.cont [4/16] %v6493, 128
          %6782 = vxpose.xlu0.b32.cont [5/16] 0.0, 128
          %6783 = vxpose.xlu0.b32.cont [6/16] 0.0, 128
          %6784 = vxpose.xlu0.b32.cont [7/16] 0.0, 128
          %6785 = vxpose.xlu0.b32.cont [8/16] 0.0, 128
          %6786 = vxpose.xlu0.b32.cont [9/16] 0.0, 128
          %6787 = vxpose.xlu0.b32.cont [10/16] 0.0, 128
          %6788 = vxpose.xlu0.b32.cont [11/16] 0.0, 128
          %6789 = vxpose.xlu0.b32.cont [12/16] 0.0, 128
          %6790 = vxpose.xlu0.b32.cont [13/16] 0.0, 128
          %6791 = vxpose.xlu0.b32.cont [14/16] 0.0, 128
          %6792 = vxpose.xlu0.b32.cont [15/16] 0.0, 128
          %6793 = vxpose.xlu0.b32.end [16/16] 0.0, 128
          %v6794 = vpop.trf.xlu0
          %v6795 = vpop.trf.xlu0
          %v6796 = vpop.trf.xlu0
          %v6797 = vpop.trf.xlu0
          %v6798 = vpop.trf.xlu0
          %v6799 = vpop.trf.xlu0
          %v6800 = vpop.trf.xlu0
          %v6801 = vpop.trf.xlu0
          %v6802 = vpop.trf.xlu0
          %v6803 = vpop.trf.xlu0
          %v6804 = vpop.trf.xlu0
          %v6805 = vpop.trf.xlu0
          %v6806 = vpop.trf.xlu0
          %v6807 = vpop.trf.xlu0
          %v6808 = vpop.trf.xlu0
          %v6809 = vpop.trf.xlu0
          %6810 = vxpose.xlu0.b32.start [1/16] %v6494, 128
          %6811 = vxpose.xlu0.b32.cont [2/16] %v6495, 128
          %6812 = vxpose.xlu0.b32.cont [3/16] %v6496, 128
          %6813 = vxpose.xlu0.b32.cont [4/16] %v6497, 128
          %6814 = vxpose.xlu0.b32.cont [5/16] 0.0, 128
          %6815 = vxpose.xlu0.b32.cont [6/16] 0.0, 128
          %6816 = vxpose.xlu0.b32.cont [7/16] 0.0, 128
          %6817 = vxpose.xlu0.b32.cont [8/16] 0.0, 128
          %6818 = vxpose.xlu0.b32.cont [9/16] 0.0, 128
          %6819 = vxpose.xlu0.b32.cont [10/16] 0.0, 128
          %6820 = vxpose.xlu0.b32.cont [11/16] 0.0, 128
          %6821 = vxpose.xlu0.b32.cont [12/16] 0.0, 128
          %6822 = vxpose.xlu0.b32.cont [13/16] 0.0, 128
          %6823 = vxpose.xlu0.b32.cont [14/16] 0.0, 128
          %6824 = vxpose.xlu0.b32.cont [15/16] 0.0, 128
          %6825 = vxpose.xlu0.b32.end [16/16] 0.0, 128
          %v6826 = vpop.trf.xlu0
          %v6827 = vpop.trf.xlu0
          %v6828 = vpop.trf.xlu0
          %v6829 = vpop.trf.xlu0
          %v6830 = vpop.trf.xlu0
          %v6831 = vpop.trf.xlu0
          %v6832 = vpop.trf.xlu0
          %v6833 = vpop.trf.xlu0
          %v6834 = vpop.trf.xlu0
          %v6835 = vpop.trf.xlu0
          %v6836 = vpop.trf.xlu0
          %v6837 = vpop.trf.xlu0
          %v6838 = vpop.trf.xlu0
          %v6839 = vpop.trf.xlu0
          %v6840 = vpop.trf.xlu0
          %v6841 = vpop.trf.xlu0
          %6842 = vxpose.xlu0.b32.start [1/16] %v6498, 128
          %6843 = vxpose.xlu0.b32.cont [2/16] %v6499, 128
          %6844 = vxpose.xlu0.b32.cont [3/16] %v6500, 128
          %6845 = vxpose.xlu0.b32.cont [4/16] %v6501, 128
          %6846 = vxpose.xlu0.b32.cont [5/16] 0.0, 128
          %6847 = vxpose.xlu0.b32.cont [6/16] 0.0, 128
          %6848 = vxpose.xlu0.b32.cont [7/16] 0.0, 128
          %6849 = vxpose.xlu0.b32.cont [8/16] 0.0, 128
          %6850 = vxpose.xlu0.b32.cont [9/16] 0.0, 128
          %6851 = vxpose.xlu0.b32.cont [10/16] 0.0, 128
          %6852 = vxpose.xlu0.b32.cont [11/16] 0.0, 128
          %6853 = vxpose.xlu0.b32.cont [12/16] 0.0, 128
          %6854 = vxpose.xlu0.b32.cont [13/16] 0.0, 128
          %6855 = vxpose.xlu0.b32.cont [14/16] 0.0, 128
          %6856 = vxpose.xlu0.b32.cont [15/16] 0.0, 128
          %6857 = vxpose.xlu0.b32.end [16/16] 0.0, 128
          %v6858 = vpop.trf.xlu0
          %v6859 = vpop.trf.xlu0
          %v6860 = vpop.trf.xlu0
          %v6861 = vpop.trf.xlu0
          %v6862 = vpop.trf.xlu0
          %v6863 = vpop.trf.xlu0
          %v6864 = vpop.trf.xlu0
          %v6865 = vpop.trf.xlu0
          %v6866 = vpop.trf.xlu0
          %v6867 = vpop.trf.xlu0
          %v6868 = vpop.trf.xlu0
          %v6869 = vpop.trf.xlu0
          %v6870 = vpop.trf.xlu0
          %v6871 = vpop.trf.xlu0
          %v6872 = vpop.trf.xlu0
          %v6873 = vpop.trf.xlu0
          %6874 = vxpose.xlu0.b32.start [1/16] %v6502, 128
          %6875 = vxpose.xlu0.b32.cont [2/16] %v6503, 128
          %6876 = vxpose.xlu0.b32.cont [3/16] %v6504, 128
          %6877 = vxpose.xlu0.b32.cont [4/16] %v6505, 128
          %6878 = vxpose.xlu0.b32.cont [5/16] 0.0, 128
          %6879 = vxpose.xlu0.b32.cont [6/16] 0.0, 128
          %6880 = vxpose.xlu0.b32.cont [7/16] 0.0, 128
          %6881 = vxpose.xlu0.b32.cont [8/16] 0.0, 128
          %6882 = vxpose.xlu0.b32.cont [9/16] 0.0, 128
          %6883 = vxpose.xlu0.b32.cont [10/16] 0.0, 128
          %6884 = vxpose.xlu0.b32.cont [11/16] 0.0, 128
          %6885 = vxpose.xlu0.b32.cont [12/16] 0.0, 128
          %6886 = vxpose.xlu0.b32.cont [13/16] 0.0, 128
          %6887 = vxpose.xlu0.b32.cont [14/16] 0.0, 128
          %6888 = vxpose.xlu0.b32.cont [15/16] 0.0, 128
          %6889 = vxpose.xlu0.b32.end [16/16] 0.0, 128
          %v6890 = vpop.trf.xlu0
          %v6891 = vpop.trf.xlu0
          %v6892 = vpop.trf.xlu0
          %v6893 = vpop.trf.xlu0
          %v6894 = vpop.trf.xlu0
          %v6895 = vpop.trf.xlu0
          %v6896 = vpop.trf.xlu0
          %v6897 = vpop.trf.xlu0
          %v6898 = vpop.trf.xlu0
          %v6899 = vpop.trf.xlu0
          %v6900 = vpop.trf.xlu0
          %v6901 = vpop.trf.xlu0
          %v6902 = vpop.trf.xlu0
          %v6903 = vpop.trf.xlu0
          %v6904 = vpop.trf.xlu0
          %v6905 = vpop.trf.xlu0
          %6906 = vxpose.xlu0.b32.start [1/16] %v6506, 128
          %6907 = vxpose.xlu0.b32.cont [2/16] %v6507, 128
          %6908 = vxpose.xlu0.b32.cont [3/16] %v6508, 128
          %6909 = vxpose.xlu0.b32.cont [4/16] %v6509, 128
          %6910 = vxpose.xlu0.b32.cont [5/16] 0.0, 128
          %6911 = vxpose.xlu0.b32.cont [6/16] 0.0, 128
          %6912 = vxpose.xlu0.b32.cont [7/16] 0.0, 128
          %6913 = vxpose.xlu0.b32.cont [8/16] 0.0, 128
          %6914 = vxpose.xlu0.b32.cont [9/16] 0.0, 128
          %6915 = vxpose.xlu0.b32.cont [10/16] 0.0, 128
          %6916 = vxpose.xlu0.b32.cont [11/16] 0.0, 128
          %6917 = vxpose.xlu0.b32.cont [12/16] 0.0, 128
          %6918 = vxpose.xlu0.b32.cont [13/16] 0.0, 128
          %6919 = vxpose.xlu0.b32.cont [14/16] 0.0, 128
          %6920 = vxpose.xlu0.b32.cont [15/16] 0.0, 128
          %6921 = vxpose.xlu0.b32.end [16/16] 0.0, 128
          %v6922 = vpop.trf.xlu0
          %v6923 = vpop.trf.xlu0
          %v6924 = vpop.trf.xlu0
          %v6925 = vpop.trf.xlu0
          %v6926 = vpop.trf.xlu0
          %v6927 = vpop.trf.xlu0
          %v6928 = vpop.trf.xlu0
          %v6929 = vpop.trf.xlu0
          %v6930 = vpop.trf.xlu0
          %v6931 = vpop.trf.xlu0
          %v6932 = vpop.trf.xlu0
          %v6933 = vpop.trf.xlu0
          %v6934 = vpop.trf.xlu0
          %v6935 = vpop.trf.xlu0
          %v6936 = vpop.trf.xlu0
          %v6937 = vpop.trf.xlu0
          %6938 = vxpose.xlu0.b32.start [1/16] %v6510, 128
          %6939 = vxpose.xlu0.b32.cont [2/16] %v6511, 128
          %6940 = vxpose.xlu0.b32.cont [3/16] %v6512, 128
          %6941 = vxpose.xlu0.b32.cont [4/16] %v6513, 128
          %6942 = vxpose.xlu0.b32.cont [5/16] 0.0, 128
          %6943 = vxpose.xlu0.b32.cont [6/16] 0.0, 128
          %6944 = vxpose.xlu0.b32.cont [7/16] 0.0, 128
          %6945 = vxpose.xlu0.b32.cont [8/16] 0.0, 128
          %6946 = vxpose.xlu0.b32.cont [9/16] 0.0, 128
          %6947 = vxpose.xlu0.b32.cont [10/16] 0.0, 128
          %6948 = vxpose.xlu0.b32.cont [11/16] 0.0, 128
          %6949 = vxpose.xlu0.b32.cont [12/16] 0.0, 128
          %6950 = vxpose.xlu0.b32.cont [13/16] 0.0, 128
          %6951 = vxpose.xlu0.b32.cont [14/16] 0.0, 128
          %6952 = vxpose.xlu0.b32.cont [15/16] 0.0, 128
          %6953 = vxpose.xlu0.b32.end [16/16] 0.0, 128
          %v6954 = vpop.trf.xlu0
          %v6955 = vpop.trf.xlu0
          %v6956 = vpop.trf.xlu0
          %v6957 = vpop.trf.xlu0
          %v6958 = vpop.trf.xlu0
          %v6959 = vpop.trf.xlu0
          %v6960 = vpop.trf.xlu0
          %v6961 = vpop.trf.xlu0
          %v6962 = vpop.trf.xlu0
          %v6963 = vpop.trf.xlu0
          %v6964 = vpop.trf.xlu0
          %v6965 = vpop.trf.xlu0
          %v6966 = vpop.trf.xlu0
          %v6967 = vpop.trf.xlu0
          %v6968 = vpop.trf.xlu0
          %v6969 = vpop.trf.xlu0
          %6970 = vxpose.xlu0.b32.start [1/16] %v6514, 128
          %6971 = vxpose.xlu0.b32.cont [2/16] %v6515, 128
          %6972 = vxpose.xlu0.b32.cont [3/16] %v6516, 128
          %6973 = vxpose.xlu0.b32.cont [4/16] %v6517, 128
          %6974 = vxpose.xlu0.b32.cont [5/16] 0.0, 128
          %6975 = vxpose.xlu0.b32.cont [6/16] 0.0, 128
          %6976 = vxpose.xlu0.b32.cont [7/16] 0.0, 128
          %6977 = vxpose.xlu0.b32.cont [8/16] 0.0, 128
          %6978 = vxpose.xlu0.b32.cont [9/16] 0.0, 128
          %6979 = vxpose.xlu0.b32.cont [10/16] 0.0, 128
          %6980 = vxpose.xlu0.b32.cont [11/16] 0.0, 128
          %6981 = vxpose.xlu0.b32.cont [12/16] 0.0, 128
          %6982 = vxpose.xlu0.b32.cont [13/16] 0.0, 128
          %6983 = vxpose.xlu0.b32.cont [14/16] 0.0, 128
          %6984 = vxpose.xlu0.b32.cont [15/16] 0.0, 128
          %6985 = vxpose.xlu0.b32.end [16/16] 0.0, 128
          %v6986 = vpop.trf.xlu0
          %v6987 = vpop.trf.xlu0
          %v6988 = vpop.trf.xlu0
          %v6989 = vpop.trf.xlu0
          %v6990 = vpop.trf.xlu0
          %v6991 = vpop.trf.xlu0
          %v6992 = vpop.trf.xlu0
          %v6993 = vpop.trf.xlu0
          %v6994 = vpop.trf.xlu0
          %v6995 = vpop.trf.xlu0
          %v6996 = vpop.trf.xlu0
          %v6997 = vpop.trf.xlu0
          %v6998 = vpop.trf.xlu0
          %v6999 = vpop.trf.xlu0
          %v7000 = vpop.trf.xlu0
          %v7001 = vpop.trf.xlu0
          %7002 = vxpose.xlu0.b32.start [1/16] %v6518, 128
          %7003 = vxpose.xlu0.b32.cont [2/16] %v6519, 128
          %7004 = vxpose.xlu0.b32.cont [3/16] %v6520, 128
          %7005 = vxpose.xlu0.b32.cont [4/16] %v6521, 128
          %7006 = vxpose.xlu0.b32.cont [5/16] 0.0, 128
          %7007 = vxpose.xlu0.b32.cont [6/16] 0.0, 128
          %7008 = vxpose.xlu0.b32.cont [7/16] 0.0, 128
          %7009 = vxpose.xlu0.b32.cont [8/16] 0.0, 128
          %7010 = vxpose.xlu0.b32.cont [9/16] 0.0, 128
          %7011 = vxpose.xlu0.b32.cont [10/16] 0.0, 128
          %7012 = vxpose.xlu0.b32.cont [11/16] 0.0, 128
          %7013 = vxpose.xlu0.b32.cont [12/16] 0.0, 128
          %7014 = vxpose.xlu0.b32.cont [13/16] 0.0, 128
          %7015 = vxpose.xlu0.b32.cont [14/16] 0.0, 128
          %7016 = vxpose.xlu0.b32.cont [15/16] 0.0, 128
          %7017 = vxpose.xlu0.b32.end [16/16] 0.0, 128
          %v7018 = vpop.trf.xlu0
          %v7019 = vpop.trf.xlu0
          %v7020 = vpop.trf.xlu0
          %v7021 = vpop.trf.xlu0
          %v7022 = vpop.trf.xlu0
          %v7023 = vpop.trf.xlu0
          %v7024 = vpop.trf.xlu0
          %v7025 = vpop.trf.xlu0
          %v7026 = vpop.trf.xlu0
          %v7027 = vpop.trf.xlu0
          %v7028 = vpop.trf.xlu0
          %v7029 = vpop.trf.xlu0
          %v7030 = vpop.trf.xlu0
          %v7031 = vpop.trf.xlu0
          %v7032 = vpop.trf.xlu0
          %v7033 = vpop.trf.xlu0
          %7034 = vxpose.xlu0.b32.start [1/16] %v6538, 128
          %7035 = vxpose.xlu0.b32.cont [2/16] %v6570, 128
          %7036 = vxpose.xlu0.b32.cont [3/16] %v6602, 128
          %7037 = vxpose.xlu0.b32.cont [4/16] %v6634, 128
          %7038 = vxpose.xlu0.b32.cont [5/16] %v6666, 128
          %7039 = vxpose.xlu0.b32.cont [6/16] %v6698, 128
          %7040 = vxpose.xlu0.b32.cont [7/16] %v6730, 128
          %7041 = vxpose.xlu0.b32.cont [8/16] %v6762, 128
          %7042 = vxpose.xlu0.b32.cont [9/16] %v6794, 128
          %7043 = vxpose.xlu0.b32.cont [10/16] %v6826, 128
          %7044 = vxpose.xlu0.b32.cont [11/16] %v6858, 128
          %7045 = vxpose.xlu0.b32.cont [12/16] %v6890, 128
          %7046 = vxpose.xlu0.b32.cont [13/16] %v6922, 128
          %7047 = vxpose.xlu0.b32.cont [14/16] %v6954, 128
          %7048 = vxpose.xlu0.b32.cont [15/16] %v6986, 128
          %7049 = vxpose.xlu0.b32.end [16/16] %v7018, 128
          %v7050 = vpop.trf.xlu0
          %v7051 = vpop.trf.xlu0
          %v7052 = vpop.trf.xlu0
          %v7053 = vpop.trf.xlu0
          %v7054 = vpop.trf.xlu0
          %v7055 = vpop.trf.xlu0
          %v7056 = vpop.trf.xlu0
          %v7057 = vpop.trf.xlu0
          %v7058 = vpop.trf.xlu0
          %v7059 = vpop.trf.xlu0
          %v7060 = vpop.trf.xlu0
          %v7061 = vpop.trf.xlu0
          %v7062 = vpop.trf.xlu0
          %v7063 = vpop.trf.xlu0
          %v7064 = vpop.trf.xlu0
          %v7065 = vpop.trf.xlu0
          %v7066 = vpack.c.bf16 %v7051, %v7050
          %v7067 = vpack.c.bf16 %v7053, %v7052
          %v7068 = vld [vmem:[#allocation15] sm:$0xf]
          %v7069 = vld [vmem:[#allocation15 + $0x4] sm:$0xf]
          %v7070 = vld [vmem:[#allocation15 + $0x8] sm:$0xf]
          %v7071 = vld [vmem:[#allocation15 + $0xc] sm:$0xf]
          %v7072 = vld [vmem:[#allocation15 + $0x10] sm:$0xf]
          %v7073 = vld [vmem:[#allocation15 + $0x14] sm:$0xf]
          %v7074 = vld [vmem:[#allocation15 + $0x18] sm:$0xf]
          %v7075 = vld [vmem:[#allocation15 + $0x1c] sm:$0xf]
          %v7076 = vld [vmem:[#allocation15 + $0x20] sm:$0xf]
          %v7077 = vld [vmem:[#allocation15 + $0x24] sm:$0xf]
          %v7078 = vld [vmem:[#allocation15 + $0x28] sm:$0xf]
          %v7079 = vld [vmem:[#allocation15 + $0x2c] sm:$0xf]
          %v7080 = vld [vmem:[#allocation15 + $0x30] sm:$0xf]
          %v7081 = vld [vmem:[#allocation15 + $0x34] sm:$0xf]
          %v7082 = vld [vmem:[#allocation15 + $0x38] sm:$0xf]
          %v7083 = vld [vmem:[#allocation15 + $0x3c] sm:$0xf]
          %v7084 = vld [vmem:[%s9] sm:$0x1]
          %v7085 = vunpack.c.l.bf16 %v7084
          %v7086 = vlaneseq
          %v7087 = vshrl.u32 %v7086, 7
          %v7088 = vsub.s32 0, %v7087
          %v7089 = vrot.slane %v7085, %v7088
          %v7106 = vunpack.c.l.b16 %v7068
          %v7107 = vunpack.c.l.b16 %v7069
          %v7108 = vunpack.c.l.b16 %v7070
          %v7109 = vunpack.c.l.b16 %v7071
          %v7110 = vunpack.c.l.b16 %v7072
          %v7111 = vunpack.c.l.b16 %v7073
          %v7112 = vunpack.c.l.b16 %v7074
          %v7113 = vunpack.c.l.b16 %v7075
          %v7114 = vunpack.c.l.b16 %v7076
          %v7115 = vunpack.c.l.b16 %v7077
          %v7116 = vunpack.c.l.b16 %v7078
          %v7117 = vunpack.c.l.b16 %v7079
          %v7118 = vunpack.c.l.b16 %v7080
          %v7119 = vunpack.c.l.b16 %v7081
          %v7120 = vunpack.c.l.b16 %v7082
          %v7121 = vunpack.c.l.b16 %v7083
          %v7122 = vpack.c.b16 %v7107, %v7106
          %v7123 = vpack.c.b16 %v7109, %v7108
          %v7124 = vpack.c.b16 %v7111, %v7110
          %v7125 = vpack.c.b16 %v7113, %v7112
          %v7126 = vpack.c.b16 %v7115, %v7114
          %v7127 = vpack.c.b16 %v7117, %v7116
          %v7128 = vpack.c.b16 %v7119, %v7118
          %v7129 = vpack.c.b16 %v7121, %v7120
          %7138 = vmatprep.subr.bf16.mxu0 0
          %7139 = vmatpush1.bf16.msra.mxu0 %v7122
          %7140 = vmatprep.subr.bf16.mxu0 0
          %7141 = vmatpush1.bf16.msra.mxu0 %v7123
          %7142 = vmatprep.subr.bf16.mxu0 0
          %7143 = vmatpush1.bf16.msra.mxu0 %v7124
          %7144 = vmatprep.subr.bf16.mxu0 0
          %7145 = vmatpush1.bf16.msra.mxu0 %v7125
          %7146 = vmatprep.subr.bf16.mxu0 0
          %7147 = vmatpush1.bf16.msra.mxu0 %v7126
          %7148 = vmatprep.subr.bf16.mxu0 0
          %7149 = vmatpush1.bf16.msra.mxu0 %v7127
          %7150 = vmatprep.subr.bf16.mxu0 0
          %7151 = vmatpush1.bf16.msra.mxu0 %v7128
          %7152 = vmatprep.subr.bf16.mxu0 0
          %7153 = vmatpush1.bf16.msra.mxu0 %v7129
          %7154 = vmatprep.subr.bf16.mxu0 0
          %7155 = vmatpush1.bf16.msra.mxu0 0
          %7156 = vmatprep.subr.bf16.mxu0 0
          %7157 = vmatpush1.bf16.msra.mxu0 0
          %7158 = vmatprep.subr.bf16.mxu0 0
          %7159 = vmatpush1.bf16.msra.mxu0 0
          %7160 = vmatprep.subr.bf16.mxu0 0
          %7161 = vmatpush1.bf16.msra.mxu0 0
          %7162 = vmatprep.subr.bf16.mxu0 0
          %7163 = vmatpush1.bf16.msra.mxu0 0
          %7164 = vmatprep.subr.bf16.mxu0 0
          %7165 = vmatpush1.bf16.msra.mxu0 0
          %7166 = vmatprep.subr.bf16.mxu0 0
          %7167 = vmatpush1.bf16.msra.mxu0 0
          %7168 = vmatprep.subr.bf16.mxu0 0
          %7169 = vmatpush1.bf16.msra.mxu0 0
          %7170 = vmatprep.mubr.bf16.mxu0 0
          %7171 = vmatmul.mubr.bf16.gmra.mrb[0].mxu0 %v7066
          %v7172 = vpop.f32.mrb[0].mxu0
          %v7173 = vadd.f32 %v7089, %v7172
          %v7174 = vpop.f32.mrb[0].mxu0
          %v7175 = vpop.f32.mrb[0].mxu0
          %v7176 = vadd.f32 %v7089, %v7175
          %v7177 = vpop.f32.mrb[0].mxu0
          %7178 = vmatprep.mubr.bf16.mxu0 0
          %7179 = vmatmul.mubr.bf16.gmra.mrb[0].mxu0 %v7067
          %v7180 = vpop.f32.mrb[0].mxu0
          %v7181 = vadd.f32 %v7089, %v7180
          %v7182 = vpop.f32.mrb[0].mxu0
          %v7183 = vpop.f32.mrb[0].mxu0
          %v7184 = vadd.f32 %v7089, %v7183
          %v7185 = vpop.f32.mrb[0].mxu0
          %7186 = vdwg.mxu0
          %v7187 = vld [vmem:[%s548] sm:$0xff]
          %v7188 = vld [vmem:[%s548 + $0x8] sm:$0xff]
          %v7189 = vld [vmem:[%s548 + $0x10] sm:$0xff]
          %v7190 = vld [vmem:[%s548 + $0x18] sm:$0xff]
          %v7191 = vadd.f32 %v7173, %v7187
          %v7192 = vadd.f32 %v7176, %v7188
          %v7193 = vadd.f32 %v7181, %v7189
          %v7194 = vadd.f32 %v7184, %v7190
          %7195 = vadd.xlane.f32.xlu0 %v7191
          %v7196 = vpop.xlane.xlu0 %7195
          %7197 = vadd.xlane.f32.xlu0 %v7192
          %v7198 = vpop.xlane.xlu0 %7197
          %7199 = vadd.xlane.f32.xlu0 %v7193
          %v7200 = vpop.xlane.xlu0 %7199
          %7201 = vadd.xlane.f32.xlu0 %v7194
          %v7202 = vpop.xlane.xlu0 %7201
          %v7203 = vmul.f32 %v7196, 0.0078125
          %v7204 = vmul.f32 %v7198, 0.0078125
          %v7205 = vmul.f32 %v7200, 0.0078125
          %v7206 = vmul.f32 %v7202, 0.0078125
          %v7207 = vmul.f32 %v7191, %v7191
          %v7208 = vmul.f32 %v7192, %v7192
          %v7209 = vmul.f32 %v7193, %v7193
          %v7210 = vmul.f32 %v7194, %v7194
          %7211 = vadd.xlane.f32.xlu0 %v7207
          %v7212 = vpop.xlane.xlu0 %7211
          %7213 = vadd.xlane.f32.xlu0 %v7208
          %v7214 = vpop.xlane.xlu0 %7213
          %7215 = vadd.xlane.f32.xlu0 %v7209
          %v7216 = vpop.xlane.xlu0 %7215
          %7217 = vadd.xlane.f32.xlu0 %v7210
          %v7218 = vpop.xlane.xlu0 %7217
          %v7219 = vmul.f32 %v7212, 0.0078125
          %v7220 = vmul.f32 %v7214, 0.0078125
          %v7221 = vmul.f32 %v7216, 0.0078125
          %v7222 = vmul.f32 %v7218, 0.0078125
          %v7223 = vmul.f32 %v7203, %v7203
          %v7224 = vmul.f32 %v7204, %v7204
          %v7225 = vmul.f32 %v7205, %v7205
          %v7226 = vmul.f32 %v7206, %v7206
          %v7227 = vsub.f32 %v7219, %v7223
          %v7228 = vsub.f32 %v7220, %v7224
          %v7229 = vsub.f32 %v7221, %v7225
          %v7230 = vsub.f32 %v7222, %v7226
          %v7231 = vsub.f32 %v7191, %v7203
          %v7232 = vsub.f32 %v7192, %v7204
          %v7233 = vsub.f32 %v7193, %v7205
          %v7234 = vsub.f32 %v7194, %v7206
          %v7235 = vadd.f32 %v7227, 1e-05
          %v7236 = vadd.f32 %v7228, 1e-05
          %v7237 = vadd.f32 %v7229, 1e-05
          %v7238 = vadd.f32 %v7230, 1e-05
          %v7239 = vrsqrt.pop %v7235
          %v7240 = vrsqrt.pop %v7236
          %v7241 = vrsqrt.pop %v7237
          %v7242 = vrsqrt.pop %v7238
          %v7243 = vmul.f32 %v7231, %v7239
          %v7244 = vmul.f32 %v7232, %v7240
          %v7245 = vmul.f32 %v7233, %v7241
          %v7246 = vmul.f32 %v7234, %v7242
          %v7247 = vld [vmem:[%s10] sm:$0x1]
          %v7248 = vunpack.c.l.bf16 %v7247
          %v7249 = vlaneseq
          %v7250 = vshrl.u32 %v7249, 7
          %v7251 = vsub.s32 0, %v7250
          %v7252 = vrot.slane %v7248, %v7251
          %v7253 = vmul.f32 %v7243, %v7252
          %v7254 = vmul.f32 %v7244, %v7252
          %v7255 = vmul.f32 %v7245, %v7252
          %v7256 = vmul.f32 %v7246, %v7252
          %v7257 = vld [vmem:[%s11] sm:$0x1]
          %v7258 = vunpack.c.l.bf16 %v7257
          %v7259 = vlaneseq
          %v7260 = vshrl.u32 %v7259, 7
          %v7261 = vsub.s32 0, %v7260
          %v7262 = vrot.slane %v7258, %v7261
          %v7263 = vadd.f32 %v7253, %v7262
          %v7264 = vadd.f32 %v7254, %v7262
          %v7265 = vadd.f32 %v7255, %v7262
          %v7266 = vadd.f32 %v7256, %v7262
          %v7267 = vpack.c.bf16 %v7264, %v7263
          %v7268 = vpack.c.bf16 %v7266, %v7265
          %v7269 = vld [vmem:[#allocation17] sm:$0xf]
          %v7270 = vld [vmem:[#allocation17 + $0x4] sm:$0xf]
          %v7271 = vld [vmem:[#allocation17 + $0x8] sm:$0xf]
          %v7272 = vld [vmem:[#allocation17 + $0xc] sm:$0xf]
          %v7273 = vld [vmem:[#allocation17 + $0x10] sm:$0xf]
          %v7274 = vld [vmem:[#allocation17 + $0x14] sm:$0xf]
          %v7275 = vld [vmem:[#allocation17 + $0x18] sm:$0xf]
          %v7276 = vld [vmem:[#allocation17 + $0x1c] sm:$0xf]
          %v7277 = vld [vmem:[#allocation17 + $0x20] sm:$0xf]
          %v7278 = vld [vmem:[#allocation17 + $0x24] sm:$0xf]
          %v7279 = vld [vmem:[#allocation17 + $0x28] sm:$0xf]
          %v7280 = vld [vmem:[#allocation17 + $0x2c] sm:$0xf]
          %v7281 = vld [vmem:[#allocation17 + $0x30] sm:$0xf]
          %v7282 = vld [vmem:[#allocation17 + $0x34] sm:$0xf]
          %v7283 = vld [vmem:[#allocation17 + $0x38] sm:$0xf]
          %v7284 = vld [vmem:[#allocation17 + $0x3c] sm:$0xf]
          %v7285 = vld [vmem:[%s13] sm:$0x1]
          %v7286 = vunpack.c.l.bf16 %v7285
          %v7287 = vlaneseq
          %v7288 = vshrl.u32 %v7287, 7
          %v7289 = vsub.s32 0, %v7288
          %v7290 = vrot.slane %v7286, %v7289
          %v7307 = vunpack.c.l.b16 %v7269
          %v7308 = vunpack.c.l.b16 %v7270
          %v7309 = vunpack.c.l.b16 %v7271
          %v7310 = vunpack.c.l.b16 %v7272
          %v7311 = vunpack.c.l.b16 %v7273
          %v7312 = vunpack.c.l.b16 %v7274
          %v7313 = vunpack.c.l.b16 %v7275
          %v7314 = vunpack.c.l.b16 %v7276
          %v7315 = vunpack.c.l.b16 %v7277
          %v7316 = vunpack.c.l.b16 %v7278
          %v7317 = vunpack.c.l.b16 %v7279
          %v7318 = vunpack.c.l.b16 %v7280
          %v7319 = vunpack.c.l.b16 %v7281
          %v7320 = vunpack.c.l.b16 %v7282
          %v7321 = vunpack.c.l.b16 %v7283
          %v7322 = vunpack.c.l.b16 %v7284
          %v7323 = vpack.c.b16 %v7308, %v7307
          %v7324 = vpack.c.b16 %v7310, %v7309
          %v7325 = vpack.c.b16 %v7312, %v7311
          %v7326 = vpack.c.b16 %v7314, %v7313
          %v7327 = vpack.c.b16 %v7316, %v7315
          %v7328 = vpack.c.b16 %v7318, %v7317
          %v7329 = vpack.c.b16 %v7320, %v7319
          %v7330 = vpack.c.b16 %v7322, %v7321
          %7339 = vmatprep.subr.bf16.mxu0 0
          %7340 = vmatpush1.bf16.msra.mxu0 %v7323
          %7341 = vmatprep.subr.bf16.mxu0 0
          %7342 = vmatpush1.bf16.msra.mxu0 %v7324
          %7343 = vmatprep.subr.bf16.mxu0 0
          %7344 = vmatpush1.bf16.msra.mxu0 %v7325
          %7345 = vmatprep.subr.bf16.mxu0 0
          %7346 = vmatpush1.bf16.msra.mxu0 %v7326
          %7347 = vmatprep.subr.bf16.mxu0 0
          %7348 = vmatpush1.bf16.msra.mxu0 %v7327
          %7349 = vmatprep.subr.bf16.mxu0 0
          %7350 = vmatpush1.bf16.msra.mxu0 %v7328
          %7351 = vmatprep.subr.bf16.mxu0 0
          %7352 = vmatpush1.bf16.msra.mxu0 %v7329
          %7353 = vmatprep.subr.bf16.mxu0 0
          %7354 = vmatpush1.bf16.msra.mxu0 %v7330
          %7355 = vmatprep.subr.bf16.mxu0 0
          %7356 = vmatpush1.bf16.msra.mxu0 0
          %7357 = vmatprep.subr.bf16.mxu0 0
          %7358 = vmatpush1.bf16.msra.mxu0 0
          %7359 = vmatprep.subr.bf16.mxu0 0
          %7360 = vmatpush1.bf16.msra.mxu0 0
          %7361 = vmatprep.subr.bf16.mxu0 0
          %7362 = vmatpush1.bf16.msra.mxu0 0
          %7363 = vmatprep.subr.bf16.mxu0 0
          %7364 = vmatpush1.bf16.msra.mxu0 0
          %7365 = vmatprep.subr.bf16.mxu0 0
          %7366 = vmatpush1.bf16.msra.mxu0 0
          %7367 = vmatprep.subr.bf16.mxu0 0
          %7368 = vmatpush1.bf16.msra.mxu0 0
          %7369 = vmatprep.subr.bf16.mxu0 0
          %7370 = vmatpush1.bf16.msra.mxu0 0
          %7371 = vmatprep.mubr.bf16.mxu0 0
          %7372 = vmatmul.mubr.bf16.gmra.mrb[0].mxu0 %v7267
          %v7373 = vpop.f32.mrb[0].mxu0
          %v7374 = vadd.f32 %v7290, %v7373
          %v7375 = vpop.f32.mrb[0].mxu0
          %v7376 = vpop.f32.mrb[0].mxu0
          %v7377 = vadd.f32 %v7290, %v7376
          %v7378 = vpop.f32.mrb[0].mxu0
          %7379 = vmatprep.mubr.bf16.mxu0 0
          %7380 = vmatmul.mubr.bf16.gmra.mrb[0].mxu0 %v7268
          %v7381 = vpop.f32.mrb[0].mxu0
          %v7382 = vadd.f32 %v7290, %v7381
          %v7383 = vpop.f32.mrb[0].mxu0
          %v7384 = vpop.f32.mrb[0].mxu0
          %v7385 = vadd.f32 %v7290, %v7384
          %v7386 = vpop.f32.mrb[0].mxu0
          %7387 = vdwg.mxu0
          %7388 = vst [vmem:[%s626] sm:$0xff] %v7374
          %7389 = vst [vmem:[%s626 + $0x8] sm:$0xff] %v7377
          %7390 = vst [vmem:[%s626 + $0x10] sm:$0xff] %v7382
          %7391 = vst [vmem:[%s626 + $0x18] sm:$0xff] %v7385
        $region112: #{tpu_custom_call.1} parent=75 // pred_fallthru
          _
        %s7392 = sand.u32 %s373, 1
        %s7393 = scalar_lea.sflag [#allocation8], %s7392
        %s7394 = sand.u32 %s373, 1
        %s7395 = smul.addr %s7394, 32
        %s7396 = scalar_lea.vmem [#allocation18], %s7395
        // Predicated region
        $region113: #{tpu_custom_call.1} parent=75 // pred_check
          %p7397 = pneg %p383
        $region114: #{tpu_custom_call.1} parent=75 // pred_check_branch
          %7399 = sbr.rel (%p7397) target = $region116
        $region115: #{tpu_custom_call.1} parent=75 // pred_region
          %s7400 = smul.u32 4, %s42
          %s7402 = ssub.s32 512, 512
          %7403 = vsyncadd %s7393, %s7402
          %s7404 = smul.addr %s41, 8
          %s7405 = sadd.s32 %s7400, %s7404
          %s7406 = smul.addr %s7405, 128
          %s7407 = scalar_lea.hbm %s14, %s7406
          %s7408 = sshll.u32 %s7396, 4
          %s7409 = int_to_ptr.vmem [resolvable:$true] %s7408
          %7414 = dma.vmem_to_hbm [thread:$0]  %s7409, 512, %s7407, %s7393, 128, 128, 8
        $region116: #{tpu_custom_call.1} parent=75 // pred_fallthru
          _
      $region76: #{tpu_custom_call.1} parent=5 // pred_fallthru
        _
      %p7415 = scmp.le.s32.totalorder 2, %s31
      // Predicated region
      $region117: #{tpu_custom_call.1} parent=5 // pred_check
        %p7416 = pneg %p7415
      $region118: #{tpu_custom_call.1} parent=5 // pred_check_branch
        %7418 = sbr.rel (%p7416) target = $region120
      $region119: #{tpu_custom_call.1} parent=5 // pred_region
        %s7419 = ssub.s32 %s31, 2
        // Predicated region
        $region121: #{tpu_custom_call.1} parent=119 // pred_check
          %p7420 = pneg %p389
        $region122: #{tpu_custom_call.1} parent=119 // pred_check_branch
          %7422 = sbr.rel (%p7420) target = $region124
        $region123: #{tpu_custom_call.1} parent=119 // pred_region
          %s7423 = sand.u32 %s374, 1
          %s7424 = scalar_lea.sflag [#allocation8], %s7423
          %s7425 = sand.u32 %s374, 1
          %s7426 = smul.addr %s7425, 32
          %s7427 = scalar_lea.vmem [#allocation18], %s7426
          %7428 = dma.done %s7424, 512
        $region124: #{tpu_custom_call.1} parent=119 // pred_fallthru
          _
      $region120: #{tpu_custom_call.1} parent=5 // pred_fallthru
        _
    $region6: #{tpu_custom_call.1} parent=1 // loop_footer
      %s35 = sadd.s32 1, %s31
    $region7: #{tpu_custom_call.1} parent=1 // loop_footer_branch
      %30 = sbr.rel target = $region3
    $region8: #{tpu_custom_call.1} parent=1 // loop_exit
      _
    %7429 = vsyncpa [#allocation7], 1
    %s7430 = scalar_lea.sflag [#allocation7], 1
    %7431 = vsyncpa %s7430, 1
    %7432 = vsyncpa [#allocation10], 1
    %s7433 = scalar_lea.sflag [#allocation10], 1
    %7434 = vsyncpa %s7433, 1
    %7435 = vsyncpa [#allocation13], 1
    %7436 = vsyncpa [#allocation16], 1
    %7437 = vsyncpa [#allocation8], 1
    %s7438 = scalar_lea.sflag [#allocation8], 1
    %7439 = vsyncpa %s7438, 1

</llo_original>
